<compile_context>
chip_gen: v6e
topology: v6e:2x2x1
jax: 0.10.0
libtpu: 0.0.40
codegen_flags: <defaults>
</compile_context>

<pallas_src>
import math
from functools import partial

import numpy as np
import jax
import jax.numpy as jnp
from jax import lax
from jax.experimental import pallas as pl
from jax.experimental.pallas import tpu as pltpu


# ----------------------------------------------------------------------------
# Cluster centers (host side, identical to the PyTorch module).
# ----------------------------------------------------------------------------
def _create_cluster_centers(num_classes, num_features, cluster_separation):
    centers = []
    for i in range(num_classes):
        center = np.zeros(num_features, dtype=np.float32)
        if i == 0:
            pass
        elif i <= num_features:
            center[i - 1] = cluster_separation
        else:
            n_dims = min(i - 1, num_features)
            center[:n_dims] = cluster_separation / np.sqrt(n_dims)
        centers.append(center)
    return np.stack(centers, axis=0)


# ----------------------------------------------------------------------------
# Stateless in-kernel RNG: murmur-style 32-bit mixer + Box-Muller.
# (All constants are numpy scalars / Python numbers -> jaxpr literals, never
#  captured jax.Array constants.)
# ----------------------------------------------------------------------------
def _fmix32(h):
    h = h ^ (h >> 16)
    h = h * np.uint32(0x85EBCA6B)
    h = h ^ (h >> 13)
    h = h * np.uint32(0xC2B2AE35)
    h = h ^ (h >> 16)
    return h


def _bits_to_unit(bits):
    # top 23 bits -> f32 in [0, 1) via exponent trick (exact, no int->fp cvt)
    mant = (bits >> 9) | np.uint32(0x3F800000)
    return lax.bitcast_convert_type(mant, jnp.float32) - 1.0


def _gen_x_tile(labels_tile, centers, seed_u32, tile_idx, *,
                tile_rows, f_pad, num_classes, noise_std):
    """center[label] + N(0, noise_std), recomputable bit-exactly per tile."""
    # one-hot(labels) @ centers on the MXU (one-hot never touches HBM)
    onehot = (labels_tile == lax.broadcasted_iota(
        jnp.int32, (tile_rows, num_classes), 1)).astype(jnp.float32)
    x = jnp.dot(onehot, centers, preferred_element_type=jnp.float32)

    # per-element counter (pure function of global row/col + seed)
    row = tile_idx * tile_rows + lax.broadcasted_iota(
        jnp.int32, (tile_rows, f_pad), 0)
    col = lax.broadcasted_iota(jnp.int32, (tile_rows, f_pad), 1)
    ctr = (row * f_pad + col).astype(jnp.uint32) * np.uint32(0x9E3779B9)

    k1 = _fmix32(seed_u32 ^ np.uint32(0x3C6EF372))
    k2 = _fmix32(seed_u32 ^ np.uint32(0xBB67AE85))
    u1 = 1.0 - _bits_to_unit(_fmix32(ctr + k1))          # (0, 1]
    u2 = _bits_to_unit(_fmix32(ctr + k2))                # [0, 1)

    r = jnp.sqrt(-2.0 * jnp.log(u1))
    z = r * jnp.cos((2.0 * math.pi) * u2)
    return x + noise_std * z


# ----------------------------------------------------------------------------
# Pass 1: per-feature sum / sumsq reduction over the seq grid (-> mean, rsqrt).
# ----------------------------------------------------------------------------
def _stats_kernel(seed_ref, labels_ref, centers_ref, mean_ref, inv_std_ref, *,
                  tile_rows, f_pad, num_classes, noise_std, total_rows):
    t = pl.program_id(0)

    @pl.when(t == 0)
    def _init():
        mean_ref[...] = jnp.zeros_like(mean_ref)
        inv_std_ref[...] = jnp.zeros_like(inv_std_ref)

    x = _gen_x_tile(labels_ref[...], centers_ref[...], seed_ref[0], t,
                    tile_rows=tile_rows, f_pad=f_pad,
                    num_classes=num_classes, noise_std=noise_std)
    mean_ref[...] += jnp.sum(x, axis=0, keepdims=True)          # running sum
    inv_std_ref[...] += jnp.sum(x * x, axis=0, keepdims=True)   # running sumsq

    @pl.when(t == pl.num_programs(0) - 1)
    def _finalize():
        inv_n = 1.0 / float(total_rows)
        mean = mean_ref[...] * inv_n
        var = jnp.maximum(inv_std_ref[...] * inv_n - mean * mean, 0.0)
        mean_ref[...] = mean
        # sklearn StandardScaler: zero-variance feature -> scale of 1
        inv_std_ref[...] = jnp.where(var > 0.0, lax.rsqrt(var), 1.0)


# ----------------------------------------------------------------------------
# Pass 2: regenerate the identical tile and write the standardized output.
# ----------------------------------------------------------------------------
def _normalize_kernel(seed_ref, labels_ref, centers_ref, mean_ref, inv_std_ref,
                      x_ref, *, tile_rows, f_pad, num_classes, noise_std):
    t = pl.program_id(0)
    x = _gen_x_tile(labels_ref[...], centers_ref[...], seed_ref[0], t,
                    tile_rows=tile_rows, f_pad=f_pad,
                    num_classes=num_classes, noise_std=noise_std)
    x_ref[...] = (x - mean_ref[...]) * inv_std_ref[...]


# ----------------------------------------------------------------------------
# Wrapper.
# ----------------------------------------------------------------------------
def _pick_tile_rows(seq_len, target):
    if seq_len <= target:
        return seq_len                       # single full-extent block
    for tr in range(min(target, seq_len), 7, -1):
        if seq_len % tr == 0 and tr % 8 == 0:
            return tr
    return seq_len                           # fallback: single block


def direct_clusters_scm(key, *,
                        seq_len: int = 1024,
                        num_features: int = 100,
                        num_classes: int = 10,
                        cluster_separation: float = 3.0,
                        within_cluster_std: float = 0.2,
                        num_outputs: int = 1,
                        tile_rows: int = 512):
    # lane-dense feature axis (pad to a multiple of 128, slice at the end)
    f_pad = ((num_features + 127) // 128) * 128
    centers_np = _create_cluster_centers(num_classes, num_features,
                                         cluster_separation)
    centers_np = np.pad(centers_np, ((0, 0), (0, f_pad - num_features)))
    centers = jnp.asarray(centers_np, jnp.float32)

    # balanced labels + random permutation (tiny glue, like the reference)
    spc, extra = divmod(seq_len, num_classes)
    labels_np = np.concatenate(
        [np.full(spc + (1 if c < extra else 0), c, np.int32)
         for c in range(num_classes)])
    k_perm, k_seed = jax.random.split(key)
    labels = jax.random.permutation(k_perm, jnp.asarray(labels_np))
    labels2d = labels.reshape(seq_len, 1)

    # kernel RNG seed lives in SMEM (no recompile when the key changes)
    seed = jax.random.randint(k_seed, (1,), 0, np.iinfo(np.int32).max,
                              dtype=jnp.int32).astype(jnp.uint32)

    # combined noise std: within-cluster draw + the extra 0.01 jitter
    noise_std = float(math.sqrt(within_cluster_std ** 2 + 0.01 ** 2))

    tr = _pick_tile_rows(seq_len, tile_rows)
    grid_t = seq_len // tr

    seed_spec = pl.BlockSpec(memory_space=pltpu.MemorySpace.SMEM)
    labels_spec = pl.BlockSpec((tr, 1), lambda t: (t, 0))
    centers_spec = pl.BlockSpec((num_classes, f_pad), lambda t: (0, 0))
    stat_spec = pl.BlockSpec((1, f_pad), lambda t: (0, 0))
    x_spec = pl.BlockSpec((tr, f_pad), lambda t: (t, 0))

    # ---- pass 1: per-feature mean / inv_std ---------------------------------
    stats_kernel = partial(_stats_kernel, tile_rows=tr, f_pad=f_pad,
                           num_classes=num_classes, noise_std=noise_std,
                           total_rows=seq_len)
    mean, inv_std = pl.pallas_call(
        stats_kernel,
        grid=(grid_t,),
        in_specs=[seed_spec, labels_spec, centers_spec],
        out_specs=[stat_spec, stat_spec],
        out_shape=[jax.ShapeDtypeStruct((1, f_pad), jnp.float32),
                   jax.ShapeDtypeStruct((1, f_pad), jnp.float32)],
        compiler_params=pltpu.CompilerParams(
            dimension_semantics=("arbitrary",),          # reduction axis
            vmem_limit_bytes=32 * 1024 * 1024),
    )(seed, labels2d, centers)

    # ---- pass 2: regenerate + standardize + write ----------------------------
    norm_kernel = partial(_normalize_kernel, tile_rows=tr, f_pad=f_pad,
                          num_classes=num_classes, noise_std=noise_std)
    x_pad = pl.pallas_call(
        norm_kernel,
        grid=(grid_t,),
        in_specs=[seed_spec, labels_spec, centers_spec, stat_spec, stat_spec],
        out_specs=x_spec,
        out_shape=jax.ShapeDtypeStruct((seq_len, f_pad), jnp.float32),
        compiler_params=pltpu.CompilerParams(
            dimension_semantics=("parallel",),           # shards on v7x 2 TCs
            vmem_limit_bytes=32 * 1024 * 1024),
    )(seed, labels2d, centers, mean, inv_std)

    x = x_pad if f_pad == num_features else x_pad[:, :num_features]
    y = labels.astype(jnp.float32)
    if num_outputs == 1:
        y = y[:, None]
    return x, y


if __name__ == "__main__":
    # module defaults: seq_len=1024, num_features=100, num_classes=10
    SEQ_LEN = 1024
    NUM_FEATURES = 100
    NUM_CLASSES = 10

    key = jax.random.PRNGKey(0)
    X, y = direct_clusters_scm(key,
                               seq_len=SEQ_LEN,
                               num_features=NUM_FEATURES,
                               num_classes=NUM_CLASSES,
                               cluster_separation=3.0,
                               within_cluster_std=0.2,
                               num_outputs=1)
    X = jax.block_until_ready(X)
    y = jax.block_until_ready(y)

    assert X.shape == (SEQ_LEN, NUM_FEATURES) and X.dtype == jnp.float32
    assert y.shape == (SEQ_LEN, 1) and y.dtype == jnp.float32

    Xn = np.asarray(X)
    yn = np.asarray(y).ravel().astype(np.int32)
    assert np.all(np.isfinite(Xn))
    # StandardScaler semantics: per-feature mean ~0, population std ~1
    assert np.allclose(Xn.mean(axis=0), 0.0, atol=2e-4)
    assert np.allclose(Xn.std(axis=0), 1.0, atol=2e-3)
    # balanced labels covering all classes
    assert yn.min() == 0 and yn.max() == NUM_CLASSES - 1

    print("KERNEL_OK")
</pallas_src>

<mosaic_0001>
module attributes {stable_mosaic.version = 11 : i64} {
  func.func @_stats_kernel(%arg0: i32, %arg1: memref<1xi32, #tpu.memory_space<smem>>, %arg2: memref<512x1xi32, #tpu.memory_space<vmem>>, %arg3: memref<10x128xf32, #tpu.memory_space<vmem>>, %arg4: memref<1x128xf32, #tpu.memory_space<vmem>>, %arg5: memref<1x128xf32, #tpu.memory_space<vmem>>) attributes {dimension_semantics = [#tpu.dimension_semantics<arbitrary>], iteration_bounds = array<i64: 2>, scalar_prefetch = 0 : i64, scratch_operands = 0 : i64, tpu.core_type = #tpu.core_type<tc>, window_params = [{transform_indices = @transform_0, window_bounds = array<i64: 1>}, {transform_indices = @transform_1, window_bounds = array<i64: 512, 1>}, {pipeline_mode = #tpu.pipeline_mode<synchronous>, transform_indices = @transform_2, window_bounds = array<i64: 10, 128>}, {pipeline_mode = #tpu.pipeline_mode<synchronous>, transform_indices = @transform_3, window_bounds = array<i64: 1, 128>}, {pipeline_mode = #tpu.pipeline_mode<synchronous>, transform_indices = @transform_4, window_bounds = array<i64: 1, 128>}]} {
    %c0_i32 = arith.constant 0 : i32
    %0 = arith.cmpi eq, %arg0, %c0_i32 : i32
    %1 = arith.extui %0 : i1 to i32
    %c0_i32_0 = arith.constant 0 : i32
    %2 = arith.cmpi ne, %1, %c0_i32_0 : i32
    scf.if %2 {
      %cst_40 = arith.constant 0.000000e+00 : f32
      %111 = vector.broadcast %cst_40 : f32 to vector<1x128xf32>
      %c0_41 = arith.constant 0 : index
      %c0_42 = arith.constant 0 : index
      %112 = vector.load %arg4[%c0_41, %c0_42] : memref<1x128xf32, #tpu.memory_space<vmem>>, vector<1x128xf32>
      tpu.vector_store %arg4[%c0_41, %c0_42], %111 {strides = array<i32>} : memref<1x128xf32, #tpu.memory_space<vmem>>, vector<1x128xf32>,
      %cst_43 = arith.constant 0.000000e+00 : f32
      %113 = vector.broadcast %cst_43 : f32 to vector<1x128xf32>
      %c0_44 = arith.constant 0 : index
      %c0_45 = arith.constant 0 : index
      %114 = vector.load %arg5[%c0_44, %c0_45] : memref<1x128xf32, #tpu.memory_space<vmem>>, vector<1x128xf32>
      tpu.vector_store %arg5[%c0_44, %c0_45], %113 {strides = array<i32>} : memref<1x128xf32, #tpu.memory_space<vmem>>, vector<1x128xf32>,
    } else {
    }
    %c0 = arith.constant 0 : index
    %c0_1 = arith.constant 0 : index
    %3 = vector.load %arg2[%c0, %c0_1] : memref<512x1xi32, #tpu.memory_space<vmem>>, vector<512x1xi32>
    %c0_2 = arith.constant 0 : index
    %c0_3 = arith.constant 0 : index
    %4 = vector.load %arg3[%c0_2, %c0_3] : memref<10x128xf32, #tpu.memory_space<vmem>>, vector<10x128xf32>
    %c0_4 = arith.constant 0 : index
    %5 = memref.load %arg1[%c0_4] : memref<1xi32, #tpu.memory_space<smem>>
    %6 = tpu.iota {dimensions = array<i32: 1>} : vector<512x10xi32>
    %7 = vector.broadcast %3 : vector<512x1xi32> to vector<512x10xi32>
    %8 = arith.cmpi eq, %7, %6 : vector<512x10xi32>
    %9 = arith.extui %8 : vector<512x10xi1> to vector<512x10xi32>
    %10 = arith.sitofp %9 : vector<512x10xi32> to vector<512x10xf32>
    %cst = arith.constant dense<0.000000e+00> : vector<512x128xf32>
    %11 = tpu.matmul %10, %4, %cst {dimension_numbers = #tpu.dot_dimension_numbers<[1], [0], [0], [1], [0, 0, 1, 1], [], []>} : vector<512x10xf32>, vector<10x128xf32>, vector<512x128xf32> -> vector<512x128xf32>
    %c512_i32 = arith.constant 512 : i32
    %12 = arith.muli %arg0, %c512_i32 : i32
    %13 = tpu.iota {dimensions = array<i32: 0>} : vector<512x128xi32>
    %14 = vector.broadcast %12 : i32 to vector<512x128xi32>
    %15 = arith.addi %14, %13 : vector<512x128xi32>
    %16 = tpu.iota {dimensions = array<i32: 1>} : vector<512x128xi32>
    %c128_i32 = arith.constant 128 : i32
    %17 = vector.broadcast %c128_i32 : i32 to vector<512x128xi32>
    %18 = arith.muli %15, %17 : vector<512x128xi32>
    %19 = arith.addi %18, %16 : vector<512x128xi32>
    %c-1640531527_i32 = arith.constant -1640531527 : i32
    %20 = vector.broadcast %c-1640531527_i32 : i32 to vector<512x128xi32>
    %21 = arith.muli %19, %20 : vector<512x128xi32>
    %c1013904242_i32 = arith.constant 1013904242 : i32
    %22 = arith.xori %5, %c1013904242_i32 : i32
    %c16_i32 = arith.constant 16 : i32
    %23 = arith.shrui %22, %c16_i32 : i32
    %24 = arith.xori %22, %23 : i32
    %c-2048144789_i32 = arith.constant -2048144789 : i32
    %25 = arith.muli %24, %c-2048144789_i32 : i32
    %c13_i32 = arith.constant 13 : i32
    %26 = arith.shrui %25, %c13_i32 : i32
    %27 = arith.xori %25, %26 : i32
    %c-1028477387_i32 = arith.constant -1028477387 : i32
    %28 = arith.muli %27, %c-1028477387_i32 : i32
    %c16_i32_5 = arith.constant 16 : i32
    %29 = arith.shrui %28, %c16_i32_5 : i32
    %30 = arith.xori %28, %29 : i32
    %c-1150833019_i32 = arith.constant -1150833019 : i32
    %31 = arith.xori %5, %c-1150833019_i32 : i32
    %c16_i32_6 = arith.constant 16 : i32
    %32 = arith.shrui %31, %c16_i32_6 : i32
    %33 = arith.xori %31, %32 : i32
    %c-2048144789_i32_7 = arith.constant -2048144789 : i32
    %34 = arith.muli %33, %c-2048144789_i32_7 : i32
    %c13_i32_8 = arith.constant 13 : i32
    %35 = arith.shrui %34, %c13_i32_8 : i32
    %36 = arith.xori %34, %35 : i32
    %c-1028477387_i32_9 = arith.constant -1028477387 : i32
    %37 = arith.muli %36, %c-1028477387_i32_9 : i32
    %c16_i32_10 = arith.constant 16 : i32
    %38 = arith.shrui %37, %c16_i32_10 : i32
    %39 = arith.xori %37, %38 : i32
    %40 = vector.broadcast %30 : i32 to vector<512x128xi32>
    %41 = arith.addi %21, %40 : vector<512x128xi32>
    %c16_i32_11 = arith.constant 16 : i32
    %42 = vector.broadcast %c16_i32_11 : i32 to vector<512x128xi32>
    %43 = arith.shrui %41, %42 : vector<512x128xi32>
    %44 = arith.xori %41, %43 : vector<512x128xi32>
    %c-2048144789_i32_12 = arith.constant -2048144789 : i32
    %45 = vector.broadcast %c-2048144789_i32_12 : i32 to vector<512x128xi32>
    %46 = arith.muli %44, %45 : vector<512x128xi32>
    %c13_i32_13 = arith.constant 13 : i32
    %47 = vector.broadcast %c13_i32_13 : i32 to vector<512x128xi32>
    %48 = arith.shrui %46, %47 : vector<512x128xi32>
    %49 = arith.xori %46, %48 : vector<512x128xi32>
    %c-1028477387_i32_14 = arith.constant -1028477387 : i32
    %50 = vector.broadcast %c-1028477387_i32_14 : i32 to vector<512x128xi32>
    %51 = arith.muli %49, %50 : vector<512x128xi32>
    %c16_i32_15 = arith.constant 16 : i32
    %52 = vector.broadcast %c16_i32_15 : i32 to vector<512x128xi32>
    %53 = arith.shrui %51, %52 : vector<512x128xi32>
    %54 = arith.xori %51, %53 : vector<512x128xi32>
    %c9_i32 = arith.constant 9 : i32
    %55 = vector.broadcast %c9_i32 : i32 to vector<512x128xi32>
    %56 = arith.shrui %54, %55 : vector<512x128xi32>
    %c1065353216_i32 = arith.constant 1065353216 : i32
    %57 = vector.broadcast %c1065353216_i32 : i32 to vector<512x128xi32>
    %58 = arith.ori %56, %57 : vector<512x128xi32>
    %59 = tpu.bitcast %58 : vector<512x128xi32> -> vector<512x128xf32>
    %cst_16 = arith.constant 1.000000e+00 : f32
    %60 = vector.broadcast %cst_16 : f32 to vector<512x128xf32>
    %61 = arith.subf %59, %60 : vector<512x128xf32>
    %cst_17 = arith.constant 1.000000e+00 : f32
    %62 = vector.broadcast %cst_17 : f32 to vector<512x128xf32>
    %63 = arith.subf %62, %61 : vector<512x128xf32>
    %64 = vector.broadcast %39 : i32 to vector<512x128xi32>
    %65 = arith.addi %21, %64 : vector<512x128xi32>
    %c16_i32_18 = arith.constant 16 : i32
    %66 = vector.broadcast %c16_i32_18 : i32 to vector<512x128xi32>
    %67 = arith.shrui %65, %66 : vector<512x128xi32>
    %68 = arith.xori %65, %67 : vector<512x128xi32>
    %c-2048144789_i32_19 = arith.constant -2048144789 : i32
    %69 = vector.broadcast %c-2048144789_i32_19 : i32 to vector<512x128xi32>
    %70 = arith.muli %68, %69 : vector<512x128xi32>
    %c13_i32_20 = arith.constant 13 : i32
    %71 = vector.broadcast %c13_i32_20 : i32 to vector<512x128xi32>
    %72 = arith.shrui %70, %71 : vector<512x128xi32>
    %73 = arith.xori %70, %72 : vector<512x128xi32>
    %c-1028477387_i32_21 = arith.constant -1028477387 : i32
    %74 = vector.broadcast %c-1028477387_i32_21 : i32 to vector<512x128xi32>
    %75 = arith.muli %73, %74 : vector<512x128xi32>
    %c16_i32_22 = arith.constant 16 : i32
    %76 = vector.broadcast %c16_i32_22 : i32 to vector<512x128xi32>
    %77 = arith.shrui %75, %76 : vector<512x128xi32>
    %78 = arith.xori %75, %77 : vector<512x128xi32>
    %c9_i32_23 = arith.constant 9 : i32
    %79 = vector.broadcast %c9_i32_23 : i32 to vector<512x128xi32>
    %80 = arith.shrui %78, %79 : vector<512x128xi32>
    %c1065353216_i32_24 = arith.constant 1065353216 : i32
    %81 = vector.broadcast %c1065353216_i32_24 : i32 to vector<512x128xi32>
    %82 = arith.ori %80, %81 : vector<512x128xi32>
    %83 = tpu.bitcast %82 : vector<512x128xi32> -> vector<512x128xf32>
    %cst_25 = arith.constant 1.000000e+00 : f32
    %84 = vector.broadcast %cst_25 : f32 to vector<512x128xf32>
    %85 = arith.subf %83, %84 : vector<512x128xf32>
    %86 = math.log %63 : vector<512x128xf32>
    %cst_26 = arith.constant -2.000000e+00 : f32
    %87 = vector.broadcast %cst_26 : f32 to vector<512x128xf32>
    %88 = arith.mulf %87, %86 : vector<512x128xf32>
    %89 = math.sqrt %88 : vector<512x128xf32>
    %cst_27 = arith.constant 6.28318548 : f32
    %90 = vector.broadcast %cst_27 : f32 to vector<512x128xf32>
    %91 = arith.mulf %90, %85 : vector<512x128xf32>
    %92 = math.cos %91 : vector<512x128xf32>
    %93 = arith.mulf %89, %92 : vector<512x128xf32>
    %cst_28 = arith.constant 0.200249851 : f32
    %94 = vector.broadcast %cst_28 : f32 to vector<512x128xf32>
    %95 = arith.mulf %94, %93 : vector<512x128xf32>
    %96 = arith.addf %11, %95 : vector<512x128xf32>
    %c0_29 = arith.constant 0 : index
    %c0_30 = arith.constant 0 : index
    %97 = vector.load %arg4[%c0_29, %c0_30] : memref<1x128xf32, #tpu.memory_space<vmem>>, vector<1x128xf32>
    %cst_31 = arith.constant dense<0.000000e+00> : vector<128xf32>
    %98 = vector.multi_reduction <add>, %96, %cst_31 [0] : vector<512x128xf32> to vector<128xf32>
    %99 = vector.shape_cast %98 : vector<128xf32> to vector<1x128xf32>
    %100 = arith.addf %97, %99 : vector<1x128xf32>
    %c0_32 = arith.constant 0 : index
    %c0_33 = arith.constant 0 : index
    %101 = vector.load %arg4[%c0_32, %c0_33] : memref<1x128xf32, #tpu.memory_space<vmem>>, vector<1x128xf32>
    tpu.vector_store %arg4[%c0_32, %c0_33], %100 {strides = array<i32>} : memref<1x128xf32, #tpu.memory_space<vmem>>, vector<1x128xf32>,
    %c0_34 = arith.constant 0 : index
    %c0_35 = arith.constant 0 : index
    %102 = vector.load %arg5[%c0_34, %c0_35] : memref<1x128xf32, #tpu.memory_space<vmem>>, vector<1x128xf32>
    %103 = arith.mulf %96, %96 : vector<512x128xf32>
    %cst_36 = arith.constant dense<0.000000e+00> : vector<128xf32>
    %104 = vector.multi_reduction <add>, %103, %cst_36 [0] : vector<512x128xf32> to vector<128xf32>
    %105 = vector.shape_cast %104 : vector<128xf32> to vector<1x128xf32>
    %106 = arith.addf %102, %105 : vector<1x128xf32>
    %c0_37 = arith.constant 0 : index
    %c0_38 = arith.constant 0 : index
    %107 = vector.load %arg5[%c0_37, %c0_38] : memref<1x128xf32, #tpu.memory_space<vmem>>, vector<1x128xf32>
    tpu.vector_store %arg5[%c0_37, %c0_38], %106 {strides = array<i32>} : memref<1x128xf32, #tpu.memory_space<vmem>>, vector<1x128xf32>,
    %c1_i32 = arith.constant 1 : i32
    %108 = arith.cmpi eq, %arg0, %c1_i32 : i32
    %109 = arith.extui %108 : i1 to i32
    %c0_i32_39 = arith.constant 0 : i32
    %110 = arith.cmpi ne, %109, %c0_i32_39 : i32
    scf.if %110 {
      %c0_40 = arith.constant 0 : index
      %c0_41 = arith.constant 0 : index
      %111 = vector.load %arg4[%c0_40, %c0_41] : memref<1x128xf32, #tpu.memory_space<vmem>>, vector<1x128xf32>
      %cst_42 = arith.constant 9.765625E-4 : f32
      %112 = vector.broadcast %cst_42 : f32 to vector<1x128xf32>
      %113 = arith.mulf %111, %112 : vector<1x128xf32>
      %c0_43 = arith.constant 0 : index
      %c0_44 = arith.constant 0 : index
      %114 = vector.load %arg5[%c0_43, %c0_44] : memref<1x128xf32, #tpu.memory_space<vmem>>, vector<1x128xf32>
      %cst_45 = arith.constant 9.765625E-4 : f32
      %115 = vector.broadcast %cst_45 : f32 to vector<1x128xf32>
      %116 = arith.mulf %114, %115 : vector<1x128xf32>
      %117 = arith.mulf %113, %113 : vector<1x128xf32>
      %118 = arith.subf %116, %117 : vector<1x128xf32>
      %cst_46 = arith.constant 0.000000e+00 : f32
      %119 = vector.broadcast %cst_46 : f32 to vector<1x128xf32>
      %120 = arith.maximumf %118, %119 : vector<1x128xf32>
      %c0_47 = arith.constant 0 : index
      %c0_48 = arith.constant 0 : index
      %121 = vector.load %arg4[%c0_47, %c0_48] : memref<1x128xf32, #tpu.memory_space<vmem>>, vector<1x128xf32>
      tpu.vector_store %arg4[%c0_47, %c0_48], %113 {strides = array<i32>} : memref<1x128xf32, #tpu.memory_space<vmem>>, vector<1x128xf32>,
      %cst_49 = arith.constant 0.000000e+00 : f32
      %122 = vector.broadcast %cst_49 : f32 to vector<1x128xf32>
      %123 = arith.cmpf ogt, %120, %122 : vector<1x128xf32>
      %124 = math.rsqrt %120 : vector<1x128xf32>
      %cst_50 = arith.constant 1.000000e+00 : f32
      %125 = vector.broadcast %cst_50 : f32 to vector<1x128xf32>
      %126 = arith.select %123, %124, %125 : vector<1x128xi1>, vector<1x128xf32>
      %c0_51 = arith.constant 0 : index
      %c0_52 = arith.constant 0 : index
      %127 = vector.load %arg5[%c0_51, %c0_52] : memref<1x128xf32, #tpu.memory_space<vmem>>, vector<1x128xf32>
      tpu.vector_store %arg5[%c0_51, %c0_52], %126 {strides = array<i32>} : memref<1x128xf32, #tpu.memory_space<vmem>>, vector<1x128xf32>,
    } else {
    }
    return
  }
  func.func @transform_0(%arg0: i32) -> i32 {
    %c0_i32 = arith.constant 0 : i32
    %c0_i32_0 = arith.constant 0 : i32
    return %c0_i32 : i32
  }
  func.func @transform_1(%arg0: i32) -> (i32, i32) {
    %c0_i32 = arith.constant 0 : i32
    %c0_i32_0 = arith.constant 0 : i32
    return %arg0, %c0_i32 : i32, i32
  }
  func.func @transform_2(%arg0: i32) -> (i32, i32) {
    %c0_i32 = arith.constant 0 : i32
    %c0_i32_0 = arith.constant 0 : i32
    %c0_i32_1 = arith.constant 0 : i32
    return %c0_i32, %c0_i32_0 : i32, i32
  }
  func.func @transform_3(%arg0: i32) -> (i32, i32) {
    %c0_i32 = arith.constant 0 : i32
    %c0_i32_0 = arith.constant 0 : i32
    %c0_i32_1 = arith.constant 0 : i32
    return %c0_i32, %c0_i32_0 : i32, i32
  }
  func.func @transform_4(%arg0: i32) -> (i32, i32) {
    %c0_i32 = arith.constant 0 : i32
    %c0_i32_0 = arith.constant 0 : i32
    %c0_i32_1 = arith.constant 0 : i32
    return %c0_i32, %c0_i32_0 : i32, i32
  }
}

</mosaic_0001>

<llo_original>
// kernel: tpu_custom_call.1
$region0: #{tpu_custom_call.1}
  #allocation0 [shape = 'u32[]', space=smem, size = 0x4, offset = 0x4, fixed_abs, tag = 'smem constant byte address 0x4 - core index']
  #allocation1 [shape = 'u32[144,128]{1,0:T(1,128)}', space=vmem, size = 0x12000, scoped, tag = 'internal scratch']
  #allocation2 [shape = 'u32[1]{0:T(128)S(6)}', space=smem, size = 0x200, scoped, tag = 'scoped memory for tpu_custom_call.1']
  %s0 = inlined_call_operand.<no memory space> [shape: u32[1], index: 0, kind: input, shape index: {}]
  %s1 = inlined_call_operand.vmem [shape: s32[1024,1], index: 1, kind: input, shape index: {}]
  %s2 = inlined_call_operand.vmem [shape: f32[10,128], index: 2, kind: input, shape index: {}]
  %s3 = inlined_call_operand.hbm [shape: f32[1,128], index: 3, kind: output, shape index: {0}]
  %s4 = inlined_call_operand.hbm [shape: f32[1,128], index: 4, kind: output, shape index: {1}]
  %5 = xla_tuple %s3, %s4
  %s6 = sld [smem:[#allocation0]]
  $region61: #{tpu_custom_call.1} parent=0
    _
  %s8 = ssub.s32 1, %s6
  %s9 = scalar_select 0, %s8, %s6
  %10 = sst [smem:[#allocation2]] %s0
  $region1: #{tpu_custom_call.1} parent=0
    #allocation3 [shape = 'u8[512]{0}', space=vmem, size = 0x400, scoped, tag = 'output window, operand 0, single buffered']
    #allocation4 [shape = 's32[2]{0}', space=sflag, size = 0x8, scoped, tag = 'scoped memory for tpu_custom_call.1']
    #allocation5 [shape = 'u8[512]{0}', space=vmem, size = 0x400, scoped, tag = 'output window, operand 1, single buffered']
    #allocation6 [shape = 's32[1]{0}', space=sflag, size = 0x4, scoped, tag = 'scoped memory for tpu_custom_call.1']
    %11 = vsyncpa [#allocation4], 0
    %12 = vsyncpa [#allocation6], 0
    loop: start=0, step=1, limit=4
    $region2: #{tpu_custom_call.1} parent=1 // loop_pre_header
      _
    $region3: #{tpu_custom_call.1} parent=1 // loop_header
      %s14 = sphi 0, %s18
      %p15 = scmp.ge.s32.totalorder %s14, 4
      %s22 = sphi 0, %s22
      %s24 = sphi 0, %s22
      %s25 = sphi 0, %s24
      %s39 = sphi 0, %s25
      %s45 = sphi 0, %s47
      %s48 = sphi 0, %s45
      %s49 = sphi 0, %s48
      %s65 = sphi 0, %s49
      %s69 = sphi 0, %s69
      %s71 = sphi 0, %s69
      %s72 = sphi 0, %s71
      %s86 = sphi 0, %s72
      %s90 = sphi 0, %s90
      %s92 = sphi 0, %s90
      %s93 = sphi 0, %s92
      %s107 = sphi 0, %s93
      %s111 = sphi 0, %s111
      %s113 = sphi 0, %s111
      %s114 = sphi 0, %s113
      %s128 = sphi 0, %s114
    $region4: #{tpu_custom_call.1} parent=1 // loop_header_branch
      %17 = sbr.rel (%p15) target = $region8
    $region5: #{tpu_custom_call.1} parent=1 // loop_body
      %s19 = ssub.s32 %s14, 1
      %s20 = ssub.s32 %s14, 2
      %s21 = sadd.s32 %s14, 1
      %s23 = sadd.s32 %s22, 1
      %p26 = scmp.eq.s32.totalorder %s14, 1
      %p27 = scmp.ne.s32.totalorder %s22, %s24
      %p28 = scmp.eq.s32.totalorder %s14, 0
      %p29 = por %p27, %p28
      %p30 = scmp.ne.s32.totalorder %s22, %s24
      %p31 = scmp.eq.s32.totalorder %s19, 1
      %p32 = por %p30, %p31
      %p33 = scmp.ne.s32.totalorder %s24, %s25
      %p34 = scmp.eq.s32.totalorder %s19, 0
      %p35 = por %p33, %p34
      %p36 = scmp.ne.s32.totalorder %s24, %s25
      %p37 = scmp.eq.s32.totalorder %s20, 1
      %p38 = por %p36, %p37
      %p40 = scmp.ne.s32.totalorder %s25, %s39
      %p41 = scmp.eq.s32.totalorder %s20, 0
      %p42 = por %p40, %p41
      %s43 = ssub.s32 %s14, %s21
      %p44 = scmp.eq.s32.totalorder %s43, 0
      %s46 = sadd.s32 %s45, 1
      %s47 = scalar_select %p44, %s45, %s46
      %p50 = pneg %p44
      %p51 = scmp.eq.s32.totalorder %s14, 1
      %p52 = por %p50, %p51
      %p53 = scmp.ne.s32.totalorder %s45, %s48
      %p54 = scmp.eq.s32.totalorder %s14, 0
      %p55 = por %p53, %p54
      %p56 = scmp.ne.s32.totalorder %s45, %s48
      %p57 = scmp.eq.s32.totalorder %s19, 1
      %p58 = por %p56, %p57
      %p59 = scmp.ne.s32.totalorder %s48, %s49
      %p60 = scmp.eq.s32.totalorder %s19, 0
      %p61 = por %p59, %p60
      %p62 = scmp.ne.s32.totalorder %s48, %s49
      %p63 = scmp.eq.s32.totalorder %s20, 1
      %p64 = por %p62, %p63
      %p66 = scmp.ne.s32.totalorder %s49, %s65
      %p67 = scmp.eq.s32.totalorder %s20, 0
      %p68 = por %p66, %p67
      %s70 = sadd.s32 %s69, 1
      %p73 = scmp.eq.s32.totalorder %s14, 1
      %p74 = scmp.ne.s32.totalorder %s69, %s71
      %p75 = scmp.eq.s32.totalorder %s14, 0
      %p76 = por %p74, %p75
      %p77 = scmp.ne.s32.totalorder %s69, %s71
      %p78 = scmp.eq.s32.totalorder %s19, 1
      %p79 = por %p77, %p78
      %p80 = scmp.ne.s32.totalorder %s71, %s72
      %p81 = scmp.eq.s32.totalorder %s19, 0
      %p82 = por %p80, %p81
      %p83 = scmp.ne.s32.totalorder %s71, %s72
      %p84 = scmp.eq.s32.totalorder %s20, 1
      %p85 = por %p83, %p84
      %p87 = scmp.ne.s32.totalorder %s72, %s86
      %p88 = scmp.eq.s32.totalorder %s20, 0
      %p89 = por %p87, %p88
      %s91 = sadd.s32 %s90, 1
      %p94 = scmp.eq.s32.totalorder %s14, 1
      %p95 = scmp.ne.s32.totalorder %s90, %s92
      %p96 = scmp.eq.s32.totalorder %s14, 0
      %p97 = por %p95, %p96
      %p98 = scmp.ne.s32.totalorder %s90, %s92
      %p99 = scmp.eq.s32.totalorder %s19, 1
      %p100 = por %p98, %p99
      %p101 = scmp.ne.s32.totalorder %s92, %s93
      %p102 = scmp.eq.s32.totalorder %s19, 0
      %p103 = por %p101, %p102
      %p104 = scmp.ne.s32.totalorder %s92, %s93
      %p105 = scmp.eq.s32.totalorder %s20, 1
      %p106 = por %p104, %p105
      %p108 = scmp.ne.s32.totalorder %s93, %s107
      %p109 = scmp.eq.s32.totalorder %s20, 0
      %p110 = por %p108, %p109
      %s112 = sadd.s32 %s111, 1
      %p115 = scmp.eq.s32.totalorder %s14, 1
      %p116 = scmp.ne.s32.totalorder %s111, %s113
      %p117 = scmp.eq.s32.totalorder %s14, 0
      %p118 = por %p116, %p117
      %p119 = scmp.ne.s32.totalorder %s111, %s113
      %p120 = scmp.eq.s32.totalorder %s19, 1
      %p121 = por %p119, %p120
      %p122 = scmp.ne.s32.totalorder %s113, %s114
      %p123 = scmp.eq.s32.totalorder %s19, 0
      %p124 = por %p122, %p123
      %p125 = scmp.ne.s32.totalorder %s113, %s114
      %p126 = scmp.eq.s32.totalorder %s20, 1
      %p127 = por %p125, %p126
      %p129 = scmp.ne.s32.totalorder %s114, %s128
      %p130 = scmp.eq.s32.totalorder %s20, 0
      %p131 = por %p129, %p130
      %p132 = scmp.le.s32.totalorder 1, %s14
      %p133 = scmp.lt.s32.totalorder %s14, 3
      %p134 = pnand %p132, %p133
      %p135 = pneg %p134
      // Predicated region
      $region9: #{tpu_custom_call.1} parent=5 // pred_check
        _
      $region10: #{tpu_custom_call.1} parent=5 // pred_check_branch
        %137 = sbr.rel (%p134) target = $region12
      $region11: #{tpu_custom_call.1} parent=5 // pred_region
        %s138 = ssub.s32 %s14, 1
        // Predicated region
        $region13: #{tpu_custom_call.1} parent=11 // pred_check
          %p139 = pneg %p35
        $region14: #{tpu_custom_call.1} parent=11 // pred_check_branch
          %141 = sbr.rel (%p139) target = $region16
        $region15: #{tpu_custom_call.1} parent=11 // pred_region
          _
        $region16: #{tpu_custom_call.1} parent=11 // pred_fallthru
          _
        // Predicated region
        $region17: #{tpu_custom_call.1} parent=11 // pred_check
          %p142 = pneg %p82
        $region18: #{tpu_custom_call.1} parent=11 // pred_check_branch
          %144 = sbr.rel (%p142) target = $region20
        $region19: #{tpu_custom_call.1} parent=11 // pred_region
          _
        $region20: #{tpu_custom_call.1} parent=11 // pred_fallthru
          _
      $region12: #{tpu_custom_call.1} parent=5 // pred_fallthru
        _
      %p145 = scmp.lt.s32.totalorder %s14, 2
      // Predicated region
      $region21: #{tpu_custom_call.1} parent=5 // pred_check
        %p146 = pneg %p145
      $region22: #{tpu_custom_call.1} parent=5 // pred_check_branch
        %148 = sbr.rel (%p146) target = $region24
      $region23: #{tpu_custom_call.1} parent=5 // pred_region
        // Predicated region
        $region25: #{tpu_custom_call.1} parent=23 // pred_check
          %p149 = pneg %p55
        $region26: #{tpu_custom_call.1} parent=23 // pred_check_branch
          %151 = sbr.rel (%p149) target = $region28
        $region27: #{tpu_custom_call.1} parent=23 // pred_region
          %s152 = smul.u32 64, %s14
          %p153 = scmp.lt.s32.totalorder %s152, 127
          %s154 = scalar_select %p153, %s152, 127
          %s155 = smul.addr %s154, 8
          %s156 = scalar_lea.vmem %s1, %s155
          %s157 = smul.u32 64, %s14
        $region28: #{tpu_custom_call.1} parent=23 // pred_fallthru
          _
      $region24: #{tpu_custom_call.1} parent=5 // pred_fallthru
        _
      %p158 = scmp.le.s32.totalorder 1, %s14
      %p159 = scmp.lt.s32.totalorder %s14, 3
      %p160 = pnand %p158, %p159
      %p161 = pneg %p160
      // Predicated region
      $region29: #{tpu_custom_call.1} parent=5 // pred_check
        _
      $region30: #{tpu_custom_call.1} parent=5 // pred_check_branch
        %163 = sbr.rel (%p160) target = $region32
      $region31: #{tpu_custom_call.1} parent=5 // pred_region
        %s164 = ssub.s32 %s14, 1
        %p165 = pneg %p35
        %p166 = pneg %p32
        %s167 = smul.u32 64, %s19
        %p168 = scmp.lt.s32.totalorder %s167, 127
        %s169 = scalar_select %p168, %s167, 127
        %s170 = smul.addr %s169, 8
        %s171 = scalar_lea.vmem %s1, %s170
        %p172 = pneg %p61
        %p173 = pneg %p58
        %p174 = pneg %p82
        %p175 = pneg %p79
        %p176 = pneg %p103
        %p177 = pneg %p100
        %p178 = pneg %p124
        %p179 = pneg %p121
        %s180 = smul.u32 64, %s19
        %p181 = scmp.lt.s32.totalorder %s180, 127
        %s182 = scalar_select %p181, %s180, 127
        %s183 = smul.addr %s182, 8
        %s184 = scalar_lea.vmem %s1, %s183
        %s185 = smul.u32 64, %s19
        %p186 = scmp.eq.s32.totalorder %s19, 0
        // Predicated region
        $region33: #{tpu_custom_call.1} parent=31 // pred_check
          %p187 = pneg %p186
        $region34: #{tpu_custom_call.1} parent=31 // pred_check_branch
          %189 = sbr.rel (%p187) target = $region36
        $region35: #{tpu_custom_call.1} parent=31 // pred_region
          %190 = vst [vmem:[#allocation3] sm:$0x1] 0.0
          %191 = vst [vmem:[#allocation5] sm:$0x1] 0.0
        $region36: #{tpu_custom_call.1} parent=31 // pred_fallthru
          _
        %v192 = vld [vmem:[%s184] sm:$0xff]
        %v193 = vld [vmem:[%s184 + $0x8] sm:$0xff]
        %v194 = vld [vmem:[%s184 + $0x10] sm:$0xff]
        %v195 = vld [vmem:[%s184 + $0x18] sm:$0xff]
        %v196 = vld [vmem:[%s184 + $0x20] sm:$0xff]
        %v197 = vld [vmem:[%s184 + $0x28] sm:$0xff]
        %v198 = vld [vmem:[%s184 + $0x30] sm:$0xff]
        %v199 = vld [vmem:[%s184 + $0x38] sm:$0xff]
        %v200 = vld [vmem:[%s184 + $0x40] sm:$0xff]
        %v201 = vld [vmem:[%s184 + $0x48] sm:$0xff]
        %v202 = vld [vmem:[%s184 + $0x50] sm:$0xff]
        %v203 = vld [vmem:[%s184 + $0x58] sm:$0xff]
        %v204 = vld [vmem:[%s184 + $0x60] sm:$0xff]
        %v205 = vld [vmem:[%s184 + $0x68] sm:$0xff]
        %v206 = vld [vmem:[%s184 + $0x70] sm:$0xff]
        %v207 = vld [vmem:[%s184 + $0x78] sm:$0xff]
        %v208 = vld [vmem:[%s184 + $0x80] sm:$0xff]
        %v209 = vld [vmem:[%s184 + $0x88] sm:$0xff]
        %v210 = vld [vmem:[%s184 + $0x90] sm:$0xff]
        %v211 = vld [vmem:[%s184 + $0x98] sm:$0xff]
        %v212 = vld [vmem:[%s184 + $0xa0] sm:$0xff]
        %v213 = vld [vmem:[%s184 + $0xa8] sm:$0xff]
        %v214 = vld [vmem:[%s184 + $0xb0] sm:$0xff]
        %v215 = vld [vmem:[%s184 + $0xb8] sm:$0xff]
        %v216 = vld [vmem:[%s184 + $0xc0] sm:$0xff]
        %v217 = vld [vmem:[%s184 + $0xc8] sm:$0xff]
        %v218 = vld [vmem:[%s184 + $0xd0] sm:$0xff]
        %v219 = vld [vmem:[%s184 + $0xd8] sm:$0xff]
        %v220 = vld [vmem:[%s184 + $0xe0] sm:$0xff]
        %v221 = vld [vmem:[%s184 + $0xe8] sm:$0xff]
        %v222 = vld [vmem:[%s184 + $0xf0] sm:$0xff]
        %v223 = vld [vmem:[%s184 + $0xf8] sm:$0xff]
        %v224 = vld [vmem:[%s184 + $0x100] sm:$0xff]
        %v225 = vld [vmem:[%s184 + $0x108] sm:$0xff]
        %v226 = vld [vmem:[%s184 + $0x110] sm:$0xff]
        %v227 = vld [vmem:[%s184 + $0x118] sm:$0xff]
        %v228 = vld [vmem:[%s184 + $0x120] sm:$0xff]
        %v229 = vld [vmem:[%s184 + $0x128] sm:$0xff]
        %v230 = vld [vmem:[%s184 + $0x130] sm:$0xff]
        %v231 = vld [vmem:[%s184 + $0x138] sm:$0xff]
        %v232 = vld [vmem:[%s184 + $0x140] sm:$0xff]
        %v233 = vld [vmem:[%s184 + $0x148] sm:$0xff]
        %v234 = vld [vmem:[%s184 + $0x150] sm:$0xff]
        %v235 = vld [vmem:[%s184 + $0x158] sm:$0xff]
        %v236 = vld [vmem:[%s184 + $0x160] sm:$0xff]
        %v237 = vld [vmem:[%s184 + $0x168] sm:$0xff]
        %v238 = vld [vmem:[%s184 + $0x170] sm:$0xff]
        %v239 = vld [vmem:[%s184 + $0x178] sm:$0xff]
        %v240 = vld [vmem:[%s184 + $0x180] sm:$0xff]
        %v241 = vld [vmem:[%s184 + $0x188] sm:$0xff]
        %v242 = vld [vmem:[%s184 + $0x190] sm:$0xff]
        %v243 = vld [vmem:[%s184 + $0x198] sm:$0xff]
        %v244 = vld [vmem:[%s184 + $0x1a0] sm:$0xff]
        %v245 = vld [vmem:[%s184 + $0x1a8] sm:$0xff]
        %v246 = vld [vmem:[%s184 + $0x1b0] sm:$0xff]
        %v247 = vld [vmem:[%s184 + $0x1b8] sm:$0xff]
        %v248 = vld [vmem:[%s184 + $0x1c0] sm:$0xff]
        %v249 = vld [vmem:[%s184 + $0x1c8] sm:$0xff]
        %v250 = vld [vmem:[%s184 + $0x1d0] sm:$0xff]
        %v251 = vld [vmem:[%s184 + $0x1d8] sm:$0xff]
        %v252 = vld [vmem:[%s184 + $0x1e0] sm:$0xff]
        %v253 = vld [vmem:[%s184 + $0x1e8] sm:$0xff]
        %v254 = vld [vmem:[%s184 + $0x1f0] sm:$0xff]
        %v255 = vld [vmem:[%s184 + $0x1f8] sm:$0xff]
        %v256 = vld [vmem:[%s2] sm:$0xff]
        %v257 = vld [vmem:[%s2 + $0x8] sm:$0x3]
        %s258 = sld [smem:[#allocation2]]
        %v259 = vlaneseq
        %v260 = vand.u32 %v259, 127
        %261 = vset.pattern.permute.xlu0 0
        %262 = vperm.xlu0 %261, %v192
        %v263 = vpop.permute.xlu0 %262
        %264 = vset.pattern.permute.xlu0 0
        %265 = vperm.xlu0 %264, %v193
        %v266 = vpop.permute.xlu0 %265
        %267 = vset.pattern.permute.xlu0 0
        %268 = vperm.xlu0 %267, %v194
        %v269 = vpop.permute.xlu0 %268
        %270 = vset.pattern.permute.xlu0 0
        %271 = vperm.xlu0 %270, %v195
        %v272 = vpop.permute.xlu0 %271
        %273 = vset.pattern.permute.xlu0 0
        %274 = vperm.xlu0 %273, %v196
        %v275 = vpop.permute.xlu0 %274
        %276 = vset.pattern.permute.xlu0 0
        %277 = vperm.xlu0 %276, %v197
        %v278 = vpop.permute.xlu0 %277
        %279 = vset.pattern.permute.xlu0 0
        %280 = vperm.xlu0 %279, %v198
        %v281 = vpop.permute.xlu0 %280
        %282 = vset.pattern.permute.xlu0 0
        %283 = vperm.xlu0 %282, %v199
        %v284 = vpop.permute.xlu0 %283
        %285 = vset.pattern.permute.xlu0 0
        %286 = vperm.xlu0 %285, %v200
        %v287 = vpop.permute.xlu0 %286
        %288 = vset.pattern.permute.xlu0 0
        %289 = vperm.xlu0 %288, %v201
        %v290 = vpop.permute.xlu0 %289
        %291 = vset.pattern.permute.xlu0 0
        %292 = vperm.xlu0 %291, %v202
        %v293 = vpop.permute.xlu0 %292
        %294 = vset.pattern.permute.xlu0 0
        %295 = vperm.xlu0 %294, %v203
        %v296 = vpop.permute.xlu0 %295
        %297 = vset.pattern.permute.xlu0 0
        %298 = vperm.xlu0 %297, %v204
        %v299 = vpop.permute.xlu0 %298
        %300 = vset.pattern.permute.xlu0 0
        %301 = vperm.xlu0 %300, %v205
        %v302 = vpop.permute.xlu0 %301
        %303 = vset.pattern.permute.xlu0 0
        %304 = vperm.xlu0 %303, %v206
        %v305 = vpop.permute.xlu0 %304
        %306 = vset.pattern.permute.xlu0 0
        %307 = vperm.xlu0 %306, %v207
        %v308 = vpop.permute.xlu0 %307
        %309 = vset.pattern.permute.xlu0 0
        %310 = vperm.xlu0 %309, %v208
        %v311 = vpop.permute.xlu0 %310
        %312 = vset.pattern.permute.xlu0 0
        %313 = vperm.xlu0 %312, %v209
        %v314 = vpop.permute.xlu0 %313
        %315 = vset.pattern.permute.xlu0 0
        %316 = vperm.xlu0 %315, %v210
        %v317 = vpop.permute.xlu0 %316
        %318 = vset.pattern.permute.xlu0 0
        %319 = vperm.xlu0 %318, %v211
        %v320 = vpop.permute.xlu0 %319
        %321 = vset.pattern.permute.xlu0 0
        %322 = vperm.xlu0 %321, %v212
        %v323 = vpop.permute.xlu0 %322
        %324 = vset.pattern.permute.xlu0 0
        %325 = vperm.xlu0 %324, %v213
        %v326 = vpop.permute.xlu0 %325
        %327 = vset.pattern.permute.xlu0 0
        %328 = vperm.xlu0 %327, %v214
        %v329 = vpop.permute.xlu0 %328
        %330 = vset.pattern.permute.xlu0 0
        %331 = vperm.xlu0 %330, %v215
        %v332 = vpop.permute.xlu0 %331
        %333 = vset.pattern.permute.xlu0 0
        %334 = vperm.xlu0 %333, %v216
        %v335 = vpop.permute.xlu0 %334
        %336 = vset.pattern.permute.xlu0 0
        %337 = vperm.xlu0 %336, %v217
        %v338 = vpop.permute.xlu0 %337
        %339 = vset.pattern.permute.xlu0 0
        %340 = vperm.xlu0 %339, %v218
        %v341 = vpop.permute.xlu0 %340
        %342 = vset.pattern.permute.xlu0 0
        %343 = vperm.xlu0 %342, %v219
        %v344 = vpop.permute.xlu0 %343
        %345 = vset.pattern.permute.xlu0 0
        %346 = vperm.xlu0 %345, %v220
        %v347 = vpop.permute.xlu0 %346
        %348 = vset.pattern.permute.xlu0 0
        %349 = vperm.xlu0 %348, %v221
        %v350 = vpop.permute.xlu0 %349
        %351 = vset.pattern.permute.xlu0 0
        %352 = vperm.xlu0 %351, %v222
        %v353 = vpop.permute.xlu0 %352
        %354 = vset.pattern.permute.xlu0 0
        %355 = vperm.xlu0 %354, %v223
        %v356 = vpop.permute.xlu0 %355
        %357 = vset.pattern.permute.xlu0 0
        %358 = vperm.xlu0 %357, %v224
        %v359 = vpop.permute.xlu0 %358
        %360 = vset.pattern.permute.xlu0 0
        %361 = vperm.xlu0 %360, %v225
        %v362 = vpop.permute.xlu0 %361
        %363 = vset.pattern.permute.xlu0 0
        %364 = vperm.xlu0 %363, %v226
        %v365 = vpop.permute.xlu0 %364
        %366 = vset.pattern.permute.xlu0 0
        %367 = vperm.xlu0 %366, %v227
        %v368 = vpop.permute.xlu0 %367
        %369 = vset.pattern.permute.xlu0 0
        %370 = vperm.xlu0 %369, %v228
        %v371 = vpop.permute.xlu0 %370
        %372 = vset.pattern.permute.xlu0 0
        %373 = vperm.xlu0 %372, %v229
        %v374 = vpop.permute.xlu0 %373
        %375 = vset.pattern.permute.xlu0 0
        %376 = vperm.xlu0 %375, %v230
        %v377 = vpop.permute.xlu0 %376
        %378 = vset.pattern.permute.xlu0 0
        %379 = vperm.xlu0 %378, %v231
        %v380 = vpop.permute.xlu0 %379
        %381 = vset.pattern.permute.xlu0 0
        %382 = vperm.xlu0 %381, %v232
        %v383 = vpop.permute.xlu0 %382
        %384 = vset.pattern.permute.xlu0 0
        %385 = vperm.xlu0 %384, %v233
        %v386 = vpop.permute.xlu0 %385
        %387 = vset.pattern.permute.xlu0 0
        %388 = vperm.xlu0 %387, %v234
        %v389 = vpop.permute.xlu0 %388
        %390 = vset.pattern.permute.xlu0 0
        %391 = vperm.xlu0 %390, %v235
        %v392 = vpop.permute.xlu0 %391
        %393 = vset.pattern.permute.xlu0 0
        %394 = vperm.xlu0 %393, %v236
        %v395 = vpop.permute.xlu0 %394
        %396 = vset.pattern.permute.xlu0 0
        %397 = vperm.xlu0 %396, %v237
        %v398 = vpop.permute.xlu0 %397
        %399 = vset.pattern.permute.xlu0 0
        %400 = vperm.xlu0 %399, %v238
        %v401 = vpop.permute.xlu0 %400
        %402 = vset.pattern.permute.xlu0 0
        %403 = vperm.xlu0 %402, %v239
        %v404 = vpop.permute.xlu0 %403
        %405 = vset.pattern.permute.xlu0 0
        %406 = vperm.xlu0 %405, %v240
        %v407 = vpop.permute.xlu0 %406
        %408 = vset.pattern.permute.xlu0 0
        %409 = vperm.xlu0 %408, %v241
        %v410 = vpop.permute.xlu0 %409
        %411 = vset.pattern.permute.xlu0 0
        %412 = vperm.xlu0 %411, %v242
        %v413 = vpop.permute.xlu0 %412
        %414 = vset.pattern.permute.xlu0 0
        %415 = vperm.xlu0 %414, %v243
        %v416 = vpop.permute.xlu0 %415
        %417 = vset.pattern.permute.xlu0 0
        %418 = vperm.xlu0 %417, %v244
        %v419 = vpop.permute.xlu0 %418
        %420 = vset.pattern.permute.xlu0 0
        %421 = vperm.xlu0 %420, %v245
        %v422 = vpop.permute.xlu0 %421
        %423 = vset.pattern.permute.xlu0 0
        %424 = vperm.xlu0 %423, %v246
        %v425 = vpop.permute.xlu0 %424
        %426 = vset.pattern.permute.xlu0 0
        %427 = vperm.xlu0 %426, %v247
        %v428 = vpop.permute.xlu0 %427
        %429 = vset.pattern.permute.xlu0 0
        %430 = vperm.xlu0 %429, %v248
        %v431 = vpop.permute.xlu0 %430
        %432 = vset.pattern.permute.xlu0 0
        %433 = vperm.xlu0 %432, %v249
        %v434 = vpop.permute.xlu0 %433
        %435 = vset.pattern.permute.xlu0 0
        %436 = vperm.xlu0 %435, %v250
        %v437 = vpop.permute.xlu0 %436
        %438 = vset.pattern.permute.xlu0 0
        %439 = vperm.xlu0 %438, %v251
        %v440 = vpop.permute.xlu0 %439
        %441 = vset.pattern.permute.xlu0 0
        %442 = vperm.xlu0 %441, %v252
        %v443 = vpop.permute.xlu0 %442
        %444 = vset.pattern.permute.xlu0 0
        %445 = vperm.xlu0 %444, %v253
        %v446 = vpop.permute.xlu0 %445
        %447 = vset.pattern.permute.xlu0 0
        %448 = vperm.xlu0 %447, %v254
        %v449 = vpop.permute.xlu0 %448
        %450 = vset.pattern.permute.xlu0 0
        %451 = vperm.xlu0 %450, %v255
        %v452 = vpop.permute.xlu0 %451
        %vm453 = vcmp.eq.s32.totalorder %v263, %v260
        %vm454 = vcmp.eq.s32.totalorder %v266, %v260
        %vm455 = vcmp.eq.s32.totalorder %v269, %v260
        %vm456 = vcmp.eq.s32.totalorder %v272, %v260
        %vm457 = vcmp.eq.s32.totalorder %v275, %v260
        %vm458 = vcmp.eq.s32.totalorder %v278, %v260
        %vm459 = vcmp.eq.s32.totalorder %v281, %v260
        %vm460 = vcmp.eq.s32.totalorder %v284, %v260
        %vm461 = vcmp.eq.s32.totalorder %v287, %v260
        %vm462 = vcmp.eq.s32.totalorder %v290, %v260
        %vm463 = vcmp.eq.s32.totalorder %v293, %v260
        %vm464 = vcmp.eq.s32.totalorder %v296, %v260
        %vm465 = vcmp.eq.s32.totalorder %v299, %v260
        %vm466 = vcmp.eq.s32.totalorder %v302, %v260
        %vm467 = vcmp.eq.s32.totalorder %v305, %v260
        %vm468 = vcmp.eq.s32.totalorder %v308, %v260
        %vm469 = vcmp.eq.s32.totalorder %v311, %v260
        %vm470 = vcmp.eq.s32.totalorder %v314, %v260
        %vm471 = vcmp.eq.s32.totalorder %v317, %v260
        %vm472 = vcmp.eq.s32.totalorder %v320, %v260
        %vm473 = vcmp.eq.s32.totalorder %v323, %v260
        %vm474 = vcmp.eq.s32.totalorder %v326, %v260
        %vm475 = vcmp.eq.s32.totalorder %v329, %v260
        %vm476 = vcmp.eq.s32.totalorder %v332, %v260
        %vm477 = vcmp.eq.s32.totalorder %v335, %v260
        %vm478 = vcmp.eq.s32.totalorder %v338, %v260
        %vm479 = vcmp.eq.s32.totalorder %v341, %v260
        %vm480 = vcmp.eq.s32.totalorder %v344, %v260
        %vm481 = vcmp.eq.s32.totalorder %v347, %v260
        %vm482 = vcmp.eq.s32.totalorder %v350, %v260
        %vm483 = vcmp.eq.s32.totalorder %v353, %v260
        %vm484 = vcmp.eq.s32.totalorder %v356, %v260
        %vm485 = vcmp.eq.s32.totalorder %v359, %v260
        %vm486 = vcmp.eq.s32.totalorder %v362, %v260
        %vm487 = vcmp.eq.s32.totalorder %v365, %v260
        %vm488 = vcmp.eq.s32.totalorder %v368, %v260
        %vm489 = vcmp.eq.s32.totalorder %v371, %v260
        %vm490 = vcmp.eq.s32.totalorder %v374, %v260
        %vm491 = vcmp.eq.s32.totalorder %v377, %v260
        %vm492 = vcmp.eq.s32.totalorder %v380, %v260
        %vm493 = vcmp.eq.s32.totalorder %v383, %v260
        %vm494 = vcmp.eq.s32.totalorder %v386, %v260
        %vm495 = vcmp.eq.s32.totalorder %v389, %v260
        %vm496 = vcmp.eq.s32.totalorder %v392, %v260
        %vm497 = vcmp.eq.s32.totalorder %v395, %v260
        %vm498 = vcmp.eq.s32.totalorder %v398, %v260
        %vm499 = vcmp.eq.s32.totalorder %v401, %v260
        %vm500 = vcmp.eq.s32.totalorder %v404, %v260
        %vm501 = vcmp.eq.s32.totalorder %v407, %v260
        %vm502 = vcmp.eq.s32.totalorder %v410, %v260
        %vm503 = vcmp.eq.s32.totalorder %v413, %v260
        %vm504 = vcmp.eq.s32.totalorder %v416, %v260
        %vm505 = vcmp.eq.s32.totalorder %v419, %v260
        %vm506 = vcmp.eq.s32.totalorder %v422, %v260
        %vm507 = vcmp.eq.s32.totalorder %v425, %v260
        %vm508 = vcmp.eq.s32.totalorder %v428, %v260
        %vm509 = vcmp.eq.s32.totalorder %v431, %v260
        %vm510 = vcmp.eq.s32.totalorder %v434, %v260
        %vm511 = vcmp.eq.s32.totalorder %v437, %v260
        %vm512 = vcmp.eq.s32.totalorder %v440, %v260
        %vm513 = vcmp.eq.s32.totalorder %v443, %v260
        %vm514 = vcmp.eq.s32.totalorder %v446, %v260
        %vm515 = vcmp.eq.s32.totalorder %v449, %v260
        %vm516 = vcmp.eq.s32.totalorder %v452, %v260
        %v517 = vsel %vm453, 1, 0
        %v518 = vsel %vm454, 1, 0
        %v519 = vsel %vm455, 1, 0
        %v520 = vsel %vm456, 1, 0
        %v521 = vsel %vm457, 1, 0
        %v522 = vsel %vm458, 1, 0
        %v523 = vsel %vm459, 1, 0
        %v524 = vsel %vm460, 1, 0
        %v525 = vsel %vm461, 1, 0
        %v526 = vsel %vm462, 1, 0
        %v527 = vsel %vm463, 1, 0
        %v528 = vsel %vm464, 1, 0
        %v529 = vsel %vm465, 1, 0
        %v530 = vsel %vm466, 1, 0
        %v531 = vsel %vm467, 1, 0
        %v532 = vsel %vm468, 1, 0
        %v533 = vsel %vm469, 1, 0
        %v534 = vsel %vm470, 1, 0
        %v535 = vsel %vm471, 1, 0
        %v536 = vsel %vm472, 1, 0
        %v537 = vsel %vm473, 1, 0
        %v538 = vsel %vm474, 1, 0
        %v539 = vsel %vm475, 1, 0
        %v540 = vsel %vm476, 1, 0
        %v541 = vsel %vm477, 1, 0
        %v542 = vsel %vm478, 1, 0
        %v543 = vsel %vm479, 1, 0
        %v544 = vsel %vm480, 1, 0
        %v545 = vsel %vm481, 1, 0
        %v546 = vsel %vm482, 1, 0
        %v547 = vsel %vm483, 1, 0
        %v548 = vsel %vm484, 1, 0
        %v549 = vsel %vm485, 1, 0
        %v550 = vsel %vm486, 1, 0
        %v551 = vsel %vm487, 1, 0
        %v552 = vsel %vm488, 1, 0
        %v553 = vsel %vm489, 1, 0
        %v554 = vsel %vm490, 1, 0
        %v555 = vsel %vm491, 1, 0
        %v556 = vsel %vm492, 1, 0
        %v557 = vsel %vm493, 1, 0
        %v558 = vsel %vm494, 1, 0
        %v559 = vsel %vm495, 1, 0
        %v560 = vsel %vm496, 1, 0
        %v561 = vsel %vm497, 1, 0
        %v562 = vsel %vm498, 1, 0
        %v563 = vsel %vm499, 1, 0
        %v564 = vsel %vm500, 1, 0
        %v565 = vsel %vm501, 1, 0
        %v566 = vsel %vm502, 1, 0
        %v567 = vsel %vm503, 1, 0
        %v568 = vsel %vm504, 1, 0
        %v569 = vsel %vm505, 1, 0
        %v570 = vsel %vm506, 1, 0
        %v571 = vsel %vm507, 1, 0
        %v572 = vsel %vm508, 1, 0
        %v573 = vsel %vm509, 1, 0
        %v574 = vsel %vm510, 1, 0
        %v575 = vsel %vm511, 1, 0
        %v576 = vsel %vm512, 1, 0
        %v577 = vsel %vm513, 1, 0
        %v578 = vsel %vm514, 1, 0
        %v579 = vsel %vm515, 1, 0
        %v580 = vsel %vm516, 1, 0
        %v581 = vcvt.s32.f32 %v517
        %v582 = vcvt.s32.f32 %v518
        %v583 = vcvt.s32.f32 %v519
        %v584 = vcvt.s32.f32 %v520
        %v585 = vcvt.s32.f32 %v521
        %v586 = vcvt.s32.f32 %v522
        %v587 = vcvt.s32.f32 %v523
        %v588 = vcvt.s32.f32 %v524
        %v589 = vcvt.s32.f32 %v525
        %v590 = vcvt.s32.f32 %v526
        %v591 = vcvt.s32.f32 %v527
        %v592 = vcvt.s32.f32 %v528
        %v593 = vcvt.s32.f32 %v529
        %v594 = vcvt.s32.f32 %v530
        %v595 = vcvt.s32.f32 %v531
        %v596 = vcvt.s32.f32 %v532
        %v597 = vcvt.s32.f32 %v533
        %v598 = vcvt.s32.f32 %v534
        %v599 = vcvt.s32.f32 %v535
        %v600 = vcvt.s32.f32 %v536
        %v601 = vcvt.s32.f32 %v537
        %v602 = vcvt.s32.f32 %v538
        %v603 = vcvt.s32.f32 %v539
        %v604 = vcvt.s32.f32 %v540
        %v605 = vcvt.s32.f32 %v541
        %v606 = vcvt.s32.f32 %v542
        %v607 = vcvt.s32.f32 %v543
        %v608 = vcvt.s32.f32 %v544
        %v609 = vcvt.s32.f32 %v545
        %v610 = vcvt.s32.f32 %v546
        %v611 = vcvt.s32.f32 %v547
        %v612 = vcvt.s32.f32 %v548
        %v613 = vcvt.s32.f32 %v549
        %v614 = vcvt.s32.f32 %v550
        %v615 = vcvt.s32.f32 %v551
        %v616 = vcvt.s32.f32 %v552
        %v617 = vcvt.s32.f32 %v553
        %v618 = vcvt.s32.f32 %v554
        %v619 = vcvt.s32.f32 %v555
        %v620 = vcvt.s32.f32 %v556
        %v621 = vcvt.s32.f32 %v557
        %v622 = vcvt.s32.f32 %v558
        %v623 = vcvt.s32.f32 %v559
        %v624 = vcvt.s32.f32 %v560
        %v625 = vcvt.s32.f32 %v561
        %v626 = vcvt.s32.f32 %v562
        %v627 = vcvt.s32.f32 %v563
        %v628 = vcvt.s32.f32 %v564
        %v629 = vcvt.s32.f32 %v565
        %v630 = vcvt.s32.f32 %v566
        %v631 = vcvt.s32.f32 %v567
        %v632 = vcvt.s32.f32 %v568
        %v633 = vcvt.s32.f32 %v569
        %v634 = vcvt.s32.f32 %v570
        %v635 = vcvt.s32.f32 %v571
        %v636 = vcvt.s32.f32 %v572
        %v637 = vcvt.s32.f32 %v573
        %v638 = vcvt.s32.f32 %v574
        %v639 = vcvt.s32.f32 %v575
        %v640 = vcvt.s32.f32 %v576
        %v641 = vcvt.s32.f32 %v577
        %v642 = vcvt.s32.f32 %v578
        %v643 = vcvt.s32.f32 %v579
        %v644 = vcvt.s32.f32 %v580
        %s645 = smul.u32 %s19, 512
        %v646 = vlaneseq
        %v647 = vshrl.u32 %v646, 7
        %v648 = vadd.s32 %v647, 8
        %v649 = vadd.s32 %v647, 16
        %v650 = vadd.s32 %v647, 24
        %v651 = vadd.s32 %v647, 32
        %v652 = vadd.s32 %v647, 40
        %v653 = vadd.s32 %v647, 48
        %v654 = vadd.s32 %v647, 56
        %v655 = vadd.s32 %v647, 64
        %v656 = vadd.s32 %v647, 72
        %v657 = vadd.s32 %v647, 80
        %v658 = vadd.s32 %v647, 88
        %v659 = vadd.s32 %v647, 96
        %v660 = vadd.s32 %v647, 104
        %v661 = vadd.s32 %v647, 112
        %v662 = vadd.s32 %v647, 120
        %v663 = vadd.s32 %v647, 128
        %v664 = vadd.s32 %v647, 136
        %v665 = vadd.s32 %v647, 144
        %v666 = vadd.s32 %v647, 152
        %v667 = vadd.s32 %v647, 160
        %v668 = vadd.s32 %v647, 168
        %v669 = vadd.s32 %v647, 176
        %v670 = vadd.s32 %v647, 184
        %v671 = vadd.s32 %v647, 192
        %v672 = vadd.s32 %v647, 200
        %v673 = vadd.s32 %v647, 208
        %v674 = vadd.s32 %v647, 216
        %v675 = vadd.s32 %v647, 224
        %v676 = vadd.s32 %v647, 232
        %v677 = vadd.s32 %v647, 240
        %v678 = vadd.s32 %v647, 248
        %v679 = vadd.s32 %v647, 256
        %v680 = vadd.s32 %v647, 264
        %v681 = vadd.s32 %v647, 272
        %v682 = vadd.s32 %v647, 280
        %v683 = vadd.s32 %v647, 288
        %v684 = vadd.s32 %v647, 296
        %v685 = vadd.s32 %v647, 304
        %v686 = vadd.s32 %v647, 312
        %v687 = vadd.s32 %v647, 320
        %v688 = vadd.s32 %v647, 328
        %v689 = vadd.s32 %v647, 336
        %v690 = vadd.s32 %v647, 344
        %v691 = vadd.s32 %v647, 352
        %v692 = vadd.s32 %v647, 360
        %v693 = vadd.s32 %v647, 368
        %v694 = vadd.s32 %v647, 376
        %v695 = vadd.s32 %v647, 384
        %v696 = vadd.s32 %v647, 392
        %v697 = vadd.s32 %v647, 400
        %v698 = vadd.s32 %v647, 408
        %v699 = vadd.s32 %v647, 416
        %v700 = vadd.s32 %v647, 424
        %v701 = vadd.s32 %v647, 432
        %v702 = vadd.s32 %v647, 440
        %v703 = vadd.s32 %v647, 448
        %v704 = vadd.s32 %v647, 456
        %v705 = vadd.s32 %v647, 464
        %v706 = vadd.s32 %v647, 472
        %v707 = vadd.s32 %v647, 480
        %v708 = vadd.s32 %v647, 488
        %v709 = vadd.s32 %v647, 496
        %v710 = vadd.s32 %v647, 504
        %v711 = vstv %s645
        %v712 = vadd.s32 %v711, %v647
        %v713 = vadd.s32 %v711, %v648
        %v714 = vadd.s32 %v711, %v649
        %v715 = vadd.s32 %v711, %v650
        %v716 = vadd.s32 %v711, %v651
        %v717 = vadd.s32 %v711, %v652
        %v718 = vadd.s32 %v711, %v653
        %v719 = vadd.s32 %v711, %v654
        %v720 = vadd.s32 %v711, %v655
        %v721 = vadd.s32 %v711, %v656
        %v722 = vadd.s32 %v711, %v657
        %v723 = vadd.s32 %v711, %v658
        %v724 = vadd.s32 %v711, %v659
        %v725 = vadd.s32 %v711, %v660
        %v726 = vadd.s32 %v711, %v661
        %v727 = vadd.s32 %v711, %v662
        %v728 = vadd.s32 %v711, %v663
        %v729 = vadd.s32 %v711, %v664
        %v730 = vadd.s32 %v711, %v665
        %v731 = vadd.s32 %v711, %v666
        %v732 = vadd.s32 %v711, %v667
        %v733 = vadd.s32 %v711, %v668
        %v734 = vadd.s32 %v711, %v669
        %v735 = vadd.s32 %v711, %v670
        %v736 = vadd.s32 %v711, %v671
        %v737 = vadd.s32 %v711, %v672
        %v738 = vadd.s32 %v711, %v673
        %v739 = vadd.s32 %v711, %v674
        %v740 = vadd.s32 %v711, %v675
        %v741 = vadd.s32 %v711, %v676
        %v742 = vadd.s32 %v711, %v677
        %v743 = vadd.s32 %v711, %v678
        %v744 = vadd.s32 %v711, %v679
        %v745 = vadd.s32 %v711, %v680
        %v746 = vadd.s32 %v711, %v681
        %v747 = vadd.s32 %v711, %v682
        %v748 = vadd.s32 %v711, %v683
        %v749 = vadd.s32 %v711, %v684
        %v750 = vadd.s32 %v711, %v685
        %v751 = vadd.s32 %v711, %v686
        %v752 = vadd.s32 %v711, %v687
        %v753 = vadd.s32 %v711, %v688
        %v754 = vadd.s32 %v711, %v689
        %v755 = vadd.s32 %v711, %v690
        %v756 = vadd.s32 %v711, %v691
        %v757 = vadd.s32 %v711, %v692
        %v758 = vadd.s32 %v711, %v693
        %v759 = vadd.s32 %v711, %v694
        %v760 = vadd.s32 %v711, %v695
        %v761 = vadd.s32 %v711, %v696
        %v762 = vadd.s32 %v711, %v697
        %v763 = vadd.s32 %v711, %v698
        %v764 = vadd.s32 %v711, %v699
        %v765 = vadd.s32 %v711, %v700
        %v766 = vadd.s32 %v711, %v701
        %v767 = vadd.s32 %v711, %v702
        %v768 = vadd.s32 %v711, %v703
        %v769 = vadd.s32 %v711, %v704
        %v770 = vadd.s32 %v711, %v705
        %v771 = vadd.s32 %v711, %v706
        %v772 = vadd.s32 %v711, %v707
        %v773 = vadd.s32 %v711, %v708
        %v774 = vadd.s32 %v711, %v709
        %v775 = vadd.s32 %v711, %v710
        %v776 = vmul.u32 %v712, 128
        %v777 = vmul.u32 %v713, 128
        %v778 = vmul.u32 %v714, 128
        %v779 = vmul.u32 %v715, 128
        %v780 = vmul.u32 %v716, 128
        %v781 = vmul.u32 %v717, 128
        %v782 = vmul.u32 %v718, 128
        %v783 = vmul.u32 %v719, 128
        %v784 = vmul.u32 %v720, 128
        %v785 = vmul.u32 %v721, 128
        %v786 = vmul.u32 %v722, 128
        %v787 = vmul.u32 %v723, 128
        %v788 = vmul.u32 %v724, 128
        %v789 = vmul.u32 %v725, 128
        %v790 = vmul.u32 %v726, 128
        %v791 = vmul.u32 %v727, 128
        %v792 = vmul.u32 %v728, 128
        %v793 = vmul.u32 %v729, 128
        %v794 = vmul.u32 %v730, 128
        %v795 = vmul.u32 %v731, 128
        %v796 = vmul.u32 %v732, 128
        %v797 = vmul.u32 %v733, 128
        %v798 = vmul.u32 %v734, 128
        %v799 = vmul.u32 %v735, 128
        %v800 = vmul.u32 %v736, 128
        %v801 = vmul.u32 %v737, 128
        %v802 = vmul.u32 %v738, 128
        %v803 = vmul.u32 %v739, 128
        %v804 = vmul.u32 %v740, 128
        %v805 = vmul.u32 %v741, 128
        %v806 = vmul.u32 %v742, 128
        %v807 = vmul.u32 %v743, 128
        %v808 = vmul.u32 %v744, 128
        %v809 = vmul.u32 %v745, 128
        %v810 = vmul.u32 %v746, 128
        %v811 = vmul.u32 %v747, 128
        %v812 = vmul.u32 %v748, 128
        %v813 = vmul.u32 %v749, 128
        %v814 = vmul.u32 %v750, 128
        %v815 = vmul.u32 %v751, 128
        %v816 = vmul.u32 %v752, 128
        %v817 = vmul.u32 %v753, 128
        %v818 = vmul.u32 %v754, 128
        %v819 = vmul.u32 %v755, 128
        %v820 = vmul.u32 %v756, 128
        %v821 = vmul.u32 %v757, 128
        %v822 = vmul.u32 %v758, 128
        %v823 = vmul.u32 %v759, 128
        %v824 = vmul.u32 %v760, 128
        %v825 = vmul.u32 %v761, 128
        %v826 = vmul.u32 %v762, 128
        %v827 = vmul.u32 %v763, 128
        %v828 = vmul.u32 %v764, 128
        %v829 = vmul.u32 %v765, 128
        %v830 = vmul.u32 %v766, 128
        %v831 = vmul.u32 %v767, 128
        %v832 = vmul.u32 %v768, 128
        %v833 = vmul.u32 %v769, 128
        %v834 = vmul.u32 %v770, 128
        %v835 = vmul.u32 %v771, 128
        %v836 = vmul.u32 %v772, 128
        %v837 = vmul.u32 %v773, 128
        %v838 = vmul.u32 %v774, 128
        %v839 = vmul.u32 %v775, 128
        %v840 = vadd.s32 %v776, %v260
        %v841 = vadd.s32 %v777, %v260
        %v842 = vadd.s32 %v778, %v260
        %v843 = vadd.s32 %v779, %v260
        %v844 = vadd.s32 %v780, %v260
        %v845 = vadd.s32 %v781, %v260
        %v846 = vadd.s32 %v782, %v260
        %v847 = vadd.s32 %v783, %v260
        %v848 = vadd.s32 %v784, %v260
        %v849 = vadd.s32 %v785, %v260
        %v850 = vadd.s32 %v786, %v260
        %v851 = vadd.s32 %v787, %v260
        %v852 = vadd.s32 %v788, %v260
        %v853 = vadd.s32 %v789, %v260
        %v854 = vadd.s32 %v790, %v260
        %v855 = vadd.s32 %v791, %v260
        %v856 = vadd.s32 %v792, %v260
        %v857 = vadd.s32 %v793, %v260
        %v858 = vadd.s32 %v794, %v260
        %v859 = vadd.s32 %v795, %v260
        %v860 = vadd.s32 %v796, %v260
        %v861 = vadd.s32 %v797, %v260
        %v862 = vadd.s32 %v798, %v260
        %v863 = vadd.s32 %v799, %v260
        %v864 = vadd.s32 %v800, %v260
        %v865 = vadd.s32 %v801, %v260
        %v866 = vadd.s32 %v802, %v260
        %v867 = vadd.s32 %v803, %v260
        %v868 = vadd.s32 %v804, %v260
        %v869 = vadd.s32 %v805, %v260
        %v870 = vadd.s32 %v806, %v260
        %v871 = vadd.s32 %v807, %v260
        %v872 = vadd.s32 %v808, %v260
        %v873 = vadd.s32 %v809, %v260
        %v874 = vadd.s32 %v810, %v260
        %v875 = vadd.s32 %v811, %v260
        %v876 = vadd.s32 %v812, %v260
        %v877 = vadd.s32 %v813, %v260
        %v878 = vadd.s32 %v814, %v260
        %v879 = vadd.s32 %v815, %v260
        %v880 = vadd.s32 %v816, %v260
        %v881 = vadd.s32 %v817, %v260
        %v882 = vadd.s32 %v818, %v260
        %v883 = vadd.s32 %v819, %v260
        %v884 = vadd.s32 %v820, %v260
        %v885 = vadd.s32 %v821, %v260
        %v886 = vadd.s32 %v822, %v260
        %v887 = vadd.s32 %v823, %v260
        %v888 = vadd.s32 %v824, %v260
        %v889 = vadd.s32 %v825, %v260
        %v890 = vadd.s32 %v826, %v260
        %v891 = vadd.s32 %v827, %v260
        %v892 = vadd.s32 %v828, %v260
        %v893 = vadd.s32 %v829, %v260
        %v894 = vadd.s32 %v830, %v260
        %v895 = vadd.s32 %v831, %v260
        %v896 = vadd.s32 %v832, %v260
        %v897 = vadd.s32 %v833, %v260
        %v898 = vadd.s32 %v834, %v260
        %v899 = vadd.s32 %v835, %v260
        %v900 = vadd.s32 %v836, %v260
        %v901 = vadd.s32 %v837, %v260
        %v902 = vadd.s32 %v838, %v260
        %v903 = vadd.s32 %v839, %v260
        %v904 = vmul.u32 %v840, 2654435769
        %v905 = vmul.u32 %v841, 2654435769
        %v906 = vmul.u32 %v842, 2654435769
        %v907 = vmul.u32 %v843, 2654435769
        %v908 = vmul.u32 %v844, 2654435769
        %v909 = vmul.u32 %v845, 2654435769
        %v910 = vmul.u32 %v846, 2654435769
        %v911 = vmul.u32 %v847, 2654435769
        %v912 = vmul.u32 %v848, 2654435769
        %v913 = vmul.u32 %v849, 2654435769
        %v914 = vmul.u32 %v850, 2654435769
        %v915 = vmul.u32 %v851, 2654435769
        %v916 = vmul.u32 %v852, 2654435769
        %v917 = vmul.u32 %v853, 2654435769
        %v918 = vmul.u32 %v854, 2654435769
        %v919 = vmul.u32 %v855, 2654435769
        %v920 = vmul.u32 %v856, 2654435769
        %v921 = vmul.u32 %v857, 2654435769
        %v922 = vmul.u32 %v858, 2654435769
        %v923 = vmul.u32 %v859, 2654435769
        %v924 = vmul.u32 %v860, 2654435769
        %v925 = vmul.u32 %v861, 2654435769
        %v926 = vmul.u32 %v862, 2654435769
        %v927 = vmul.u32 %v863, 2654435769
        %v928 = vmul.u32 %v864, 2654435769
        %v929 = vmul.u32 %v865, 2654435769
        %v930 = vmul.u32 %v866, 2654435769
        %v931 = vmul.u32 %v867, 2654435769
        %v932 = vmul.u32 %v868, 2654435769
        %v933 = vmul.u32 %v869, 2654435769
        %v934 = vmul.u32 %v870, 2654435769
        %v935 = vmul.u32 %v871, 2654435769
        %v936 = vmul.u32 %v872, 2654435769
        %v937 = vmul.u32 %v873, 2654435769
        %v938 = vmul.u32 %v874, 2654435769
        %v939 = vmul.u32 %v875, 2654435769
        %v940 = vmul.u32 %v876, 2654435769
        %v941 = vmul.u32 %v877, 2654435769
        %v942 = vmul.u32 %v878, 2654435769
        %v943 = vmul.u32 %v879, 2654435769
        %v944 = vmul.u32 %v880, 2654435769
        %v945 = vmul.u32 %v881, 2654435769
        %v946 = vmul.u32 %v882, 2654435769
        %v947 = vmul.u32 %v883, 2654435769
        %v948 = vmul.u32 %v884, 2654435769
        %v949 = vmul.u32 %v885, 2654435769
        %v950 = vmul.u32 %v886, 2654435769
        %v951 = vmul.u32 %v887, 2654435769
        %v952 = vmul.u32 %v888, 2654435769
        %v953 = vmul.u32 %v889, 2654435769
        %v954 = vmul.u32 %v890, 2654435769
        %v955 = vmul.u32 %v891, 2654435769
        %v956 = vmul.u32 %v892, 2654435769
        %v957 = vmul.u32 %v893, 2654435769
        %v958 = vmul.u32 %v894, 2654435769
        %v959 = vmul.u32 %v895, 2654435769
        %v960 = vmul.u32 %v896, 2654435769
        %v961 = vmul.u32 %v897, 2654435769
        %v962 = vmul.u32 %v898, 2654435769
        %v963 = vmul.u32 %v899, 2654435769
        %v964 = vmul.u32 %v900, 2654435769
        %v965 = vmul.u32 %v901, 2654435769
        %v966 = vmul.u32 %v902, 2654435769
        %v967 = vmul.u32 %v903, 2654435769
        %s968 = sxor.u32 %s258, 1013904242
        %s969 = sshrl.u32 %s968, 16
        %s970 = sxor.u32 %s968, %s969
        %s971 = smul.u32 %s970, 2246822507
        %s972 = sshrl.u32 %s971, 13
        %s973 = sxor.u32 %s971, %s972
        %s974 = smul.u32 %s973, 3266489909
        %s975 = sshrl.u32 %s974, 16
        %s976 = sxor.u32 %s974, %s975
        %s977 = sxor.u32 %s258, 3144134277
        %s978 = sshrl.u32 %s977, 16
        %s979 = sxor.u32 %s977, %s978
        %s980 = smul.u32 %s979, 2246822507
        %s981 = sshrl.u32 %s980, 13
        %s982 = sxor.u32 %s980, %s981
        %s983 = smul.u32 %s982, 3266489909
        %s984 = sshrl.u32 %s983, 16
        %s985 = sxor.u32 %s983, %s984
        %v986 = vstv %s976
        %v987 = vadd.s32 %v904, %v986
        %v988 = vadd.s32 %v905, %v986
        %v989 = vadd.s32 %v906, %v986
        %v990 = vadd.s32 %v907, %v986
        %v991 = vadd.s32 %v908, %v986
        %v992 = vadd.s32 %v909, %v986
        %v993 = vadd.s32 %v910, %v986
        %v994 = vadd.s32 %v911, %v986
        %v995 = vadd.s32 %v912, %v986
        %v996 = vadd.s32 %v913, %v986
        %v997 = vadd.s32 %v914, %v986
        %v998 = vadd.s32 %v915, %v986
        %v999 = vadd.s32 %v916, %v986
        %v1000 = vadd.s32 %v917, %v986
        %v1001 = vadd.s32 %v918, %v986
        %v1002 = vadd.s32 %v919, %v986
        %v1003 = vadd.s32 %v920, %v986
        %v1004 = vadd.s32 %v921, %v986
        %v1005 = vadd.s32 %v922, %v986
        %v1006 = vadd.s32 %v923, %v986
        %v1007 = vadd.s32 %v924, %v986
        %v1008 = vadd.s32 %v925, %v986
        %v1009 = vadd.s32 %v926, %v986
        %v1010 = vadd.s32 %v927, %v986
        %v1011 = vadd.s32 %v928, %v986
        %v1012 = vadd.s32 %v929, %v986
        %v1013 = vadd.s32 %v930, %v986
        %v1014 = vadd.s32 %v931, %v986
        %v1015 = vadd.s32 %v932, %v986
        %v1016 = vadd.s32 %v933, %v986
        %v1017 = vadd.s32 %v934, %v986
        %v1018 = vadd.s32 %v935, %v986
        %v1019 = vadd.s32 %v936, %v986
        %v1020 = vadd.s32 %v937, %v986
        %v1021 = vadd.s32 %v938, %v986
        %v1022 = vadd.s32 %v939, %v986
        %v1023 = vadd.s32 %v940, %v986
        %v1024 = vadd.s32 %v941, %v986
        %v1025 = vadd.s32 %v942, %v986
        %v1026 = vadd.s32 %v943, %v986
        %v1027 = vadd.s32 %v944, %v986
        %v1028 = vadd.s32 %v945, %v986
        %v1029 = vadd.s32 %v946, %v986
        %v1030 = vadd.s32 %v947, %v986
        %v1031 = vadd.s32 %v948, %v986
        %v1032 = vadd.s32 %v949, %v986
        %v1033 = vadd.s32 %v950, %v986
        %v1034 = vadd.s32 %v951, %v986
        %v1035 = vadd.s32 %v952, %v986
        %v1036 = vadd.s32 %v953, %v986
        %v1037 = vadd.s32 %v954, %v986
        %v1038 = vadd.s32 %v955, %v986
        %v1039 = vadd.s32 %v956, %v986
        %v1040 = vadd.s32 %v957, %v986
        %v1041 = vadd.s32 %v958, %v986
        %v1042 = vadd.s32 %v959, %v986
        %v1043 = vadd.s32 %v960, %v986
        %v1044 = vadd.s32 %v961, %v986
        %v1045 = vadd.s32 %v962, %v986
        %v1046 = vadd.s32 %v963, %v986
        %v1047 = vadd.s32 %v964, %v986
        %v1048 = vadd.s32 %v965, %v986
        %v1049 = vadd.s32 %v966, %v986
        %v1050 = vadd.s32 %v967, %v986
        %v1051 = vshrl.u32 %v987, 16
        %v1052 = vshrl.u32 %v988, 16
        %v1053 = vshrl.u32 %v989, 16
        %v1054 = vshrl.u32 %v990, 16
        %v1055 = vshrl.u32 %v991, 16
        %v1056 = vshrl.u32 %v992, 16
        %v1057 = vshrl.u32 %v993, 16
        %v1058 = vshrl.u32 %v994, 16
        %v1059 = vshrl.u32 %v995, 16
        %v1060 = vshrl.u32 %v996, 16
        %v1061 = vshrl.u32 %v997, 16
        %v1062 = vshrl.u32 %v998, 16
        %v1063 = vshrl.u32 %v999, 16
        %v1064 = vshrl.u32 %v1000, 16
        %v1065 = vshrl.u32 %v1001, 16
        %v1066 = vshrl.u32 %v1002, 16
        %v1067 = vshrl.u32 %v1003, 16
        %v1068 = vshrl.u32 %v1004, 16
        %v1069 = vshrl.u32 %v1005, 16
        %v1070 = vshrl.u32 %v1006, 16
        %v1071 = vshrl.u32 %v1007, 16
        %v1072 = vshrl.u32 %v1008, 16
        %v1073 = vshrl.u32 %v1009, 16
        %v1074 = vshrl.u32 %v1010, 16
        %v1075 = vshrl.u32 %v1011, 16
        %v1076 = vshrl.u32 %v1012, 16
        %v1077 = vshrl.u32 %v1013, 16
        %v1078 = vshrl.u32 %v1014, 16
        %v1079 = vshrl.u32 %v1015, 16
        %v1080 = vshrl.u32 %v1016, 16
        %v1081 = vshrl.u32 %v1017, 16
        %v1082 = vshrl.u32 %v1018, 16
        %v1083 = vshrl.u32 %v1019, 16
        %v1084 = vshrl.u32 %v1020, 16
        %v1085 = vshrl.u32 %v1021, 16
        %v1086 = vshrl.u32 %v1022, 16
        %v1087 = vshrl.u32 %v1023, 16
        %v1088 = vshrl.u32 %v1024, 16
        %v1089 = vshrl.u32 %v1025, 16
        %v1090 = vshrl.u32 %v1026, 16
        %v1091 = vshrl.u32 %v1027, 16
        %v1092 = vshrl.u32 %v1028, 16
        %v1093 = vshrl.u32 %v1029, 16
        %v1094 = vshrl.u32 %v1030, 16
        %v1095 = vshrl.u32 %v1031, 16
        %v1096 = vshrl.u32 %v1032, 16
        %v1097 = vshrl.u32 %v1033, 16
        %v1098 = vshrl.u32 %v1034, 16
        %v1099 = vshrl.u32 %v1035, 16
        %v1100 = vshrl.u32 %v1036, 16
        %v1101 = vshrl.u32 %v1037, 16
        %v1102 = vshrl.u32 %v1038, 16
        %v1103 = vshrl.u32 %v1039, 16
        %v1104 = vshrl.u32 %v1040, 16
        %v1105 = vshrl.u32 %v1041, 16
        %v1106 = vshrl.u32 %v1042, 16
        %v1107 = vshrl.u32 %v1043, 16
        %v1108 = vshrl.u32 %v1044, 16
        %v1109 = vshrl.u32 %v1045, 16
        %v1110 = vshrl.u32 %v1046, 16
        %v1111 = vshrl.u32 %v1047, 16
        %v1112 = vshrl.u32 %v1048, 16
        %v1113 = vshrl.u32 %v1049, 16
        %v1114 = vshrl.u32 %v1050, 16
        %v1115 = vxor.u32 %v987, %v1051
        %v1116 = vxor.u32 %v988, %v1052
        %v1117 = vxor.u32 %v989, %v1053
        %v1118 = vxor.u32 %v990, %v1054
        %v1119 = vxor.u32 %v991, %v1055
        %v1120 = vxor.u32 %v992, %v1056
        %v1121 = vxor.u32 %v993, %v1057
        %v1122 = vxor.u32 %v994, %v1058
        %v1123 = vxor.u32 %v995, %v1059
        %v1124 = vxor.u32 %v996, %v1060
        %v1125 = vxor.u32 %v997, %v1061
        %v1126 = vxor.u32 %v998, %v1062
        %v1127 = vxor.u32 %v999, %v1063
        %v1128 = vxor.u32 %v1000, %v1064
        %v1129 = vxor.u32 %v1001, %v1065
        %v1130 = vxor.u32 %v1002, %v1066
        %v1131 = vxor.u32 %v1003, %v1067
        %v1132 = vxor.u32 %v1004, %v1068
        %v1133 = vxor.u32 %v1005, %v1069
        %v1134 = vxor.u32 %v1006, %v1070
        %v1135 = vxor.u32 %v1007, %v1071
        %v1136 = vxor.u32 %v1008, %v1072
        %v1137 = vxor.u32 %v1009, %v1073
        %v1138 = vxor.u32 %v1010, %v1074
        %v1139 = vxor.u32 %v1011, %v1075
        %v1140 = vxor.u32 %v1012, %v1076
        %v1141 = vxor.u32 %v1013, %v1077
        %v1142 = vxor.u32 %v1014, %v1078
        %v1143 = vxor.u32 %v1015, %v1079
        %v1144 = vxor.u32 %v1016, %v1080
        %v1145 = vxor.u32 %v1017, %v1081
        %v1146 = vxor.u32 %v1018, %v1082
        %v1147 = vxor.u32 %v1019, %v1083
        %v1148 = vxor.u32 %v1020, %v1084
        %v1149 = vxor.u32 %v1021, %v1085
        %v1150 = vxor.u32 %v1022, %v1086
        %v1151 = vxor.u32 %v1023, %v1087
        %v1152 = vxor.u32 %v1024, %v1088
        %v1153 = vxor.u32 %v1025, %v1089
        %v1154 = vxor.u32 %v1026, %v1090
        %v1155 = vxor.u32 %v1027, %v1091
        %v1156 = vxor.u32 %v1028, %v1092
        %v1157 = vxor.u32 %v1029, %v1093
        %v1158 = vxor.u32 %v1030, %v1094
        %v1159 = vxor.u32 %v1031, %v1095
        %v1160 = vxor.u32 %v1032, %v1096
        %v1161 = vxor.u32 %v1033, %v1097
        %v1162 = vxor.u32 %v1034, %v1098
        %v1163 = vxor.u32 %v1035, %v1099
        %v1164 = vxor.u32 %v1036, %v1100
        %v1165 = vxor.u32 %v1037, %v1101
        %v1166 = vxor.u32 %v1038, %v1102
        %v1167 = vxor.u32 %v1039, %v1103
        %v1168 = vxor.u32 %v1040, %v1104
        %v1169 = vxor.u32 %v1041, %v1105
        %v1170 = vxor.u32 %v1042, %v1106
        %v1171 = vxor.u32 %v1043, %v1107
        %v1172 = vxor.u32 %v1044, %v1108
        %v1173 = vxor.u32 %v1045, %v1109
        %v1174 = vxor.u32 %v1046, %v1110
        %v1175 = vxor.u32 %v1047, %v1111
        %v1176 = vxor.u32 %v1048, %v1112
        %v1177 = vxor.u32 %v1049, %v1113
        %v1178 = vxor.u32 %v1050, %v1114
        %v1179 = vmul.u32 %v1115, 2246822507
        %v1180 = vmul.u32 %v1116, 2246822507
        %v1181 = vmul.u32 %v1117, 2246822507
        %v1182 = vmul.u32 %v1118, 2246822507
        %v1183 = vmul.u32 %v1119, 2246822507
        %v1184 = vmul.u32 %v1120, 2246822507
        %v1185 = vmul.u32 %v1121, 2246822507
        %v1186 = vmul.u32 %v1122, 2246822507
        %v1187 = vmul.u32 %v1123, 2246822507
        %v1188 = vmul.u32 %v1124, 2246822507
        %v1189 = vmul.u32 %v1125, 2246822507
        %v1190 = vmul.u32 %v1126, 2246822507
        %v1191 = vmul.u32 %v1127, 2246822507
        %v1192 = vmul.u32 %v1128, 2246822507
        %v1193 = vmul.u32 %v1129, 2246822507
        %v1194 = vmul.u32 %v1130, 2246822507
        %v1195 = vmul.u32 %v1131, 2246822507
        %v1196 = vmul.u32 %v1132, 2246822507
        %v1197 = vmul.u32 %v1133, 2246822507
        %v1198 = vmul.u32 %v1134, 2246822507
        %v1199 = vmul.u32 %v1135, 2246822507
        %v1200 = vmul.u32 %v1136, 2246822507
        %v1201 = vmul.u32 %v1137, 2246822507
        %v1202 = vmul.u32 %v1138, 2246822507
        %v1203 = vmul.u32 %v1139, 2246822507
        %v1204 = vmul.u32 %v1140, 2246822507
        %v1205 = vmul.u32 %v1141, 2246822507
        %v1206 = vmul.u32 %v1142, 2246822507
        %v1207 = vmul.u32 %v1143, 2246822507
        %v1208 = vmul.u32 %v1144, 2246822507
        %v1209 = vmul.u32 %v1145, 2246822507
        %v1210 = vmul.u32 %v1146, 2246822507
        %v1211 = vmul.u32 %v1147, 2246822507
        %v1212 = vmul.u32 %v1148, 2246822507
        %v1213 = vmul.u32 %v1149, 2246822507
        %v1214 = vmul.u32 %v1150, 2246822507
        %v1215 = vmul.u32 %v1151, 2246822507
        %v1216 = vmul.u32 %v1152, 2246822507
        %v1217 = vmul.u32 %v1153, 2246822507
        %v1218 = vmul.u32 %v1154, 2246822507
        %v1219 = vmul.u32 %v1155, 2246822507
        %v1220 = vmul.u32 %v1156, 2246822507
        %v1221 = vmul.u32 %v1157, 2246822507
        %v1222 = vmul.u32 %v1158, 2246822507
        %v1223 = vmul.u32 %v1159, 2246822507
        %v1224 = vmul.u32 %v1160, 2246822507
        %v1225 = vmul.u32 %v1161, 2246822507
        %v1226 = vmul.u32 %v1162, 2246822507
        %v1227 = vmul.u32 %v1163, 2246822507
        %v1228 = vmul.u32 %v1164, 2246822507
        %v1229 = vmul.u32 %v1165, 2246822507
        %v1230 = vmul.u32 %v1166, 2246822507
        %v1231 = vmul.u32 %v1167, 2246822507
        %v1232 = vmul.u32 %v1168, 2246822507
        %v1233 = vmul.u32 %v1169, 2246822507
        %v1234 = vmul.u32 %v1170, 2246822507
        %v1235 = vmul.u32 %v1171, 2246822507
        %v1236 = vmul.u32 %v1172, 2246822507
        %v1237 = vmul.u32 %v1173, 2246822507
        %v1238 = vmul.u32 %v1174, 2246822507
        %v1239 = vmul.u32 %v1175, 2246822507
        %v1240 = vmul.u32 %v1176, 2246822507
        %v1241 = vmul.u32 %v1177, 2246822507
        %v1242 = vmul.u32 %v1178, 2246822507
        %v1243 = vshrl.u32 %v1179, 13
        %v1244 = vshrl.u32 %v1180, 13
        %v1245 = vshrl.u32 %v1181, 13
        %v1246 = vshrl.u32 %v1182, 13
        %v1247 = vshrl.u32 %v1183, 13
        %v1248 = vshrl.u32 %v1184, 13
        %v1249 = vshrl.u32 %v1185, 13
        %v1250 = vshrl.u32 %v1186, 13
        %v1251 = vshrl.u32 %v1187, 13
        %v1252 = vshrl.u32 %v1188, 13
        %v1253 = vshrl.u32 %v1189, 13
        %v1254 = vshrl.u32 %v1190, 13
        %v1255 = vshrl.u32 %v1191, 13
        %v1256 = vshrl.u32 %v1192, 13
        %v1257 = vshrl.u32 %v1193, 13
        %v1258 = vshrl.u32 %v1194, 13
        %v1259 = vshrl.u32 %v1195, 13
        %v1260 = vshrl.u32 %v1196, 13
        %v1261 = vshrl.u32 %v1197, 13
        %v1262 = vshrl.u32 %v1198, 13
        %v1263 = vshrl.u32 %v1199, 13
        %v1264 = vshrl.u32 %v1200, 13
        %v1265 = vshrl.u32 %v1201, 13
        %v1266 = vshrl.u32 %v1202, 13
        %v1267 = vshrl.u32 %v1203, 13
        %v1268 = vshrl.u32 %v1204, 13
        %v1269 = vshrl.u32 %v1205, 13
        %v1270 = vshrl.u32 %v1206, 13
        %v1271 = vshrl.u32 %v1207, 13
        %v1272 = vshrl.u32 %v1208, 13
        %v1273 = vshrl.u32 %v1209, 13
        %v1274 = vshrl.u32 %v1210, 13
        %v1275 = vshrl.u32 %v1211, 13
        %v1276 = vshrl.u32 %v1212, 13
        %v1277 = vshrl.u32 %v1213, 13
        %v1278 = vshrl.u32 %v1214, 13
        %v1279 = vshrl.u32 %v1215, 13
        %v1280 = vshrl.u32 %v1216, 13
        %v1281 = vshrl.u32 %v1217, 13
        %v1282 = vshrl.u32 %v1218, 13
        %v1283 = vshrl.u32 %v1219, 13
        %v1284 = vshrl.u32 %v1220, 13
        %v1285 = vshrl.u32 %v1221, 13
        %v1286 = vshrl.u32 %v1222, 13
        %v1287 = vshrl.u32 %v1223, 13
        %v1288 = vshrl.u32 %v1224, 13
        %v1289 = vshrl.u32 %v1225, 13
        %v1290 = vshrl.u32 %v1226, 13
        %v1291 = vshrl.u32 %v1227, 13
        %v1292 = vshrl.u32 %v1228, 13
        %v1293 = vshrl.u32 %v1229, 13
        %v1294 = vshrl.u32 %v1230, 13
        %v1295 = vshrl.u32 %v1231, 13
        %v1296 = vshrl.u32 %v1232, 13
        %v1297 = vshrl.u32 %v1233, 13
        %v1298 = vshrl.u32 %v1234, 13
        %v1299 = vshrl.u32 %v1235, 13
        %v1300 = vshrl.u32 %v1236, 13
        %v1301 = vshrl.u32 %v1237, 13
        %v1302 = vshrl.u32 %v1238, 13
        %v1303 = vshrl.u32 %v1239, 13
        %v1304 = vshrl.u32 %v1240, 13
        %v1305 = vshrl.u32 %v1241, 13
        %v1306 = vshrl.u32 %v1242, 13
        %v1307 = vxor.u32 %v1179, %v1243
        %v1308 = vxor.u32 %v1180, %v1244
        %v1309 = vxor.u32 %v1181, %v1245
        %v1310 = vxor.u32 %v1182, %v1246
        %v1311 = vxor.u32 %v1183, %v1247
        %v1312 = vxor.u32 %v1184, %v1248
        %v1313 = vxor.u32 %v1185, %v1249
        %v1314 = vxor.u32 %v1186, %v1250
        %v1315 = vxor.u32 %v1187, %v1251
        %v1316 = vxor.u32 %v1188, %v1252
        %v1317 = vxor.u32 %v1189, %v1253
        %v1318 = vxor.u32 %v1190, %v1254
        %v1319 = vxor.u32 %v1191, %v1255
        %v1320 = vxor.u32 %v1192, %v1256
        %v1321 = vxor.u32 %v1193, %v1257
        %v1322 = vxor.u32 %v1194, %v1258
        %v1323 = vxor.u32 %v1195, %v1259
        %v1324 = vxor.u32 %v1196, %v1260
        %v1325 = vxor.u32 %v1197, %v1261
        %v1326 = vxor.u32 %v1198, %v1262
        %v1327 = vxor.u32 %v1199, %v1263
        %v1328 = vxor.u32 %v1200, %v1264
        %v1329 = vxor.u32 %v1201, %v1265
        %v1330 = vxor.u32 %v1202, %v1266
        %v1331 = vxor.u32 %v1203, %v1267
        %v1332 = vxor.u32 %v1204, %v1268
        %v1333 = vxor.u32 %v1205, %v1269
        %v1334 = vxor.u32 %v1206, %v1270
        %v1335 = vxor.u32 %v1207, %v1271
        %v1336 = vxor.u32 %v1208, %v1272
        %v1337 = vxor.u32 %v1209, %v1273
        %v1338 = vxor.u32 %v1210, %v1274
        %v1339 = vxor.u32 %v1211, %v1275
        %v1340 = vxor.u32 %v1212, %v1276
        %v1341 = vxor.u32 %v1213, %v1277
        %v1342 = vxor.u32 %v1214, %v1278
        %v1343 = vxor.u32 %v1215, %v1279
        %v1344 = vxor.u32 %v1216, %v1280
        %v1345 = vxor.u32 %v1217, %v1281
        %v1346 = vxor.u32 %v1218, %v1282
        %v1347 = vxor.u32 %v1219, %v1283
        %v1348 = vxor.u32 %v1220, %v1284
        %v1349 = vxor.u32 %v1221, %v1285
        %v1350 = vxor.u32 %v1222, %v1286
        %v1351 = vxor.u32 %v1223, %v1287
        %v1352 = vxor.u32 %v1224, %v1288
        %v1353 = vxor.u32 %v1225, %v1289
        %v1354 = vxor.u32 %v1226, %v1290
        %v1355 = vxor.u32 %v1227, %v1291
        %v1356 = vxor.u32 %v1228, %v1292
        %v1357 = vxor.u32 %v1229, %v1293
        %v1358 = vxor.u32 %v1230, %v1294
        %v1359 = vxor.u32 %v1231, %v1295
        %v1360 = vxor.u32 %v1232, %v1296
        %v1361 = vxor.u32 %v1233, %v1297
        %v1362 = vxor.u32 %v1234, %v1298
        %v1363 = vxor.u32 %v1235, %v1299
        %v1364 = vxor.u32 %v1236, %v1300
        %v1365 = vxor.u32 %v1237, %v1301
        %v1366 = vxor.u32 %v1238, %v1302
        %v1367 = vxor.u32 %v1239, %v1303
        %v1368 = vxor.u32 %v1240, %v1304
        %v1369 = vxor.u32 %v1241, %v1305
        %v1370 = vxor.u32 %v1242, %v1306
        %v1371 = vmul.u32 %v1307, 3266489909
        %v1372 = vmul.u32 %v1308, 3266489909
        %v1373 = vmul.u32 %v1309, 3266489909
        %v1374 = vmul.u32 %v1310, 3266489909
        %v1375 = vmul.u32 %v1311, 3266489909
        %v1376 = vmul.u32 %v1312, 3266489909
        %v1377 = vmul.u32 %v1313, 3266489909
        %v1378 = vmul.u32 %v1314, 3266489909
        %v1379 = vmul.u32 %v1315, 3266489909
        %v1380 = vmul.u32 %v1316, 3266489909
        %v1381 = vmul.u32 %v1317, 3266489909
        %v1382 = vmul.u32 %v1318, 3266489909
        %v1383 = vmul.u32 %v1319, 3266489909
        %v1384 = vmul.u32 %v1320, 3266489909
        %v1385 = vmul.u32 %v1321, 3266489909
        %v1386 = vmul.u32 %v1322, 3266489909
        %v1387 = vmul.u32 %v1323, 3266489909
        %v1388 = vmul.u32 %v1324, 3266489909
        %v1389 = vmul.u32 %v1325, 3266489909
        %v1390 = vmul.u32 %v1326, 3266489909
        %v1391 = vmul.u32 %v1327, 3266489909
        %v1392 = vmul.u32 %v1328, 3266489909
        %v1393 = vmul.u32 %v1329, 3266489909
        %v1394 = vmul.u32 %v1330, 3266489909
        %v1395 = vmul.u32 %v1331, 3266489909
        %v1396 = vmul.u32 %v1332, 3266489909
        %v1397 = vmul.u32 %v1333, 3266489909
        %v1398 = vmul.u32 %v1334, 3266489909
        %v1399 = vmul.u32 %v1335, 3266489909
        %v1400 = vmul.u32 %v1336, 3266489909
        %v1401 = vmul.u32 %v1337, 3266489909
        %v1402 = vmul.u32 %v1338, 3266489909
        %v1403 = vmul.u32 %v1339, 3266489909
        %v1404 = vmul.u32 %v1340, 3266489909
        %v1405 = vmul.u32 %v1341, 3266489909
        %v1406 = vmul.u32 %v1342, 3266489909
        %v1407 = vmul.u32 %v1343, 3266489909
        %v1408 = vmul.u32 %v1344, 3266489909
        %v1409 = vmul.u32 %v1345, 3266489909
        %v1410 = vmul.u32 %v1346, 3266489909
        %v1411 = vmul.u32 %v1347, 3266489909
        %v1412 = vmul.u32 %v1348, 3266489909
        %v1413 = vmul.u32 %v1349, 3266489909
        %v1414 = vmul.u32 %v1350, 3266489909
        %v1415 = vmul.u32 %v1351, 3266489909
        %v1416 = vmul.u32 %v1352, 3266489909
        %v1417 = vmul.u32 %v1353, 3266489909
        %v1418 = vmul.u32 %v1354, 3266489909
        %v1419 = vmul.u32 %v1355, 3266489909
        %v1420 = vmul.u32 %v1356, 3266489909
        %v1421 = vmul.u32 %v1357, 3266489909
        %v1422 = vmul.u32 %v1358, 3266489909
        %v1423 = vmul.u32 %v1359, 3266489909
        %v1424 = vmul.u32 %v1360, 3266489909
        %v1425 = vmul.u32 %v1361, 3266489909
        %v1426 = vmul.u32 %v1362, 3266489909
        %v1427 = vmul.u32 %v1363, 3266489909
        %v1428 = vmul.u32 %v1364, 3266489909
        %v1429 = vmul.u32 %v1365, 3266489909
        %v1430 = vmul.u32 %v1366, 3266489909
        %v1431 = vmul.u32 %v1367, 3266489909
        %v1432 = vmul.u32 %v1368, 3266489909
        %v1433 = vmul.u32 %v1369, 3266489909
        %v1434 = vmul.u32 %v1370, 3266489909
        %v1435 = vshrl.u32 %v1371, 16
        %v1436 = vshrl.u32 %v1372, 16
        %v1437 = vshrl.u32 %v1373, 16
        %v1438 = vshrl.u32 %v1374, 16
        %v1439 = vshrl.u32 %v1375, 16
        %v1440 = vshrl.u32 %v1376, 16
        %v1441 = vshrl.u32 %v1377, 16
        %v1442 = vshrl.u32 %v1378, 16
        %v1443 = vshrl.u32 %v1379, 16
        %v1444 = vshrl.u32 %v1380, 16
        %v1445 = vshrl.u32 %v1381, 16
        %v1446 = vshrl.u32 %v1382, 16
        %v1447 = vshrl.u32 %v1383, 16
        %v1448 = vshrl.u32 %v1384, 16
        %v1449 = vshrl.u32 %v1385, 16
        %v1450 = vshrl.u32 %v1386, 16
        %v1451 = vshrl.u32 %v1387, 16
        %v1452 = vshrl.u32 %v1388, 16
        %v1453 = vshrl.u32 %v1389, 16
        %v1454 = vshrl.u32 %v1390, 16
        %v1455 = vshrl.u32 %v1391, 16
        %v1456 = vshrl.u32 %v1392, 16
        %v1457 = vshrl.u32 %v1393, 16
        %v1458 = vshrl.u32 %v1394, 16
        %v1459 = vshrl.u32 %v1395, 16
        %v1460 = vshrl.u32 %v1396, 16
        %v1461 = vshrl.u32 %v1397, 16
        %v1462 = vshrl.u32 %v1398, 16
        %v1463 = vshrl.u32 %v1399, 16
        %v1464 = vshrl.u32 %v1400, 16
        %v1465 = vshrl.u32 %v1401, 16
        %v1466 = vshrl.u32 %v1402, 16
        %v1467 = vshrl.u32 %v1403, 16
        %v1468 = vshrl.u32 %v1404, 16
        %v1469 = vshrl.u32 %v1405, 16
        %v1470 = vshrl.u32 %v1406, 16
        %v1471 = vshrl.u32 %v1407, 16
        %v1472 = vshrl.u32 %v1408, 16
        %v1473 = vshrl.u32 %v1409, 16
        %v1474 = vshrl.u32 %v1410, 16
        %v1475 = vshrl.u32 %v1411, 16
        %v1476 = vshrl.u32 %v1412, 16
        %v1477 = vshrl.u32 %v1413, 16
        %v1478 = vshrl.u32 %v1414, 16
        %v1479 = vshrl.u32 %v1415, 16
        %v1480 = vshrl.u32 %v1416, 16
        %v1481 = vshrl.u32 %v1417, 16
        %v1482 = vshrl.u32 %v1418, 16
        %v1483 = vshrl.u32 %v1419, 16
        %v1484 = vshrl.u32 %v1420, 16
        %v1485 = vshrl.u32 %v1421, 16
        %v1486 = vshrl.u32 %v1422, 16
        %v1487 = vshrl.u32 %v1423, 16
        %v1488 = vshrl.u32 %v1424, 16
        %v1489 = vshrl.u32 %v1425, 16
        %v1490 = vshrl.u32 %v1426, 16
        %v1491 = vshrl.u32 %v1427, 16
        %v1492 = vshrl.u32 %v1428, 16
        %v1493 = vshrl.u32 %v1429, 16
        %v1494 = vshrl.u32 %v1430, 16
        %v1495 = vshrl.u32 %v1431, 16
        %v1496 = vshrl.u32 %v1432, 16
        %v1497 = vshrl.u32 %v1433, 16
        %v1498 = vshrl.u32 %v1434, 16
        %v1499 = vxor.u32 %v1371, %v1435
        %v1500 = vxor.u32 %v1372, %v1436
        %v1501 = vxor.u32 %v1373, %v1437
        %v1502 = vxor.u32 %v1374, %v1438
        %v1503 = vxor.u32 %v1375, %v1439
        %v1504 = vxor.u32 %v1376, %v1440
        %v1505 = vxor.u32 %v1377, %v1441
        %v1506 = vxor.u32 %v1378, %v1442
        %v1507 = vxor.u32 %v1379, %v1443
        %v1508 = vxor.u32 %v1380, %v1444
        %v1509 = vxor.u32 %v1381, %v1445
        %v1510 = vxor.u32 %v1382, %v1446
        %v1511 = vxor.u32 %v1383, %v1447
        %v1512 = vxor.u32 %v1384, %v1448
        %v1513 = vxor.u32 %v1385, %v1449
        %v1514 = vxor.u32 %v1386, %v1450
        %v1515 = vxor.u32 %v1387, %v1451
        %v1516 = vxor.u32 %v1388, %v1452
        %v1517 = vxor.u32 %v1389, %v1453
        %v1518 = vxor.u32 %v1390, %v1454
        %v1519 = vxor.u32 %v1391, %v1455
        %v1520 = vxor.u32 %v1392, %v1456
        %v1521 = vxor.u32 %v1393, %v1457
        %v1522 = vxor.u32 %v1394, %v1458
        %v1523 = vxor.u32 %v1395, %v1459
        %v1524 = vxor.u32 %v1396, %v1460
        %v1525 = vxor.u32 %v1397, %v1461
        %v1526 = vxor.u32 %v1398, %v1462
        %v1527 = vxor.u32 %v1399, %v1463
        %v1528 = vxor.u32 %v1400, %v1464
        %v1529 = vxor.u32 %v1401, %v1465
        %v1530 = vxor.u32 %v1402, %v1466
        %v1531 = vxor.u32 %v1403, %v1467
        %v1532 = vxor.u32 %v1404, %v1468
        %v1533 = vxor.u32 %v1405, %v1469
        %v1534 = vxor.u32 %v1406, %v1470
        %v1535 = vxor.u32 %v1407, %v1471
        %v1536 = vxor.u32 %v1408, %v1472
        %v1537 = vxor.u32 %v1409, %v1473
        %v1538 = vxor.u32 %v1410, %v1474
        %v1539 = vxor.u32 %v1411, %v1475
        %v1540 = vxor.u32 %v1412, %v1476
        %v1541 = vxor.u32 %v1413, %v1477
        %v1542 = vxor.u32 %v1414, %v1478
        %v1543 = vxor.u32 %v1415, %v1479
        %v1544 = vxor.u32 %v1416, %v1480
        %v1545 = vxor.u32 %v1417, %v1481
        %v1546 = vxor.u32 %v1418, %v1482
        %v1547 = vxor.u32 %v1419, %v1483
        %v1548 = vxor.u32 %v1420, %v1484
        %v1549 = vxor.u32 %v1421, %v1485
        %v1550 = vxor.u32 %v1422, %v1486
        %v1551 = vxor.u32 %v1423, %v1487
        %v1552 = vxor.u32 %v1424, %v1488
        %v1553 = vxor.u32 %v1425, %v1489
        %v1554 = vxor.u32 %v1426, %v1490
        %v1555 = vxor.u32 %v1427, %v1491
        %v1556 = vxor.u32 %v1428, %v1492
        %v1557 = vxor.u32 %v1429, %v1493
        %v1558 = vxor.u32 %v1430, %v1494
        %v1559 = vxor.u32 %v1431, %v1495
        %v1560 = vxor.u32 %v1432, %v1496
        %v1561 = vxor.u32 %v1433, %v1497
        %v1562 = vxor.u32 %v1434, %v1498
        %v1563 = vshrl.u32 %v1499, 9
        %v1564 = vshrl.u32 %v1500, 9
        %v1565 = vshrl.u32 %v1501, 9
        %v1566 = vshrl.u32 %v1502, 9
        %v1567 = vshrl.u32 %v1503, 9
        %v1568 = vshrl.u32 %v1504, 9
        %v1569 = vshrl.u32 %v1505, 9
        %v1570 = vshrl.u32 %v1506, 9
        %v1571 = vshrl.u32 %v1507, 9
        %v1572 = vshrl.u32 %v1508, 9
        %v1573 = vshrl.u32 %v1509, 9
        %v1574 = vshrl.u32 %v1510, 9
        %v1575 = vshrl.u32 %v1511, 9
        %v1576 = vshrl.u32 %v1512, 9
        %v1577 = vshrl.u32 %v1513, 9
        %v1578 = vshrl.u32 %v1514, 9
        %v1579 = vshrl.u32 %v1515, 9
        %v1580 = vshrl.u32 %v1516, 9
        %v1581 = vshrl.u32 %v1517, 9
        %v1582 = vshrl.u32 %v1518, 9
        %v1583 = vshrl.u32 %v1519, 9
        %v1584 = vshrl.u32 %v1520, 9
        %v1585 = vshrl.u32 %v1521, 9
        %v1586 = vshrl.u32 %v1522, 9
        %v1587 = vshrl.u32 %v1523, 9
        %v1588 = vshrl.u32 %v1524, 9
        %v1589 = vshrl.u32 %v1525, 9
        %v1590 = vshrl.u32 %v1526, 9
        %v1591 = vshrl.u32 %v1527, 9
        %v1592 = vshrl.u32 %v1528, 9
        %v1593 = vshrl.u32 %v1529, 9
        %v1594 = vshrl.u32 %v1530, 9
        %v1595 = vshrl.u32 %v1531, 9
        %v1596 = vshrl.u32 %v1532, 9
        %v1597 = vshrl.u32 %v1533, 9
        %v1598 = vshrl.u32 %v1534, 9
        %v1599 = vshrl.u32 %v1535, 9
        %v1600 = vshrl.u32 %v1536, 9
        %v1601 = vshrl.u32 %v1537, 9
        %v1602 = vshrl.u32 %v1538, 9
        %v1603 = vshrl.u32 %v1539, 9
        %v1604 = vshrl.u32 %v1540, 9
        %v1605 = vshrl.u32 %v1541, 9
        %v1606 = vshrl.u32 %v1542, 9
        %v1607 = vshrl.u32 %v1543, 9
        %v1608 = vshrl.u32 %v1544, 9
        %v1609 = vshrl.u32 %v1545, 9
        %v1610 = vshrl.u32 %v1546, 9
        %v1611 = vshrl.u32 %v1547, 9
        %v1612 = vshrl.u32 %v1548, 9
        %v1613 = vshrl.u32 %v1549, 9
        %v1614 = vshrl.u32 %v1550, 9
        %v1615 = vshrl.u32 %v1551, 9
        %v1616 = vshrl.u32 %v1552, 9
        %v1617 = vshrl.u32 %v1553, 9
        %v1618 = vshrl.u32 %v1554, 9
        %v1619 = vshrl.u32 %v1555, 9
        %v1620 = vshrl.u32 %v1556, 9
        %v1621 = vshrl.u32 %v1557, 9
        %v1622 = vshrl.u32 %v1558, 9
        %v1623 = vshrl.u32 %v1559, 9
        %v1624 = vshrl.u32 %v1560, 9
        %v1625 = vshrl.u32 %v1561, 9
        %v1626 = vshrl.u32 %v1562, 9
        %v1627 = vor.u32 %v1563, 1065353216
        %v1628 = vor.u32 %v1564, 1065353216
        %v1629 = vor.u32 %v1565, 1065353216
        %v1630 = vor.u32 %v1566, 1065353216
        %v1631 = vor.u32 %v1567, 1065353216
        %v1632 = vor.u32 %v1568, 1065353216
        %v1633 = vor.u32 %v1569, 1065353216
        %v1634 = vor.u32 %v1570, 1065353216
        %v1635 = vor.u32 %v1571, 1065353216
        %v1636 = vor.u32 %v1572, 1065353216
        %v1637 = vor.u32 %v1573, 1065353216
        %v1638 = vor.u32 %v1574, 1065353216
        %v1639 = vor.u32 %v1575, 1065353216
        %v1640 = vor.u32 %v1576, 1065353216
        %v1641 = vor.u32 %v1577, 1065353216
        %v1642 = vor.u32 %v1578, 1065353216
        %v1643 = vor.u32 %v1579, 1065353216
        %v1644 = vor.u32 %v1580, 1065353216
        %v1645 = vor.u32 %v1581, 1065353216
        %v1646 = vor.u32 %v1582, 1065353216
        %v1647 = vor.u32 %v1583, 1065353216
        %v1648 = vor.u32 %v1584, 1065353216
        %v1649 = vor.u32 %v1585, 1065353216
        %v1650 = vor.u32 %v1586, 1065353216
        %v1651 = vor.u32 %v1587, 1065353216
        %v1652 = vor.u32 %v1588, 1065353216
        %v1653 = vor.u32 %v1589, 1065353216
        %v1654 = vor.u32 %v1590, 1065353216
        %v1655 = vor.u32 %v1591, 1065353216
        %v1656 = vor.u32 %v1592, 1065353216
        %v1657 = vor.u32 %v1593, 1065353216
        %v1658 = vor.u32 %v1594, 1065353216
        %v1659 = vor.u32 %v1595, 1065353216
        %v1660 = vor.u32 %v1596, 1065353216
        %v1661 = vor.u32 %v1597, 1065353216
        %v1662 = vor.u32 %v1598, 1065353216
        %v1663 = vor.u32 %v1599, 1065353216
        %v1664 = vor.u32 %v1600, 1065353216
        %v1665 = vor.u32 %v1601, 1065353216
        %v1666 = vor.u32 %v1602, 1065353216
        %v1667 = vor.u32 %v1603, 1065353216
        %v1668 = vor.u32 %v1604, 1065353216
        %v1669 = vor.u32 %v1605, 1065353216
        %v1670 = vor.u32 %v1606, 1065353216
        %v1671 = vor.u32 %v1607, 1065353216
        %v1672 = vor.u32 %v1608, 1065353216
        %v1673 = vor.u32 %v1609, 1065353216
        %v1674 = vor.u32 %v1610, 1065353216
        %v1675 = vor.u32 %v1611, 1065353216
        %v1676 = vor.u32 %v1612, 1065353216
        %v1677 = vor.u32 %v1613, 1065353216
        %v1678 = vor.u32 %v1614, 1065353216
        %v1679 = vor.u32 %v1615, 1065353216
        %v1680 = vor.u32 %v1616, 1065353216
        %v1681 = vor.u32 %v1617, 1065353216
        %v1682 = vor.u32 %v1618, 1065353216
        %v1683 = vor.u32 %v1619, 1065353216
        %v1684 = vor.u32 %v1620, 1065353216
        %v1685 = vor.u32 %v1621, 1065353216
        %v1686 = vor.u32 %v1622, 1065353216
        %v1687 = vor.u32 %v1623, 1065353216
        %v1688 = vor.u32 %v1624, 1065353216
        %v1689 = vor.u32 %v1625, 1065353216
        %v1690 = vor.u32 %v1626, 1065353216
        %v1755 = vsub.f32 %v1627, 1.0
        %v1756 = vsub.f32 %v1628, 1.0
        %v1757 = vsub.f32 %v1629, 1.0
        %v1758 = vsub.f32 %v1630, 1.0
        %v1759 = vsub.f32 %v1631, 1.0
        %v1760 = vsub.f32 %v1632, 1.0
        %v1761 = vsub.f32 %v1633, 1.0
        %v1762 = vsub.f32 %v1634, 1.0
        %v1763 = vsub.f32 %v1635, 1.0
        %v1764 = vsub.f32 %v1636, 1.0
        %v1765 = vsub.f32 %v1637, 1.0
        %v1766 = vsub.f32 %v1638, 1.0
        %v1767 = vsub.f32 %v1639, 1.0
        %v1768 = vsub.f32 %v1640, 1.0
        %v1769 = vsub.f32 %v1641, 1.0
        %v1770 = vsub.f32 %v1642, 1.0
        %v1771 = vsub.f32 %v1643, 1.0
        %v1772 = vsub.f32 %v1644, 1.0
        %v1773 = vsub.f32 %v1645, 1.0
        %v1774 = vsub.f32 %v1646, 1.0
        %v1775 = vsub.f32 %v1647, 1.0
        %v1776 = vsub.f32 %v1648, 1.0
        %v1777 = vsub.f32 %v1649, 1.0
        %v1778 = vsub.f32 %v1650, 1.0
        %v1779 = vsub.f32 %v1651, 1.0
        %v1780 = vsub.f32 %v1652, 1.0
        %v1781 = vsub.f32 %v1653, 1.0
        %v1782 = vsub.f32 %v1654, 1.0
        %v1783 = vsub.f32 %v1655, 1.0
        %v1784 = vsub.f32 %v1656, 1.0
        %v1785 = vsub.f32 %v1657, 1.0
        %v1786 = vsub.f32 %v1658, 1.0
        %v1787 = vsub.f32 %v1659, 1.0
        %v1788 = vsub.f32 %v1660, 1.0
        %v1789 = vsub.f32 %v1661, 1.0
        %v1790 = vsub.f32 %v1662, 1.0
        %v1791 = vsub.f32 %v1663, 1.0
        %v1792 = vsub.f32 %v1664, 1.0
        %v1793 = vsub.f32 %v1665, 1.0
        %v1794 = vsub.f32 %v1666, 1.0
        %v1795 = vsub.f32 %v1667, 1.0
        %v1796 = vsub.f32 %v1668, 1.0
        %v1797 = vsub.f32 %v1669, 1.0
        %v1798 = vsub.f32 %v1670, 1.0
        %v1799 = vsub.f32 %v1671, 1.0
        %v1800 = vsub.f32 %v1672, 1.0
        %v1801 = vsub.f32 %v1673, 1.0
        %v1802 = vsub.f32 %v1674, 1.0
        %v1803 = vsub.f32 %v1675, 1.0
        %v1804 = vsub.f32 %v1676, 1.0
        %v1805 = vsub.f32 %v1677, 1.0
        %v1806 = vsub.f32 %v1678, 1.0
        %v1807 = vsub.f32 %v1679, 1.0
        %v1808 = vsub.f32 %v1680, 1.0
        %v1809 = vsub.f32 %v1681, 1.0
        %v1810 = vsub.f32 %v1682, 1.0
        %v1811 = vsub.f32 %v1683, 1.0
        %v1812 = vsub.f32 %v1684, 1.0
        %v1813 = vsub.f32 %v1685, 1.0
        %v1814 = vsub.f32 %v1686, 1.0
        %v1815 = vsub.f32 %v1687, 1.0
        %v1816 = vsub.f32 %v1688, 1.0
        %v1817 = vsub.f32 %v1689, 1.0
        %v1818 = vsub.f32 %v1690, 1.0
        %v1819 = vsub.f32 1.0, %v1755
        %v1820 = vsub.f32 1.0, %v1756
        %v1821 = vsub.f32 1.0, %v1757
        %v1822 = vsub.f32 1.0, %v1758
        %v1823 = vsub.f32 1.0, %v1759
        %v1824 = vsub.f32 1.0, %v1760
        %v1825 = vsub.f32 1.0, %v1761
        %v1826 = vsub.f32 1.0, %v1762
        %v1827 = vsub.f32 1.0, %v1763
        %v1828 = vsub.f32 1.0, %v1764
        %v1829 = vsub.f32 1.0, %v1765
        %v1830 = vsub.f32 1.0, %v1766
        %v1831 = vsub.f32 1.0, %v1767
        %v1832 = vsub.f32 1.0, %v1768
        %v1833 = vsub.f32 1.0, %v1769
        %v1834 = vsub.f32 1.0, %v1770
        %v1835 = vsub.f32 1.0, %v1771
        %v1836 = vsub.f32 1.0, %v1772
        %v1837 = vsub.f32 1.0, %v1773
        %v1838 = vsub.f32 1.0, %v1774
        %v1839 = vsub.f32 1.0, %v1775
        %v1840 = vsub.f32 1.0, %v1776
        %v1841 = vsub.f32 1.0, %v1777
        %v1842 = vsub.f32 1.0, %v1778
        %v1843 = vsub.f32 1.0, %v1779
        %v1844 = vsub.f32 1.0, %v1780
        %v1845 = vsub.f32 1.0, %v1781
        %v1846 = vsub.f32 1.0, %v1782
        %v1847 = vsub.f32 1.0, %v1783
        %v1848 = vsub.f32 1.0, %v1784
        %v1849 = vsub.f32 1.0, %v1785
        %v1850 = vsub.f32 1.0, %v1786
        %v1851 = vsub.f32 1.0, %v1787
        %v1852 = vsub.f32 1.0, %v1788
        %v1853 = vsub.f32 1.0, %v1789
        %v1854 = vsub.f32 1.0, %v1790
        %v1855 = vsub.f32 1.0, %v1791
        %v1856 = vsub.f32 1.0, %v1792
        %v1857 = vsub.f32 1.0, %v1793
        %v1858 = vsub.f32 1.0, %v1794
        %v1859 = vsub.f32 1.0, %v1795
        %v1860 = vsub.f32 1.0, %v1796
        %v1861 = vsub.f32 1.0, %v1797
        %v1862 = vsub.f32 1.0, %v1798
        %v1863 = vsub.f32 1.0, %v1799
        %v1864 = vsub.f32 1.0, %v1800
        %v1865 = vsub.f32 1.0, %v1801
        %v1866 = vsub.f32 1.0, %v1802
        %v1867 = vsub.f32 1.0, %v1803
        %v1868 = vsub.f32 1.0, %v1804
        %v1869 = vsub.f32 1.0, %v1805
        %v1870 = vsub.f32 1.0, %v1806
        %v1871 = vsub.f32 1.0, %v1807
        %v1872 = vsub.f32 1.0, %v1808
        %v1873 = vsub.f32 1.0, %v1809
        %v1874 = vsub.f32 1.0, %v1810
        %v1875 = vsub.f32 1.0, %v1811
        %v1876 = vsub.f32 1.0, %v1812
        %v1877 = vsub.f32 1.0, %v1813
        %v1878 = vsub.f32 1.0, %v1814
        %v1879 = vsub.f32 1.0, %v1815
        %v1880 = vsub.f32 1.0, %v1816
        %v1881 = vsub.f32 1.0, %v1817
        %v1882 = vsub.f32 1.0, %v1818
        %v1883 = vstv %s985
        %v1884 = vadd.s32 %v904, %v1883
        %v1885 = vadd.s32 %v905, %v1883
        %v1886 = vadd.s32 %v906, %v1883
        %v1887 = vadd.s32 %v907, %v1883
        %v1888 = vadd.s32 %v908, %v1883
        %v1889 = vadd.s32 %v909, %v1883
        %v1890 = vadd.s32 %v910, %v1883
        %v1891 = vadd.s32 %v911, %v1883
        %v1892 = vadd.s32 %v912, %v1883
        %v1893 = vadd.s32 %v913, %v1883
        %v1894 = vadd.s32 %v914, %v1883
        %v1895 = vadd.s32 %v915, %v1883
        %v1896 = vadd.s32 %v916, %v1883
        %v1897 = vadd.s32 %v917, %v1883
        %v1898 = vadd.s32 %v918, %v1883
        %v1899 = vadd.s32 %v919, %v1883
        %v1900 = vadd.s32 %v920, %v1883
        %v1901 = vadd.s32 %v921, %v1883
        %v1902 = vadd.s32 %v922, %v1883
        %v1903 = vadd.s32 %v923, %v1883
        %v1904 = vadd.s32 %v924, %v1883
        %v1905 = vadd.s32 %v925, %v1883
        %v1906 = vadd.s32 %v926, %v1883
        %v1907 = vadd.s32 %v927, %v1883
        %v1908 = vadd.s32 %v928, %v1883
        %v1909 = vadd.s32 %v929, %v1883
        %v1910 = vadd.s32 %v930, %v1883
        %v1911 = vadd.s32 %v931, %v1883
        %v1912 = vadd.s32 %v932, %v1883
        %v1913 = vadd.s32 %v933, %v1883
        %v1914 = vadd.s32 %v934, %v1883
        %v1915 = vadd.s32 %v935, %v1883
        %v1916 = vadd.s32 %v936, %v1883
        %v1917 = vadd.s32 %v937, %v1883
        %v1918 = vadd.s32 %v938, %v1883
        %v1919 = vadd.s32 %v939, %v1883
        %v1920 = vadd.s32 %v940, %v1883
        %v1921 = vadd.s32 %v941, %v1883
        %v1922 = vadd.s32 %v942, %v1883
        %v1923 = vadd.s32 %v943, %v1883
        %v1924 = vadd.s32 %v944, %v1883
        %v1925 = vadd.s32 %v945, %v1883
        %v1926 = vadd.s32 %v946, %v1883
        %v1927 = vadd.s32 %v947, %v1883
        %v1928 = vadd.s32 %v948, %v1883
        %v1929 = vadd.s32 %v949, %v1883
        %v1930 = vadd.s32 %v950, %v1883
        %v1931 = vadd.s32 %v951, %v1883
        %v1932 = vadd.s32 %v952, %v1883
        %v1933 = vadd.s32 %v953, %v1883
        %v1934 = vadd.s32 %v954, %v1883
        %v1935 = vadd.s32 %v955, %v1883
        %v1936 = vadd.s32 %v956, %v1883
        %v1937 = vadd.s32 %v957, %v1883
        %v1938 = vadd.s32 %v958, %v1883
        %v1939 = vadd.s32 %v959, %v1883
        %v1940 = vadd.s32 %v960, %v1883
        %v1941 = vadd.s32 %v961, %v1883
        %v1942 = vadd.s32 %v962, %v1883
        %v1943 = vadd.s32 %v963, %v1883
        %v1944 = vadd.s32 %v964, %v1883
        %v1945 = vadd.s32 %v965, %v1883
        %v1946 = vadd.s32 %v966, %v1883
        %v1947 = vadd.s32 %v967, %v1883
        %v1948 = vshrl.u32 %v1884, 16
        %v1949 = vshrl.u32 %v1885, 16
        %v1950 = vshrl.u32 %v1886, 16
        %v1951 = vshrl.u32 %v1887, 16
        %v1952 = vshrl.u32 %v1888, 16
        %v1953 = vshrl.u32 %v1889, 16
        %v1954 = vshrl.u32 %v1890, 16
        %v1955 = vshrl.u32 %v1891, 16
        %v1956 = vshrl.u32 %v1892, 16
        %v1957 = vshrl.u32 %v1893, 16
        %v1958 = vshrl.u32 %v1894, 16
        %v1959 = vshrl.u32 %v1895, 16
        %v1960 = vshrl.u32 %v1896, 16
        %v1961 = vshrl.u32 %v1897, 16
        %v1962 = vshrl.u32 %v1898, 16
        %v1963 = vshrl.u32 %v1899, 16
        %v1964 = vshrl.u32 %v1900, 16
        %v1965 = vshrl.u32 %v1901, 16
        %v1966 = vshrl.u32 %v1902, 16
        %v1967 = vshrl.u32 %v1903, 16
        %v1968 = vshrl.u32 %v1904, 16
        %v1969 = vshrl.u32 %v1905, 16
        %v1970 = vshrl.u32 %v1906, 16
        %v1971 = vshrl.u32 %v1907, 16
        %v1972 = vshrl.u32 %v1908, 16
        %v1973 = vshrl.u32 %v1909, 16
        %v1974 = vshrl.u32 %v1910, 16
        %v1975 = vshrl.u32 %v1911, 16
        %v1976 = vshrl.u32 %v1912, 16
        %v1977 = vshrl.u32 %v1913, 16
        %v1978 = vshrl.u32 %v1914, 16
        %v1979 = vshrl.u32 %v1915, 16
        %v1980 = vshrl.u32 %v1916, 16
        %v1981 = vshrl.u32 %v1917, 16
        %v1982 = vshrl.u32 %v1918, 16
        %v1983 = vshrl.u32 %v1919, 16
        %v1984 = vshrl.u32 %v1920, 16
        %v1985 = vshrl.u32 %v1921, 16
        %v1986 = vshrl.u32 %v1922, 16
        %v1987 = vshrl.u32 %v1923, 16
        %v1988 = vshrl.u32 %v1924, 16
        %v1989 = vshrl.u32 %v1925, 16
        %v1990 = vshrl.u32 %v1926, 16
        %v1991 = vshrl.u32 %v1927, 16
        %v1992 = vshrl.u32 %v1928, 16
        %v1993 = vshrl.u32 %v1929, 16
        %v1994 = vshrl.u32 %v1930, 16
        %v1995 = vshrl.u32 %v1931, 16
        %v1996 = vshrl.u32 %v1932, 16
        %v1997 = vshrl.u32 %v1933, 16
        %v1998 = vshrl.u32 %v1934, 16
        %v1999 = vshrl.u32 %v1935, 16
        %v2000 = vshrl.u32 %v1936, 16
        %v2001 = vshrl.u32 %v1937, 16
        %v2002 = vshrl.u32 %v1938, 16
        %v2003 = vshrl.u32 %v1939, 16
        %v2004 = vshrl.u32 %v1940, 16
        %v2005 = vshrl.u32 %v1941, 16
        %v2006 = vshrl.u32 %v1942, 16
        %v2007 = vshrl.u32 %v1943, 16
        %v2008 = vshrl.u32 %v1944, 16
        %v2009 = vshrl.u32 %v1945, 16
        %v2010 = vshrl.u32 %v1946, 16
        %v2011 = vshrl.u32 %v1947, 16
        %v2012 = vxor.u32 %v1884, %v1948
        %v2013 = vxor.u32 %v1885, %v1949
        %v2014 = vxor.u32 %v1886, %v1950
        %v2015 = vxor.u32 %v1887, %v1951
        %v2016 = vxor.u32 %v1888, %v1952
        %v2017 = vxor.u32 %v1889, %v1953
        %v2018 = vxor.u32 %v1890, %v1954
        %v2019 = vxor.u32 %v1891, %v1955
        %v2020 = vxor.u32 %v1892, %v1956
        %v2021 = vxor.u32 %v1893, %v1957
        %v2022 = vxor.u32 %v1894, %v1958
        %v2023 = vxor.u32 %v1895, %v1959
        %v2024 = vxor.u32 %v1896, %v1960
        %v2025 = vxor.u32 %v1897, %v1961
        %v2026 = vxor.u32 %v1898, %v1962
        %v2027 = vxor.u32 %v1899, %v1963
        %v2028 = vxor.u32 %v1900, %v1964
        %v2029 = vxor.u32 %v1901, %v1965
        %v2030 = vxor.u32 %v1902, %v1966
        %v2031 = vxor.u32 %v1903, %v1967
        %v2032 = vxor.u32 %v1904, %v1968
        %v2033 = vxor.u32 %v1905, %v1969
        %v2034 = vxor.u32 %v1906, %v1970
        %v2035 = vxor.u32 %v1907, %v1971
        %v2036 = vxor.u32 %v1908, %v1972
        %v2037 = vxor.u32 %v1909, %v1973
        %v2038 = vxor.u32 %v1910, %v1974
        %v2039 = vxor.u32 %v1911, %v1975
        %v2040 = vxor.u32 %v1912, %v1976
        %v2041 = vxor.u32 %v1913, %v1977
        %v2042 = vxor.u32 %v1914, %v1978
        %v2043 = vxor.u32 %v1915, %v1979
        %v2044 = vxor.u32 %v1916, %v1980
        %v2045 = vxor.u32 %v1917, %v1981
        %v2046 = vxor.u32 %v1918, %v1982
        %v2047 = vxor.u32 %v1919, %v1983
        %v2048 = vxor.u32 %v1920, %v1984
        %v2049 = vxor.u32 %v1921, %v1985
        %v2050 = vxor.u32 %v1922, %v1986
        %v2051 = vxor.u32 %v1923, %v1987
        %v2052 = vxor.u32 %v1924, %v1988
        %v2053 = vxor.u32 %v1925, %v1989
        %v2054 = vxor.u32 %v1926, %v1990
        %v2055 = vxor.u32 %v1927, %v1991
        %v2056 = vxor.u32 %v1928, %v1992
        %v2057 = vxor.u32 %v1929, %v1993
        %v2058 = vxor.u32 %v1930, %v1994
        %v2059 = vxor.u32 %v1931, %v1995
        %v2060 = vxor.u32 %v1932, %v1996
        %v2061 = vxor.u32 %v1933, %v1997
        %v2062 = vxor.u32 %v1934, %v1998
        %v2063 = vxor.u32 %v1935, %v1999
        %v2064 = vxor.u32 %v1936, %v2000
        %v2065 = vxor.u32 %v1937, %v2001
        %v2066 = vxor.u32 %v1938, %v2002
        %v2067 = vxor.u32 %v1939, %v2003
        %v2068 = vxor.u32 %v1940, %v2004
        %v2069 = vxor.u32 %v1941, %v2005
        %v2070 = vxor.u32 %v1942, %v2006
        %v2071 = vxor.u32 %v1943, %v2007
        %v2072 = vxor.u32 %v1944, %v2008
        %v2073 = vxor.u32 %v1945, %v2009
        %v2074 = vxor.u32 %v1946, %v2010
        %v2075 = vxor.u32 %v1947, %v2011
        %v2076 = vmul.u32 %v2012, 2246822507
        %v2077 = vmul.u32 %v2013, 2246822507
        %v2078 = vmul.u32 %v2014, 2246822507
        %v2079 = vmul.u32 %v2015, 2246822507
        %v2080 = vmul.u32 %v2016, 2246822507
        %v2081 = vmul.u32 %v2017, 2246822507
        %v2082 = vmul.u32 %v2018, 2246822507
        %v2083 = vmul.u32 %v2019, 2246822507
        %v2084 = vmul.u32 %v2020, 2246822507
        %v2085 = vmul.u32 %v2021, 2246822507
        %v2086 = vmul.u32 %v2022, 2246822507
        %v2087 = vmul.u32 %v2023, 2246822507
        %v2088 = vmul.u32 %v2024, 2246822507
        %v2089 = vmul.u32 %v2025, 2246822507
        %v2090 = vmul.u32 %v2026, 2246822507
        %v2091 = vmul.u32 %v2027, 2246822507
        %v2092 = vmul.u32 %v2028, 2246822507
        %v2093 = vmul.u32 %v2029, 2246822507
        %v2094 = vmul.u32 %v2030, 2246822507
        %v2095 = vmul.u32 %v2031, 2246822507
        %v2096 = vmul.u32 %v2032, 2246822507
        %v2097 = vmul.u32 %v2033, 2246822507
        %v2098 = vmul.u32 %v2034, 2246822507
        %v2099 = vmul.u32 %v2035, 2246822507
        %v2100 = vmul.u32 %v2036, 2246822507
        %v2101 = vmul.u32 %v2037, 2246822507
        %v2102 = vmul.u32 %v2038, 2246822507
        %v2103 = vmul.u32 %v2039, 2246822507
        %v2104 = vmul.u32 %v2040, 2246822507
        %v2105 = vmul.u32 %v2041, 2246822507
        %v2106 = vmul.u32 %v2042, 2246822507
        %v2107 = vmul.u32 %v2043, 2246822507
        %v2108 = vmul.u32 %v2044, 2246822507
        %v2109 = vmul.u32 %v2045, 2246822507
        %v2110 = vmul.u32 %v2046, 2246822507
        %v2111 = vmul.u32 %v2047, 2246822507
        %v2112 = vmul.u32 %v2048, 2246822507
        %v2113 = vmul.u32 %v2049, 2246822507
        %v2114 = vmul.u32 %v2050, 2246822507
        %v2115 = vmul.u32 %v2051, 2246822507
        %v2116 = vmul.u32 %v2052, 2246822507
        %v2117 = vmul.u32 %v2053, 2246822507
        %v2118 = vmul.u32 %v2054, 2246822507
        %v2119 = vmul.u32 %v2055, 2246822507
        %v2120 = vmul.u32 %v2056, 2246822507
        %v2121 = vmul.u32 %v2057, 2246822507
        %v2122 = vmul.u32 %v2058, 2246822507
        %v2123 = vmul.u32 %v2059, 2246822507
        %v2124 = vmul.u32 %v2060, 2246822507
        %v2125 = vmul.u32 %v2061, 2246822507
        %v2126 = vmul.u32 %v2062, 2246822507
        %v2127 = vmul.u32 %v2063, 2246822507
        %v2128 = vmul.u32 %v2064, 2246822507
        %v2129 = vmul.u32 %v2065, 2246822507
        %v2130 = vmul.u32 %v2066, 2246822507
        %v2131 = vmul.u32 %v2067, 2246822507
        %v2132 = vmul.u32 %v2068, 2246822507
        %v2133 = vmul.u32 %v2069, 2246822507
        %v2134 = vmul.u32 %v2070, 2246822507
        %v2135 = vmul.u32 %v2071, 2246822507
        %v2136 = vmul.u32 %v2072, 2246822507
        %v2137 = vmul.u32 %v2073, 2246822507
        %v2138 = vmul.u32 %v2074, 2246822507
        %v2139 = vmul.u32 %v2075, 2246822507
        %v2140 = vshrl.u32 %v2076, 13
        %v2141 = vshrl.u32 %v2077, 13
        %v2142 = vshrl.u32 %v2078, 13
        %v2143 = vshrl.u32 %v2079, 13
        %v2144 = vshrl.u32 %v2080, 13
        %v2145 = vshrl.u32 %v2081, 13
        %v2146 = vshrl.u32 %v2082, 13
        %v2147 = vshrl.u32 %v2083, 13
        %v2148 = vshrl.u32 %v2084, 13
        %v2149 = vshrl.u32 %v2085, 13
        %v2150 = vshrl.u32 %v2086, 13
        %v2151 = vshrl.u32 %v2087, 13
        %v2152 = vshrl.u32 %v2088, 13
        %v2153 = vshrl.u32 %v2089, 13
        %v2154 = vshrl.u32 %v2090, 13
        %v2155 = vshrl.u32 %v2091, 13
        %v2156 = vshrl.u32 %v2092, 13
        %v2157 = vshrl.u32 %v2093, 13
        %v2158 = vshrl.u32 %v2094, 13
        %v2159 = vshrl.u32 %v2095, 13
        %v2160 = vshrl.u32 %v2096, 13
        %v2161 = vshrl.u32 %v2097, 13
        %v2162 = vshrl.u32 %v2098, 13
        %v2163 = vshrl.u32 %v2099, 13
        %v2164 = vshrl.u32 %v2100, 13
        %v2165 = vshrl.u32 %v2101, 13
        %v2166 = vshrl.u32 %v2102, 13
        %v2167 = vshrl.u32 %v2103, 13
        %v2168 = vshrl.u32 %v2104, 13
        %v2169 = vshrl.u32 %v2105, 13
        %v2170 = vshrl.u32 %v2106, 13
        %v2171 = vshrl.u32 %v2107, 13
        %v2172 = vshrl.u32 %v2108, 13
        %v2173 = vshrl.u32 %v2109, 13
        %v2174 = vshrl.u32 %v2110, 13
        %v2175 = vshrl.u32 %v2111, 13
        %v2176 = vshrl.u32 %v2112, 13
        %v2177 = vshrl.u32 %v2113, 13
        %v2178 = vshrl.u32 %v2114, 13
        %v2179 = vshrl.u32 %v2115, 13
        %v2180 = vshrl.u32 %v2116, 13
        %v2181 = vshrl.u32 %v2117, 13
        %v2182 = vshrl.u32 %v2118, 13
        %v2183 = vshrl.u32 %v2119, 13
        %v2184 = vshrl.u32 %v2120, 13
        %v2185 = vshrl.u32 %v2121, 13
        %v2186 = vshrl.u32 %v2122, 13
        %v2187 = vshrl.u32 %v2123, 13
        %v2188 = vshrl.u32 %v2124, 13
        %v2189 = vshrl.u32 %v2125, 13
        %v2190 = vshrl.u32 %v2126, 13
        %v2191 = vshrl.u32 %v2127, 13
        %v2192 = vshrl.u32 %v2128, 13
        %v2193 = vshrl.u32 %v2129, 13
        %v2194 = vshrl.u32 %v2130, 13
        %v2195 = vshrl.u32 %v2131, 13
        %v2196 = vshrl.u32 %v2132, 13
        %v2197 = vshrl.u32 %v2133, 13
        %v2198 = vshrl.u32 %v2134, 13
        %v2199 = vshrl.u32 %v2135, 13
        %v2200 = vshrl.u32 %v2136, 13
        %v2201 = vshrl.u32 %v2137, 13
        %v2202 = vshrl.u32 %v2138, 13
        %v2203 = vshrl.u32 %v2139, 13
        %v2204 = vxor.u32 %v2076, %v2140
        %v2205 = vxor.u32 %v2077, %v2141
        %v2206 = vxor.u32 %v2078, %v2142
        %v2207 = vxor.u32 %v2079, %v2143
        %v2208 = vxor.u32 %v2080, %v2144
        %v2209 = vxor.u32 %v2081, %v2145
        %v2210 = vxor.u32 %v2082, %v2146
        %v2211 = vxor.u32 %v2083, %v2147
        %v2212 = vxor.u32 %v2084, %v2148
        %v2213 = vxor.u32 %v2085, %v2149
        %v2214 = vxor.u32 %v2086, %v2150
        %v2215 = vxor.u32 %v2087, %v2151
        %v2216 = vxor.u32 %v2088, %v2152
        %v2217 = vxor.u32 %v2089, %v2153
        %v2218 = vxor.u32 %v2090, %v2154
        %v2219 = vxor.u32 %v2091, %v2155
        %v2220 = vxor.u32 %v2092, %v2156
        %v2221 = vxor.u32 %v2093, %v2157
        %v2222 = vxor.u32 %v2094, %v2158
        %v2223 = vxor.u32 %v2095, %v2159
        %v2224 = vxor.u32 %v2096, %v2160
        %v2225 = vxor.u32 %v2097, %v2161
        %v2226 = vxor.u32 %v2098, %v2162
        %v2227 = vxor.u32 %v2099, %v2163
        %v2228 = vxor.u32 %v2100, %v2164
        %v2229 = vxor.u32 %v2101, %v2165
        %v2230 = vxor.u32 %v2102, %v2166
        %v2231 = vxor.u32 %v2103, %v2167
        %v2232 = vxor.u32 %v2104, %v2168
        %v2233 = vxor.u32 %v2105, %v2169
        %v2234 = vxor.u32 %v2106, %v2170
        %v2235 = vxor.u32 %v2107, %v2171
        %v2236 = vxor.u32 %v2108, %v2172
        %v2237 = vxor.u32 %v2109, %v2173
        %v2238 = vxor.u32 %v2110, %v2174
        %v2239 = vxor.u32 %v2111, %v2175
        %v2240 = vxor.u32 %v2112, %v2176
        %v2241 = vxor.u32 %v2113, %v2177
        %v2242 = vxor.u32 %v2114, %v2178
        %v2243 = vxor.u32 %v2115, %v2179
        %v2244 = vxor.u32 %v2116, %v2180
        %v2245 = vxor.u32 %v2117, %v2181
        %v2246 = vxor.u32 %v2118, %v2182
        %v2247 = vxor.u32 %v2119, %v2183
        %v2248 = vxor.u32 %v2120, %v2184
        %v2249 = vxor.u32 %v2121, %v2185
        %v2250 = vxor.u32 %v2122, %v2186
        %v2251 = vxor.u32 %v2123, %v2187
        %v2252 = vxor.u32 %v2124, %v2188
        %v2253 = vxor.u32 %v2125, %v2189
        %v2254 = vxor.u32 %v2126, %v2190
        %v2255 = vxor.u32 %v2127, %v2191
        %v2256 = vxor.u32 %v2128, %v2192
        %v2257 = vxor.u32 %v2129, %v2193
        %v2258 = vxor.u32 %v2130, %v2194
        %v2259 = vxor.u32 %v2131, %v2195
        %v2260 = vxor.u32 %v2132, %v2196
        %v2261 = vxor.u32 %v2133, %v2197
        %v2262 = vxor.u32 %v2134, %v2198
        %v2263 = vxor.u32 %v2135, %v2199
        %v2264 = vxor.u32 %v2136, %v2200
        %v2265 = vxor.u32 %v2137, %v2201
        %v2266 = vxor.u32 %v2138, %v2202
        %v2267 = vxor.u32 %v2139, %v2203
        %v2268 = vmul.u32 %v2204, 3266489909
        %v2269 = vmul.u32 %v2205, 3266489909
        %v2270 = vmul.u32 %v2206, 3266489909
        %v2271 = vmul.u32 %v2207, 3266489909
        %v2272 = vmul.u32 %v2208, 3266489909
        %v2273 = vmul.u32 %v2209, 3266489909
        %v2274 = vmul.u32 %v2210, 3266489909
        %v2275 = vmul.u32 %v2211, 3266489909
        %v2276 = vmul.u32 %v2212, 3266489909
        %v2277 = vmul.u32 %v2213, 3266489909
        %v2278 = vmul.u32 %v2214, 3266489909
        %v2279 = vmul.u32 %v2215, 3266489909
        %v2280 = vmul.u32 %v2216, 3266489909
        %v2281 = vmul.u32 %v2217, 3266489909
        %v2282 = vmul.u32 %v2218, 3266489909
        %v2283 = vmul.u32 %v2219, 3266489909
        %v2284 = vmul.u32 %v2220, 3266489909
        %v2285 = vmul.u32 %v2221, 3266489909
        %v2286 = vmul.u32 %v2222, 3266489909
        %v2287 = vmul.u32 %v2223, 3266489909
        %v2288 = vmul.u32 %v2224, 3266489909
        %v2289 = vmul.u32 %v2225, 3266489909
        %v2290 = vmul.u32 %v2226, 3266489909
        %v2291 = vmul.u32 %v2227, 3266489909
        %v2292 = vmul.u32 %v2228, 3266489909
        %v2293 = vmul.u32 %v2229, 3266489909
        %v2294 = vmul.u32 %v2230, 3266489909
        %v2295 = vmul.u32 %v2231, 3266489909
        %v2296 = vmul.u32 %v2232, 3266489909
        %v2297 = vmul.u32 %v2233, 3266489909
        %v2298 = vmul.u32 %v2234, 3266489909
        %v2299 = vmul.u32 %v2235, 3266489909
        %v2300 = vmul.u32 %v2236, 3266489909
        %v2301 = vmul.u32 %v2237, 3266489909
        %v2302 = vmul.u32 %v2238, 3266489909
        %v2303 = vmul.u32 %v2239, 3266489909
        %v2304 = vmul.u32 %v2240, 3266489909
        %v2305 = vmul.u32 %v2241, 3266489909
        %v2306 = vmul.u32 %v2242, 3266489909
        %v2307 = vmul.u32 %v2243, 3266489909
        %v2308 = vmul.u32 %v2244, 3266489909
        %v2309 = vmul.u32 %v2245, 3266489909
        %v2310 = vmul.u32 %v2246, 3266489909
        %v2311 = vmul.u32 %v2247, 3266489909
        %v2312 = vmul.u32 %v2248, 3266489909
        %v2313 = vmul.u32 %v2249, 3266489909
        %v2314 = vmul.u32 %v2250, 3266489909
        %v2315 = vmul.u32 %v2251, 3266489909
        %v2316 = vmul.u32 %v2252, 3266489909
        %v2317 = vmul.u32 %v2253, 3266489909
        %v2318 = vmul.u32 %v2254, 3266489909
        %v2319 = vmul.u32 %v2255, 3266489909
        %v2320 = vmul.u32 %v2256, 3266489909
        %v2321 = vmul.u32 %v2257, 3266489909
        %v2322 = vmul.u32 %v2258, 3266489909
        %v2323 = vmul.u32 %v2259, 3266489909
        %v2324 = vmul.u32 %v2260, 3266489909
        %v2325 = vmul.u32 %v2261, 3266489909
        %v2326 = vmul.u32 %v2262, 3266489909
        %v2327 = vmul.u32 %v2263, 3266489909
        %v2328 = vmul.u32 %v2264, 3266489909
        %v2329 = vmul.u32 %v2265, 3266489909
        %v2330 = vmul.u32 %v2266, 3266489909
        %v2331 = vmul.u32 %v2267, 3266489909
        %v2332 = vshrl.u32 %v2268, 16
        %v2333 = vshrl.u32 %v2269, 16
        %v2334 = vshrl.u32 %v2270, 16
        %v2335 = vshrl.u32 %v2271, 16
        %v2336 = vshrl.u32 %v2272, 16
        %v2337 = vshrl.u32 %v2273, 16
        %v2338 = vshrl.u32 %v2274, 16
        %v2339 = vshrl.u32 %v2275, 16
        %v2340 = vshrl.u32 %v2276, 16
        %v2341 = vshrl.u32 %v2277, 16
        %v2342 = vshrl.u32 %v2278, 16
        %v2343 = vshrl.u32 %v2279, 16
        %v2344 = vshrl.u32 %v2280, 16
        %v2345 = vshrl.u32 %v2281, 16
        %v2346 = vshrl.u32 %v2282, 16
        %v2347 = vshrl.u32 %v2283, 16
        %v2348 = vshrl.u32 %v2284, 16
        %v2349 = vshrl.u32 %v2285, 16
        %v2350 = vshrl.u32 %v2286, 16
        %v2351 = vshrl.u32 %v2287, 16
        %v2352 = vshrl.u32 %v2288, 16
        %v2353 = vshrl.u32 %v2289, 16
        %v2354 = vshrl.u32 %v2290, 16
        %v2355 = vshrl.u32 %v2291, 16
        %v2356 = vshrl.u32 %v2292, 16
        %v2357 = vshrl.u32 %v2293, 16
        %v2358 = vshrl.u32 %v2294, 16
        %v2359 = vshrl.u32 %v2295, 16
        %v2360 = vshrl.u32 %v2296, 16
        %v2361 = vshrl.u32 %v2297, 16
        %v2362 = vshrl.u32 %v2298, 16
        %v2363 = vshrl.u32 %v2299, 16
        %v2364 = vshrl.u32 %v2300, 16
        %v2365 = vshrl.u32 %v2301, 16
        %v2366 = vshrl.u32 %v2302, 16
        %v2367 = vshrl.u32 %v2303, 16
        %v2368 = vshrl.u32 %v2304, 16
        %v2369 = vshrl.u32 %v2305, 16
        %v2370 = vshrl.u32 %v2306, 16
        %v2371 = vshrl.u32 %v2307, 16
        %v2372 = vshrl.u32 %v2308, 16
        %v2373 = vshrl.u32 %v2309, 16
        %v2374 = vshrl.u32 %v2310, 16
        %v2375 = vshrl.u32 %v2311, 16
        %v2376 = vshrl.u32 %v2312, 16
        %v2377 = vshrl.u32 %v2313, 16
        %v2378 = vshrl.u32 %v2314, 16
        %v2379 = vshrl.u32 %v2315, 16
        %v2380 = vshrl.u32 %v2316, 16
        %v2381 = vshrl.u32 %v2317, 16
        %v2382 = vshrl.u32 %v2318, 16
        %v2383 = vshrl.u32 %v2319, 16
        %v2384 = vshrl.u32 %v2320, 16
        %v2385 = vshrl.u32 %v2321, 16
        %v2386 = vshrl.u32 %v2322, 16
        %v2387 = vshrl.u32 %v2323, 16
        %v2388 = vshrl.u32 %v2324, 16
        %v2389 = vshrl.u32 %v2325, 16
        %v2390 = vshrl.u32 %v2326, 16
        %v2391 = vshrl.u32 %v2327, 16
        %v2392 = vshrl.u32 %v2328, 16
        %v2393 = vshrl.u32 %v2329, 16
        %v2394 = vshrl.u32 %v2330, 16
        %v2395 = vshrl.u32 %v2331, 16
        %v2396 = vxor.u32 %v2268, %v2332
        %v2397 = vxor.u32 %v2269, %v2333
        %v2398 = vxor.u32 %v2270, %v2334
        %v2399 = vxor.u32 %v2271, %v2335
        %v2400 = vxor.u32 %v2272, %v2336
        %v2401 = vxor.u32 %v2273, %v2337
        %v2402 = vxor.u32 %v2274, %v2338
        %v2403 = vxor.u32 %v2275, %v2339
        %v2404 = vxor.u32 %v2276, %v2340
        %v2405 = vxor.u32 %v2277, %v2341
        %v2406 = vxor.u32 %v2278, %v2342
        %v2407 = vxor.u32 %v2279, %v2343
        %v2408 = vxor.u32 %v2280, %v2344
        %v2409 = vxor.u32 %v2281, %v2345
        %v2410 = vxor.u32 %v2282, %v2346
        %v2411 = vxor.u32 %v2283, %v2347
        %v2412 = vxor.u32 %v2284, %v2348
        %v2413 = vxor.u32 %v2285, %v2349
        %v2414 = vxor.u32 %v2286, %v2350
        %v2415 = vxor.u32 %v2287, %v2351
        %v2416 = vxor.u32 %v2288, %v2352
        %v2417 = vxor.u32 %v2289, %v2353
        %v2418 = vxor.u32 %v2290, %v2354
        %v2419 = vxor.u32 %v2291, %v2355
        %v2420 = vxor.u32 %v2292, %v2356
        %v2421 = vxor.u32 %v2293, %v2357
        %v2422 = vxor.u32 %v2294, %v2358
        %v2423 = vxor.u32 %v2295, %v2359
        %v2424 = vxor.u32 %v2296, %v2360
        %v2425 = vxor.u32 %v2297, %v2361
        %v2426 = vxor.u32 %v2298, %v2362
        %v2427 = vxor.u32 %v2299, %v2363
        %v2428 = vxor.u32 %v2300, %v2364
        %v2429 = vxor.u32 %v2301, %v2365
        %v2430 = vxor.u32 %v2302, %v2366
        %v2431 = vxor.u32 %v2303, %v2367
        %v2432 = vxor.u32 %v2304, %v2368
        %v2433 = vxor.u32 %v2305, %v2369
        %v2434 = vxor.u32 %v2306, %v2370
        %v2435 = vxor.u32 %v2307, %v2371
        %v2436 = vxor.u32 %v2308, %v2372
        %v2437 = vxor.u32 %v2309, %v2373
        %v2438 = vxor.u32 %v2310, %v2374
        %v2439 = vxor.u32 %v2311, %v2375
        %v2440 = vxor.u32 %v2312, %v2376
        %v2441 = vxor.u32 %v2313, %v2377
        %v2442 = vxor.u32 %v2314, %v2378
        %v2443 = vxor.u32 %v2315, %v2379
        %v2444 = vxor.u32 %v2316, %v2380
        %v2445 = vxor.u32 %v2317, %v2381
        %v2446 = vxor.u32 %v2318, %v2382
        %v2447 = vxor.u32 %v2319, %v2383
        %v2448 = vxor.u32 %v2320, %v2384
        %v2449 = vxor.u32 %v2321, %v2385
        %v2450 = vxor.u32 %v2322, %v2386
        %v2451 = vxor.u32 %v2323, %v2387
        %v2452 = vxor.u32 %v2324, %v2388
        %v2453 = vxor.u32 %v2325, %v2389
        %v2454 = vxor.u32 %v2326, %v2390
        %v2455 = vxor.u32 %v2327, %v2391
        %v2456 = vxor.u32 %v2328, %v2392
        %v2457 = vxor.u32 %v2329, %v2393
        %v2458 = vxor.u32 %v2330, %v2394
        %v2459 = vxor.u32 %v2331, %v2395
        %v2460 = vshrl.u32 %v2396, 9
        %v2461 = vshrl.u32 %v2397, 9
        %v2462 = vshrl.u32 %v2398, 9
        %v2463 = vshrl.u32 %v2399, 9
        %v2464 = vshrl.u32 %v2400, 9
        %v2465 = vshrl.u32 %v2401, 9
        %v2466 = vshrl.u32 %v2402, 9
        %v2467 = vshrl.u32 %v2403, 9
        %v2468 = vshrl.u32 %v2404, 9
        %v2469 = vshrl.u32 %v2405, 9
        %v2470 = vshrl.u32 %v2406, 9
        %v2471 = vshrl.u32 %v2407, 9
        %v2472 = vshrl.u32 %v2408, 9
        %v2473 = vshrl.u32 %v2409, 9
        %v2474 = vshrl.u32 %v2410, 9
        %v2475 = vshrl.u32 %v2411, 9
        %v2476 = vshrl.u32 %v2412, 9
        %v2477 = vshrl.u32 %v2413, 9
        %v2478 = vshrl.u32 %v2414, 9
        %v2479 = vshrl.u32 %v2415, 9
        %v2480 = vshrl.u32 %v2416, 9
        %v2481 = vshrl.u32 %v2417, 9
        %v2482 = vshrl.u32 %v2418, 9
        %v2483 = vshrl.u32 %v2419, 9
        %v2484 = vshrl.u32 %v2420, 9
        %v2485 = vshrl.u32 %v2421, 9
        %v2486 = vshrl.u32 %v2422, 9
        %v2487 = vshrl.u32 %v2423, 9
        %v2488 = vshrl.u32 %v2424, 9
        %v2489 = vshrl.u32 %v2425, 9
        %v2490 = vshrl.u32 %v2426, 9
        %v2491 = vshrl.u32 %v2427, 9
        %v2492 = vshrl.u32 %v2428, 9
        %v2493 = vshrl.u32 %v2429, 9
        %v2494 = vshrl.u32 %v2430, 9
        %v2495 = vshrl.u32 %v2431, 9
        %v2496 = vshrl.u32 %v2432, 9
        %v2497 = vshrl.u32 %v2433, 9
        %v2498 = vshrl.u32 %v2434, 9
        %v2499 = vshrl.u32 %v2435, 9
        %v2500 = vshrl.u32 %v2436, 9
        %v2501 = vshrl.u32 %v2437, 9
        %v2502 = vshrl.u32 %v2438, 9
        %v2503 = vshrl.u32 %v2439, 9
        %v2504 = vshrl.u32 %v2440, 9
        %v2505 = vshrl.u32 %v2441, 9
        %v2506 = vshrl.u32 %v2442, 9
        %v2507 = vshrl.u32 %v2443, 9
        %v2508 = vshrl.u32 %v2444, 9
        %v2509 = vshrl.u32 %v2445, 9
        %v2510 = vshrl.u32 %v2446, 9
        %v2511 = vshrl.u32 %v2447, 9
        %v2512 = vshrl.u32 %v2448, 9
        %v2513 = vshrl.u32 %v2449, 9
        %v2514 = vshrl.u32 %v2450, 9
        %v2515 = vshrl.u32 %v2451, 9
        %v2516 = vshrl.u32 %v2452, 9
        %v2517 = vshrl.u32 %v2453, 9
        %v2518 = vshrl.u32 %v2454, 9
        %v2519 = vshrl.u32 %v2455, 9
        %v2520 = vshrl.u32 %v2456, 9
        %v2521 = vshrl.u32 %v2457, 9
        %v2522 = vshrl.u32 %v2458, 9
        %v2523 = vshrl.u32 %v2459, 9
        %v2524 = vor.u32 %v2460, 1065353216
        %v2525 = vor.u32 %v2461, 1065353216
        %v2526 = vor.u32 %v2462, 1065353216
        %v2527 = vor.u32 %v2463, 1065353216
        %v2528 = vor.u32 %v2464, 1065353216
        %v2529 = vor.u32 %v2465, 1065353216
        %v2530 = vor.u32 %v2466, 1065353216
        %v2531 = vor.u32 %v2467, 1065353216
        %v2532 = vor.u32 %v2468, 1065353216
        %v2533 = vor.u32 %v2469, 1065353216
        %v2534 = vor.u32 %v2470, 1065353216
        %v2535 = vor.u32 %v2471, 1065353216
        %v2536 = vor.u32 %v2472, 1065353216
        %v2537 = vor.u32 %v2473, 1065353216
        %v2538 = vor.u32 %v2474, 1065353216
        %v2539 = vor.u32 %v2475, 1065353216
        %v2540 = vor.u32 %v2476, 1065353216
        %v2541 = vor.u32 %v2477, 1065353216
        %v2542 = vor.u32 %v2478, 1065353216
        %v2543 = vor.u32 %v2479, 1065353216
        %v2544 = vor.u32 %v2480, 1065353216
        %v2545 = vor.u32 %v2481, 1065353216
        %v2546 = vor.u32 %v2482, 1065353216
        %v2547 = vor.u32 %v2483, 1065353216
        %v2548 = vor.u32 %v2484, 1065353216
        %v2549 = vor.u32 %v2485, 1065353216
        %v2550 = vor.u32 %v2486, 1065353216
        %v2551 = vor.u32 %v2487, 1065353216
        %v2552 = vor.u32 %v2488, 1065353216
        %v2553 = vor.u32 %v2489, 1065353216
        %v2554 = vor.u32 %v2490, 1065353216
        %v2555 = vor.u32 %v2491, 1065353216
        %v2556 = vor.u32 %v2492, 1065353216
        %v2557 = vor.u32 %v2493, 1065353216
        %v2558 = vor.u32 %v2494, 1065353216
        %v2559 = vor.u32 %v2495, 1065353216
        %v2560 = vor.u32 %v2496, 1065353216
        %v2561 = vor.u32 %v2497, 1065353216
        %v2562 = vor.u32 %v2498, 1065353216
        %v2563 = vor.u32 %v2499, 1065353216
        %v2564 = vor.u32 %v2500, 1065353216
        %v2565 = vor.u32 %v2501, 1065353216
        %v2566 = vor.u32 %v2502, 1065353216
        %v2567 = vor.u32 %v2503, 1065353216
        %v2568 = vor.u32 %v2504, 1065353216
        %v2569 = vor.u32 %v2505, 1065353216
        %v2570 = vor.u32 %v2506, 1065353216
        %v2571 = vor.u32 %v2507, 1065353216
        %v2572 = vor.u32 %v2508, 1065353216
        %v2573 = vor.u32 %v2509, 1065353216
        %v2574 = vor.u32 %v2510, 1065353216
        %v2575 = vor.u32 %v2511, 1065353216
        %v2576 = vor.u32 %v2512, 1065353216
        %v2577 = vor.u32 %v2513, 1065353216
        %v2578 = vor.u32 %v2514, 1065353216
        %v2579 = vor.u32 %v2515, 1065353216
        %v2580 = vor.u32 %v2516, 1065353216
        %v2581 = vor.u32 %v2517, 1065353216
        %v2582 = vor.u32 %v2518, 1065353216
        %v2583 = vor.u32 %v2519, 1065353216
        %v2584 = vor.u32 %v2520, 1065353216
        %v2585 = vor.u32 %v2521, 1065353216
        %v2586 = vor.u32 %v2522, 1065353216
        %v2587 = vor.u32 %v2523, 1065353216
        %v2652 = vsub.f32 %v2524, 1.0
        %v2653 = vsub.f32 %v2525, 1.0
        %v2654 = vsub.f32 %v2526, 1.0
        %v2655 = vsub.f32 %v2527, 1.0
        %v2656 = vsub.f32 %v2528, 1.0
        %v2657 = vsub.f32 %v2529, 1.0
        %v2658 = vsub.f32 %v2530, 1.0
        %v2659 = vsub.f32 %v2531, 1.0
        %v2660 = vsub.f32 %v2532, 1.0
        %v2661 = vsub.f32 %v2533, 1.0
        %v2662 = vsub.f32 %v2534, 1.0
        %v2663 = vsub.f32 %v2535, 1.0
        %v2664 = vsub.f32 %v2536, 1.0
        %v2665 = vsub.f32 %v2537, 1.0
        %v2666 = vsub.f32 %v2538, 1.0
        %v2667 = vsub.f32 %v2539, 1.0
        %v2668 = vsub.f32 %v2540, 1.0
        %v2669 = vsub.f32 %v2541, 1.0
        %v2670 = vsub.f32 %v2542, 1.0
        %v2671 = vsub.f32 %v2543, 1.0
        %v2672 = vsub.f32 %v2544, 1.0
        %v2673 = vsub.f32 %v2545, 1.0
        %v2674 = vsub.f32 %v2546, 1.0
        %v2675 = vsub.f32 %v2547, 1.0
        %v2676 = vsub.f32 %v2548, 1.0
        %v2677 = vsub.f32 %v2549, 1.0
        %v2678 = vsub.f32 %v2550, 1.0
        %v2679 = vsub.f32 %v2551, 1.0
        %v2680 = vsub.f32 %v2552, 1.0
        %v2681 = vsub.f32 %v2553, 1.0
        %v2682 = vsub.f32 %v2554, 1.0
        %v2683 = vsub.f32 %v2555, 1.0
        %v2684 = vsub.f32 %v2556, 1.0
        %v2685 = vsub.f32 %v2557, 1.0
        %v2686 = vsub.f32 %v2558, 1.0
        %v2687 = vsub.f32 %v2559, 1.0
        %v2688 = vsub.f32 %v2560, 1.0
        %v2689 = vsub.f32 %v2561, 1.0
        %v2690 = vsub.f32 %v2562, 1.0
        %v2691 = vsub.f32 %v2563, 1.0
        %v2692 = vsub.f32 %v2564, 1.0
        %v2693 = vsub.f32 %v2565, 1.0
        %v2694 = vsub.f32 %v2566, 1.0
        %v2695 = vsub.f32 %v2567, 1.0
        %v2696 = vsub.f32 %v2568, 1.0
        %v2697 = vsub.f32 %v2569, 1.0
        %v2698 = vsub.f32 %v2570, 1.0
        %v2699 = vsub.f32 %v2571, 1.0
        %v2700 = vsub.f32 %v2572, 1.0
        %v2701 = vsub.f32 %v2573, 1.0
        %v2702 = vsub.f32 %v2574, 1.0
        %v2703 = vsub.f32 %v2575, 1.0
        %v2704 = vsub.f32 %v2576, 1.0
        %v2705 = vsub.f32 %v2577, 1.0
        %v2706 = vsub.f32 %v2578, 1.0
        %v2707 = vsub.f32 %v2579, 1.0
        %v2708 = vsub.f32 %v2580, 1.0
        %v2709 = vsub.f32 %v2581, 1.0
        %v2710 = vsub.f32 %v2582, 1.0
        %v2711 = vsub.f32 %v2583, 1.0
        %v2712 = vsub.f32 %v2584, 1.0
        %v2713 = vsub.f32 %v2585, 1.0
        %v2714 = vsub.f32 %v2586, 1.0
        %v2715 = vsub.f32 %v2587, 1.0
        %v2716 = vlog2.pop %v1819
        %v2717 = vmul.f32 %v2716, 0.6931472
        %v2718 = vlog2.pop %v1820
        %v2719 = vmul.f32 %v2718, 0.6931472
        %v2720 = vlog2.pop %v1821
        %v2721 = vmul.f32 %v2720, 0.6931472
        %v2722 = vlog2.pop %v1822
        %v2723 = vmul.f32 %v2722, 0.6931472
        %v2724 = vlog2.pop %v1823
        %v2725 = vmul.f32 %v2724, 0.6931472
        %v2726 = vlog2.pop %v1824
        %v2727 = vmul.f32 %v2726, 0.6931472
        %v2728 = vlog2.pop %v1825
        %v2729 = vmul.f32 %v2728, 0.6931472
        %v2730 = vlog2.pop %v1826
        %v2731 = vmul.f32 %v2730, 0.6931472
        %v2732 = vlog2.pop %v1827
        %v2733 = vmul.f32 %v2732, 0.6931472
        %v2734 = vlog2.pop %v1828
        %v2735 = vmul.f32 %v2734, 0.6931472
        %v2736 = vlog2.pop %v1829
        %v2737 = vmul.f32 %v2736, 0.6931472
        %v2738 = vlog2.pop %v1830
        %v2739 = vmul.f32 %v2738, 0.6931472
        %v2740 = vlog2.pop %v1831
        %v2741 = vmul.f32 %v2740, 0.6931472
        %v2742 = vlog2.pop %v1832
        %v2743 = vmul.f32 %v2742, 0.6931472
        %v2744 = vlog2.pop %v1833
        %v2745 = vmul.f32 %v2744, 0.6931472
        %v2746 = vlog2.pop %v1834
        %v2747 = vmul.f32 %v2746, 0.6931472
        %v2748 = vlog2.pop %v1835
        %v2749 = vmul.f32 %v2748, 0.6931472
        %v2750 = vlog2.pop %v1836
        %v2751 = vmul.f32 %v2750, 0.6931472
        %v2752 = vlog2.pop %v1837
        %v2753 = vmul.f32 %v2752, 0.6931472
        %v2754 = vlog2.pop %v1838
        %v2755 = vmul.f32 %v2754, 0.6931472
        %v2756 = vlog2.pop %v1839
        %v2757 = vmul.f32 %v2756, 0.6931472
        %v2758 = vlog2.pop %v1840
        %v2759 = vmul.f32 %v2758, 0.6931472
        %v2760 = vlog2.pop %v1841
        %v2761 = vmul.f32 %v2760, 0.6931472
        %v2762 = vlog2.pop %v1842
        %v2763 = vmul.f32 %v2762, 0.6931472
        %v2764 = vlog2.pop %v1843
        %v2765 = vmul.f32 %v2764, 0.6931472
        %v2766 = vlog2.pop %v1844
        %v2767 = vmul.f32 %v2766, 0.6931472
        %v2768 = vlog2.pop %v1845
        %v2769 = vmul.f32 %v2768, 0.6931472
        %v2770 = vlog2.pop %v1846
        %v2771 = vmul.f32 %v2770, 0.6931472
        %v2772 = vlog2.pop %v1847
        %v2773 = vmul.f32 %v2772, 0.6931472
        %v2774 = vlog2.pop %v1848
        %v2775 = vmul.f32 %v2774, 0.6931472
        %v2776 = vlog2.pop %v1849
        %v2777 = vmul.f32 %v2776, 0.6931472
        %v2778 = vlog2.pop %v1850
        %v2779 = vmul.f32 %v2778, 0.6931472
        %v2780 = vlog2.pop %v1851
        %v2781 = vmul.f32 %v2780, 0.6931472
        %v2782 = vlog2.pop %v1852
        %v2783 = vmul.f32 %v2782, 0.6931472
        %v2784 = vlog2.pop %v1853
        %v2785 = vmul.f32 %v2784, 0.6931472
        %v2786 = vlog2.pop %v1854
        %v2787 = vmul.f32 %v2786, 0.6931472
        %v2788 = vlog2.pop %v1855
        %v2789 = vmul.f32 %v2788, 0.6931472
        %v2790 = vlog2.pop %v1856
        %v2791 = vmul.f32 %v2790, 0.6931472
        %v2792 = vlog2.pop %v1857
        %v2793 = vmul.f32 %v2792, 0.6931472
        %v2794 = vlog2.pop %v1858
        %v2795 = vmul.f32 %v2794, 0.6931472
        %v2796 = vlog2.pop %v1859
        %v2797 = vmul.f32 %v2796, 0.6931472
        %v2798 = vlog2.pop %v1860
        %v2799 = vmul.f32 %v2798, 0.6931472
        %v2800 = vlog2.pop %v1861
        %v2801 = vmul.f32 %v2800, 0.6931472
        %v2802 = vlog2.pop %v1862
        %v2803 = vmul.f32 %v2802, 0.6931472
        %v2804 = vlog2.pop %v1863
        %v2805 = vmul.f32 %v2804, 0.6931472
        %v2806 = vlog2.pop %v1864
        %v2807 = vmul.f32 %v2806, 0.6931472
        %v2808 = vlog2.pop %v1865
        %v2809 = vmul.f32 %v2808, 0.6931472
        %v2810 = vlog2.pop %v1866
        %v2811 = vmul.f32 %v2810, 0.6931472
        %v2812 = vlog2.pop %v1867
        %v2813 = vmul.f32 %v2812, 0.6931472
        %v2814 = vlog2.pop %v1868
        %v2815 = vmul.f32 %v2814, 0.6931472
        %v2816 = vlog2.pop %v1869
        %v2817 = vmul.f32 %v2816, 0.6931472
        %v2818 = vlog2.pop %v1870
        %v2819 = vmul.f32 %v2818, 0.6931472
        %v2820 = vlog2.pop %v1871
        %v2821 = vmul.f32 %v2820, 0.6931472
        %v2822 = vlog2.pop %v1872
        %v2823 = vmul.f32 %v2822, 0.6931472
        %v2824 = vlog2.pop %v1873
        %v2825 = vmul.f32 %v2824, 0.6931472
        %v2826 = vlog2.pop %v1874
        %v2827 = vmul.f32 %v2826, 0.6931472
        %v2828 = vlog2.pop %v1875
        %v2829 = vmul.f32 %v2828, 0.6931472
        %v2830 = vlog2.pop %v1876
        %v2831 = vmul.f32 %v2830, 0.6931472
        %v2832 = vlog2.pop %v1877
        %v2833 = vmul.f32 %v2832, 0.6931472
        %v2834 = vlog2.pop %v1878
        %v2835 = vmul.f32 %v2834, 0.6931472
        %v2836 = vlog2.pop %v1879
        %v2837 = vmul.f32 %v2836, 0.6931472
        %v2838 = vlog2.pop %v1880
        %v2839 = vmul.f32 %v2838, 0.6931472
        %v2840 = vlog2.pop %v1881
        %v2841 = vmul.f32 %v2840, 0.6931472
        %v2842 = vlog2.pop %v1882
        %v2843 = vmul.f32 %v2842, 0.6931472
        %v2844 = vmul.f32 %v2717, -2.0
        %v2845 = vmul.f32 %v2719, -2.0
        %v2846 = vmul.f32 %v2721, -2.0
        %v2847 = vmul.f32 %v2723, -2.0
        %v2848 = vmul.f32 %v2725, -2.0
        %v2849 = vmul.f32 %v2727, -2.0
        %v2850 = vmul.f32 %v2729, -2.0
        %v2851 = vmul.f32 %v2731, -2.0
        %v2852 = vmul.f32 %v2733, -2.0
        %v2853 = vmul.f32 %v2735, -2.0
        %v2854 = vmul.f32 %v2737, -2.0
        %v2855 = vmul.f32 %v2739, -2.0
        %v2856 = vmul.f32 %v2741, -2.0
        %v2857 = vmul.f32 %v2743, -2.0
        %v2858 = vmul.f32 %v2745, -2.0
        %v2859 = vmul.f32 %v2747, -2.0
        %v2860 = vmul.f32 %v2749, -2.0
        %v2861 = vmul.f32 %v2751, -2.0
        %v2862 = vmul.f32 %v2753, -2.0
        %v2863 = vmul.f32 %v2755, -2.0
        %v2864 = vmul.f32 %v2757, -2.0
        %v2865 = vmul.f32 %v2759, -2.0
        %v2866 = vmul.f32 %v2761, -2.0
        %v2867 = vmul.f32 %v2763, -2.0
        %v2868 = vmul.f32 %v2765, -2.0
        %v2869 = vmul.f32 %v2767, -2.0
        %v2870 = vmul.f32 %v2769, -2.0
        %v2871 = vmul.f32 %v2771, -2.0
        %v2872 = vmul.f32 %v2773, -2.0
        %v2873 = vmul.f32 %v2775, -2.0
        %v2874 = vmul.f32 %v2777, -2.0
        %v2875 = vmul.f32 %v2779, -2.0
        %v2876 = vmul.f32 %v2781, -2.0
        %v2877 = vmul.f32 %v2783, -2.0
        %v2878 = vmul.f32 %v2785, -2.0
        %v2879 = vmul.f32 %v2787, -2.0
        %v2880 = vmul.f32 %v2789, -2.0
        %v2881 = vmul.f32 %v2791, -2.0
        %v2882 = vmul.f32 %v2793, -2.0
        %v2883 = vmul.f32 %v2795, -2.0
        %v2884 = vmul.f32 %v2797, -2.0
        %v2885 = vmul.f32 %v2799, -2.0
        %v2886 = vmul.f32 %v2801, -2.0
        %v2887 = vmul.f32 %v2803, -2.0
        %v2888 = vmul.f32 %v2805, -2.0
        %v2889 = vmul.f32 %v2807, -2.0
        %v2890 = vmul.f32 %v2809, -2.0
        %v2891 = vmul.f32 %v2811, -2.0
        %v2892 = vmul.f32 %v2813, -2.0
        %v2893 = vmul.f32 %v2815, -2.0
        %v2894 = vmul.f32 %v2817, -2.0
        %v2895 = vmul.f32 %v2819, -2.0
        %v2896 = vmul.f32 %v2821, -2.0
        %v2897 = vmul.f32 %v2823, -2.0
        %v2898 = vmul.f32 %v2825, -2.0
        %v2899 = vmul.f32 %v2827, -2.0
        %v2900 = vmul.f32 %v2829, -2.0
        %v2901 = vmul.f32 %v2831, -2.0
        %v2902 = vmul.f32 %v2833, -2.0
        %v2903 = vmul.f32 %v2835, -2.0
        %v2904 = vmul.f32 %v2837, -2.0
        %v2905 = vmul.f32 %v2839, -2.0
        %v2906 = vmul.f32 %v2841, -2.0
        %v2907 = vmul.f32 %v2843, -2.0
        %v2908 = vrsqrt.pop %v2844
        %v2909 = vmul.f32 %v2844, %v2908
        %vm2910 = vcmp.eq.f32.partialorder %v2844, inf
        %v2911 = vsel %vm2910, %v2844, %v2909
        %vm2912 = vcmp.eq.f32.partialorder %v2844, 0.0
        %v2913 = vand.u32 %v2844, 2147483648
        %v2914 = vsel %vm2912, %v2913, %v2911
        %v2915 = vrsqrt.pop %v2845
        %v2916 = vmul.f32 %v2845, %v2915
        %vm2917 = vcmp.eq.f32.partialorder %v2845, inf
        %v2918 = vsel %vm2917, %v2845, %v2916
        %vm2919 = vcmp.eq.f32.partialorder %v2845, 0.0
        %v2920 = vand.u32 %v2845, 2147483648
        %v2921 = vsel %vm2919, %v2920, %v2918
        %v2922 = vrsqrt.pop %v2846
        %v2923 = vmul.f32 %v2846, %v2922
        %vm2924 = vcmp.eq.f32.partialorder %v2846, inf
        %v2925 = vsel %vm2924, %v2846, %v2923
        %vm2926 = vcmp.eq.f32.partialorder %v2846, 0.0
        %v2927 = vand.u32 %v2846, 2147483648
        %v2928 = vsel %vm2926, %v2927, %v2925
        %v2929 = vrsqrt.pop %v2847
        %v2930 = vmul.f32 %v2847, %v2929
        %vm2931 = vcmp.eq.f32.partialorder %v2847, inf
        %v2932 = vsel %vm2931, %v2847, %v2930
        %vm2933 = vcmp.eq.f32.partialorder %v2847, 0.0
        %v2934 = vand.u32 %v2847, 2147483648
        %v2935 = vsel %vm2933, %v2934, %v2932
        %v2936 = vrsqrt.pop %v2848
        %v2937 = vmul.f32 %v2848, %v2936
        %vm2938 = vcmp.eq.f32.partialorder %v2848, inf
        %v2939 = vsel %vm2938, %v2848, %v2937
        %vm2940 = vcmp.eq.f32.partialorder %v2848, 0.0
        %v2941 = vand.u32 %v2848, 2147483648
        %v2942 = vsel %vm2940, %v2941, %v2939
        %v2943 = vrsqrt.pop %v2849
        %v2944 = vmul.f32 %v2849, %v2943
        %vm2945 = vcmp.eq.f32.partialorder %v2849, inf
        %v2946 = vsel %vm2945, %v2849, %v2944
        %vm2947 = vcmp.eq.f32.partialorder %v2849, 0.0
        %v2948 = vand.u32 %v2849, 2147483648
        %v2949 = vsel %vm2947, %v2948, %v2946
        %v2950 = vrsqrt.pop %v2850
        %v2951 = vmul.f32 %v2850, %v2950
        %vm2952 = vcmp.eq.f32.partialorder %v2850, inf
        %v2953 = vsel %vm2952, %v2850, %v2951
        %vm2954 = vcmp.eq.f32.partialorder %v2850, 0.0
        %v2955 = vand.u32 %v2850, 2147483648
        %v2956 = vsel %vm2954, %v2955, %v2953
        %v2957 = vrsqrt.pop %v2851
        %v2958 = vmul.f32 %v2851, %v2957
        %vm2959 = vcmp.eq.f32.partialorder %v2851, inf
        %v2960 = vsel %vm2959, %v2851, %v2958
        %vm2961 = vcmp.eq.f32.partialorder %v2851, 0.0
        %v2962 = vand.u32 %v2851, 2147483648
        %v2963 = vsel %vm2961, %v2962, %v2960
        %v2964 = vrsqrt.pop %v2852
        %v2965 = vmul.f32 %v2852, %v2964
        %vm2966 = vcmp.eq.f32.partialorder %v2852, inf
        %v2967 = vsel %vm2966, %v2852, %v2965
        %vm2968 = vcmp.eq.f32.partialorder %v2852, 0.0
        %v2969 = vand.u32 %v2852, 2147483648
        %v2970 = vsel %vm2968, %v2969, %v2967
        %v2971 = vrsqrt.pop %v2853
        %v2972 = vmul.f32 %v2853, %v2971
        %vm2973 = vcmp.eq.f32.partialorder %v2853, inf
        %v2974 = vsel %vm2973, %v2853, %v2972
        %vm2975 = vcmp.eq.f32.partialorder %v2853, 0.0
        %v2976 = vand.u32 %v2853, 2147483648
        %v2977 = vsel %vm2975, %v2976, %v2974
        %v2978 = vrsqrt.pop %v2854
        %v2979 = vmul.f32 %v2854, %v2978
        %vm2980 = vcmp.eq.f32.partialorder %v2854, inf
        %v2981 = vsel %vm2980, %v2854, %v2979
        %vm2982 = vcmp.eq.f32.partialorder %v2854, 0.0
        %v2983 = vand.u32 %v2854, 2147483648
        %v2984 = vsel %vm2982, %v2983, %v2981
        %v2985 = vrsqrt.pop %v2855
        %v2986 = vmul.f32 %v2855, %v2985
        %vm2987 = vcmp.eq.f32.partialorder %v2855, inf
        %v2988 = vsel %vm2987, %v2855, %v2986
        %vm2989 = vcmp.eq.f32.partialorder %v2855, 0.0
        %v2990 = vand.u32 %v2855, 2147483648
        %v2991 = vsel %vm2989, %v2990, %v2988
        %v2992 = vrsqrt.pop %v2856
        %v2993 = vmul.f32 %v2856, %v2992
        %vm2994 = vcmp.eq.f32.partialorder %v2856, inf
        %v2995 = vsel %vm2994, %v2856, %v2993
        %vm2996 = vcmp.eq.f32.partialorder %v2856, 0.0
        %v2997 = vand.u32 %v2856, 2147483648
        %v2998 = vsel %vm2996, %v2997, %v2995
        %v2999 = vrsqrt.pop %v2857
        %v3000 = vmul.f32 %v2857, %v2999
        %vm3001 = vcmp.eq.f32.partialorder %v2857, inf
        %v3002 = vsel %vm3001, %v2857, %v3000
        %vm3003 = vcmp.eq.f32.partialorder %v2857, 0.0
        %v3004 = vand.u32 %v2857, 2147483648
        %v3005 = vsel %vm3003, %v3004, %v3002
        %v3006 = vrsqrt.pop %v2858
        %v3007 = vmul.f32 %v2858, %v3006
        %vm3008 = vcmp.eq.f32.partialorder %v2858, inf
        %v3009 = vsel %vm3008, %v2858, %v3007
        %vm3010 = vcmp.eq.f32.partialorder %v2858, 0.0
        %v3011 = vand.u32 %v2858, 2147483648
        %v3012 = vsel %vm3010, %v3011, %v3009
        %v3013 = vrsqrt.pop %v2859
        %v3014 = vmul.f32 %v2859, %v3013
        %vm3015 = vcmp.eq.f32.partialorder %v2859, inf
        %v3016 = vsel %vm3015, %v2859, %v3014
        %vm3017 = vcmp.eq.f32.partialorder %v2859, 0.0
        %v3018 = vand.u32 %v2859, 2147483648
        %v3019 = vsel %vm3017, %v3018, %v3016
        %v3020 = vrsqrt.pop %v2860
        %v3021 = vmul.f32 %v2860, %v3020
        %vm3022 = vcmp.eq.f32.partialorder %v2860, inf
        %v3023 = vsel %vm3022, %v2860, %v3021
        %vm3024 = vcmp.eq.f32.partialorder %v2860, 0.0
        %v3025 = vand.u32 %v2860, 2147483648
        %v3026 = vsel %vm3024, %v3025, %v3023
        %v3027 = vrsqrt.pop %v2861
        %v3028 = vmul.f32 %v2861, %v3027
        %vm3029 = vcmp.eq.f32.partialorder %v2861, inf
        %v3030 = vsel %vm3029, %v2861, %v3028
        %vm3031 = vcmp.eq.f32.partialorder %v2861, 0.0
        %v3032 = vand.u32 %v2861, 2147483648
        %v3033 = vsel %vm3031, %v3032, %v3030
        %v3034 = vrsqrt.pop %v2862
        %v3035 = vmul.f32 %v2862, %v3034
        %vm3036 = vcmp.eq.f32.partialorder %v2862, inf
        %v3037 = vsel %vm3036, %v2862, %v3035
        %vm3038 = vcmp.eq.f32.partialorder %v2862, 0.0
        %v3039 = vand.u32 %v2862, 2147483648
        %v3040 = vsel %vm3038, %v3039, %v3037
        %v3041 = vrsqrt.pop %v2863
        %v3042 = vmul.f32 %v2863, %v3041
        %vm3043 = vcmp.eq.f32.partialorder %v2863, inf
        %v3044 = vsel %vm3043, %v2863, %v3042
        %vm3045 = vcmp.eq.f32.partialorder %v2863, 0.0
        %v3046 = vand.u32 %v2863, 2147483648
        %v3047 = vsel %vm3045, %v3046, %v3044
        %v3048 = vrsqrt.pop %v2864
        %v3049 = vmul.f32 %v2864, %v3048
        %vm3050 = vcmp.eq.f32.partialorder %v2864, inf
        %v3051 = vsel %vm3050, %v2864, %v3049
        %vm3052 = vcmp.eq.f32.partialorder %v2864, 0.0
        %v3053 = vand.u32 %v2864, 2147483648
        %v3054 = vsel %vm3052, %v3053, %v3051
        %v3055 = vrsqrt.pop %v2865
        %v3056 = vmul.f32 %v2865, %v3055
        %vm3057 = vcmp.eq.f32.partialorder %v2865, inf
        %v3058 = vsel %vm3057, %v2865, %v3056
        %vm3059 = vcmp.eq.f32.partialorder %v2865, 0.0
        %v3060 = vand.u32 %v2865, 2147483648
        %v3061 = vsel %vm3059, %v3060, %v3058
        %v3062 = vrsqrt.pop %v2866
        %v3063 = vmul.f32 %v2866, %v3062
        %vm3064 = vcmp.eq.f32.partialorder %v2866, inf
        %v3065 = vsel %vm3064, %v2866, %v3063
        %vm3066 = vcmp.eq.f32.partialorder %v2866, 0.0
        %v3067 = vand.u32 %v2866, 2147483648
        %v3068 = vsel %vm3066, %v3067, %v3065
        %v3069 = vrsqrt.pop %v2867
        %v3070 = vmul.f32 %v2867, %v3069
        %vm3071 = vcmp.eq.f32.partialorder %v2867, inf
        %v3072 = vsel %vm3071, %v2867, %v3070
        %vm3073 = vcmp.eq.f32.partialorder %v2867, 0.0
        %v3074 = vand.u32 %v2867, 2147483648
        %v3075 = vsel %vm3073, %v3074, %v3072
        %v3076 = vrsqrt.pop %v2868
        %v3077 = vmul.f32 %v2868, %v3076
        %vm3078 = vcmp.eq.f32.partialorder %v2868, inf
        %v3079 = vsel %vm3078, %v2868, %v3077
        %vm3080 = vcmp.eq.f32.partialorder %v2868, 0.0
        %v3081 = vand.u32 %v2868, 2147483648
        %v3082 = vsel %vm3080, %v3081, %v3079
        %v3083 = vrsqrt.pop %v2869
        %v3084 = vmul.f32 %v2869, %v3083
        %vm3085 = vcmp.eq.f32.partialorder %v2869, inf
        %v3086 = vsel %vm3085, %v2869, %v3084
        %vm3087 = vcmp.eq.f32.partialorder %v2869, 0.0
        %v3088 = vand.u32 %v2869, 2147483648
        %v3089 = vsel %vm3087, %v3088, %v3086
        %v3090 = vrsqrt.pop %v2870
        %v3091 = vmul.f32 %v2870, %v3090
        %vm3092 = vcmp.eq.f32.partialorder %v2870, inf
        %v3093 = vsel %vm3092, %v2870, %v3091
        %vm3094 = vcmp.eq.f32.partialorder %v2870, 0.0
        %v3095 = vand.u32 %v2870, 2147483648
        %v3096 = vsel %vm3094, %v3095, %v3093
        %v3097 = vrsqrt.pop %v2871
        %v3098 = vmul.f32 %v2871, %v3097
        %vm3099 = vcmp.eq.f32.partialorder %v2871, inf
        %v3100 = vsel %vm3099, %v2871, %v3098
        %vm3101 = vcmp.eq.f32.partialorder %v2871, 0.0
        %v3102 = vand.u32 %v2871, 2147483648
        %v3103 = vsel %vm3101, %v3102, %v3100
        %v3104 = vrsqrt.pop %v2872
        %v3105 = vmul.f32 %v2872, %v3104
        %vm3106 = vcmp.eq.f32.partialorder %v2872, inf
        %v3107 = vsel %vm3106, %v2872, %v3105
        %vm3108 = vcmp.eq.f32.partialorder %v2872, 0.0
        %v3109 = vand.u32 %v2872, 2147483648
        %v3110 = vsel %vm3108, %v3109, %v3107
        %v3111 = vrsqrt.pop %v2873
        %v3112 = vmul.f32 %v2873, %v3111
        %vm3113 = vcmp.eq.f32.partialorder %v2873, inf
        %v3114 = vsel %vm3113, %v2873, %v3112
        %vm3115 = vcmp.eq.f32.partialorder %v2873, 0.0
        %v3116 = vand.u32 %v2873, 2147483648
        %v3117 = vsel %vm3115, %v3116, %v3114
        %v3118 = vrsqrt.pop %v2874
        %v3119 = vmul.f32 %v2874, %v3118
        %vm3120 = vcmp.eq.f32.partialorder %v2874, inf
        %v3121 = vsel %vm3120, %v2874, %v3119
        %vm3122 = vcmp.eq.f32.partialorder %v2874, 0.0
        %v3123 = vand.u32 %v2874, 2147483648
        %v3124 = vsel %vm3122, %v3123, %v3121
        %v3125 = vrsqrt.pop %v2875
        %v3126 = vmul.f32 %v2875, %v3125
        %vm3127 = vcmp.eq.f32.partialorder %v2875, inf
        %v3128 = vsel %vm3127, %v2875, %v3126
        %vm3129 = vcmp.eq.f32.partialorder %v2875, 0.0
        %v3130 = vand.u32 %v2875, 2147483648
        %v3131 = vsel %vm3129, %v3130, %v3128
        %v3132 = vrsqrt.pop %v2876
        %v3133 = vmul.f32 %v2876, %v3132
        %vm3134 = vcmp.eq.f32.partialorder %v2876, inf
        %v3135 = vsel %vm3134, %v2876, %v3133
        %vm3136 = vcmp.eq.f32.partialorder %v2876, 0.0
        %v3137 = vand.u32 %v2876, 2147483648
        %v3138 = vsel %vm3136, %v3137, %v3135
        %v3139 = vrsqrt.pop %v2877
        %v3140 = vmul.f32 %v2877, %v3139
        %vm3141 = vcmp.eq.f32.partialorder %v2877, inf
        %v3142 = vsel %vm3141, %v2877, %v3140
        %vm3143 = vcmp.eq.f32.partialorder %v2877, 0.0
        %v3144 = vand.u32 %v2877, 2147483648
        %v3145 = vsel %vm3143, %v3144, %v3142
        %v3146 = vrsqrt.pop %v2878
        %v3147 = vmul.f32 %v2878, %v3146
        %vm3148 = vcmp.eq.f32.partialorder %v2878, inf
        %v3149 = vsel %vm3148, %v2878, %v3147
        %vm3150 = vcmp.eq.f32.partialorder %v2878, 0.0
        %v3151 = vand.u32 %v2878, 2147483648
        %v3152 = vsel %vm3150, %v3151, %v3149
        %v3153 = vrsqrt.pop %v2879
        %v3154 = vmul.f32 %v2879, %v3153
        %vm3155 = vcmp.eq.f32.partialorder %v2879, inf
        %v3156 = vsel %vm3155, %v2879, %v3154
        %vm3157 = vcmp.eq.f32.partialorder %v2879, 0.0
        %v3158 = vand.u32 %v2879, 2147483648
        %v3159 = vsel %vm3157, %v3158, %v3156
        %v3160 = vrsqrt.pop %v2880
        %v3161 = vmul.f32 %v2880, %v3160
        %vm3162 = vcmp.eq.f32.partialorder %v2880, inf
        %v3163 = vsel %vm3162, %v2880, %v3161
        %vm3164 = vcmp.eq.f32.partialorder %v2880, 0.0
        %v3165 = vand.u32 %v2880, 2147483648
        %v3166 = vsel %vm3164, %v3165, %v3163
        %v3167 = vrsqrt.pop %v2881
        %v3168 = vmul.f32 %v2881, %v3167
        %vm3169 = vcmp.eq.f32.partialorder %v2881, inf
        %v3170 = vsel %vm3169, %v2881, %v3168
        %vm3171 = vcmp.eq.f32.partialorder %v2881, 0.0
        %v3172 = vand.u32 %v2881, 2147483648
        %v3173 = vsel %vm3171, %v3172, %v3170
        %v3174 = vrsqrt.pop %v2882
        %v3175 = vmul.f32 %v2882, %v3174
        %vm3176 = vcmp.eq.f32.partialorder %v2882, inf
        %v3177 = vsel %vm3176, %v2882, %v3175
        %vm3178 = vcmp.eq.f32.partialorder %v2882, 0.0
        %v3179 = vand.u32 %v2882, 2147483648
        %v3180 = vsel %vm3178, %v3179, %v3177
        %v3181 = vrsqrt.pop %v2883
        %v3182 = vmul.f32 %v2883, %v3181
        %vm3183 = vcmp.eq.f32.partialorder %v2883, inf
        %v3184 = vsel %vm3183, %v2883, %v3182
        %vm3185 = vcmp.eq.f32.partialorder %v2883, 0.0
        %v3186 = vand.u32 %v2883, 2147483648
        %v3187 = vsel %vm3185, %v3186, %v3184
        %v3188 = vrsqrt.pop %v2884
        %v3189 = vmul.f32 %v2884, %v3188
        %vm3190 = vcmp.eq.f32.partialorder %v2884, inf
        %v3191 = vsel %vm3190, %v2884, %v3189
        %vm3192 = vcmp.eq.f32.partialorder %v2884, 0.0
        %v3193 = vand.u32 %v2884, 2147483648
        %v3194 = vsel %vm3192, %v3193, %v3191
        %v3195 = vrsqrt.pop %v2885
        %v3196 = vmul.f32 %v2885, %v3195
        %vm3197 = vcmp.eq.f32.partialorder %v2885, inf
        %v3198 = vsel %vm3197, %v2885, %v3196
        %vm3199 = vcmp.eq.f32.partialorder %v2885, 0.0
        %v3200 = vand.u32 %v2885, 2147483648
        %v3201 = vsel %vm3199, %v3200, %v3198
        %v3202 = vrsqrt.pop %v2886
        %v3203 = vmul.f32 %v2886, %v3202
        %vm3204 = vcmp.eq.f32.partialorder %v2886, inf
        %v3205 = vsel %vm3204, %v2886, %v3203
        %vm3206 = vcmp.eq.f32.partialorder %v2886, 0.0
        %v3207 = vand.u32 %v2886, 2147483648
        %v3208 = vsel %vm3206, %v3207, %v3205
        %v3209 = vrsqrt.pop %v2887
        %v3210 = vmul.f32 %v2887, %v3209
        %vm3211 = vcmp.eq.f32.partialorder %v2887, inf
        %v3212 = vsel %vm3211, %v2887, %v3210
        %vm3213 = vcmp.eq.f32.partialorder %v2887, 0.0
        %v3214 = vand.u32 %v2887, 2147483648
        %v3215 = vsel %vm3213, %v3214, %v3212
        %v3216 = vrsqrt.pop %v2888
        %v3217 = vmul.f32 %v2888, %v3216
        %vm3218 = vcmp.eq.f32.partialorder %v2888, inf
        %v3219 = vsel %vm3218, %v2888, %v3217
        %vm3220 = vcmp.eq.f32.partialorder %v2888, 0.0
        %v3221 = vand.u32 %v2888, 2147483648
        %v3222 = vsel %vm3220, %v3221, %v3219
        %v3223 = vrsqrt.pop %v2889
        %v3224 = vmul.f32 %v2889, %v3223
        %vm3225 = vcmp.eq.f32.partialorder %v2889, inf
        %v3226 = vsel %vm3225, %v2889, %v3224
        %vm3227 = vcmp.eq.f32.partialorder %v2889, 0.0
        %v3228 = vand.u32 %v2889, 2147483648
        %v3229 = vsel %vm3227, %v3228, %v3226
        %v3230 = vrsqrt.pop %v2890
        %v3231 = vmul.f32 %v2890, %v3230
        %vm3232 = vcmp.eq.f32.partialorder %v2890, inf
        %v3233 = vsel %vm3232, %v2890, %v3231
        %vm3234 = vcmp.eq.f32.partialorder %v2890, 0.0
        %v3235 = vand.u32 %v2890, 2147483648
        %v3236 = vsel %vm3234, %v3235, %v3233
        %v3237 = vrsqrt.pop %v2891
        %v3238 = vmul.f32 %v2891, %v3237
        %vm3239 = vcmp.eq.f32.partialorder %v2891, inf
        %v3240 = vsel %vm3239, %v2891, %v3238
        %vm3241 = vcmp.eq.f32.partialorder %v2891, 0.0
        %v3242 = vand.u32 %v2891, 2147483648
        %v3243 = vsel %vm3241, %v3242, %v3240
        %v3244 = vrsqrt.pop %v2892
        %v3245 = vmul.f32 %v2892, %v3244
        %vm3246 = vcmp.eq.f32.partialorder %v2892, inf
        %v3247 = vsel %vm3246, %v2892, %v3245
        %vm3248 = vcmp.eq.f32.partialorder %v2892, 0.0
        %v3249 = vand.u32 %v2892, 2147483648
        %v3250 = vsel %vm3248, %v3249, %v3247
        %v3251 = vrsqrt.pop %v2893
        %v3252 = vmul.f32 %v2893, %v3251
        %vm3253 = vcmp.eq.f32.partialorder %v2893, inf
        %v3254 = vsel %vm3253, %v2893, %v3252
        %vm3255 = vcmp.eq.f32.partialorder %v2893, 0.0
        %v3256 = vand.u32 %v2893, 2147483648
        %v3257 = vsel %vm3255, %v3256, %v3254
        %v3258 = vrsqrt.pop %v2894
        %v3259 = vmul.f32 %v2894, %v3258
        %vm3260 = vcmp.eq.f32.partialorder %v2894, inf
        %v3261 = vsel %vm3260, %v2894, %v3259
        %vm3262 = vcmp.eq.f32.partialorder %v2894, 0.0
        %v3263 = vand.u32 %v2894, 2147483648
        %v3264 = vsel %vm3262, %v3263, %v3261
        %v3265 = vrsqrt.pop %v2895
        %v3266 = vmul.f32 %v2895, %v3265
        %vm3267 = vcmp.eq.f32.partialorder %v2895, inf
        %v3268 = vsel %vm3267, %v2895, %v3266
        %vm3269 = vcmp.eq.f32.partialorder %v2895, 0.0
        %v3270 = vand.u32 %v2895, 2147483648
        %v3271 = vsel %vm3269, %v3270, %v3268
        %v3272 = vrsqrt.pop %v2896
        %v3273 = vmul.f32 %v2896, %v3272
        %vm3274 = vcmp.eq.f32.partialorder %v2896, inf
        %v3275 = vsel %vm3274, %v2896, %v3273
        %vm3276 = vcmp.eq.f32.partialorder %v2896, 0.0
        %v3277 = vand.u32 %v2896, 2147483648
        %v3278 = vsel %vm3276, %v3277, %v3275
        %v3279 = vrsqrt.pop %v2897
        %v3280 = vmul.f32 %v2897, %v3279
        %vm3281 = vcmp.eq.f32.partialorder %v2897, inf
        %v3282 = vsel %vm3281, %v2897, %v3280
        %vm3283 = vcmp.eq.f32.partialorder %v2897, 0.0
        %v3284 = vand.u32 %v2897, 2147483648
        %v3285 = vsel %vm3283, %v3284, %v3282
        %v3286 = vrsqrt.pop %v2898
        %v3287 = vmul.f32 %v2898, %v3286
        %vm3288 = vcmp.eq.f32.partialorder %v2898, inf
        %v3289 = vsel %vm3288, %v2898, %v3287
        %vm3290 = vcmp.eq.f32.partialorder %v2898, 0.0
        %v3291 = vand.u32 %v2898, 2147483648
        %v3292 = vsel %vm3290, %v3291, %v3289
        %v3293 = vrsqrt.pop %v2899
        %v3294 = vmul.f32 %v2899, %v3293
        %vm3295 = vcmp.eq.f32.partialorder %v2899, inf
        %v3296 = vsel %vm3295, %v2899, %v3294
        %vm3297 = vcmp.eq.f32.partialorder %v2899, 0.0
        %v3298 = vand.u32 %v2899, 2147483648
        %v3299 = vsel %vm3297, %v3298, %v3296
        %v3300 = vrsqrt.pop %v2900
        %v3301 = vmul.f32 %v2900, %v3300
        %vm3302 = vcmp.eq.f32.partialorder %v2900, inf
        %v3303 = vsel %vm3302, %v2900, %v3301
        %vm3304 = vcmp.eq.f32.partialorder %v2900, 0.0
        %v3305 = vand.u32 %v2900, 2147483648
        %v3306 = vsel %vm3304, %v3305, %v3303
        %v3307 = vrsqrt.pop %v2901
        %v3308 = vmul.f32 %v2901, %v3307
        %vm3309 = vcmp.eq.f32.partialorder %v2901, inf
        %v3310 = vsel %vm3309, %v2901, %v3308
        %vm3311 = vcmp.eq.f32.partialorder %v2901, 0.0
        %v3312 = vand.u32 %v2901, 2147483648
        %v3313 = vsel %vm3311, %v3312, %v3310
        %v3314 = vrsqrt.pop %v2902
        %v3315 = vmul.f32 %v2902, %v3314
        %vm3316 = vcmp.eq.f32.partialorder %v2902, inf
        %v3317 = vsel %vm3316, %v2902, %v3315
        %vm3318 = vcmp.eq.f32.partialorder %v2902, 0.0
        %v3319 = vand.u32 %v2902, 2147483648
        %v3320 = vsel %vm3318, %v3319, %v3317
        %v3321 = vrsqrt.pop %v2903
        %v3322 = vmul.f32 %v2903, %v3321
        %vm3323 = vcmp.eq.f32.partialorder %v2903, inf
        %v3324 = vsel %vm3323, %v2903, %v3322
        %vm3325 = vcmp.eq.f32.partialorder %v2903, 0.0
        %v3326 = vand.u32 %v2903, 2147483648
        %v3327 = vsel %vm3325, %v3326, %v3324
        %v3328 = vrsqrt.pop %v2904
        %v3329 = vmul.f32 %v2904, %v3328
        %vm3330 = vcmp.eq.f32.partialorder %v2904, inf
        %v3331 = vsel %vm3330, %v2904, %v3329
        %vm3332 = vcmp.eq.f32.partialorder %v2904, 0.0
        %v3333 = vand.u32 %v2904, 2147483648
        %v3334 = vsel %vm3332, %v3333, %v3331
        %v3335 = vrsqrt.pop %v2905
        %v3336 = vmul.f32 %v2905, %v3335
        %vm3337 = vcmp.eq.f32.partialorder %v2905, inf
        %v3338 = vsel %vm3337, %v2905, %v3336
        %vm3339 = vcmp.eq.f32.partialorder %v2905, 0.0
        %v3340 = vand.u32 %v2905, 2147483648
        %v3341 = vsel %vm3339, %v3340, %v3338
        %v3342 = vrsqrt.pop %v2906
        %v3343 = vmul.f32 %v2906, %v3342
        %vm3344 = vcmp.eq.f32.partialorder %v2906, inf
        %v3345 = vsel %vm3344, %v2906, %v3343
        %vm3346 = vcmp.eq.f32.partialorder %v2906, 0.0
        %v3347 = vand.u32 %v2906, 2147483648
        %v3348 = vsel %vm3346, %v3347, %v3345
        %v3349 = vrsqrt.pop %v2907
        %v3350 = vmul.f32 %v2907, %v3349
        %vm3351 = vcmp.eq.f32.partialorder %v2907, inf
        %v3352 = vsel %vm3351, %v2907, %v3350
        %vm3353 = vcmp.eq.f32.partialorder %v2907, 0.0
        %v3354 = vand.u32 %v2907, 2147483648
        %v3355 = vsel %vm3353, %v3354, %v3352
        %v3356 = vmul.f32 %v2652, 6.2831855
        %v3357 = vmul.f32 %v2653, 6.2831855
        %v3358 = vmul.f32 %v2654, 6.2831855
        %v3359 = vmul.f32 %v2655, 6.2831855
        %v3360 = vmul.f32 %v2656, 6.2831855
        %v3361 = vmul.f32 %v2657, 6.2831855
        %v3362 = vmul.f32 %v2658, 6.2831855
        %v3363 = vmul.f32 %v2659, 6.2831855
        %v3364 = vmul.f32 %v2660, 6.2831855
        %v3365 = vmul.f32 %v2661, 6.2831855
        %v3366 = vmul.f32 %v2662, 6.2831855
        %v3367 = vmul.f32 %v2663, 6.2831855
        %v3368 = vmul.f32 %v2664, 6.2831855
        %v3369 = vmul.f32 %v2665, 6.2831855
        %v3370 = vmul.f32 %v2666, 6.2831855
        %v3371 = vmul.f32 %v2667, 6.2831855
        %v3372 = vmul.f32 %v2668, 6.2831855
        %v3373 = vmul.f32 %v2669, 6.2831855
        %v3374 = vmul.f32 %v2670, 6.2831855
        %v3375 = vmul.f32 %v2671, 6.2831855
        %v3376 = vmul.f32 %v2672, 6.2831855
        %v3377 = vmul.f32 %v2673, 6.2831855
        %v3378 = vmul.f32 %v2674, 6.2831855
        %v3379 = vmul.f32 %v2675, 6.2831855
        %v3380 = vmul.f32 %v2676, 6.2831855
        %v3381 = vmul.f32 %v2677, 6.2831855
        %v3382 = vmul.f32 %v2678, 6.2831855
        %v3383 = vmul.f32 %v2679, 6.2831855
        %v3384 = vmul.f32 %v2680, 6.2831855
        %v3385 = vmul.f32 %v2681, 6.2831855
        %v3386 = vmul.f32 %v2682, 6.2831855
        %v3387 = vmul.f32 %v2683, 6.2831855
        %v3388 = vmul.f32 %v2684, 6.2831855
        %v3389 = vmul.f32 %v2685, 6.2831855
        %v3390 = vmul.f32 %v2686, 6.2831855
        %v3391 = vmul.f32 %v2687, 6.2831855
        %v3392 = vmul.f32 %v2688, 6.2831855
        %v3393 = vmul.f32 %v2689, 6.2831855
        %v3394 = vmul.f32 %v2690, 6.2831855
        %v3395 = vmul.f32 %v2691, 6.2831855
        %v3396 = vmul.f32 %v2692, 6.2831855
        %v3397 = vmul.f32 %v2693, 6.2831855
        %v3398 = vmul.f32 %v2694, 6.2831855
        %v3399 = vmul.f32 %v2695, 6.2831855
        %v3400 = vmul.f32 %v2696, 6.2831855
        %v3401 = vmul.f32 %v2697, 6.2831855
        %v3402 = vmul.f32 %v2698, 6.2831855
        %v3403 = vmul.f32 %v2699, 6.2831855
        %v3404 = vmul.f32 %v2700, 6.2831855
        %v3405 = vmul.f32 %v2701, 6.2831855
        %v3406 = vmul.f32 %v2702, 6.2831855
        %v3407 = vmul.f32 %v2703, 6.2831855
        %v3408 = vmul.f32 %v2704, 6.2831855
        %v3409 = vmul.f32 %v2705, 6.2831855
        %v3410 = vmul.f32 %v2706, 6.2831855
        %v3411 = vmul.f32 %v2707, 6.2831855
        %v3412 = vmul.f32 %v2708, 6.2831855
        %v3413 = vmul.f32 %v2709, 6.2831855
        %v3414 = vmul.f32 %v2710, 6.2831855
        %v3415 = vmul.f32 %v2711, 6.2831855
        %v3416 = vmul.f32 %v2712, 6.2831855
        %v3417 = vmul.f32 %v2713, 6.2831855
        %v3418 = vmul.f32 %v2714, 6.2831855
        %v3419 = vmul.f32 %v2715, 6.2831855
        %v3420 = vand.u32 2147483647, %v3356
        %vm3421 = vcmp.le.f32.partialorder %v3420, 0.7853982
        %vm3422 = vcmp.lt.s32.totalorder %v3356, 0
        %v3423 = vand.u32 %v3356, 2139095040
        %v3424 = vshrl.u32 %v3423, 23
        %v3425 = vsub.s32 %v3424, 127
        %v3426 = vand.u32 2147483647, %v3356
        %v3427 = vand.u32 %v3426, 8388607
        %v3428 = vor.u32 %v3427, 8388608
        %v3429 = vsub.s32 0, %v3428
        %v3430 = vadd.s32 %v3425, 1
        %vm3431 = vcmp.gt.s32.totalorder %v3430, 0
        %v3432 = vsel %vm3431, %v3430, 0
        %v3433 = vshrl.u32 %v3432, 5
        %v3434 = vand.u32 %v3432, 31
        %v3435 = vsub.s32 32, %v3434
        %v3436 = vshrl.u32 683565275, %v3435
        %v3437 = vshll.u32 683565275, %v3434
        %v3438 = vshrl.u32 2475754826, %v3435
        %v3439 = vor.u32 %v3437, %v3438
        %v3440 = vshll.u32 2475754826, %v3434
        %v3441 = vshrl.u32 2131351028, %v3435
        %v3442 = vor.u32 %v3440, %v3441
        %v3443 = vshll.u32 2131351028, %v3434
        %v3444 = vshrl.u32 2102212464, %v3435
        %v3445 = vor.u32 %v3443, %v3444
        %v3446 = vshll.u32 2102212464, %v3434
        %v3447 = vshrl.u32 920167782, %v3435
        %v3448 = vor.u32 %v3446, %v3447
        %v3449 = vshll.u32 920167782, %v3434
        %v3450 = vshrl.u32 1326507024, %v3435
        %v3451 = vor.u32 %v3449, %v3450
        %vm3452 = vcmp.lt.s32.totalorder %v3433, 1
        %vm3453 = vcmp.lt.s32.totalorder %v3433, 2
        %vm3454 = vcmp.lt.s32.totalorder %v3433, 3
        %vm3455 = vcmp.lt.s32.totalorder %v3433, 4
        %v3456 = vsel %vm3452, %v3436, %v3439
        %v3457 = vsel %vm3455, %v3445, 2102212464
        %v3458 = vsel %vm3454, %v3442, %v3457
        %v3459 = vsel %vm3453, %v3456, %v3458
        %v3460 = vsel %vm3452, %v3439, %v3442
        %v3461 = vsel %vm3455, %v3448, 920167782
        %v3462 = vsel %vm3454, %v3445, %v3461
        %v3463 = vsel %vm3453, %v3460, %v3462
        %v3464 = vsel %vm3452, %v3442, %v3445
        %v3465 = vsel %vm3455, %v3451, 1326507024
        %v3466 = vsel %vm3454, %v3448, %v3465
        %v3467 = vsel %vm3453, %v3464, %v3466
        %v3468 = vshll.u32 %v3428, 8
        %v3469 = vmul.u32.u64.compose %v3468, %v3467
        %v3470 = vextract.low.u32 %v3469
        %v3471 = vextract.high.u32 %v3469
        %v3472 = vmul.u32.u64.compose %v3468, %v3463
        %v3473 = vextract.low.u32 %v3472
        %v3474 = vextract.high.u32 %v3472
        %v3475 = vmul.u32 %v3468, %v3459
        %v3476 = vadd.s32 %v3471, %v3473
        %vm3477 = vc.u32 %v3471, %v3473
        %v3478 = vadd.s32 %v3474, 1
        %v3479 = vsel %vm3477, %v3478, %v3474
        %v3480 = vadd.s32 %v3475, %v3479
        %v3481 = vadd.s32 %v3480, 536870912
        %v3482 = vshrl.u32 %v3481, 30
        %v3483 = vshll.u32 %v3482, 30
        %v3484 = vsub.s32 %v3480, %v3483
        %vm3485 = vcmp.lt.s32.totalorder %v3484, 0
        %v3486 = vsub.s32 0, %v3484
        %v3487 = vsel %vm3485, %v3486, %v3484
        %v3488 = vclz %v3487
        %v3489 = vsub.s32 %v3488, 2
        %vm3490 = vcmp.gt.s32.totalorder 0, %v3489
        %v3491 = vsel %vm3490, 0, %v3489
        %v3492 = vsub.s32 32, %v3491
        %v3493 = vshll.u32 %v3484, %v3491
        %v3494 = vshrl.u32 %v3476, %v3492
        %v3495 = vor.u32 %v3493, %v3494
        %v3496 = vsub.s32 4294967266, %v3491
        %v3497 = vadd.s32 %v3496, 127
        %v3498 = vshll.u32 %v3497, 23
        %v3499 = vor.u32 4788187, %v3498
        %v3500 = vand.u32 2147483647, %v3499
        %v3502 = vcvt.s32.f32 %v3495
        %v3503 = vmul.f32 %v3502, %v3500
        %v3504 = vxor.u32 %v3503, 2147483648
        %v3505 = vsel %vm3422, %v3504, %v3503
        %v3506 = vsub.s32 4, %v3482
        %v3507 = vsel %vm3422, %v3506, %v3482
        %v3508 = vsel %vm3421, %v3356, %v3505
        %v3509 = vsel %vm3421, 0, %v3507
        %v3510 = vcosq.f32.pop %v3508
        %v3511 = vsinq.f32.pop %v3508
        %vm3512 = vweird.f32 %v3356
        %v3513 = vand.u32 %v3509, 3
        %vm3514 = vcmp.lt.s32.totalorder %v3513, 2
        %vm3515 = vcmp.eq.s32.totalorder %v3513, 0
        %v3516 = vxor.u32 %v3511, 2147483648
        %v3517 = vsel %vm3515, %v3510, %v3516
        %vm3518 = vcmp.eq.s32.totalorder %v3513, 2
        %v3519 = vxor.u32 %v3510, 2147483648
        %v3520 = vsel %vm3518, %v3519, %v3511
        %v3521 = vsel %vm3514, %v3517, %v3520
        %v3522 = vsel %vm3512, nan, %v3521
        %v3523 = vand.u32 2147483647, %v3357
        %vm3524 = vcmp.le.f32.partialorder %v3523, 0.7853982
        %vm3525 = vcmp.lt.s32.totalorder %v3357, 0
        %v3526 = vand.u32 %v3357, 2139095040
        %v3527 = vshrl.u32 %v3526, 23
        %v3528 = vsub.s32 %v3527, 127
        %v3529 = vand.u32 2147483647, %v3357
        %v3530 = vand.u32 %v3529, 8388607
        %v3531 = vor.u32 %v3530, 8388608
        %v3532 = vsub.s32 0, %v3531
        %v3533 = vadd.s32 %v3528, 1
        %vm3534 = vcmp.gt.s32.totalorder %v3533, 0
        %v3535 = vsel %vm3534, %v3533, 0
        %v3536 = vshrl.u32 %v3535, 5
        %v3537 = vand.u32 %v3535, 31
        %v3538 = vsub.s32 32, %v3537
        %v3539 = vshrl.u32 683565275, %v3538
        %v3540 = vshll.u32 683565275, %v3537
        %v3541 = vshrl.u32 2475754826, %v3538
        %v3542 = vor.u32 %v3540, %v3541
        %v3543 = vshll.u32 2475754826, %v3537
        %v3544 = vshrl.u32 2131351028, %v3538
        %v3545 = vor.u32 %v3543, %v3544
        %v3546 = vshll.u32 2131351028, %v3537
        %v3547 = vshrl.u32 2102212464, %v3538
        %v3548 = vor.u32 %v3546, %v3547
        %v3549 = vshll.u32 2102212464, %v3537
        %v3550 = vshrl.u32 920167782, %v3538
        %v3551 = vor.u32 %v3549, %v3550
        %v3552 = vshll.u32 920167782, %v3537
        %v3553 = vshrl.u32 1326507024, %v3538
        %v3554 = vor.u32 %v3552, %v3553
        %vm3555 = vcmp.lt.s32.totalorder %v3536, 1
        %vm3556 = vcmp.lt.s32.totalorder %v3536, 2
        %vm3557 = vcmp.lt.s32.totalorder %v3536, 3
        %vm3558 = vcmp.lt.s32.totalorder %v3536, 4
        %v3559 = vsel %vm3555, %v3539, %v3542
        %v3560 = vsel %vm3558, %v3548, 2102212464
        %v3561 = vsel %vm3557, %v3545, %v3560
        %v3562 = vsel %vm3556, %v3559, %v3561
        %v3563 = vsel %vm3555, %v3542, %v3545
        %v3564 = vsel %vm3558, %v3551, 920167782
        %v3565 = vsel %vm3557, %v3548, %v3564
        %v3566 = vsel %vm3556, %v3563, %v3565
        %v3567 = vsel %vm3555, %v3545, %v3548
        %v3568 = vsel %vm3558, %v3554, 1326507024
        %v3569 = vsel %vm3557, %v3551, %v3568
        %v3570 = vsel %vm3556, %v3567, %v3569
        %v3571 = vshll.u32 %v3531, 8
        %v3572 = vmul.u32.u64.compose %v3571, %v3570
        %v3573 = vextract.low.u32 %v3572
        %v3574 = vextract.high.u32 %v3572
        %v3575 = vmul.u32.u64.compose %v3571, %v3566
        %v3576 = vextract.low.u32 %v3575
        %v3577 = vextract.high.u32 %v3575
        %v3578 = vmul.u32 %v3571, %v3562
        %v3579 = vadd.s32 %v3574, %v3576
        %vm3580 = vc.u32 %v3574, %v3576
        %v3581 = vadd.s32 %v3577, 1
        %v3582 = vsel %vm3580, %v3581, %v3577
        %v3583 = vadd.s32 %v3578, %v3582
        %v3584 = vadd.s32 %v3583, 536870912
        %v3585 = vshrl.u32 %v3584, 30
        %v3586 = vshll.u32 %v3585, 30
        %v3587 = vsub.s32 %v3583, %v3586
        %vm3588 = vcmp.lt.s32.totalorder %v3587, 0
        %v3589 = vsub.s32 0, %v3587
        %v3590 = vsel %vm3588, %v3589, %v3587
        %v3591 = vclz %v3590
        %v3592 = vsub.s32 %v3591, 2
        %vm3593 = vcmp.gt.s32.totalorder 0, %v3592
        %v3594 = vsel %vm3593, 0, %v3592
        %v3595 = vsub.s32 32, %v3594
        %v3596 = vshll.u32 %v3587, %v3594
        %v3597 = vshrl.u32 %v3579, %v3595
        %v3598 = vor.u32 %v3596, %v3597
        %v3599 = vsub.s32 4294967266, %v3594
        %v3600 = vadd.s32 %v3599, 127
        %v3601 = vshll.u32 %v3600, 23
        %v3602 = vor.u32 4788187, %v3601
        %v3603 = vand.u32 2147483647, %v3602
        %v3605 = vcvt.s32.f32 %v3598
        %v3606 = vmul.f32 %v3605, %v3603
        %v3607 = vxor.u32 %v3606, 2147483648
        %v3608 = vsel %vm3525, %v3607, %v3606
        %v3609 = vsub.s32 4, %v3585
        %v3610 = vsel %vm3525, %v3609, %v3585
        %v3611 = vsel %vm3524, %v3357, %v3608
        %v3612 = vsel %vm3524, 0, %v3610
        %v3613 = vcosq.f32.pop %v3611
        %v3614 = vsinq.f32.pop %v3611
        %vm3615 = vweird.f32 %v3357
        %v3616 = vand.u32 %v3612, 3
        %vm3617 = vcmp.lt.s32.totalorder %v3616, 2
        %vm3618 = vcmp.eq.s32.totalorder %v3616, 0
        %v3619 = vxor.u32 %v3614, 2147483648
        %v3620 = vsel %vm3618, %v3613, %v3619
        %vm3621 = vcmp.eq.s32.totalorder %v3616, 2
        %v3622 = vxor.u32 %v3613, 2147483648
        %v3623 = vsel %vm3621, %v3622, %v3614
        %v3624 = vsel %vm3617, %v3620, %v3623
        %v3625 = vsel %vm3615, nan, %v3624
        %v3626 = vand.u32 2147483647, %v3358
        %vm3627 = vcmp.le.f32.partialorder %v3626, 0.7853982
        %vm3628 = vcmp.lt.s32.totalorder %v3358, 0
        %v3629 = vand.u32 %v3358, 2139095040
        %v3630 = vshrl.u32 %v3629, 23
        %v3631 = vsub.s32 %v3630, 127
        %v3632 = vand.u32 2147483647, %v3358
        %v3633 = vand.u32 %v3632, 8388607
        %v3634 = vor.u32 %v3633, 8388608
        %v3635 = vsub.s32 0, %v3634
        %v3636 = vadd.s32 %v3631, 1
        %vm3637 = vcmp.gt.s32.totalorder %v3636, 0
        %v3638 = vsel %vm3637, %v3636, 0
        %v3639 = vshrl.u32 %v3638, 5
        %v3640 = vand.u32 %v3638, 31
        %v3641 = vsub.s32 32, %v3640
        %v3642 = vshrl.u32 683565275, %v3641
        %v3643 = vshll.u32 683565275, %v3640
        %v3644 = vshrl.u32 2475754826, %v3641
        %v3645 = vor.u32 %v3643, %v3644
        %v3646 = vshll.u32 2475754826, %v3640
        %v3647 = vshrl.u32 2131351028, %v3641
        %v3648 = vor.u32 %v3646, %v3647
        %v3649 = vshll.u32 2131351028, %v3640
        %v3650 = vshrl.u32 2102212464, %v3641
        %v3651 = vor.u32 %v3649, %v3650
        %v3652 = vshll.u32 2102212464, %v3640
        %v3653 = vshrl.u32 920167782, %v3641
        %v3654 = vor.u32 %v3652, %v3653
        %v3655 = vshll.u32 920167782, %v3640
        %v3656 = vshrl.u32 1326507024, %v3641
        %v3657 = vor.u32 %v3655, %v3656
        %vm3658 = vcmp.lt.s32.totalorder %v3639, 1
        %vm3659 = vcmp.lt.s32.totalorder %v3639, 2
        %vm3660 = vcmp.lt.s32.totalorder %v3639, 3
        %vm3661 = vcmp.lt.s32.totalorder %v3639, 4
        %v3662 = vsel %vm3658, %v3642, %v3645
        %v3663 = vsel %vm3661, %v3651, 2102212464
        %v3664 = vsel %vm3660, %v3648, %v3663
        %v3665 = vsel %vm3659, %v3662, %v3664
        %v3666 = vsel %vm3658, %v3645, %v3648
        %v3667 = vsel %vm3661, %v3654, 920167782
        %v3668 = vsel %vm3660, %v3651, %v3667
        %v3669 = vsel %vm3659, %v3666, %v3668
        %v3670 = vsel %vm3658, %v3648, %v3651
        %v3671 = vsel %vm3661, %v3657, 1326507024
        %v3672 = vsel %vm3660, %v3654, %v3671
        %v3673 = vsel %vm3659, %v3670, %v3672
        %v3674 = vshll.u32 %v3634, 8
        %v3675 = vmul.u32.u64.compose %v3674, %v3673
        %v3676 = vextract.low.u32 %v3675
        %v3677 = vextract.high.u32 %v3675
        %v3678 = vmul.u32.u64.compose %v3674, %v3669
        %v3679 = vextract.low.u32 %v3678
        %v3680 = vextract.high.u32 %v3678
        %v3681 = vmul.u32 %v3674, %v3665
        %v3682 = vadd.s32 %v3677, %v3679
        %vm3683 = vc.u32 %v3677, %v3679
        %v3684 = vadd.s32 %v3680, 1
        %v3685 = vsel %vm3683, %v3684, %v3680
        %v3686 = vadd.s32 %v3681, %v3685
        %v3687 = vadd.s32 %v3686, 536870912
        %v3688 = vshrl.u32 %v3687, 30
        %v3689 = vshll.u32 %v3688, 30
        %v3690 = vsub.s32 %v3686, %v3689
        %vm3691 = vcmp.lt.s32.totalorder %v3690, 0
        %v3692 = vsub.s32 0, %v3690
        %v3693 = vsel %vm3691, %v3692, %v3690
        %v3694 = vclz %v3693
        %v3695 = vsub.s32 %v3694, 2
        %vm3696 = vcmp.gt.s32.totalorder 0, %v3695
        %v3697 = vsel %vm3696, 0, %v3695
        %v3698 = vsub.s32 32, %v3697
        %v3699 = vshll.u32 %v3690, %v3697
        %v3700 = vshrl.u32 %v3682, %v3698
        %v3701 = vor.u32 %v3699, %v3700
        %v3702 = vsub.s32 4294967266, %v3697
        %v3703 = vadd.s32 %v3702, 127
        %v3704 = vshll.u32 %v3703, 23
        %v3705 = vor.u32 4788187, %v3704
        %v3706 = vand.u32 2147483647, %v3705
        %v3708 = vcvt.s32.f32 %v3701
        %v3709 = vmul.f32 %v3708, %v3706
        %v3710 = vxor.u32 %v3709, 2147483648
        %v3711 = vsel %vm3628, %v3710, %v3709
        %v3712 = vsub.s32 4, %v3688
        %v3713 = vsel %vm3628, %v3712, %v3688
        %v3714 = vsel %vm3627, %v3358, %v3711
        %v3715 = vsel %vm3627, 0, %v3713
        %v3716 = vcosq.f32.pop %v3714
        %v3717 = vsinq.f32.pop %v3714
        %vm3718 = vweird.f32 %v3358
        %v3719 = vand.u32 %v3715, 3
        %vm3720 = vcmp.lt.s32.totalorder %v3719, 2
        %vm3721 = vcmp.eq.s32.totalorder %v3719, 0
        %v3722 = vxor.u32 %v3717, 2147483648
        %v3723 = vsel %vm3721, %v3716, %v3722
        %vm3724 = vcmp.eq.s32.totalorder %v3719, 2
        %v3725 = vxor.u32 %v3716, 2147483648
        %v3726 = vsel %vm3724, %v3725, %v3717
        %v3727 = vsel %vm3720, %v3723, %v3726
        %v3728 = vsel %vm3718, nan, %v3727
        %v3729 = vand.u32 2147483647, %v3359
        %vm3730 = vcmp.le.f32.partialorder %v3729, 0.7853982
        %vm3731 = vcmp.lt.s32.totalorder %v3359, 0
        %v3732 = vand.u32 %v3359, 2139095040
        %v3733 = vshrl.u32 %v3732, 23
        %v3734 = vsub.s32 %v3733, 127
        %v3735 = vand.u32 2147483647, %v3359
        %v3736 = vand.u32 %v3735, 8388607
        %v3737 = vor.u32 %v3736, 8388608
        %v3738 = vsub.s32 0, %v3737
        %v3739 = vadd.s32 %v3734, 1
        %vm3740 = vcmp.gt.s32.totalorder %v3739, 0
        %v3741 = vsel %vm3740, %v3739, 0
        %v3742 = vshrl.u32 %v3741, 5
        %v3743 = vand.u32 %v3741, 31
        %v3744 = vsub.s32 32, %v3743
        %v3745 = vshrl.u32 683565275, %v3744
        %v3746 = vshll.u32 683565275, %v3743
        %v3747 = vshrl.u32 2475754826, %v3744
        %v3748 = vor.u32 %v3746, %v3747
        %v3749 = vshll.u32 2475754826, %v3743
        %v3750 = vshrl.u32 2131351028, %v3744
        %v3751 = vor.u32 %v3749, %v3750
        %v3752 = vshll.u32 2131351028, %v3743
        %v3753 = vshrl.u32 2102212464, %v3744
        %v3754 = vor.u32 %v3752, %v3753
        %v3755 = vshll.u32 2102212464, %v3743
        %v3756 = vshrl.u32 920167782, %v3744
        %v3757 = vor.u32 %v3755, %v3756
        %v3758 = vshll.u32 920167782, %v3743
        %v3759 = vshrl.u32 1326507024, %v3744
        %v3760 = vor.u32 %v3758, %v3759
        %vm3761 = vcmp.lt.s32.totalorder %v3742, 1
        %vm3762 = vcmp.lt.s32.totalorder %v3742, 2
        %vm3763 = vcmp.lt.s32.totalorder %v3742, 3
        %vm3764 = vcmp.lt.s32.totalorder %v3742, 4
        %v3765 = vsel %vm3761, %v3745, %v3748
        %v3766 = vsel %vm3764, %v3754, 2102212464
        %v3767 = vsel %vm3763, %v3751, %v3766
        %v3768 = vsel %vm3762, %v3765, %v3767
        %v3769 = vsel %vm3761, %v3748, %v3751
        %v3770 = vsel %vm3764, %v3757, 920167782
        %v3771 = vsel %vm3763, %v3754, %v3770
        %v3772 = vsel %vm3762, %v3769, %v3771
        %v3773 = vsel %vm3761, %v3751, %v3754
        %v3774 = vsel %vm3764, %v3760, 1326507024
        %v3775 = vsel %vm3763, %v3757, %v3774
        %v3776 = vsel %vm3762, %v3773, %v3775
        %v3777 = vshll.u32 %v3737, 8
        %v3778 = vmul.u32.u64.compose %v3777, %v3776
        %v3779 = vextract.low.u32 %v3778
        %v3780 = vextract.high.u32 %v3778
        %v3781 = vmul.u32.u64.compose %v3777, %v3772
        %v3782 = vextract.low.u32 %v3781
        %v3783 = vextract.high.u32 %v3781
        %v3784 = vmul.u32 %v3777, %v3768
        %v3785 = vadd.s32 %v3780, %v3782
        %vm3786 = vc.u32 %v3780, %v3782
        %v3787 = vadd.s32 %v3783, 1
        %v3788 = vsel %vm3786, %v3787, %v3783
        %v3789 = vadd.s32 %v3784, %v3788
        %v3790 = vadd.s32 %v3789, 536870912
        %v3791 = vshrl.u32 %v3790, 30
        %v3792 = vshll.u32 %v3791, 30
        %v3793 = vsub.s32 %v3789, %v3792
        %vm3794 = vcmp.lt.s32.totalorder %v3793, 0
        %v3795 = vsub.s32 0, %v3793
        %v3796 = vsel %vm3794, %v3795, %v3793
        %v3797 = vclz %v3796
        %v3798 = vsub.s32 %v3797, 2
        %vm3799 = vcmp.gt.s32.totalorder 0, %v3798
        %v3800 = vsel %vm3799, 0, %v3798
        %v3801 = vsub.s32 32, %v3800
        %v3802 = vshll.u32 %v3793, %v3800
        %v3803 = vshrl.u32 %v3785, %v3801
        %v3804 = vor.u32 %v3802, %v3803
        %v3805 = vsub.s32 4294967266, %v3800
        %v3806 = vadd.s32 %v3805, 127
        %v3807 = vshll.u32 %v3806, 23
        %v3808 = vor.u32 4788187, %v3807
        %v3809 = vand.u32 2147483647, %v3808
        %v3811 = vcvt.s32.f32 %v3804
        %v3812 = vmul.f32 %v3811, %v3809
        %v3813 = vxor.u32 %v3812, 2147483648
        %v3814 = vsel %vm3731, %v3813, %v3812
        %v3815 = vsub.s32 4, %v3791
        %v3816 = vsel %vm3731, %v3815, %v3791
        %v3817 = vsel %vm3730, %v3359, %v3814
        %v3818 = vsel %vm3730, 0, %v3816
        %v3819 = vcosq.f32.pop %v3817
        %v3820 = vsinq.f32.pop %v3817
        %vm3821 = vweird.f32 %v3359
        %v3822 = vand.u32 %v3818, 3
        %vm3823 = vcmp.lt.s32.totalorder %v3822, 2
        %vm3824 = vcmp.eq.s32.totalorder %v3822, 0
        %v3825 = vxor.u32 %v3820, 2147483648
        %v3826 = vsel %vm3824, %v3819, %v3825
        %vm3827 = vcmp.eq.s32.totalorder %v3822, 2
        %v3828 = vxor.u32 %v3819, 2147483648
        %v3829 = vsel %vm3827, %v3828, %v3820
        %v3830 = vsel %vm3823, %v3826, %v3829
        %v3831 = vsel %vm3821, nan, %v3830
        %v3832 = vand.u32 2147483647, %v3360
        %vm3833 = vcmp.le.f32.partialorder %v3832, 0.7853982
        %vm3834 = vcmp.lt.s32.totalorder %v3360, 0
        %v3835 = vand.u32 %v3360, 2139095040
        %v3836 = vshrl.u32 %v3835, 23
        %v3837 = vsub.s32 %v3836, 127
        %v3838 = vand.u32 2147483647, %v3360
        %v3839 = vand.u32 %v3838, 8388607
        %v3840 = vor.u32 %v3839, 8388608
        %v3841 = vsub.s32 0, %v3840
        %v3842 = vadd.s32 %v3837, 1
        %vm3843 = vcmp.gt.s32.totalorder %v3842, 0
        %v3844 = vsel %vm3843, %v3842, 0
        %v3845 = vshrl.u32 %v3844, 5
        %v3846 = vand.u32 %v3844, 31
        %v3847 = vsub.s32 32, %v3846
        %v3848 = vshrl.u32 683565275, %v3847
        %v3849 = vshll.u32 683565275, %v3846
        %v3850 = vshrl.u32 2475754826, %v3847
        %v3851 = vor.u32 %v3849, %v3850
        %v3852 = vshll.u32 2475754826, %v3846
        %v3853 = vshrl.u32 2131351028, %v3847
        %v3854 = vor.u32 %v3852, %v3853
        %v3855 = vshll.u32 2131351028, %v3846
        %v3856 = vshrl.u32 2102212464, %v3847
        %v3857 = vor.u32 %v3855, %v3856
        %v3858 = vshll.u32 2102212464, %v3846
        %v3859 = vshrl.u32 920167782, %v3847
        %v3860 = vor.u32 %v3858, %v3859
        %v3861 = vshll.u32 920167782, %v3846
        %v3862 = vshrl.u32 1326507024, %v3847
        %v3863 = vor.u32 %v3861, %v3862
        %vm3864 = vcmp.lt.s32.totalorder %v3845, 1
        %vm3865 = vcmp.lt.s32.totalorder %v3845, 2
        %vm3866 = vcmp.lt.s32.totalorder %v3845, 3
        %vm3867 = vcmp.lt.s32.totalorder %v3845, 4
        %v3868 = vsel %vm3864, %v3848, %v3851
        %v3869 = vsel %vm3867, %v3857, 2102212464
        %v3870 = vsel %vm3866, %v3854, %v3869
        %v3871 = vsel %vm3865, %v3868, %v3870
        %v3872 = vsel %vm3864, %v3851, %v3854
        %v3873 = vsel %vm3867, %v3860, 920167782
        %v3874 = vsel %vm3866, %v3857, %v3873
        %v3875 = vsel %vm3865, %v3872, %v3874
        %v3876 = vsel %vm3864, %v3854, %v3857
        %v3877 = vsel %vm3867, %v3863, 1326507024
        %v3878 = vsel %vm3866, %v3860, %v3877
        %v3879 = vsel %vm3865, %v3876, %v3878
        %v3880 = vshll.u32 %v3840, 8
        %v3881 = vmul.u32.u64.compose %v3880, %v3879
        %v3882 = vextract.low.u32 %v3881
        %v3883 = vextract.high.u32 %v3881
        %v3884 = vmul.u32.u64.compose %v3880, %v3875
        %v3885 = vextract.low.u32 %v3884
        %v3886 = vextract.high.u32 %v3884
        %v3887 = vmul.u32 %v3880, %v3871
        %v3888 = vadd.s32 %v3883, %v3885
        %vm3889 = vc.u32 %v3883, %v3885
        %v3890 = vadd.s32 %v3886, 1
        %v3891 = vsel %vm3889, %v3890, %v3886
        %v3892 = vadd.s32 %v3887, %v3891
        %v3893 = vadd.s32 %v3892, 536870912
        %v3894 = vshrl.u32 %v3893, 30
        %v3895 = vshll.u32 %v3894, 30
        %v3896 = vsub.s32 %v3892, %v3895
        %vm3897 = vcmp.lt.s32.totalorder %v3896, 0
        %v3898 = vsub.s32 0, %v3896
        %v3899 = vsel %vm3897, %v3898, %v3896
        %v3900 = vclz %v3899
        %v3901 = vsub.s32 %v3900, 2
        %vm3902 = vcmp.gt.s32.totalorder 0, %v3901
        %v3903 = vsel %vm3902, 0, %v3901
        %v3904 = vsub.s32 32, %v3903
        %v3905 = vshll.u32 %v3896, %v3903
        %v3906 = vshrl.u32 %v3888, %v3904
        %v3907 = vor.u32 %v3905, %v3906
        %v3908 = vsub.s32 4294967266, %v3903
        %v3909 = vadd.s32 %v3908, 127
        %v3910 = vshll.u32 %v3909, 23
        %v3911 = vor.u32 4788187, %v3910
        %v3912 = vand.u32 2147483647, %v3911
        %v3914 = vcvt.s32.f32 %v3907
        %v3915 = vmul.f32 %v3914, %v3912
        %v3916 = vxor.u32 %v3915, 2147483648
        %v3917 = vsel %vm3834, %v3916, %v3915
        %v3918 = vsub.s32 4, %v3894
        %v3919 = vsel %vm3834, %v3918, %v3894
        %v3920 = vsel %vm3833, %v3360, %v3917
        %v3921 = vsel %vm3833, 0, %v3919
        %v3922 = vcosq.f32.pop %v3920
        %v3923 = vsinq.f32.pop %v3920
        %vm3924 = vweird.f32 %v3360
        %v3925 = vand.u32 %v3921, 3
        %vm3926 = vcmp.lt.s32.totalorder %v3925, 2
        %vm3927 = vcmp.eq.s32.totalorder %v3925, 0
        %v3928 = vxor.u32 %v3923, 2147483648
        %v3929 = vsel %vm3927, %v3922, %v3928
        %vm3930 = vcmp.eq.s32.totalorder %v3925, 2
        %v3931 = vxor.u32 %v3922, 2147483648
        %v3932 = vsel %vm3930, %v3931, %v3923
        %v3933 = vsel %vm3926, %v3929, %v3932
        %v3934 = vsel %vm3924, nan, %v3933
        %v3935 = vand.u32 2147483647, %v3361
        %vm3936 = vcmp.le.f32.partialorder %v3935, 0.7853982
        %vm3937 = vcmp.lt.s32.totalorder %v3361, 0
        %v3938 = vand.u32 %v3361, 2139095040
        %v3939 = vshrl.u32 %v3938, 23
        %v3940 = vsub.s32 %v3939, 127
        %v3941 = vand.u32 2147483647, %v3361
        %v3942 = vand.u32 %v3941, 8388607
        %v3943 = vor.u32 %v3942, 8388608
        %v3944 = vsub.s32 0, %v3943
        %v3945 = vadd.s32 %v3940, 1
        %vm3946 = vcmp.gt.s32.totalorder %v3945, 0
        %v3947 = vsel %vm3946, %v3945, 0
        %v3948 = vshrl.u32 %v3947, 5
        %v3949 = vand.u32 %v3947, 31
        %v3950 = vsub.s32 32, %v3949
        %v3951 = vshrl.u32 683565275, %v3950
        %v3952 = vshll.u32 683565275, %v3949
        %v3953 = vshrl.u32 2475754826, %v3950
        %v3954 = vor.u32 %v3952, %v3953
        %v3955 = vshll.u32 2475754826, %v3949
        %v3956 = vshrl.u32 2131351028, %v3950
        %v3957 = vor.u32 %v3955, %v3956
        %v3958 = vshll.u32 2131351028, %v3949
        %v3959 = vshrl.u32 2102212464, %v3950
        %v3960 = vor.u32 %v3958, %v3959
        %v3961 = vshll.u32 2102212464, %v3949
        %v3962 = vshrl.u32 920167782, %v3950
        %v3963 = vor.u32 %v3961, %v3962
        %v3964 = vshll.u32 920167782, %v3949
        %v3965 = vshrl.u32 1326507024, %v3950
        %v3966 = vor.u32 %v3964, %v3965
        %vm3967 = vcmp.lt.s32.totalorder %v3948, 1
        %vm3968 = vcmp.lt.s32.totalorder %v3948, 2
        %vm3969 = vcmp.lt.s32.totalorder %v3948, 3
        %vm3970 = vcmp.lt.s32.totalorder %v3948, 4
        %v3971 = vsel %vm3967, %v3951, %v3954
        %v3972 = vsel %vm3970, %v3960, 2102212464
        %v3973 = vsel %vm3969, %v3957, %v3972
        %v3974 = vsel %vm3968, %v3971, %v3973
        %v3975 = vsel %vm3967, %v3954, %v3957
        %v3976 = vsel %vm3970, %v3963, 920167782
        %v3977 = vsel %vm3969, %v3960, %v3976
        %v3978 = vsel %vm3968, %v3975, %v3977
        %v3979 = vsel %vm3967, %v3957, %v3960
        %v3980 = vsel %vm3970, %v3966, 1326507024
        %v3981 = vsel %vm3969, %v3963, %v3980
        %v3982 = vsel %vm3968, %v3979, %v3981
        %v3983 = vshll.u32 %v3943, 8
        %v3984 = vmul.u32.u64.compose %v3983, %v3982
        %v3985 = vextract.low.u32 %v3984
        %v3986 = vextract.high.u32 %v3984
        %v3987 = vmul.u32.u64.compose %v3983, %v3978
        %v3988 = vextract.low.u32 %v3987
        %v3989 = vextract.high.u32 %v3987
        %v3990 = vmul.u32 %v3983, %v3974
        %v3991 = vadd.s32 %v3986, %v3988
        %vm3992 = vc.u32 %v3986, %v3988
        %v3993 = vadd.s32 %v3989, 1
        %v3994 = vsel %vm3992, %v3993, %v3989
        %v3995 = vadd.s32 %v3990, %v3994
        %v3996 = vadd.s32 %v3995, 536870912
        %v3997 = vshrl.u32 %v3996, 30
        %v3998 = vshll.u32 %v3997, 30
        %v3999 = vsub.s32 %v3995, %v3998
        %vm4000 = vcmp.lt.s32.totalorder %v3999, 0
        %v4001 = vsub.s32 0, %v3999
        %v4002 = vsel %vm4000, %v4001, %v3999
        %v4003 = vclz %v4002
        %v4004 = vsub.s32 %v4003, 2
        %vm4005 = vcmp.gt.s32.totalorder 0, %v4004
        %v4006 = vsel %vm4005, 0, %v4004
        %v4007 = vsub.s32 32, %v4006
        %v4008 = vshll.u32 %v3999, %v4006
        %v4009 = vshrl.u32 %v3991, %v4007
        %v4010 = vor.u32 %v4008, %v4009
        %v4011 = vsub.s32 4294967266, %v4006
        %v4012 = vadd.s32 %v4011, 127
        %v4013 = vshll.u32 %v4012, 23
        %v4014 = vor.u32 4788187, %v4013
        %v4015 = vand.u32 2147483647, %v4014
        %v4017 = vcvt.s32.f32 %v4010
        %v4018 = vmul.f32 %v4017, %v4015
        %v4019 = vxor.u32 %v4018, 2147483648
        %v4020 = vsel %vm3937, %v4019, %v4018
        %v4021 = vsub.s32 4, %v3997
        %v4022 = vsel %vm3937, %v4021, %v3997
        %v4023 = vsel %vm3936, %v3361, %v4020
        %v4024 = vsel %vm3936, 0, %v4022
        %v4025 = vcosq.f32.pop %v4023
        %v4026 = vsinq.f32.pop %v4023
        %vm4027 = vweird.f32 %v3361
        %v4028 = vand.u32 %v4024, 3
        %vm4029 = vcmp.lt.s32.totalorder %v4028, 2
        %vm4030 = vcmp.eq.s32.totalorder %v4028, 0
        %v4031 = vxor.u32 %v4026, 2147483648
        %v4032 = vsel %vm4030, %v4025, %v4031
        %vm4033 = vcmp.eq.s32.totalorder %v4028, 2
        %v4034 = vxor.u32 %v4025, 2147483648
        %v4035 = vsel %vm4033, %v4034, %v4026
        %v4036 = vsel %vm4029, %v4032, %v4035
        %v4037 = vsel %vm4027, nan, %v4036
        %v4038 = vand.u32 2147483647, %v3362
        %vm4039 = vcmp.le.f32.partialorder %v4038, 0.7853982
        %vm4040 = vcmp.lt.s32.totalorder %v3362, 0
        %v4041 = vand.u32 %v3362, 2139095040
        %v4042 = vshrl.u32 %v4041, 23
        %v4043 = vsub.s32 %v4042, 127
        %v4044 = vand.u32 2147483647, %v3362
        %v4045 = vand.u32 %v4044, 8388607
        %v4046 = vor.u32 %v4045, 8388608
        %v4047 = vsub.s32 0, %v4046
        %v4048 = vadd.s32 %v4043, 1
        %vm4049 = vcmp.gt.s32.totalorder %v4048, 0
        %v4050 = vsel %vm4049, %v4048, 0
        %v4051 = vshrl.u32 %v4050, 5
        %v4052 = vand.u32 %v4050, 31
        %v4053 = vsub.s32 32, %v4052
        %v4054 = vshrl.u32 683565275, %v4053
        %v4055 = vshll.u32 683565275, %v4052
        %v4056 = vshrl.u32 2475754826, %v4053
        %v4057 = vor.u32 %v4055, %v4056
        %v4058 = vshll.u32 2475754826, %v4052
        %v4059 = vshrl.u32 2131351028, %v4053
        %v4060 = vor.u32 %v4058, %v4059
        %v4061 = vshll.u32 2131351028, %v4052
        %v4062 = vshrl.u32 2102212464, %v4053
        %v4063 = vor.u32 %v4061, %v4062
        %v4064 = vshll.u32 2102212464, %v4052
        %v4065 = vshrl.u32 920167782, %v4053
        %v4066 = vor.u32 %v4064, %v4065
        %v4067 = vshll.u32 920167782, %v4052
        %v4068 = vshrl.u32 1326507024, %v4053
        %v4069 = vor.u32 %v4067, %v4068
        %vm4070 = vcmp.lt.s32.totalorder %v4051, 1
        %vm4071 = vcmp.lt.s32.totalorder %v4051, 2
        %vm4072 = vcmp.lt.s32.totalorder %v4051, 3
        %vm4073 = vcmp.lt.s32.totalorder %v4051, 4
        %v4074 = vsel %vm4070, %v4054, %v4057
        %v4075 = vsel %vm4073, %v4063, 2102212464
        %v4076 = vsel %vm4072, %v4060, %v4075
        %v4077 = vsel %vm4071, %v4074, %v4076
        %v4078 = vsel %vm4070, %v4057, %v4060
        %v4079 = vsel %vm4073, %v4066, 920167782
        %v4080 = vsel %vm4072, %v4063, %v4079
        %v4081 = vsel %vm4071, %v4078, %v4080
        %v4082 = vsel %vm4070, %v4060, %v4063
        %v4083 = vsel %vm4073, %v4069, 1326507024
        %v4084 = vsel %vm4072, %v4066, %v4083
        %v4085 = vsel %vm4071, %v4082, %v4084
        %v4086 = vshll.u32 %v4046, 8
        %v4087 = vmul.u32.u64.compose %v4086, %v4085
        %v4088 = vextract.low.u32 %v4087
        %v4089 = vextract.high.u32 %v4087
        %v4090 = vmul.u32.u64.compose %v4086, %v4081
        %v4091 = vextract.low.u32 %v4090
        %v4092 = vextract.high.u32 %v4090
        %v4093 = vmul.u32 %v4086, %v4077
        %v4094 = vadd.s32 %v4089, %v4091
        %vm4095 = vc.u32 %v4089, %v4091
        %v4096 = vadd.s32 %v4092, 1
        %v4097 = vsel %vm4095, %v4096, %v4092
        %v4098 = vadd.s32 %v4093, %v4097
        %v4099 = vadd.s32 %v4098, 536870912
        %v4100 = vshrl.u32 %v4099, 30
        %v4101 = vshll.u32 %v4100, 30
        %v4102 = vsub.s32 %v4098, %v4101
        %vm4103 = vcmp.lt.s32.totalorder %v4102, 0
        %v4104 = vsub.s32 0, %v4102
        %v4105 = vsel %vm4103, %v4104, %v4102
        %v4106 = vclz %v4105
        %v4107 = vsub.s32 %v4106, 2
        %vm4108 = vcmp.gt.s32.totalorder 0, %v4107
        %v4109 = vsel %vm4108, 0, %v4107
        %v4110 = vsub.s32 32, %v4109
        %v4111 = vshll.u32 %v4102, %v4109
        %v4112 = vshrl.u32 %v4094, %v4110
        %v4113 = vor.u32 %v4111, %v4112
        %v4114 = vsub.s32 4294967266, %v4109
        %v4115 = vadd.s32 %v4114, 127
        %v4116 = vshll.u32 %v4115, 23
        %v4117 = vor.u32 4788187, %v4116
        %v4118 = vand.u32 2147483647, %v4117
        %v4120 = vcvt.s32.f32 %v4113
        %v4121 = vmul.f32 %v4120, %v4118
        %v4122 = vxor.u32 %v4121, 2147483648
        %v4123 = vsel %vm4040, %v4122, %v4121
        %v4124 = vsub.s32 4, %v4100
        %v4125 = vsel %vm4040, %v4124, %v4100
        %v4126 = vsel %vm4039, %v3362, %v4123
        %v4127 = vsel %vm4039, 0, %v4125
        %v4128 = vcosq.f32.pop %v4126
        %v4129 = vsinq.f32.pop %v4126
        %vm4130 = vweird.f32 %v3362
        %v4131 = vand.u32 %v4127, 3
        %vm4132 = vcmp.lt.s32.totalorder %v4131, 2
        %vm4133 = vcmp.eq.s32.totalorder %v4131, 0
        %v4134 = vxor.u32 %v4129, 2147483648
        %v4135 = vsel %vm4133, %v4128, %v4134
        %vm4136 = vcmp.eq.s32.totalorder %v4131, 2
        %v4137 = vxor.u32 %v4128, 2147483648
        %v4138 = vsel %vm4136, %v4137, %v4129
        %v4139 = vsel %vm4132, %v4135, %v4138
        %v4140 = vsel %vm4130, nan, %v4139
        %v4141 = vand.u32 2147483647, %v3363
        %vm4142 = vcmp.le.f32.partialorder %v4141, 0.7853982
        %vm4143 = vcmp.lt.s32.totalorder %v3363, 0
        %v4144 = vand.u32 %v3363, 2139095040
        %v4145 = vshrl.u32 %v4144, 23
        %v4146 = vsub.s32 %v4145, 127
        %v4147 = vand.u32 2147483647, %v3363
        %v4148 = vand.u32 %v4147, 8388607
        %v4149 = vor.u32 %v4148, 8388608
        %v4150 = vsub.s32 0, %v4149
        %v4151 = vadd.s32 %v4146, 1
        %vm4152 = vcmp.gt.s32.totalorder %v4151, 0
        %v4153 = vsel %vm4152, %v4151, 0
        %v4154 = vshrl.u32 %v4153, 5
        %v4155 = vand.u32 %v4153, 31
        %v4156 = vsub.s32 32, %v4155
        %v4157 = vshrl.u32 683565275, %v4156
        %v4158 = vshll.u32 683565275, %v4155
        %v4159 = vshrl.u32 2475754826, %v4156
        %v4160 = vor.u32 %v4158, %v4159
        %v4161 = vshll.u32 2475754826, %v4155
        %v4162 = vshrl.u32 2131351028, %v4156
        %v4163 = vor.u32 %v4161, %v4162
        %v4164 = vshll.u32 2131351028, %v4155
        %v4165 = vshrl.u32 2102212464, %v4156
        %v4166 = vor.u32 %v4164, %v4165
        %v4167 = vshll.u32 2102212464, %v4155
        %v4168 = vshrl.u32 920167782, %v4156
        %v4169 = vor.u32 %v4167, %v4168
        %v4170 = vshll.u32 920167782, %v4155
        %v4171 = vshrl.u32 1326507024, %v4156
        %v4172 = vor.u32 %v4170, %v4171
        %vm4173 = vcmp.lt.s32.totalorder %v4154, 1
        %vm4174 = vcmp.lt.s32.totalorder %v4154, 2
        %vm4175 = vcmp.lt.s32.totalorder %v4154, 3
        %vm4176 = vcmp.lt.s32.totalorder %v4154, 4
        %v4177 = vsel %vm4173, %v4157, %v4160
        %v4178 = vsel %vm4176, %v4166, 2102212464
        %v4179 = vsel %vm4175, %v4163, %v4178
        %v4180 = vsel %vm4174, %v4177, %v4179
        %v4181 = vsel %vm4173, %v4160, %v4163
        %v4182 = vsel %vm4176, %v4169, 920167782
        %v4183 = vsel %vm4175, %v4166, %v4182
        %v4184 = vsel %vm4174, %v4181, %v4183
        %v4185 = vsel %vm4173, %v4163, %v4166
        %v4186 = vsel %vm4176, %v4172, 1326507024
        %v4187 = vsel %vm4175, %v4169, %v4186
        %v4188 = vsel %vm4174, %v4185, %v4187
        %v4189 = vshll.u32 %v4149, 8
        %v4190 = vmul.u32.u64.compose %v4189, %v4188
        %v4191 = vextract.low.u32 %v4190
        %v4192 = vextract.high.u32 %v4190
        %v4193 = vmul.u32.u64.compose %v4189, %v4184
        %v4194 = vextract.low.u32 %v4193
        %v4195 = vextract.high.u32 %v4193
        %v4196 = vmul.u32 %v4189, %v4180
        %v4197 = vadd.s32 %v4192, %v4194
        %vm4198 = vc.u32 %v4192, %v4194
        %v4199 = vadd.s32 %v4195, 1
        %v4200 = vsel %vm4198, %v4199, %v4195
        %v4201 = vadd.s32 %v4196, %v4200
        %v4202 = vadd.s32 %v4201, 536870912
        %v4203 = vshrl.u32 %v4202, 30
        %v4204 = vshll.u32 %v4203, 30
        %v4205 = vsub.s32 %v4201, %v4204
        %vm4206 = vcmp.lt.s32.totalorder %v4205, 0
        %v4207 = vsub.s32 0, %v4205
        %v4208 = vsel %vm4206, %v4207, %v4205
        %v4209 = vclz %v4208
        %v4210 = vsub.s32 %v4209, 2
        %vm4211 = vcmp.gt.s32.totalorder 0, %v4210
        %v4212 = vsel %vm4211, 0, %v4210
        %v4213 = vsub.s32 32, %v4212
        %v4214 = vshll.u32 %v4205, %v4212
        %v4215 = vshrl.u32 %v4197, %v4213
        %v4216 = vor.u32 %v4214, %v4215
        %v4217 = vsub.s32 4294967266, %v4212
        %v4218 = vadd.s32 %v4217, 127
        %v4219 = vshll.u32 %v4218, 23
        %v4220 = vor.u32 4788187, %v4219
        %v4221 = vand.u32 2147483647, %v4220
        %v4223 = vcvt.s32.f32 %v4216
        %v4224 = vmul.f32 %v4223, %v4221
        %v4225 = vxor.u32 %v4224, 2147483648
        %v4226 = vsel %vm4143, %v4225, %v4224
        %v4227 = vsub.s32 4, %v4203
        %v4228 = vsel %vm4143, %v4227, %v4203
        %v4229 = vsel %vm4142, %v3363, %v4226
        %v4230 = vsel %vm4142, 0, %v4228
        %v4231 = vcosq.f32.pop %v4229
        %v4232 = vsinq.f32.pop %v4229
        %vm4233 = vweird.f32 %v3363
        %v4234 = vand.u32 %v4230, 3
        %vm4235 = vcmp.lt.s32.totalorder %v4234, 2
        %vm4236 = vcmp.eq.s32.totalorder %v4234, 0
        %v4237 = vxor.u32 %v4232, 2147483648
        %v4238 = vsel %vm4236, %v4231, %v4237
        %vm4239 = vcmp.eq.s32.totalorder %v4234, 2
        %v4240 = vxor.u32 %v4231, 2147483648
        %v4241 = vsel %vm4239, %v4240, %v4232
        %v4242 = vsel %vm4235, %v4238, %v4241
        %v4243 = vsel %vm4233, nan, %v4242
        %v4244 = vand.u32 2147483647, %v3364
        %vm4245 = vcmp.le.f32.partialorder %v4244, 0.7853982
        %vm4246 = vcmp.lt.s32.totalorder %v3364, 0
        %v4247 = vand.u32 %v3364, 2139095040
        %v4248 = vshrl.u32 %v4247, 23
        %v4249 = vsub.s32 %v4248, 127
        %v4250 = vand.u32 2147483647, %v3364
        %v4251 = vand.u32 %v4250, 8388607
        %v4252 = vor.u32 %v4251, 8388608
        %v4253 = vsub.s32 0, %v4252
        %v4254 = vadd.s32 %v4249, 1
        %vm4255 = vcmp.gt.s32.totalorder %v4254, 0
        %v4256 = vsel %vm4255, %v4254, 0
        %v4257 = vshrl.u32 %v4256, 5
        %v4258 = vand.u32 %v4256, 31
        %v4259 = vsub.s32 32, %v4258
        %v4260 = vshrl.u32 683565275, %v4259
        %v4261 = vshll.u32 683565275, %v4258
        %v4262 = vshrl.u32 2475754826, %v4259
        %v4263 = vor.u32 %v4261, %v4262
        %v4264 = vshll.u32 2475754826, %v4258
        %v4265 = vshrl.u32 2131351028, %v4259
        %v4266 = vor.u32 %v4264, %v4265
        %v4267 = vshll.u32 2131351028, %v4258
        %v4268 = vshrl.u32 2102212464, %v4259
        %v4269 = vor.u32 %v4267, %v4268
        %v4270 = vshll.u32 2102212464, %v4258
        %v4271 = vshrl.u32 920167782, %v4259
        %v4272 = vor.u32 %v4270, %v4271
        %v4273 = vshll.u32 920167782, %v4258
        %v4274 = vshrl.u32 1326507024, %v4259
        %v4275 = vor.u32 %v4273, %v4274
        %vm4276 = vcmp.lt.s32.totalorder %v4257, 1
        %vm4277 = vcmp.lt.s32.totalorder %v4257, 2
        %vm4278 = vcmp.lt.s32.totalorder %v4257, 3
        %vm4279 = vcmp.lt.s32.totalorder %v4257, 4
        %v4280 = vsel %vm4276, %v4260, %v4263
        %v4281 = vsel %vm4279, %v4269, 2102212464
        %v4282 = vsel %vm4278, %v4266, %v4281
        %v4283 = vsel %vm4277, %v4280, %v4282
        %v4284 = vsel %vm4276, %v4263, %v4266
        %v4285 = vsel %vm4279, %v4272, 920167782
        %v4286 = vsel %vm4278, %v4269, %v4285
        %v4287 = vsel %vm4277, %v4284, %v4286
        %v4288 = vsel %vm4276, %v4266, %v4269
        %v4289 = vsel %vm4279, %v4275, 1326507024
        %v4290 = vsel %vm4278, %v4272, %v4289
        %v4291 = vsel %vm4277, %v4288, %v4290
        %v4292 = vshll.u32 %v4252, 8
        %v4293 = vmul.u32.u64.compose %v4292, %v4291
        %v4294 = vextract.low.u32 %v4293
        %v4295 = vextract.high.u32 %v4293
        %v4296 = vmul.u32.u64.compose %v4292, %v4287
        %v4297 = vextract.low.u32 %v4296
        %v4298 = vextract.high.u32 %v4296
        %v4299 = vmul.u32 %v4292, %v4283
        %v4300 = vadd.s32 %v4295, %v4297
        %vm4301 = vc.u32 %v4295, %v4297
        %v4302 = vadd.s32 %v4298, 1
        %v4303 = vsel %vm4301, %v4302, %v4298
        %v4304 = vadd.s32 %v4299, %v4303
        %v4305 = vadd.s32 %v4304, 536870912
        %v4306 = vshrl.u32 %v4305, 30
        %v4307 = vshll.u32 %v4306, 30
        %v4308 = vsub.s32 %v4304, %v4307
        %vm4309 = vcmp.lt.s32.totalorder %v4308, 0
        %v4310 = vsub.s32 0, %v4308
        %v4311 = vsel %vm4309, %v4310, %v4308
        %v4312 = vclz %v4311
        %v4313 = vsub.s32 %v4312, 2
        %vm4314 = vcmp.gt.s32.totalorder 0, %v4313
        %v4315 = vsel %vm4314, 0, %v4313
        %v4316 = vsub.s32 32, %v4315
        %v4317 = vshll.u32 %v4308, %v4315
        %v4318 = vshrl.u32 %v4300, %v4316
        %v4319 = vor.u32 %v4317, %v4318
        %v4320 = vsub.s32 4294967266, %v4315
        %v4321 = vadd.s32 %v4320, 127
        %v4322 = vshll.u32 %v4321, 23
        %v4323 = vor.u32 4788187, %v4322
        %v4324 = vand.u32 2147483647, %v4323
        %v4326 = vcvt.s32.f32 %v4319
        %v4327 = vmul.f32 %v4326, %v4324
        %v4328 = vxor.u32 %v4327, 2147483648
        %v4329 = vsel %vm4246, %v4328, %v4327
        %v4330 = vsub.s32 4, %v4306
        %v4331 = vsel %vm4246, %v4330, %v4306
        %v4332 = vsel %vm4245, %v3364, %v4329
        %v4333 = vsel %vm4245, 0, %v4331
        %v4334 = vcosq.f32.pop %v4332
        %v4335 = vsinq.f32.pop %v4332
        %vm4336 = vweird.f32 %v3364
        %v4337 = vand.u32 %v4333, 3
        %vm4338 = vcmp.lt.s32.totalorder %v4337, 2
        %vm4339 = vcmp.eq.s32.totalorder %v4337, 0
        %v4340 = vxor.u32 %v4335, 2147483648
        %v4341 = vsel %vm4339, %v4334, %v4340
        %vm4342 = vcmp.eq.s32.totalorder %v4337, 2
        %v4343 = vxor.u32 %v4334, 2147483648
        %v4344 = vsel %vm4342, %v4343, %v4335
        %v4345 = vsel %vm4338, %v4341, %v4344
        %v4346 = vsel %vm4336, nan, %v4345
        %v4347 = vand.u32 2147483647, %v3365
        %vm4348 = vcmp.le.f32.partialorder %v4347, 0.7853982
        %vm4349 = vcmp.lt.s32.totalorder %v3365, 0
        %v4350 = vand.u32 %v3365, 2139095040
        %v4351 = vshrl.u32 %v4350, 23
        %v4352 = vsub.s32 %v4351, 127
        %v4353 = vand.u32 2147483647, %v3365
        %v4354 = vand.u32 %v4353, 8388607
        %v4355 = vor.u32 %v4354, 8388608
        %v4356 = vsub.s32 0, %v4355
        %v4357 = vadd.s32 %v4352, 1
        %vm4358 = vcmp.gt.s32.totalorder %v4357, 0
        %v4359 = vsel %vm4358, %v4357, 0
        %v4360 = vshrl.u32 %v4359, 5
        %v4361 = vand.u32 %v4359, 31
        %v4362 = vsub.s32 32, %v4361
        %v4363 = vshrl.u32 683565275, %v4362
        %v4364 = vshll.u32 683565275, %v4361
        %v4365 = vshrl.u32 2475754826, %v4362
        %v4366 = vor.u32 %v4364, %v4365
        %v4367 = vshll.u32 2475754826, %v4361
        %v4368 = vshrl.u32 2131351028, %v4362
        %v4369 = vor.u32 %v4367, %v4368
        %v4370 = vshll.u32 2131351028, %v4361
        %v4371 = vshrl.u32 2102212464, %v4362
        %v4372 = vor.u32 %v4370, %v4371
        %v4373 = vshll.u32 2102212464, %v4361
        %v4374 = vshrl.u32 920167782, %v4362
        %v4375 = vor.u32 %v4373, %v4374
        %v4376 = vshll.u32 920167782, %v4361
        %v4377 = vshrl.u32 1326507024, %v4362
        %v4378 = vor.u32 %v4376, %v4377
        %vm4379 = vcmp.lt.s32.totalorder %v4360, 1
        %vm4380 = vcmp.lt.s32.totalorder %v4360, 2
        %vm4381 = vcmp.lt.s32.totalorder %v4360, 3
        %vm4382 = vcmp.lt.s32.totalorder %v4360, 4
        %v4383 = vsel %vm4379, %v4363, %v4366
        %v4384 = vsel %vm4382, %v4372, 2102212464
        %v4385 = vsel %vm4381, %v4369, %v4384
        %v4386 = vsel %vm4380, %v4383, %v4385
        %v4387 = vsel %vm4379, %v4366, %v4369
        %v4388 = vsel %vm4382, %v4375, 920167782
        %v4389 = vsel %vm4381, %v4372, %v4388
        %v4390 = vsel %vm4380, %v4387, %v4389
        %v4391 = vsel %vm4379, %v4369, %v4372
        %v4392 = vsel %vm4382, %v4378, 1326507024
        %v4393 = vsel %vm4381, %v4375, %v4392
        %v4394 = vsel %vm4380, %v4391, %v4393
        %v4395 = vshll.u32 %v4355, 8
        %v4396 = vmul.u32.u64.compose %v4395, %v4394
        %v4397 = vextract.low.u32 %v4396
        %v4398 = vextract.high.u32 %v4396
        %v4399 = vmul.u32.u64.compose %v4395, %v4390
        %v4400 = vextract.low.u32 %v4399
        %v4401 = vextract.high.u32 %v4399
        %v4402 = vmul.u32 %v4395, %v4386
        %v4403 = vadd.s32 %v4398, %v4400
        %vm4404 = vc.u32 %v4398, %v4400
        %v4405 = vadd.s32 %v4401, 1
        %v4406 = vsel %vm4404, %v4405, %v4401
        %v4407 = vadd.s32 %v4402, %v4406
        %v4408 = vadd.s32 %v4407, 536870912
        %v4409 = vshrl.u32 %v4408, 30
        %v4410 = vshll.u32 %v4409, 30
        %v4411 = vsub.s32 %v4407, %v4410
        %vm4412 = vcmp.lt.s32.totalorder %v4411, 0
        %v4413 = vsub.s32 0, %v4411
        %v4414 = vsel %vm4412, %v4413, %v4411
        %v4415 = vclz %v4414
        %v4416 = vsub.s32 %v4415, 2
        %vm4417 = vcmp.gt.s32.totalorder 0, %v4416
        %v4418 = vsel %vm4417, 0, %v4416
        %v4419 = vsub.s32 32, %v4418
        %v4420 = vshll.u32 %v4411, %v4418
        %v4421 = vshrl.u32 %v4403, %v4419
        %v4422 = vor.u32 %v4420, %v4421
        %v4423 = vsub.s32 4294967266, %v4418
        %v4424 = vadd.s32 %v4423, 127
        %v4425 = vshll.u32 %v4424, 23
        %v4426 = vor.u32 4788187, %v4425
        %v4427 = vand.u32 2147483647, %v4426
        %v4429 = vcvt.s32.f32 %v4422
        %v4430 = vmul.f32 %v4429, %v4427
        %v4431 = vxor.u32 %v4430, 2147483648
        %v4432 = vsel %vm4349, %v4431, %v4430
        %v4433 = vsub.s32 4, %v4409
        %v4434 = vsel %vm4349, %v4433, %v4409
        %v4435 = vsel %vm4348, %v3365, %v4432
        %v4436 = vsel %vm4348, 0, %v4434
        %v4437 = vcosq.f32.pop %v4435
        %v4438 = vsinq.f32.pop %v4435
        %vm4439 = vweird.f32 %v3365
        %v4440 = vand.u32 %v4436, 3
        %vm4441 = vcmp.lt.s32.totalorder %v4440, 2
        %vm4442 = vcmp.eq.s32.totalorder %v4440, 0
        %v4443 = vxor.u32 %v4438, 2147483648
        %v4444 = vsel %vm4442, %v4437, %v4443
        %vm4445 = vcmp.eq.s32.totalorder %v4440, 2
        %v4446 = vxor.u32 %v4437, 2147483648
        %v4447 = vsel %vm4445, %v4446, %v4438
        %v4448 = vsel %vm4441, %v4444, %v4447
        %v4449 = vsel %vm4439, nan, %v4448
        %v4450 = vand.u32 2147483647, %v3366
        %vm4451 = vcmp.le.f32.partialorder %v4450, 0.7853982
        %vm4452 = vcmp.lt.s32.totalorder %v3366, 0
        %v4453 = vand.u32 %v3366, 2139095040
        %v4454 = vshrl.u32 %v4453, 23
        %v4455 = vsub.s32 %v4454, 127
        %v4456 = vand.u32 2147483647, %v3366
        %v4457 = vand.u32 %v4456, 8388607
        %v4458 = vor.u32 %v4457, 8388608
        %v4459 = vsub.s32 0, %v4458
        %v4460 = vadd.s32 %v4455, 1
        %vm4461 = vcmp.gt.s32.totalorder %v4460, 0
        %v4462 = vsel %vm4461, %v4460, 0
        %v4463 = vshrl.u32 %v4462, 5
        %v4464 = vand.u32 %v4462, 31
        %v4465 = vsub.s32 32, %v4464
        %v4466 = vshrl.u32 683565275, %v4465
        %v4467 = vshll.u32 683565275, %v4464
        %v4468 = vshrl.u32 2475754826, %v4465
        %v4469 = vor.u32 %v4467, %v4468
        %v4470 = vshll.u32 2475754826, %v4464
        %v4471 = vshrl.u32 2131351028, %v4465
        %v4472 = vor.u32 %v4470, %v4471
        %v4473 = vshll.u32 2131351028, %v4464
        %v4474 = vshrl.u32 2102212464, %v4465
        %v4475 = vor.u32 %v4473, %v4474
        %v4476 = vshll.u32 2102212464, %v4464
        %v4477 = vshrl.u32 920167782, %v4465
        %v4478 = vor.u32 %v4476, %v4477
        %v4479 = vshll.u32 920167782, %v4464
        %v4480 = vshrl.u32 1326507024, %v4465
        %v4481 = vor.u32 %v4479, %v4480
        %vm4482 = vcmp.lt.s32.totalorder %v4463, 1
        %vm4483 = vcmp.lt.s32.totalorder %v4463, 2
        %vm4484 = vcmp.lt.s32.totalorder %v4463, 3
        %vm4485 = vcmp.lt.s32.totalorder %v4463, 4
        %v4486 = vsel %vm4482, %v4466, %v4469
        %v4487 = vsel %vm4485, %v4475, 2102212464
        %v4488 = vsel %vm4484, %v4472, %v4487
        %v4489 = vsel %vm4483, %v4486, %v4488
        %v4490 = vsel %vm4482, %v4469, %v4472
        %v4491 = vsel %vm4485, %v4478, 920167782
        %v4492 = vsel %vm4484, %v4475, %v4491
        %v4493 = vsel %vm4483, %v4490, %v4492
        %v4494 = vsel %vm4482, %v4472, %v4475
        %v4495 = vsel %vm4485, %v4481, 1326507024
        %v4496 = vsel %vm4484, %v4478, %v4495
        %v4497 = vsel %vm4483, %v4494, %v4496
        %v4498 = vshll.u32 %v4458, 8
        %v4499 = vmul.u32.u64.compose %v4498, %v4497
        %v4500 = vextract.low.u32 %v4499
        %v4501 = vextract.high.u32 %v4499
        %v4502 = vmul.u32.u64.compose %v4498, %v4493
        %v4503 = vextract.low.u32 %v4502
        %v4504 = vextract.high.u32 %v4502
        %v4505 = vmul.u32 %v4498, %v4489
        %v4506 = vadd.s32 %v4501, %v4503
        %vm4507 = vc.u32 %v4501, %v4503
        %v4508 = vadd.s32 %v4504, 1
        %v4509 = vsel %vm4507, %v4508, %v4504
        %v4510 = vadd.s32 %v4505, %v4509
        %v4511 = vadd.s32 %v4510, 536870912
        %v4512 = vshrl.u32 %v4511, 30
        %v4513 = vshll.u32 %v4512, 30
        %v4514 = vsub.s32 %v4510, %v4513
        %vm4515 = vcmp.lt.s32.totalorder %v4514, 0
        %v4516 = vsub.s32 0, %v4514
        %v4517 = vsel %vm4515, %v4516, %v4514
        %v4518 = vclz %v4517
        %v4519 = vsub.s32 %v4518, 2
        %vm4520 = vcmp.gt.s32.totalorder 0, %v4519
        %v4521 = vsel %vm4520, 0, %v4519
        %v4522 = vsub.s32 32, %v4521
        %v4523 = vshll.u32 %v4514, %v4521
        %v4524 = vshrl.u32 %v4506, %v4522
        %v4525 = vor.u32 %v4523, %v4524
        %v4526 = vsub.s32 4294967266, %v4521
        %v4527 = vadd.s32 %v4526, 127
        %v4528 = vshll.u32 %v4527, 23
        %v4529 = vor.u32 4788187, %v4528
        %v4530 = vand.u32 2147483647, %v4529
        %v4532 = vcvt.s32.f32 %v4525
        %v4533 = vmul.f32 %v4532, %v4530
        %v4534 = vxor.u32 %v4533, 2147483648
        %v4535 = vsel %vm4452, %v4534, %v4533
        %v4536 = vsub.s32 4, %v4512
        %v4537 = vsel %vm4452, %v4536, %v4512
        %v4538 = vsel %vm4451, %v3366, %v4535
        %v4539 = vsel %vm4451, 0, %v4537
        %v4540 = vcosq.f32.pop %v4538
        %v4541 = vsinq.f32.pop %v4538
        %vm4542 = vweird.f32 %v3366
        %v4543 = vand.u32 %v4539, 3
        %vm4544 = vcmp.lt.s32.totalorder %v4543, 2
        %vm4545 = vcmp.eq.s32.totalorder %v4543, 0
        %v4546 = vxor.u32 %v4541, 2147483648
        %v4547 = vsel %vm4545, %v4540, %v4546
        %vm4548 = vcmp.eq.s32.totalorder %v4543, 2
        %v4549 = vxor.u32 %v4540, 2147483648
        %v4550 = vsel %vm4548, %v4549, %v4541
        %v4551 = vsel %vm4544, %v4547, %v4550
        %v4552 = vsel %vm4542, nan, %v4551
        %v4553 = vand.u32 2147483647, %v3367
        %vm4554 = vcmp.le.f32.partialorder %v4553, 0.7853982
        %vm4555 = vcmp.lt.s32.totalorder %v3367, 0
        %v4556 = vand.u32 %v3367, 2139095040
        %v4557 = vshrl.u32 %v4556, 23
        %v4558 = vsub.s32 %v4557, 127
        %v4559 = vand.u32 2147483647, %v3367
        %v4560 = vand.u32 %v4559, 8388607
        %v4561 = vor.u32 %v4560, 8388608
        %v4562 = vsub.s32 0, %v4561
        %v4563 = vadd.s32 %v4558, 1
        %vm4564 = vcmp.gt.s32.totalorder %v4563, 0
        %v4565 = vsel %vm4564, %v4563, 0
        %v4566 = vshrl.u32 %v4565, 5
        %v4567 = vand.u32 %v4565, 31
        %v4568 = vsub.s32 32, %v4567
        %v4569 = vshrl.u32 683565275, %v4568
        %v4570 = vshll.u32 683565275, %v4567
        %v4571 = vshrl.u32 2475754826, %v4568
        %v4572 = vor.u32 %v4570, %v4571
        %v4573 = vshll.u32 2475754826, %v4567
        %v4574 = vshrl.u32 2131351028, %v4568
        %v4575 = vor.u32 %v4573, %v4574
        %v4576 = vshll.u32 2131351028, %v4567
        %v4577 = vshrl.u32 2102212464, %v4568
        %v4578 = vor.u32 %v4576, %v4577
        %v4579 = vshll.u32 2102212464, %v4567
        %v4580 = vshrl.u32 920167782, %v4568
        %v4581 = vor.u32 %v4579, %v4580
        %v4582 = vshll.u32 920167782, %v4567
        %v4583 = vshrl.u32 1326507024, %v4568
        %v4584 = vor.u32 %v4582, %v4583
        %vm4585 = vcmp.lt.s32.totalorder %v4566, 1
        %vm4586 = vcmp.lt.s32.totalorder %v4566, 2
        %vm4587 = vcmp.lt.s32.totalorder %v4566, 3
        %vm4588 = vcmp.lt.s32.totalorder %v4566, 4
        %v4589 = vsel %vm4585, %v4569, %v4572
        %v4590 = vsel %vm4588, %v4578, 2102212464
        %v4591 = vsel %vm4587, %v4575, %v4590
        %v4592 = vsel %vm4586, %v4589, %v4591
        %v4593 = vsel %vm4585, %v4572, %v4575
        %v4594 = vsel %vm4588, %v4581, 920167782
        %v4595 = vsel %vm4587, %v4578, %v4594
        %v4596 = vsel %vm4586, %v4593, %v4595
        %v4597 = vsel %vm4585, %v4575, %v4578
        %v4598 = vsel %vm4588, %v4584, 1326507024
        %v4599 = vsel %vm4587, %v4581, %v4598
        %v4600 = vsel %vm4586, %v4597, %v4599
        %v4601 = vshll.u32 %v4561, 8
        %v4602 = vmul.u32.u64.compose %v4601, %v4600
        %v4603 = vextract.low.u32 %v4602
        %v4604 = vextract.high.u32 %v4602
        %v4605 = vmul.u32.u64.compose %v4601, %v4596
        %v4606 = vextract.low.u32 %v4605
        %v4607 = vextract.high.u32 %v4605
        %v4608 = vmul.u32 %v4601, %v4592
        %v4609 = vadd.s32 %v4604, %v4606
        %vm4610 = vc.u32 %v4604, %v4606
        %v4611 = vadd.s32 %v4607, 1
        %v4612 = vsel %vm4610, %v4611, %v4607
        %v4613 = vadd.s32 %v4608, %v4612
        %v4614 = vadd.s32 %v4613, 536870912
        %v4615 = vshrl.u32 %v4614, 30
        %v4616 = vshll.u32 %v4615, 30
        %v4617 = vsub.s32 %v4613, %v4616
        %vm4618 = vcmp.lt.s32.totalorder %v4617, 0
        %v4619 = vsub.s32 0, %v4617
        %v4620 = vsel %vm4618, %v4619, %v4617
        %v4621 = vclz %v4620
        %v4622 = vsub.s32 %v4621, 2
        %vm4623 = vcmp.gt.s32.totalorder 0, %v4622
        %v4624 = vsel %vm4623, 0, %v4622
        %v4625 = vsub.s32 32, %v4624
        %v4626 = vshll.u32 %v4617, %v4624
        %v4627 = vshrl.u32 %v4609, %v4625
        %v4628 = vor.u32 %v4626, %v4627
        %v4629 = vsub.s32 4294967266, %v4624
        %v4630 = vadd.s32 %v4629, 127
        %v4631 = vshll.u32 %v4630, 23
        %v4632 = vor.u32 4788187, %v4631
        %v4633 = vand.u32 2147483647, %v4632
        %v4635 = vcvt.s32.f32 %v4628
        %v4636 = vmul.f32 %v4635, %v4633
        %v4637 = vxor.u32 %v4636, 2147483648
        %v4638 = vsel %vm4555, %v4637, %v4636
        %v4639 = vsub.s32 4, %v4615
        %v4640 = vsel %vm4555, %v4639, %v4615
        %v4641 = vsel %vm4554, %v3367, %v4638
        %v4642 = vsel %vm4554, 0, %v4640
        %v4643 = vcosq.f32.pop %v4641
        %v4644 = vsinq.f32.pop %v4641
        %vm4645 = vweird.f32 %v3367
        %v4646 = vand.u32 %v4642, 3
        %vm4647 = vcmp.lt.s32.totalorder %v4646, 2
        %vm4648 = vcmp.eq.s32.totalorder %v4646, 0
        %v4649 = vxor.u32 %v4644, 2147483648
        %v4650 = vsel %vm4648, %v4643, %v4649
        %vm4651 = vcmp.eq.s32.totalorder %v4646, 2
        %v4652 = vxor.u32 %v4643, 2147483648
        %v4653 = vsel %vm4651, %v4652, %v4644
        %v4654 = vsel %vm4647, %v4650, %v4653
        %v4655 = vsel %vm4645, nan, %v4654
        %v4656 = vand.u32 2147483647, %v3368
        %vm4657 = vcmp.le.f32.partialorder %v4656, 0.7853982
        %vm4658 = vcmp.lt.s32.totalorder %v3368, 0
        %v4659 = vand.u32 %v3368, 2139095040
        %v4660 = vshrl.u32 %v4659, 23
        %v4661 = vsub.s32 %v4660, 127
        %v4662 = vand.u32 2147483647, %v3368
        %v4663 = vand.u32 %v4662, 8388607
        %v4664 = vor.u32 %v4663, 8388608
        %v4665 = vsub.s32 0, %v4664
        %v4666 = vadd.s32 %v4661, 1
        %vm4667 = vcmp.gt.s32.totalorder %v4666, 0
        %v4668 = vsel %vm4667, %v4666, 0
        %v4669 = vshrl.u32 %v4668, 5
        %v4670 = vand.u32 %v4668, 31
        %v4671 = vsub.s32 32, %v4670
        %v4672 = vshrl.u32 683565275, %v4671
        %v4673 = vshll.u32 683565275, %v4670
        %v4674 = vshrl.u32 2475754826, %v4671
        %v4675 = vor.u32 %v4673, %v4674
        %v4676 = vshll.u32 2475754826, %v4670
        %v4677 = vshrl.u32 2131351028, %v4671
        %v4678 = vor.u32 %v4676, %v4677
        %v4679 = vshll.u32 2131351028, %v4670
        %v4680 = vshrl.u32 2102212464, %v4671
        %v4681 = vor.u32 %v4679, %v4680
        %v4682 = vshll.u32 2102212464, %v4670
        %v4683 = vshrl.u32 920167782, %v4671
        %v4684 = vor.u32 %v4682, %v4683
        %v4685 = vshll.u32 920167782, %v4670
        %v4686 = vshrl.u32 1326507024, %v4671
        %v4687 = vor.u32 %v4685, %v4686
        %vm4688 = vcmp.lt.s32.totalorder %v4669, 1
        %vm4689 = vcmp.lt.s32.totalorder %v4669, 2
        %vm4690 = vcmp.lt.s32.totalorder %v4669, 3
        %vm4691 = vcmp.lt.s32.totalorder %v4669, 4
        %v4692 = vsel %vm4688, %v4672, %v4675
        %v4693 = vsel %vm4691, %v4681, 2102212464
        %v4694 = vsel %vm4690, %v4678, %v4693
        %v4695 = vsel %vm4689, %v4692, %v4694
        %v4696 = vsel %vm4688, %v4675, %v4678
        %v4697 = vsel %vm4691, %v4684, 920167782
        %v4698 = vsel %vm4690, %v4681, %v4697
        %v4699 = vsel %vm4689, %v4696, %v4698
        %v4700 = vsel %vm4688, %v4678, %v4681
        %v4701 = vsel %vm4691, %v4687, 1326507024
        %v4702 = vsel %vm4690, %v4684, %v4701
        %v4703 = vsel %vm4689, %v4700, %v4702
        %v4704 = vshll.u32 %v4664, 8
        %v4705 = vmul.u32.u64.compose %v4704, %v4703
        %v4706 = vextract.low.u32 %v4705
        %v4707 = vextract.high.u32 %v4705
        %v4708 = vmul.u32.u64.compose %v4704, %v4699
        %v4709 = vextract.low.u32 %v4708
        %v4710 = vextract.high.u32 %v4708
        %v4711 = vmul.u32 %v4704, %v4695
        %v4712 = vadd.s32 %v4707, %v4709
        %vm4713 = vc.u32 %v4707, %v4709
        %v4714 = vadd.s32 %v4710, 1
        %v4715 = vsel %vm4713, %v4714, %v4710
        %v4716 = vadd.s32 %v4711, %v4715
        %v4717 = vadd.s32 %v4716, 536870912
        %v4718 = vshrl.u32 %v4717, 30
        %v4719 = vshll.u32 %v4718, 30
        %v4720 = vsub.s32 %v4716, %v4719
        %vm4721 = vcmp.lt.s32.totalorder %v4720, 0
        %v4722 = vsub.s32 0, %v4720
        %v4723 = vsel %vm4721, %v4722, %v4720
        %v4724 = vclz %v4723
        %v4725 = vsub.s32 %v4724, 2
        %vm4726 = vcmp.gt.s32.totalorder 0, %v4725
        %v4727 = vsel %vm4726, 0, %v4725
        %v4728 = vsub.s32 32, %v4727
        %v4729 = vshll.u32 %v4720, %v4727
        %v4730 = vshrl.u32 %v4712, %v4728
        %v4731 = vor.u32 %v4729, %v4730
        %v4732 = vsub.s32 4294967266, %v4727
        %v4733 = vadd.s32 %v4732, 127
        %v4734 = vshll.u32 %v4733, 23
        %v4735 = vor.u32 4788187, %v4734
        %v4736 = vand.u32 2147483647, %v4735
        %v4738 = vcvt.s32.f32 %v4731
        %v4739 = vmul.f32 %v4738, %v4736
        %v4740 = vxor.u32 %v4739, 2147483648
        %v4741 = vsel %vm4658, %v4740, %v4739
        %v4742 = vsub.s32 4, %v4718
        %v4743 = vsel %vm4658, %v4742, %v4718
        %v4744 = vsel %vm4657, %v3368, %v4741
        %v4745 = vsel %vm4657, 0, %v4743
        %v4746 = vcosq.f32.pop %v4744
        %v4747 = vsinq.f32.pop %v4744
        %vm4748 = vweird.f32 %v3368
        %v4749 = vand.u32 %v4745, 3
        %vm4750 = vcmp.lt.s32.totalorder %v4749, 2
        %vm4751 = vcmp.eq.s32.totalorder %v4749, 0
        %v4752 = vxor.u32 %v4747, 2147483648
        %v4753 = vsel %vm4751, %v4746, %v4752
        %vm4754 = vcmp.eq.s32.totalorder %v4749, 2
        %v4755 = vxor.u32 %v4746, 2147483648
        %v4756 = vsel %vm4754, %v4755, %v4747
        %v4757 = vsel %vm4750, %v4753, %v4756
        %v4758 = vsel %vm4748, nan, %v4757
        %v4759 = vand.u32 2147483647, %v3369
        %vm4760 = vcmp.le.f32.partialorder %v4759, 0.7853982
        %vm4761 = vcmp.lt.s32.totalorder %v3369, 0
        %v4762 = vand.u32 %v3369, 2139095040
        %v4763 = vshrl.u32 %v4762, 23
        %v4764 = vsub.s32 %v4763, 127
        %v4765 = vand.u32 2147483647, %v3369
        %v4766 = vand.u32 %v4765, 8388607
        %v4767 = vor.u32 %v4766, 8388608
        %v4768 = vsub.s32 0, %v4767
        %v4769 = vadd.s32 %v4764, 1
        %vm4770 = vcmp.gt.s32.totalorder %v4769, 0
        %v4771 = vsel %vm4770, %v4769, 0
        %v4772 = vshrl.u32 %v4771, 5
        %v4773 = vand.u32 %v4771, 31
        %v4774 = vsub.s32 32, %v4773
        %v4775 = vshrl.u32 683565275, %v4774
        %v4776 = vshll.u32 683565275, %v4773
        %v4777 = vshrl.u32 2475754826, %v4774
        %v4778 = vor.u32 %v4776, %v4777
        %v4779 = vshll.u32 2475754826, %v4773
        %v4780 = vshrl.u32 2131351028, %v4774
        %v4781 = vor.u32 %v4779, %v4780
        %v4782 = vshll.u32 2131351028, %v4773
        %v4783 = vshrl.u32 2102212464, %v4774
        %v4784 = vor.u32 %v4782, %v4783
        %v4785 = vshll.u32 2102212464, %v4773
        %v4786 = vshrl.u32 920167782, %v4774
        %v4787 = vor.u32 %v4785, %v4786
        %v4788 = vshll.u32 920167782, %v4773
        %v4789 = vshrl.u32 1326507024, %v4774
        %v4790 = vor.u32 %v4788, %v4789
        %vm4791 = vcmp.lt.s32.totalorder %v4772, 1
        %vm4792 = vcmp.lt.s32.totalorder %v4772, 2
        %vm4793 = vcmp.lt.s32.totalorder %v4772, 3
        %vm4794 = vcmp.lt.s32.totalorder %v4772, 4
        %v4795 = vsel %vm4791, %v4775, %v4778
        %v4796 = vsel %vm4794, %v4784, 2102212464
        %v4797 = vsel %vm4793, %v4781, %v4796
        %v4798 = vsel %vm4792, %v4795, %v4797
        %v4799 = vsel %vm4791, %v4778, %v4781
        %v4800 = vsel %vm4794, %v4787, 920167782
        %v4801 = vsel %vm4793, %v4784, %v4800
        %v4802 = vsel %vm4792, %v4799, %v4801
        %v4803 = vsel %vm4791, %v4781, %v4784
        %v4804 = vsel %vm4794, %v4790, 1326507024
        %v4805 = vsel %vm4793, %v4787, %v4804
        %v4806 = vsel %vm4792, %v4803, %v4805
        %v4807 = vshll.u32 %v4767, 8
        %v4808 = vmul.u32.u64.compose %v4807, %v4806
        %v4809 = vextract.low.u32 %v4808
        %v4810 = vextract.high.u32 %v4808
        %v4811 = vmul.u32.u64.compose %v4807, %v4802
        %v4812 = vextract.low.u32 %v4811
        %v4813 = vextract.high.u32 %v4811
        %v4814 = vmul.u32 %v4807, %v4798
        %v4815 = vadd.s32 %v4810, %v4812
        %vm4816 = vc.u32 %v4810, %v4812
        %v4817 = vadd.s32 %v4813, 1
        %v4818 = vsel %vm4816, %v4817, %v4813
        %v4819 = vadd.s32 %v4814, %v4818
        %v4820 = vadd.s32 %v4819, 536870912
        %v4821 = vshrl.u32 %v4820, 30
        %v4822 = vshll.u32 %v4821, 30
        %v4823 = vsub.s32 %v4819, %v4822
        %vm4824 = vcmp.lt.s32.totalorder %v4823, 0
        %v4825 = vsub.s32 0, %v4823
        %v4826 = vsel %vm4824, %v4825, %v4823
        %v4827 = vclz %v4826
        %v4828 = vsub.s32 %v4827, 2
        %vm4829 = vcmp.gt.s32.totalorder 0, %v4828
        %v4830 = vsel %vm4829, 0, %v4828
        %v4831 = vsub.s32 32, %v4830
        %v4832 = vshll.u32 %v4823, %v4830
        %v4833 = vshrl.u32 %v4815, %v4831
        %v4834 = vor.u32 %v4832, %v4833
        %v4835 = vsub.s32 4294967266, %v4830
        %v4836 = vadd.s32 %v4835, 127
        %v4837 = vshll.u32 %v4836, 23
        %v4838 = vor.u32 4788187, %v4837
        %v4839 = vand.u32 2147483647, %v4838
        %v4841 = vcvt.s32.f32 %v4834
        %v4842 = vmul.f32 %v4841, %v4839
        %v4843 = vxor.u32 %v4842, 2147483648
        %v4844 = vsel %vm4761, %v4843, %v4842
        %v4845 = vsub.s32 4, %v4821
        %v4846 = vsel %vm4761, %v4845, %v4821
        %v4847 = vsel %vm4760, %v3369, %v4844
        %v4848 = vsel %vm4760, 0, %v4846
        %v4849 = vcosq.f32.pop %v4847
        %v4850 = vsinq.f32.pop %v4847
        %vm4851 = vweird.f32 %v3369
        %v4852 = vand.u32 %v4848, 3
        %vm4853 = vcmp.lt.s32.totalorder %v4852, 2
        %vm4854 = vcmp.eq.s32.totalorder %v4852, 0
        %v4855 = vxor.u32 %v4850, 2147483648
        %v4856 = vsel %vm4854, %v4849, %v4855
        %vm4857 = vcmp.eq.s32.totalorder %v4852, 2
        %v4858 = vxor.u32 %v4849, 2147483648
        %v4859 = vsel %vm4857, %v4858, %v4850
        %v4860 = vsel %vm4853, %v4856, %v4859
        %v4861 = vsel %vm4851, nan, %v4860
        %v4862 = vand.u32 2147483647, %v3370
        %vm4863 = vcmp.le.f32.partialorder %v4862, 0.7853982
        %vm4864 = vcmp.lt.s32.totalorder %v3370, 0
        %v4865 = vand.u32 %v3370, 2139095040
        %v4866 = vshrl.u32 %v4865, 23
        %v4867 = vsub.s32 %v4866, 127
        %v4868 = vand.u32 2147483647, %v3370
        %v4869 = vand.u32 %v4868, 8388607
        %v4870 = vor.u32 %v4869, 8388608
        %v4871 = vsub.s32 0, %v4870
        %v4872 = vadd.s32 %v4867, 1
        %vm4873 = vcmp.gt.s32.totalorder %v4872, 0
        %v4874 = vsel %vm4873, %v4872, 0
        %v4875 = vshrl.u32 %v4874, 5
        %v4876 = vand.u32 %v4874, 31
        %v4877 = vsub.s32 32, %v4876
        %v4878 = vshrl.u32 683565275, %v4877
        %v4879 = vshll.u32 683565275, %v4876
        %v4880 = vshrl.u32 2475754826, %v4877
        %v4881 = vor.u32 %v4879, %v4880
        %v4882 = vshll.u32 2475754826, %v4876
        %v4883 = vshrl.u32 2131351028, %v4877
        %v4884 = vor.u32 %v4882, %v4883
        %v4885 = vshll.u32 2131351028, %v4876
        %v4886 = vshrl.u32 2102212464, %v4877
        %v4887 = vor.u32 %v4885, %v4886
        %v4888 = vshll.u32 2102212464, %v4876
        %v4889 = vshrl.u32 920167782, %v4877
        %v4890 = vor.u32 %v4888, %v4889
        %v4891 = vshll.u32 920167782, %v4876
        %v4892 = vshrl.u32 1326507024, %v4877
        %v4893 = vor.u32 %v4891, %v4892
        %vm4894 = vcmp.lt.s32.totalorder %v4875, 1
        %vm4895 = vcmp.lt.s32.totalorder %v4875, 2
        %vm4896 = vcmp.lt.s32.totalorder %v4875, 3
        %vm4897 = vcmp.lt.s32.totalorder %v4875, 4
        %v4898 = vsel %vm4894, %v4878, %v4881
        %v4899 = vsel %vm4897, %v4887, 2102212464
        %v4900 = vsel %vm4896, %v4884, %v4899
        %v4901 = vsel %vm4895, %v4898, %v4900
        %v4902 = vsel %vm4894, %v4881, %v4884
        %v4903 = vsel %vm4897, %v4890, 920167782
        %v4904 = vsel %vm4896, %v4887, %v4903
        %v4905 = vsel %vm4895, %v4902, %v4904
        %v4906 = vsel %vm4894, %v4884, %v4887
        %v4907 = vsel %vm4897, %v4893, 1326507024
        %v4908 = vsel %vm4896, %v4890, %v4907
        %v4909 = vsel %vm4895, %v4906, %v4908
        %v4910 = vshll.u32 %v4870, 8
        %v4911 = vmul.u32.u64.compose %v4910, %v4909
        %v4912 = vextract.low.u32 %v4911
        %v4913 = vextract.high.u32 %v4911
        %v4914 = vmul.u32.u64.compose %v4910, %v4905
        %v4915 = vextract.low.u32 %v4914
        %v4916 = vextract.high.u32 %v4914
        %v4917 = vmul.u32 %v4910, %v4901
        %v4918 = vadd.s32 %v4913, %v4915
        %vm4919 = vc.u32 %v4913, %v4915
        %v4920 = vadd.s32 %v4916, 1
        %v4921 = vsel %vm4919, %v4920, %v4916
        %v4922 = vadd.s32 %v4917, %v4921
        %v4923 = vadd.s32 %v4922, 536870912
        %v4924 = vshrl.u32 %v4923, 30
        %v4925 = vshll.u32 %v4924, 30
        %v4926 = vsub.s32 %v4922, %v4925
        %vm4927 = vcmp.lt.s32.totalorder %v4926, 0
        %v4928 = vsub.s32 0, %v4926
        %v4929 = vsel %vm4927, %v4928, %v4926
        %v4930 = vclz %v4929
        %v4931 = vsub.s32 %v4930, 2
        %vm4932 = vcmp.gt.s32.totalorder 0, %v4931
        %v4933 = vsel %vm4932, 0, %v4931
        %v4934 = vsub.s32 32, %v4933
        %v4935 = vshll.u32 %v4926, %v4933
        %v4936 = vshrl.u32 %v4918, %v4934
        %v4937 = vor.u32 %v4935, %v4936
        %v4938 = vsub.s32 4294967266, %v4933
        %v4939 = vadd.s32 %v4938, 127
        %v4940 = vshll.u32 %v4939, 23
        %v4941 = vor.u32 4788187, %v4940
        %v4942 = vand.u32 2147483647, %v4941
        %v4944 = vcvt.s32.f32 %v4937
        %v4945 = vmul.f32 %v4944, %v4942
        %v4946 = vxor.u32 %v4945, 2147483648
        %v4947 = vsel %vm4864, %v4946, %v4945
        %v4948 = vsub.s32 4, %v4924
        %v4949 = vsel %vm4864, %v4948, %v4924
        %v4950 = vsel %vm4863, %v3370, %v4947
        %v4951 = vsel %vm4863, 0, %v4949
        %v4952 = vcosq.f32.pop %v4950
        %v4953 = vsinq.f32.pop %v4950
        %vm4954 = vweird.f32 %v3370
        %v4955 = vand.u32 %v4951, 3
        %vm4956 = vcmp.lt.s32.totalorder %v4955, 2
        %vm4957 = vcmp.eq.s32.totalorder %v4955, 0
        %v4958 = vxor.u32 %v4953, 2147483648
        %v4959 = vsel %vm4957, %v4952, %v4958
        %vm4960 = vcmp.eq.s32.totalorder %v4955, 2
        %v4961 = vxor.u32 %v4952, 2147483648
        %v4962 = vsel %vm4960, %v4961, %v4953
        %v4963 = vsel %vm4956, %v4959, %v4962
        %v4964 = vsel %vm4954, nan, %v4963
        %v4965 = vand.u32 2147483647, %v3371
        %vm4966 = vcmp.le.f32.partialorder %v4965, 0.7853982
        %vm4967 = vcmp.lt.s32.totalorder %v3371, 0
        %v4968 = vand.u32 %v3371, 2139095040
        %v4969 = vshrl.u32 %v4968, 23
        %v4970 = vsub.s32 %v4969, 127
        %v4971 = vand.u32 2147483647, %v3371
        %v4972 = vand.u32 %v4971, 8388607
        %v4973 = vor.u32 %v4972, 8388608
        %v4974 = vsub.s32 0, %v4973
        %v4975 = vadd.s32 %v4970, 1
        %vm4976 = vcmp.gt.s32.totalorder %v4975, 0
        %v4977 = vsel %vm4976, %v4975, 0
        %v4978 = vshrl.u32 %v4977, 5
        %v4979 = vand.u32 %v4977, 31
        %v4980 = vsub.s32 32, %v4979
        %v4981 = vshrl.u32 683565275, %v4980
        %v4982 = vshll.u32 683565275, %v4979
        %v4983 = vshrl.u32 2475754826, %v4980
        %v4984 = vor.u32 %v4982, %v4983
        %v4985 = vshll.u32 2475754826, %v4979
        %v4986 = vshrl.u32 2131351028, %v4980
        %v4987 = vor.u32 %v4985, %v4986
        %v4988 = vshll.u32 2131351028, %v4979
        %v4989 = vshrl.u32 2102212464, %v4980
        %v4990 = vor.u32 %v4988, %v4989
        %v4991 = vshll.u32 2102212464, %v4979
        %v4992 = vshrl.u32 920167782, %v4980
        %v4993 = vor.u32 %v4991, %v4992
        %v4994 = vshll.u32 920167782, %v4979
        %v4995 = vshrl.u32 1326507024, %v4980
        %v4996 = vor.u32 %v4994, %v4995
        %vm4997 = vcmp.lt.s32.totalorder %v4978, 1
        %vm4998 = vcmp.lt.s32.totalorder %v4978, 2
        %vm4999 = vcmp.lt.s32.totalorder %v4978, 3
        %vm5000 = vcmp.lt.s32.totalorder %v4978, 4
        %v5001 = vsel %vm4997, %v4981, %v4984
        %v5002 = vsel %vm5000, %v4990, 2102212464
        %v5003 = vsel %vm4999, %v4987, %v5002
        %v5004 = vsel %vm4998, %v5001, %v5003
        %v5005 = vsel %vm4997, %v4984, %v4987
        %v5006 = vsel %vm5000, %v4993, 920167782
        %v5007 = vsel %vm4999, %v4990, %v5006
        %v5008 = vsel %vm4998, %v5005, %v5007
        %v5009 = vsel %vm4997, %v4987, %v4990
        %v5010 = vsel %vm5000, %v4996, 1326507024
        %v5011 = vsel %vm4999, %v4993, %v5010
        %v5012 = vsel %vm4998, %v5009, %v5011
        %v5013 = vshll.u32 %v4973, 8
        %v5014 = vmul.u32.u64.compose %v5013, %v5012
        %v5015 = vextract.low.u32 %v5014
        %v5016 = vextract.high.u32 %v5014
        %v5017 = vmul.u32.u64.compose %v5013, %v5008
        %v5018 = vextract.low.u32 %v5017
        %v5019 = vextract.high.u32 %v5017
        %v5020 = vmul.u32 %v5013, %v5004
        %v5021 = vadd.s32 %v5016, %v5018
        %vm5022 = vc.u32 %v5016, %v5018
        %v5023 = vadd.s32 %v5019, 1
        %v5024 = vsel %vm5022, %v5023, %v5019
        %v5025 = vadd.s32 %v5020, %v5024
        %v5026 = vadd.s32 %v5025, 536870912
        %v5027 = vshrl.u32 %v5026, 30
        %v5028 = vshll.u32 %v5027, 30
        %v5029 = vsub.s32 %v5025, %v5028
        %vm5030 = vcmp.lt.s32.totalorder %v5029, 0
        %v5031 = vsub.s32 0, %v5029
        %v5032 = vsel %vm5030, %v5031, %v5029
        %v5033 = vclz %v5032
        %v5034 = vsub.s32 %v5033, 2
        %vm5035 = vcmp.gt.s32.totalorder 0, %v5034
        %v5036 = vsel %vm5035, 0, %v5034
        %v5037 = vsub.s32 32, %v5036
        %v5038 = vshll.u32 %v5029, %v5036
        %v5039 = vshrl.u32 %v5021, %v5037
        %v5040 = vor.u32 %v5038, %v5039
        %v5041 = vsub.s32 4294967266, %v5036
        %v5042 = vadd.s32 %v5041, 127
        %v5043 = vshll.u32 %v5042, 23
        %v5044 = vor.u32 4788187, %v5043
        %v5045 = vand.u32 2147483647, %v5044
        %v5047 = vcvt.s32.f32 %v5040
        %v5048 = vmul.f32 %v5047, %v5045
        %v5049 = vxor.u32 %v5048, 2147483648
        %v5050 = vsel %vm4967, %v5049, %v5048
        %v5051 = vsub.s32 4, %v5027
        %v5052 = vsel %vm4967, %v5051, %v5027
        %v5053 = vsel %vm4966, %v3371, %v5050
        %v5054 = vsel %vm4966, 0, %v5052
        %v5055 = vcosq.f32.pop %v5053
        %v5056 = vsinq.f32.pop %v5053
        %vm5057 = vweird.f32 %v3371
        %v5058 = vand.u32 %v5054, 3
        %vm5059 = vcmp.lt.s32.totalorder %v5058, 2
        %vm5060 = vcmp.eq.s32.totalorder %v5058, 0
        %v5061 = vxor.u32 %v5056, 2147483648
        %v5062 = vsel %vm5060, %v5055, %v5061
        %vm5063 = vcmp.eq.s32.totalorder %v5058, 2
        %v5064 = vxor.u32 %v5055, 2147483648
        %v5065 = vsel %vm5063, %v5064, %v5056
        %v5066 = vsel %vm5059, %v5062, %v5065
        %v5067 = vsel %vm5057, nan, %v5066
        %v5068 = vand.u32 2147483647, %v3372
        %vm5069 = vcmp.le.f32.partialorder %v5068, 0.7853982
        %vm5070 = vcmp.lt.s32.totalorder %v3372, 0
        %v5071 = vand.u32 %v3372, 2139095040
        %v5072 = vshrl.u32 %v5071, 23
        %v5073 = vsub.s32 %v5072, 127
        %v5074 = vand.u32 2147483647, %v3372
        %v5075 = vand.u32 %v5074, 8388607
        %v5076 = vor.u32 %v5075, 8388608
        %v5077 = vsub.s32 0, %v5076
        %v5078 = vadd.s32 %v5073, 1
        %vm5079 = vcmp.gt.s32.totalorder %v5078, 0
        %v5080 = vsel %vm5079, %v5078, 0
        %v5081 = vshrl.u32 %v5080, 5
        %v5082 = vand.u32 %v5080, 31
        %v5083 = vsub.s32 32, %v5082
        %v5084 = vshrl.u32 683565275, %v5083
        %v5085 = vshll.u32 683565275, %v5082
        %v5086 = vshrl.u32 2475754826, %v5083
        %v5087 = vor.u32 %v5085, %v5086
        %v5088 = vshll.u32 2475754826, %v5082
        %v5089 = vshrl.u32 2131351028, %v5083
        %v5090 = vor.u32 %v5088, %v5089
        %v5091 = vshll.u32 2131351028, %v5082
        %v5092 = vshrl.u32 2102212464, %v5083
        %v5093 = vor.u32 %v5091, %v5092
        %v5094 = vshll.u32 2102212464, %v5082
        %v5095 = vshrl.u32 920167782, %v5083
        %v5096 = vor.u32 %v5094, %v5095
        %v5097 = vshll.u32 920167782, %v5082
        %v5098 = vshrl.u32 1326507024, %v5083
        %v5099 = vor.u32 %v5097, %v5098
        %vm5100 = vcmp.lt.s32.totalorder %v5081, 1
        %vm5101 = vcmp.lt.s32.totalorder %v5081, 2
        %vm5102 = vcmp.lt.s32.totalorder %v5081, 3
        %vm5103 = vcmp.lt.s32.totalorder %v5081, 4
        %v5104 = vsel %vm5100, %v5084, %v5087
        %v5105 = vsel %vm5103, %v5093, 2102212464
        %v5106 = vsel %vm5102, %v5090, %v5105
        %v5107 = vsel %vm5101, %v5104, %v5106
        %v5108 = vsel %vm5100, %v5087, %v5090
        %v5109 = vsel %vm5103, %v5096, 920167782
        %v5110 = vsel %vm5102, %v5093, %v5109
        %v5111 = vsel %vm5101, %v5108, %v5110
        %v5112 = vsel %vm5100, %v5090, %v5093
        %v5113 = vsel %vm5103, %v5099, 1326507024
        %v5114 = vsel %vm5102, %v5096, %v5113
        %v5115 = vsel %vm5101, %v5112, %v5114
        %v5116 = vshll.u32 %v5076, 8
        %v5117 = vmul.u32.u64.compose %v5116, %v5115
        %v5118 = vextract.low.u32 %v5117
        %v5119 = vextract.high.u32 %v5117
        %v5120 = vmul.u32.u64.compose %v5116, %v5111
        %v5121 = vextract.low.u32 %v5120
        %v5122 = vextract.high.u32 %v5120
        %v5123 = vmul.u32 %v5116, %v5107
        %v5124 = vadd.s32 %v5119, %v5121
        %vm5125 = vc.u32 %v5119, %v5121
        %v5126 = vadd.s32 %v5122, 1
        %v5127 = vsel %vm5125, %v5126, %v5122
        %v5128 = vadd.s32 %v5123, %v5127
        %v5129 = vadd.s32 %v5128, 536870912
        %v5130 = vshrl.u32 %v5129, 30
        %v5131 = vshll.u32 %v5130, 30
        %v5132 = vsub.s32 %v5128, %v5131
        %vm5133 = vcmp.lt.s32.totalorder %v5132, 0
        %v5134 = vsub.s32 0, %v5132
        %v5135 = vsel %vm5133, %v5134, %v5132
        %v5136 = vclz %v5135
        %v5137 = vsub.s32 %v5136, 2
        %vm5138 = vcmp.gt.s32.totalorder 0, %v5137
        %v5139 = vsel %vm5138, 0, %v5137
        %v5140 = vsub.s32 32, %v5139
        %v5141 = vshll.u32 %v5132, %v5139
        %v5142 = vshrl.u32 %v5124, %v5140
        %v5143 = vor.u32 %v5141, %v5142
        %v5144 = vsub.s32 4294967266, %v5139
        %v5145 = vadd.s32 %v5144, 127
        %v5146 = vshll.u32 %v5145, 23
        %v5147 = vor.u32 4788187, %v5146
        %v5148 = vand.u32 2147483647, %v5147
        %v5150 = vcvt.s32.f32 %v5143
        %v5151 = vmul.f32 %v5150, %v5148
        %v5152 = vxor.u32 %v5151, 2147483648
        %v5153 = vsel %vm5070, %v5152, %v5151
        %v5154 = vsub.s32 4, %v5130
        %v5155 = vsel %vm5070, %v5154, %v5130
        %v5156 = vsel %vm5069, %v3372, %v5153
        %v5157 = vsel %vm5069, 0, %v5155
        %v5158 = vcosq.f32.pop %v5156
        %v5159 = vsinq.f32.pop %v5156
        %vm5160 = vweird.f32 %v3372
        %v5161 = vand.u32 %v5157, 3
        %vm5162 = vcmp.lt.s32.totalorder %v5161, 2
        %vm5163 = vcmp.eq.s32.totalorder %v5161, 0
        %v5164 = vxor.u32 %v5159, 2147483648
        %v5165 = vsel %vm5163, %v5158, %v5164
        %vm5166 = vcmp.eq.s32.totalorder %v5161, 2
        %v5167 = vxor.u32 %v5158, 2147483648
        %v5168 = vsel %vm5166, %v5167, %v5159
        %v5169 = vsel %vm5162, %v5165, %v5168
        %v5170 = vsel %vm5160, nan, %v5169
        %v5171 = vand.u32 2147483647, %v3373
        %vm5172 = vcmp.le.f32.partialorder %v5171, 0.7853982
        %vm5173 = vcmp.lt.s32.totalorder %v3373, 0
        %v5174 = vand.u32 %v3373, 2139095040
        %v5175 = vshrl.u32 %v5174, 23
        %v5176 = vsub.s32 %v5175, 127
        %v5177 = vand.u32 2147483647, %v3373
        %v5178 = vand.u32 %v5177, 8388607
        %v5179 = vor.u32 %v5178, 8388608
        %v5180 = vsub.s32 0, %v5179
        %v5181 = vadd.s32 %v5176, 1
        %vm5182 = vcmp.gt.s32.totalorder %v5181, 0
        %v5183 = vsel %vm5182, %v5181, 0
        %v5184 = vshrl.u32 %v5183, 5
        %v5185 = vand.u32 %v5183, 31
        %v5186 = vsub.s32 32, %v5185
        %v5187 = vshrl.u32 683565275, %v5186
        %v5188 = vshll.u32 683565275, %v5185
        %v5189 = vshrl.u32 2475754826, %v5186
        %v5190 = vor.u32 %v5188, %v5189
        %v5191 = vshll.u32 2475754826, %v5185
        %v5192 = vshrl.u32 2131351028, %v5186
        %v5193 = vor.u32 %v5191, %v5192
        %v5194 = vshll.u32 2131351028, %v5185
        %v5195 = vshrl.u32 2102212464, %v5186
        %v5196 = vor.u32 %v5194, %v5195
        %v5197 = vshll.u32 2102212464, %v5185
        %v5198 = vshrl.u32 920167782, %v5186
        %v5199 = vor.u32 %v5197, %v5198
        %v5200 = vshll.u32 920167782, %v5185
        %v5201 = vshrl.u32 1326507024, %v5186
        %v5202 = vor.u32 %v5200, %v5201
        %vm5203 = vcmp.lt.s32.totalorder %v5184, 1
        %vm5204 = vcmp.lt.s32.totalorder %v5184, 2
        %vm5205 = vcmp.lt.s32.totalorder %v5184, 3
        %vm5206 = vcmp.lt.s32.totalorder %v5184, 4
        %v5207 = vsel %vm5203, %v5187, %v5190
        %v5208 = vsel %vm5206, %v5196, 2102212464
        %v5209 = vsel %vm5205, %v5193, %v5208
        %v5210 = vsel %vm5204, %v5207, %v5209
        %v5211 = vsel %vm5203, %v5190, %v5193
        %v5212 = vsel %vm5206, %v5199, 920167782
        %v5213 = vsel %vm5205, %v5196, %v5212
        %v5214 = vsel %vm5204, %v5211, %v5213
        %v5215 = vsel %vm5203, %v5193, %v5196
        %v5216 = vsel %vm5206, %v5202, 1326507024
        %v5217 = vsel %vm5205, %v5199, %v5216
        %v5218 = vsel %vm5204, %v5215, %v5217
        %v5219 = vshll.u32 %v5179, 8
        %v5220 = vmul.u32.u64.compose %v5219, %v5218
        %v5221 = vextract.low.u32 %v5220
        %v5222 = vextract.high.u32 %v5220
        %v5223 = vmul.u32.u64.compose %v5219, %v5214
        %v5224 = vextract.low.u32 %v5223
        %v5225 = vextract.high.u32 %v5223
        %v5226 = vmul.u32 %v5219, %v5210
        %v5227 = vadd.s32 %v5222, %v5224
        %vm5228 = vc.u32 %v5222, %v5224
        %v5229 = vadd.s32 %v5225, 1
        %v5230 = vsel %vm5228, %v5229, %v5225
        %v5231 = vadd.s32 %v5226, %v5230
        %v5232 = vadd.s32 %v5231, 536870912
        %v5233 = vshrl.u32 %v5232, 30
        %v5234 = vshll.u32 %v5233, 30
        %v5235 = vsub.s32 %v5231, %v5234
        %vm5236 = vcmp.lt.s32.totalorder %v5235, 0
        %v5237 = vsub.s32 0, %v5235
        %v5238 = vsel %vm5236, %v5237, %v5235
        %v5239 = vclz %v5238
        %v5240 = vsub.s32 %v5239, 2
        %vm5241 = vcmp.gt.s32.totalorder 0, %v5240
        %v5242 = vsel %vm5241, 0, %v5240
        %v5243 = vsub.s32 32, %v5242
        %v5244 = vshll.u32 %v5235, %v5242
        %v5245 = vshrl.u32 %v5227, %v5243
        %v5246 = vor.u32 %v5244, %v5245
        %v5247 = vsub.s32 4294967266, %v5242
        %v5248 = vadd.s32 %v5247, 127
        %v5249 = vshll.u32 %v5248, 23
        %v5250 = vor.u32 4788187, %v5249
        %v5251 = vand.u32 2147483647, %v5250
        %v5253 = vcvt.s32.f32 %v5246
        %v5254 = vmul.f32 %v5253, %v5251
        %v5255 = vxor.u32 %v5254, 2147483648
        %v5256 = vsel %vm5173, %v5255, %v5254
        %v5257 = vsub.s32 4, %v5233
        %v5258 = vsel %vm5173, %v5257, %v5233
        %v5259 = vsel %vm5172, %v3373, %v5256
        %v5260 = vsel %vm5172, 0, %v5258
        %v5261 = vcosq.f32.pop %v5259
        %v5262 = vsinq.f32.pop %v5259
        %vm5263 = vweird.f32 %v3373
        %v5264 = vand.u32 %v5260, 3
        %vm5265 = vcmp.lt.s32.totalorder %v5264, 2
        %vm5266 = vcmp.eq.s32.totalorder %v5264, 0
        %v5267 = vxor.u32 %v5262, 2147483648
        %v5268 = vsel %vm5266, %v5261, %v5267
        %vm5269 = vcmp.eq.s32.totalorder %v5264, 2
        %v5270 = vxor.u32 %v5261, 2147483648
        %v5271 = vsel %vm5269, %v5270, %v5262
        %v5272 = vsel %vm5265, %v5268, %v5271
        %v5273 = vsel %vm5263, nan, %v5272
        %v5274 = vand.u32 2147483647, %v3374
        %vm5275 = vcmp.le.f32.partialorder %v5274, 0.7853982
        %vm5276 = vcmp.lt.s32.totalorder %v3374, 0
        %v5277 = vand.u32 %v3374, 2139095040
        %v5278 = vshrl.u32 %v5277, 23
        %v5279 = vsub.s32 %v5278, 127
        %v5280 = vand.u32 2147483647, %v3374
        %v5281 = vand.u32 %v5280, 8388607
        %v5282 = vor.u32 %v5281, 8388608
        %v5283 = vsub.s32 0, %v5282
        %v5284 = vadd.s32 %v5279, 1
        %vm5285 = vcmp.gt.s32.totalorder %v5284, 0
        %v5286 = vsel %vm5285, %v5284, 0
        %v5287 = vshrl.u32 %v5286, 5
        %v5288 = vand.u32 %v5286, 31
        %v5289 = vsub.s32 32, %v5288
        %v5290 = vshrl.u32 683565275, %v5289
        %v5291 = vshll.u32 683565275, %v5288
        %v5292 = vshrl.u32 2475754826, %v5289
        %v5293 = vor.u32 %v5291, %v5292
        %v5294 = vshll.u32 2475754826, %v5288
        %v5295 = vshrl.u32 2131351028, %v5289
        %v5296 = vor.u32 %v5294, %v5295
        %v5297 = vshll.u32 2131351028, %v5288
        %v5298 = vshrl.u32 2102212464, %v5289
        %v5299 = vor.u32 %v5297, %v5298
        %v5300 = vshll.u32 2102212464, %v5288
        %v5301 = vshrl.u32 920167782, %v5289
        %v5302 = vor.u32 %v5300, %v5301
        %v5303 = vshll.u32 920167782, %v5288
        %v5304 = vshrl.u32 1326507024, %v5289
        %v5305 = vor.u32 %v5303, %v5304
        %vm5306 = vcmp.lt.s32.totalorder %v5287, 1
        %vm5307 = vcmp.lt.s32.totalorder %v5287, 2
        %vm5308 = vcmp.lt.s32.totalorder %v5287, 3
        %vm5309 = vcmp.lt.s32.totalorder %v5287, 4
        %v5310 = vsel %vm5306, %v5290, %v5293
        %v5311 = vsel %vm5309, %v5299, 2102212464
        %v5312 = vsel %vm5308, %v5296, %v5311
        %v5313 = vsel %vm5307, %v5310, %v5312
        %v5314 = vsel %vm5306, %v5293, %v5296
        %v5315 = vsel %vm5309, %v5302, 920167782
        %v5316 = vsel %vm5308, %v5299, %v5315
        %v5317 = vsel %vm5307, %v5314, %v5316
        %v5318 = vsel %vm5306, %v5296, %v5299
        %v5319 = vsel %vm5309, %v5305, 1326507024
        %v5320 = vsel %vm5308, %v5302, %v5319
        %v5321 = vsel %vm5307, %v5318, %v5320
        %v5322 = vshll.u32 %v5282, 8
        %v5323 = vmul.u32.u64.compose %v5322, %v5321
        %v5324 = vextract.low.u32 %v5323
        %v5325 = vextract.high.u32 %v5323
        %v5326 = vmul.u32.u64.compose %v5322, %v5317
        %v5327 = vextract.low.u32 %v5326
        %v5328 = vextract.high.u32 %v5326
        %v5329 = vmul.u32 %v5322, %v5313
        %v5330 = vadd.s32 %v5325, %v5327
        %vm5331 = vc.u32 %v5325, %v5327
        %v5332 = vadd.s32 %v5328, 1
        %v5333 = vsel %vm5331, %v5332, %v5328
        %v5334 = vadd.s32 %v5329, %v5333
        %v5335 = vadd.s32 %v5334, 536870912
        %v5336 = vshrl.u32 %v5335, 30
        %v5337 = vshll.u32 %v5336, 30
        %v5338 = vsub.s32 %v5334, %v5337
        %vm5339 = vcmp.lt.s32.totalorder %v5338, 0
        %v5340 = vsub.s32 0, %v5338
        %v5341 = vsel %vm5339, %v5340, %v5338
        %v5342 = vclz %v5341
        %v5343 = vsub.s32 %v5342, 2
        %vm5344 = vcmp.gt.s32.totalorder 0, %v5343
        %v5345 = vsel %vm5344, 0, %v5343
        %v5346 = vsub.s32 32, %v5345
        %v5347 = vshll.u32 %v5338, %v5345
        %v5348 = vshrl.u32 %v5330, %v5346
        %v5349 = vor.u32 %v5347, %v5348
        %v5350 = vsub.s32 4294967266, %v5345
        %v5351 = vadd.s32 %v5350, 127
        %v5352 = vshll.u32 %v5351, 23
        %v5353 = vor.u32 4788187, %v5352
        %v5354 = vand.u32 2147483647, %v5353
        %v5356 = vcvt.s32.f32 %v5349
        %v5357 = vmul.f32 %v5356, %v5354
        %v5358 = vxor.u32 %v5357, 2147483648
        %v5359 = vsel %vm5276, %v5358, %v5357
        %v5360 = vsub.s32 4, %v5336
        %v5361 = vsel %vm5276, %v5360, %v5336
        %v5362 = vsel %vm5275, %v3374, %v5359
        %v5363 = vsel %vm5275, 0, %v5361
        %v5364 = vcosq.f32.pop %v5362
        %v5365 = vsinq.f32.pop %v5362
        %vm5366 = vweird.f32 %v3374
        %v5367 = vand.u32 %v5363, 3
        %vm5368 = vcmp.lt.s32.totalorder %v5367, 2
        %vm5369 = vcmp.eq.s32.totalorder %v5367, 0
        %v5370 = vxor.u32 %v5365, 2147483648
        %v5371 = vsel %vm5369, %v5364, %v5370
        %vm5372 = vcmp.eq.s32.totalorder %v5367, 2
        %v5373 = vxor.u32 %v5364, 2147483648
        %v5374 = vsel %vm5372, %v5373, %v5365
        %v5375 = vsel %vm5368, %v5371, %v5374
        %v5376 = vsel %vm5366, nan, %v5375
        %v5377 = vand.u32 2147483647, %v3375
        %vm5378 = vcmp.le.f32.partialorder %v5377, 0.7853982
        %vm5379 = vcmp.lt.s32.totalorder %v3375, 0
        %v5380 = vand.u32 %v3375, 2139095040
        %v5381 = vshrl.u32 %v5380, 23
        %v5382 = vsub.s32 %v5381, 127
        %v5383 = vand.u32 2147483647, %v3375
        %v5384 = vand.u32 %v5383, 8388607
        %v5385 = vor.u32 %v5384, 8388608
        %v5386 = vsub.s32 0, %v5385
        %v5387 = vadd.s32 %v5382, 1
        %vm5388 = vcmp.gt.s32.totalorder %v5387, 0
        %v5389 = vsel %vm5388, %v5387, 0
        %v5390 = vshrl.u32 %v5389, 5
        %v5391 = vand.u32 %v5389, 31
        %v5392 = vsub.s32 32, %v5391
        %v5393 = vshrl.u32 683565275, %v5392
        %v5394 = vshll.u32 683565275, %v5391
        %v5395 = vshrl.u32 2475754826, %v5392
        %v5396 = vor.u32 %v5394, %v5395
        %v5397 = vshll.u32 2475754826, %v5391
        %v5398 = vshrl.u32 2131351028, %v5392
        %v5399 = vor.u32 %v5397, %v5398
        %v5400 = vshll.u32 2131351028, %v5391
        %v5401 = vshrl.u32 2102212464, %v5392
        %v5402 = vor.u32 %v5400, %v5401
        %v5403 = vshll.u32 2102212464, %v5391
        %v5404 = vshrl.u32 920167782, %v5392
        %v5405 = vor.u32 %v5403, %v5404
        %v5406 = vshll.u32 920167782, %v5391
        %v5407 = vshrl.u32 1326507024, %v5392
        %v5408 = vor.u32 %v5406, %v5407
        %vm5409 = vcmp.lt.s32.totalorder %v5390, 1
        %vm5410 = vcmp.lt.s32.totalorder %v5390, 2
        %vm5411 = vcmp.lt.s32.totalorder %v5390, 3
        %vm5412 = vcmp.lt.s32.totalorder %v5390, 4
        %v5413 = vsel %vm5409, %v5393, %v5396
        %v5414 = vsel %vm5412, %v5402, 2102212464
        %v5415 = vsel %vm5411, %v5399, %v5414
        %v5416 = vsel %vm5410, %v5413, %v5415
        %v5417 = vsel %vm5409, %v5396, %v5399
        %v5418 = vsel %vm5412, %v5405, 920167782
        %v5419 = vsel %vm5411, %v5402, %v5418
        %v5420 = vsel %vm5410, %v5417, %v5419
        %v5421 = vsel %vm5409, %v5399, %v5402
        %v5422 = vsel %vm5412, %v5408, 1326507024
        %v5423 = vsel %vm5411, %v5405, %v5422
        %v5424 = vsel %vm5410, %v5421, %v5423
        %v5425 = vshll.u32 %v5385, 8
        %v5426 = vmul.u32.u64.compose %v5425, %v5424
        %v5427 = vextract.low.u32 %v5426
        %v5428 = vextract.high.u32 %v5426
        %v5429 = vmul.u32.u64.compose %v5425, %v5420
        %v5430 = vextract.low.u32 %v5429
        %v5431 = vextract.high.u32 %v5429
        %v5432 = vmul.u32 %v5425, %v5416
        %v5433 = vadd.s32 %v5428, %v5430
        %vm5434 = vc.u32 %v5428, %v5430
        %v5435 = vadd.s32 %v5431, 1
        %v5436 = vsel %vm5434, %v5435, %v5431
        %v5437 = vadd.s32 %v5432, %v5436
        %v5438 = vadd.s32 %v5437, 536870912
        %v5439 = vshrl.u32 %v5438, 30
        %v5440 = vshll.u32 %v5439, 30
        %v5441 = vsub.s32 %v5437, %v5440
        %vm5442 = vcmp.lt.s32.totalorder %v5441, 0
        %v5443 = vsub.s32 0, %v5441
        %v5444 = vsel %vm5442, %v5443, %v5441
        %v5445 = vclz %v5444
        %v5446 = vsub.s32 %v5445, 2
        %vm5447 = vcmp.gt.s32.totalorder 0, %v5446
        %v5448 = vsel %vm5447, 0, %v5446
        %v5449 = vsub.s32 32, %v5448
        %v5450 = vshll.u32 %v5441, %v5448
        %v5451 = vshrl.u32 %v5433, %v5449
        %v5452 = vor.u32 %v5450, %v5451
        %v5453 = vsub.s32 4294967266, %v5448
        %v5454 = vadd.s32 %v5453, 127
        %v5455 = vshll.u32 %v5454, 23
        %v5456 = vor.u32 4788187, %v5455
        %v5457 = vand.u32 2147483647, %v5456
        %v5459 = vcvt.s32.f32 %v5452
        %v5460 = vmul.f32 %v5459, %v5457
        %v5461 = vxor.u32 %v5460, 2147483648
        %v5462 = vsel %vm5379, %v5461, %v5460
        %v5463 = vsub.s32 4, %v5439
        %v5464 = vsel %vm5379, %v5463, %v5439
        %v5465 = vsel %vm5378, %v3375, %v5462
        %v5466 = vsel %vm5378, 0, %v5464
        %v5467 = vcosq.f32.pop %v5465
        %v5468 = vsinq.f32.pop %v5465
        %vm5469 = vweird.f32 %v3375
        %v5470 = vand.u32 %v5466, 3
        %vm5471 = vcmp.lt.s32.totalorder %v5470, 2
        %vm5472 = vcmp.eq.s32.totalorder %v5470, 0
        %v5473 = vxor.u32 %v5468, 2147483648
        %v5474 = vsel %vm5472, %v5467, %v5473
        %vm5475 = vcmp.eq.s32.totalorder %v5470, 2
        %v5476 = vxor.u32 %v5467, 2147483648
        %v5477 = vsel %vm5475, %v5476, %v5468
        %v5478 = vsel %vm5471, %v5474, %v5477
        %v5479 = vsel %vm5469, nan, %v5478
        %v5480 = vand.u32 2147483647, %v3376
        %vm5481 = vcmp.le.f32.partialorder %v5480, 0.7853982
        %vm5482 = vcmp.lt.s32.totalorder %v3376, 0
        %v5483 = vand.u32 %v3376, 2139095040
        %v5484 = vshrl.u32 %v5483, 23
        %v5485 = vsub.s32 %v5484, 127
        %v5486 = vand.u32 2147483647, %v3376
        %v5487 = vand.u32 %v5486, 8388607
        %v5488 = vor.u32 %v5487, 8388608
        %v5489 = vsub.s32 0, %v5488
        %v5490 = vadd.s32 %v5485, 1
        %vm5491 = vcmp.gt.s32.totalorder %v5490, 0
        %v5492 = vsel %vm5491, %v5490, 0
        %v5493 = vshrl.u32 %v5492, 5
        %v5494 = vand.u32 %v5492, 31
        %v5495 = vsub.s32 32, %v5494
        %v5496 = vshrl.u32 683565275, %v5495
        %v5497 = vshll.u32 683565275, %v5494
        %v5498 = vshrl.u32 2475754826, %v5495
        %v5499 = vor.u32 %v5497, %v5498
        %v5500 = vshll.u32 2475754826, %v5494
        %v5501 = vshrl.u32 2131351028, %v5495
        %v5502 = vor.u32 %v5500, %v5501
        %v5503 = vshll.u32 2131351028, %v5494
        %v5504 = vshrl.u32 2102212464, %v5495
        %v5505 = vor.u32 %v5503, %v5504
        %v5506 = vshll.u32 2102212464, %v5494
        %v5507 = vshrl.u32 920167782, %v5495
        %v5508 = vor.u32 %v5506, %v5507
        %v5509 = vshll.u32 920167782, %v5494
        %v5510 = vshrl.u32 1326507024, %v5495
        %v5511 = vor.u32 %v5509, %v5510
        %vm5512 = vcmp.lt.s32.totalorder %v5493, 1
        %vm5513 = vcmp.lt.s32.totalorder %v5493, 2
        %vm5514 = vcmp.lt.s32.totalorder %v5493, 3
        %vm5515 = vcmp.lt.s32.totalorder %v5493, 4
        %v5516 = vsel %vm5512, %v5496, %v5499
        %v5517 = vsel %vm5515, %v5505, 2102212464
        %v5518 = vsel %vm5514, %v5502, %v5517
        %v5519 = vsel %vm5513, %v5516, %v5518
        %v5520 = vsel %vm5512, %v5499, %v5502
        %v5521 = vsel %vm5515, %v5508, 920167782
        %v5522 = vsel %vm5514, %v5505, %v5521
        %v5523 = vsel %vm5513, %v5520, %v5522
        %v5524 = vsel %vm5512, %v5502, %v5505
        %v5525 = vsel %vm5515, %v5511, 1326507024
        %v5526 = vsel %vm5514, %v5508, %v5525
        %v5527 = vsel %vm5513, %v5524, %v5526
        %v5528 = vshll.u32 %v5488, 8
        %v5529 = vmul.u32.u64.compose %v5528, %v5527
        %v5530 = vextract.low.u32 %v5529
        %v5531 = vextract.high.u32 %v5529
        %v5532 = vmul.u32.u64.compose %v5528, %v5523
        %v5533 = vextract.low.u32 %v5532
        %v5534 = vextract.high.u32 %v5532
        %v5535 = vmul.u32 %v5528, %v5519
        %v5536 = vadd.s32 %v5531, %v5533
        %vm5537 = vc.u32 %v5531, %v5533
        %v5538 = vadd.s32 %v5534, 1
        %v5539 = vsel %vm5537, %v5538, %v5534
        %v5540 = vadd.s32 %v5535, %v5539
        %v5541 = vadd.s32 %v5540, 536870912
        %v5542 = vshrl.u32 %v5541, 30
        %v5543 = vshll.u32 %v5542, 30
        %v5544 = vsub.s32 %v5540, %v5543
        %vm5545 = vcmp.lt.s32.totalorder %v5544, 0
        %v5546 = vsub.s32 0, %v5544
        %v5547 = vsel %vm5545, %v5546, %v5544
        %v5548 = vclz %v5547
        %v5549 = vsub.s32 %v5548, 2
        %vm5550 = vcmp.gt.s32.totalorder 0, %v5549
        %v5551 = vsel %vm5550, 0, %v5549
        %v5552 = vsub.s32 32, %v5551
        %v5553 = vshll.u32 %v5544, %v5551
        %v5554 = vshrl.u32 %v5536, %v5552
        %v5555 = vor.u32 %v5553, %v5554
        %v5556 = vsub.s32 4294967266, %v5551
        %v5557 = vadd.s32 %v5556, 127
        %v5558 = vshll.u32 %v5557, 23
        %v5559 = vor.u32 4788187, %v5558
        %v5560 = vand.u32 2147483647, %v5559
        %v5562 = vcvt.s32.f32 %v5555
        %v5563 = vmul.f32 %v5562, %v5560
        %v5564 = vxor.u32 %v5563, 2147483648
        %v5565 = vsel %vm5482, %v5564, %v5563
        %v5566 = vsub.s32 4, %v5542
        %v5567 = vsel %vm5482, %v5566, %v5542
        %v5568 = vsel %vm5481, %v3376, %v5565
        %v5569 = vsel %vm5481, 0, %v5567
        %v5570 = vcosq.f32.pop %v5568
        %v5571 = vsinq.f32.pop %v5568
        %vm5572 = vweird.f32 %v3376
        %v5573 = vand.u32 %v5569, 3
        %vm5574 = vcmp.lt.s32.totalorder %v5573, 2
        %vm5575 = vcmp.eq.s32.totalorder %v5573, 0
        %v5576 = vxor.u32 %v5571, 2147483648
        %v5577 = vsel %vm5575, %v5570, %v5576
        %vm5578 = vcmp.eq.s32.totalorder %v5573, 2
        %v5579 = vxor.u32 %v5570, 2147483648
        %v5580 = vsel %vm5578, %v5579, %v5571
        %v5581 = vsel %vm5574, %v5577, %v5580
        %v5582 = vsel %vm5572, nan, %v5581
        %v5583 = vand.u32 2147483647, %v3377
        %vm5584 = vcmp.le.f32.partialorder %v5583, 0.7853982
        %vm5585 = vcmp.lt.s32.totalorder %v3377, 0
        %v5586 = vand.u32 %v3377, 2139095040
        %v5587 = vshrl.u32 %v5586, 23
        %v5588 = vsub.s32 %v5587, 127
        %v5589 = vand.u32 2147483647, %v3377
        %v5590 = vand.u32 %v5589, 8388607
        %v5591 = vor.u32 %v5590, 8388608
        %v5592 = vsub.s32 0, %v5591
        %v5593 = vadd.s32 %v5588, 1
        %vm5594 = vcmp.gt.s32.totalorder %v5593, 0
        %v5595 = vsel %vm5594, %v5593, 0
        %v5596 = vshrl.u32 %v5595, 5
        %v5597 = vand.u32 %v5595, 31
        %v5598 = vsub.s32 32, %v5597
        %v5599 = vshrl.u32 683565275, %v5598
        %v5600 = vshll.u32 683565275, %v5597
        %v5601 = vshrl.u32 2475754826, %v5598
        %v5602 = vor.u32 %v5600, %v5601
        %v5603 = vshll.u32 2475754826, %v5597
        %v5604 = vshrl.u32 2131351028, %v5598
        %v5605 = vor.u32 %v5603, %v5604
        %v5606 = vshll.u32 2131351028, %v5597
        %v5607 = vshrl.u32 2102212464, %v5598
        %v5608 = vor.u32 %v5606, %v5607
        %v5609 = vshll.u32 2102212464, %v5597
        %v5610 = vshrl.u32 920167782, %v5598
        %v5611 = vor.u32 %v5609, %v5610
        %v5612 = vshll.u32 920167782, %v5597
        %v5613 = vshrl.u32 1326507024, %v5598
        %v5614 = vor.u32 %v5612, %v5613
        %vm5615 = vcmp.lt.s32.totalorder %v5596, 1
        %vm5616 = vcmp.lt.s32.totalorder %v5596, 2
        %vm5617 = vcmp.lt.s32.totalorder %v5596, 3
        %vm5618 = vcmp.lt.s32.totalorder %v5596, 4
        %v5619 = vsel %vm5615, %v5599, %v5602
        %v5620 = vsel %vm5618, %v5608, 2102212464
        %v5621 = vsel %vm5617, %v5605, %v5620
        %v5622 = vsel %vm5616, %v5619, %v5621
        %v5623 = vsel %vm5615, %v5602, %v5605
        %v5624 = vsel %vm5618, %v5611, 920167782
        %v5625 = vsel %vm5617, %v5608, %v5624
        %v5626 = vsel %vm5616, %v5623, %v5625
        %v5627 = vsel %vm5615, %v5605, %v5608
        %v5628 = vsel %vm5618, %v5614, 1326507024
        %v5629 = vsel %vm5617, %v5611, %v5628
        %v5630 = vsel %vm5616, %v5627, %v5629
        %v5631 = vshll.u32 %v5591, 8
        %v5632 = vmul.u32.u64.compose %v5631, %v5630
        %v5633 = vextract.low.u32 %v5632
        %v5634 = vextract.high.u32 %v5632
        %v5635 = vmul.u32.u64.compose %v5631, %v5626
        %v5636 = vextract.low.u32 %v5635
        %v5637 = vextract.high.u32 %v5635
        %v5638 = vmul.u32 %v5631, %v5622
        %v5639 = vadd.s32 %v5634, %v5636
        %vm5640 = vc.u32 %v5634, %v5636
        %v5641 = vadd.s32 %v5637, 1
        %v5642 = vsel %vm5640, %v5641, %v5637
        %v5643 = vadd.s32 %v5638, %v5642
        %v5644 = vadd.s32 %v5643, 536870912
        %v5645 = vshrl.u32 %v5644, 30
        %v5646 = vshll.u32 %v5645, 30
        %v5647 = vsub.s32 %v5643, %v5646
        %vm5648 = vcmp.lt.s32.totalorder %v5647, 0
        %v5649 = vsub.s32 0, %v5647
        %v5650 = vsel %vm5648, %v5649, %v5647
        %v5651 = vclz %v5650
        %v5652 = vsub.s32 %v5651, 2
        %vm5653 = vcmp.gt.s32.totalorder 0, %v5652
        %v5654 = vsel %vm5653, 0, %v5652
        %v5655 = vsub.s32 32, %v5654
        %v5656 = vshll.u32 %v5647, %v5654
        %v5657 = vshrl.u32 %v5639, %v5655
        %v5658 = vor.u32 %v5656, %v5657
        %v5659 = vsub.s32 4294967266, %v5654
        %v5660 = vadd.s32 %v5659, 127
        %v5661 = vshll.u32 %v5660, 23
        %v5662 = vor.u32 4788187, %v5661
        %v5663 = vand.u32 2147483647, %v5662
        %v5665 = vcvt.s32.f32 %v5658
        %v5666 = vmul.f32 %v5665, %v5663
        %v5667 = vxor.u32 %v5666, 2147483648
        %v5668 = vsel %vm5585, %v5667, %v5666
        %v5669 = vsub.s32 4, %v5645
        %v5670 = vsel %vm5585, %v5669, %v5645
        %v5671 = vsel %vm5584, %v3377, %v5668
        %v5672 = vsel %vm5584, 0, %v5670
        %v5673 = vcosq.f32.pop %v5671
        %v5674 = vsinq.f32.pop %v5671
        %vm5675 = vweird.f32 %v3377
        %v5676 = vand.u32 %v5672, 3
        %vm5677 = vcmp.lt.s32.totalorder %v5676, 2
        %vm5678 = vcmp.eq.s32.totalorder %v5676, 0
        %v5679 = vxor.u32 %v5674, 2147483648
        %v5680 = vsel %vm5678, %v5673, %v5679
        %vm5681 = vcmp.eq.s32.totalorder %v5676, 2
        %v5682 = vxor.u32 %v5673, 2147483648
        %v5683 = vsel %vm5681, %v5682, %v5674
        %v5684 = vsel %vm5677, %v5680, %v5683
        %v5685 = vsel %vm5675, nan, %v5684
        %v5686 = vand.u32 2147483647, %v3378
        %vm5687 = vcmp.le.f32.partialorder %v5686, 0.7853982
        %vm5688 = vcmp.lt.s32.totalorder %v3378, 0
        %v5689 = vand.u32 %v3378, 2139095040
        %v5690 = vshrl.u32 %v5689, 23
        %v5691 = vsub.s32 %v5690, 127
        %v5692 = vand.u32 2147483647, %v3378
        %v5693 = vand.u32 %v5692, 8388607
        %v5694 = vor.u32 %v5693, 8388608
        %v5695 = vsub.s32 0, %v5694
        %v5696 = vadd.s32 %v5691, 1
        %vm5697 = vcmp.gt.s32.totalorder %v5696, 0
        %v5698 = vsel %vm5697, %v5696, 0
        %v5699 = vshrl.u32 %v5698, 5
        %v5700 = vand.u32 %v5698, 31
        %v5701 = vsub.s32 32, %v5700
        %v5702 = vshrl.u32 683565275, %v5701
        %v5703 = vshll.u32 683565275, %v5700
        %v5704 = vshrl.u32 2475754826, %v5701
        %v5705 = vor.u32 %v5703, %v5704
        %v5706 = vshll.u32 2475754826, %v5700
        %v5707 = vshrl.u32 2131351028, %v5701
        %v5708 = vor.u32 %v5706, %v5707
        %v5709 = vshll.u32 2131351028, %v5700
        %v5710 = vshrl.u32 2102212464, %v5701
        %v5711 = vor.u32 %v5709, %v5710
        %v5712 = vshll.u32 2102212464, %v5700
        %v5713 = vshrl.u32 920167782, %v5701
        %v5714 = vor.u32 %v5712, %v5713
        %v5715 = vshll.u32 920167782, %v5700
        %v5716 = vshrl.u32 1326507024, %v5701
        %v5717 = vor.u32 %v5715, %v5716
        %vm5718 = vcmp.lt.s32.totalorder %v5699, 1
        %vm5719 = vcmp.lt.s32.totalorder %v5699, 2
        %vm5720 = vcmp.lt.s32.totalorder %v5699, 3
        %vm5721 = vcmp.lt.s32.totalorder %v5699, 4
        %v5722 = vsel %vm5718, %v5702, %v5705
        %v5723 = vsel %vm5721, %v5711, 2102212464
        %v5724 = vsel %vm5720, %v5708, %v5723
        %v5725 = vsel %vm5719, %v5722, %v5724
        %v5726 = vsel %vm5718, %v5705, %v5708
        %v5727 = vsel %vm5721, %v5714, 920167782
        %v5728 = vsel %vm5720, %v5711, %v5727
        %v5729 = vsel %vm5719, %v5726, %v5728
        %v5730 = vsel %vm5718, %v5708, %v5711
        %v5731 = vsel %vm5721, %v5717, 1326507024
        %v5732 = vsel %vm5720, %v5714, %v5731
        %v5733 = vsel %vm5719, %v5730, %v5732
        %v5734 = vshll.u32 %v5694, 8
        %v5735 = vmul.u32.u64.compose %v5734, %v5733
        %v5736 = vextract.low.u32 %v5735
        %v5737 = vextract.high.u32 %v5735
        %v5738 = vmul.u32.u64.compose %v5734, %v5729
        %v5739 = vextract.low.u32 %v5738
        %v5740 = vextract.high.u32 %v5738
        %v5741 = vmul.u32 %v5734, %v5725
        %v5742 = vadd.s32 %v5737, %v5739
        %vm5743 = vc.u32 %v5737, %v5739
        %v5744 = vadd.s32 %v5740, 1
        %v5745 = vsel %vm5743, %v5744, %v5740
        %v5746 = vadd.s32 %v5741, %v5745
        %v5747 = vadd.s32 %v5746, 536870912
        %v5748 = vshrl.u32 %v5747, 30
        %v5749 = vshll.u32 %v5748, 30
        %v5750 = vsub.s32 %v5746, %v5749
        %vm5751 = vcmp.lt.s32.totalorder %v5750, 0
        %v5752 = vsub.s32 0, %v5750
        %v5753 = vsel %vm5751, %v5752, %v5750
        %v5754 = vclz %v5753
        %v5755 = vsub.s32 %v5754, 2
        %vm5756 = vcmp.gt.s32.totalorder 0, %v5755
        %v5757 = vsel %vm5756, 0, %v5755
        %v5758 = vsub.s32 32, %v5757
        %v5759 = vshll.u32 %v5750, %v5757
        %v5760 = vshrl.u32 %v5742, %v5758
        %v5761 = vor.u32 %v5759, %v5760
        %v5762 = vsub.s32 4294967266, %v5757
        %v5763 = vadd.s32 %v5762, 127
        %v5764 = vshll.u32 %v5763, 23
        %v5765 = vor.u32 4788187, %v5764
        %v5766 = vand.u32 2147483647, %v5765
        %v5768 = vcvt.s32.f32 %v5761
        %v5769 = vmul.f32 %v5768, %v5766
        %v5770 = vxor.u32 %v5769, 2147483648
        %v5771 = vsel %vm5688, %v5770, %v5769
        %v5772 = vsub.s32 4, %v5748
        %v5773 = vsel %vm5688, %v5772, %v5748
        %v5774 = vsel %vm5687, %v3378, %v5771
        %v5775 = vsel %vm5687, 0, %v5773
        %v5776 = vcosq.f32.pop %v5774
        %v5777 = vsinq.f32.pop %v5774
        %vm5778 = vweird.f32 %v3378
        %v5779 = vand.u32 %v5775, 3
        %vm5780 = vcmp.lt.s32.totalorder %v5779, 2
        %vm5781 = vcmp.eq.s32.totalorder %v5779, 0
        %v5782 = vxor.u32 %v5777, 2147483648
        %v5783 = vsel %vm5781, %v5776, %v5782
        %vm5784 = vcmp.eq.s32.totalorder %v5779, 2
        %v5785 = vxor.u32 %v5776, 2147483648
        %v5786 = vsel %vm5784, %v5785, %v5777
        %v5787 = vsel %vm5780, %v5783, %v5786
        %v5788 = vsel %vm5778, nan, %v5787
        %v5789 = vand.u32 2147483647, %v3379
        %vm5790 = vcmp.le.f32.partialorder %v5789, 0.7853982
        %vm5791 = vcmp.lt.s32.totalorder %v3379, 0
        %v5792 = vand.u32 %v3379, 2139095040
        %v5793 = vshrl.u32 %v5792, 23
        %v5794 = vsub.s32 %v5793, 127
        %v5795 = vand.u32 2147483647, %v3379
        %v5796 = vand.u32 %v5795, 8388607
        %v5797 = vor.u32 %v5796, 8388608
        %v5798 = vsub.s32 0, %v5797
        %v5799 = vadd.s32 %v5794, 1
        %vm5800 = vcmp.gt.s32.totalorder %v5799, 0
        %v5801 = vsel %vm5800, %v5799, 0
        %v5802 = vshrl.u32 %v5801, 5
        %v5803 = vand.u32 %v5801, 31
        %v5804 = vsub.s32 32, %v5803
        %v5805 = vshrl.u32 683565275, %v5804
        %v5806 = vshll.u32 683565275, %v5803
        %v5807 = vshrl.u32 2475754826, %v5804
        %v5808 = vor.u32 %v5806, %v5807
        %v5809 = vshll.u32 2475754826, %v5803
        %v5810 = vshrl.u32 2131351028, %v5804
        %v5811 = vor.u32 %v5809, %v5810
        %v5812 = vshll.u32 2131351028, %v5803
        %v5813 = vshrl.u32 2102212464, %v5804
        %v5814 = vor.u32 %v5812, %v5813
        %v5815 = vshll.u32 2102212464, %v5803
        %v5816 = vshrl.u32 920167782, %v5804
        %v5817 = vor.u32 %v5815, %v5816
        %v5818 = vshll.u32 920167782, %v5803
        %v5819 = vshrl.u32 1326507024, %v5804
        %v5820 = vor.u32 %v5818, %v5819
        %vm5821 = vcmp.lt.s32.totalorder %v5802, 1
        %vm5822 = vcmp.lt.s32.totalorder %v5802, 2
        %vm5823 = vcmp.lt.s32.totalorder %v5802, 3
        %vm5824 = vcmp.lt.s32.totalorder %v5802, 4
        %v5825 = vsel %vm5821, %v5805, %v5808
        %v5826 = vsel %vm5824, %v5814, 2102212464
        %v5827 = vsel %vm5823, %v5811, %v5826
        %v5828 = vsel %vm5822, %v5825, %v5827
        %v5829 = vsel %vm5821, %v5808, %v5811
        %v5830 = vsel %vm5824, %v5817, 920167782
        %v5831 = vsel %vm5823, %v5814, %v5830
        %v5832 = vsel %vm5822, %v5829, %v5831
        %v5833 = vsel %vm5821, %v5811, %v5814
        %v5834 = vsel %vm5824, %v5820, 1326507024
        %v5835 = vsel %vm5823, %v5817, %v5834
        %v5836 = vsel %vm5822, %v5833, %v5835
        %v5837 = vshll.u32 %v5797, 8
        %v5838 = vmul.u32.u64.compose %v5837, %v5836
        %v5839 = vextract.low.u32 %v5838
        %v5840 = vextract.high.u32 %v5838
        %v5841 = vmul.u32.u64.compose %v5837, %v5832
        %v5842 = vextract.low.u32 %v5841
        %v5843 = vextract.high.u32 %v5841
        %v5844 = vmul.u32 %v5837, %v5828
        %v5845 = vadd.s32 %v5840, %v5842
        %vm5846 = vc.u32 %v5840, %v5842
        %v5847 = vadd.s32 %v5843, 1
        %v5848 = vsel %vm5846, %v5847, %v5843
        %v5849 = vadd.s32 %v5844, %v5848
        %v5850 = vadd.s32 %v5849, 536870912
        %v5851 = vshrl.u32 %v5850, 30
        %v5852 = vshll.u32 %v5851, 30
        %v5853 = vsub.s32 %v5849, %v5852
        %vm5854 = vcmp.lt.s32.totalorder %v5853, 0
        %v5855 = vsub.s32 0, %v5853
        %v5856 = vsel %vm5854, %v5855, %v5853
        %v5857 = vclz %v5856
        %v5858 = vsub.s32 %v5857, 2
        %vm5859 = vcmp.gt.s32.totalorder 0, %v5858
        %v5860 = vsel %vm5859, 0, %v5858
        %v5861 = vsub.s32 32, %v5860
        %v5862 = vshll.u32 %v5853, %v5860
        %v5863 = vshrl.u32 %v5845, %v5861
        %v5864 = vor.u32 %v5862, %v5863
        %v5865 = vsub.s32 4294967266, %v5860
        %v5866 = vadd.s32 %v5865, 127
        %v5867 = vshll.u32 %v5866, 23
        %v5868 = vor.u32 4788187, %v5867
        %v5869 = vand.u32 2147483647, %v5868
        %v5871 = vcvt.s32.f32 %v5864
        %v5872 = vmul.f32 %v5871, %v5869
        %v5873 = vxor.u32 %v5872, 2147483648
        %v5874 = vsel %vm5791, %v5873, %v5872
        %v5875 = vsub.s32 4, %v5851
        %v5876 = vsel %vm5791, %v5875, %v5851
        %v5877 = vsel %vm5790, %v3379, %v5874
        %v5878 = vsel %vm5790, 0, %v5876
        %v5879 = vcosq.f32.pop %v5877
        %v5880 = vsinq.f32.pop %v5877
        %vm5881 = vweird.f32 %v3379
        %v5882 = vand.u32 %v5878, 3
        %vm5883 = vcmp.lt.s32.totalorder %v5882, 2
        %vm5884 = vcmp.eq.s32.totalorder %v5882, 0
        %v5885 = vxor.u32 %v5880, 2147483648
        %v5886 = vsel %vm5884, %v5879, %v5885
        %vm5887 = vcmp.eq.s32.totalorder %v5882, 2
        %v5888 = vxor.u32 %v5879, 2147483648
        %v5889 = vsel %vm5887, %v5888, %v5880
        %v5890 = vsel %vm5883, %v5886, %v5889
        %v5891 = vsel %vm5881, nan, %v5890
        %v5892 = vand.u32 2147483647, %v3380
        %vm5893 = vcmp.le.f32.partialorder %v5892, 0.7853982
        %vm5894 = vcmp.lt.s32.totalorder %v3380, 0
        %v5895 = vand.u32 %v3380, 2139095040
        %v5896 = vshrl.u32 %v5895, 23
        %v5897 = vsub.s32 %v5896, 127
        %v5898 = vand.u32 2147483647, %v3380
        %v5899 = vand.u32 %v5898, 8388607
        %v5900 = vor.u32 %v5899, 8388608
        %v5901 = vsub.s32 0, %v5900
        %v5902 = vadd.s32 %v5897, 1
        %vm5903 = vcmp.gt.s32.totalorder %v5902, 0
        %v5904 = vsel %vm5903, %v5902, 0
        %v5905 = vshrl.u32 %v5904, 5
        %v5906 = vand.u32 %v5904, 31
        %v5907 = vsub.s32 32, %v5906
        %v5908 = vshrl.u32 683565275, %v5907
        %v5909 = vshll.u32 683565275, %v5906
        %v5910 = vshrl.u32 2475754826, %v5907
        %v5911 = vor.u32 %v5909, %v5910
        %v5912 = vshll.u32 2475754826, %v5906
        %v5913 = vshrl.u32 2131351028, %v5907
        %v5914 = vor.u32 %v5912, %v5913
        %v5915 = vshll.u32 2131351028, %v5906
        %v5916 = vshrl.u32 2102212464, %v5907
        %v5917 = vor.u32 %v5915, %v5916
        %v5918 = vshll.u32 2102212464, %v5906
        %v5919 = vshrl.u32 920167782, %v5907
        %v5920 = vor.u32 %v5918, %v5919
        %v5921 = vshll.u32 920167782, %v5906
        %v5922 = vshrl.u32 1326507024, %v5907
        %v5923 = vor.u32 %v5921, %v5922
        %vm5924 = vcmp.lt.s32.totalorder %v5905, 1
        %vm5925 = vcmp.lt.s32.totalorder %v5905, 2
        %vm5926 = vcmp.lt.s32.totalorder %v5905, 3
        %vm5927 = vcmp.lt.s32.totalorder %v5905, 4
        %v5928 = vsel %vm5924, %v5908, %v5911
        %v5929 = vsel %vm5927, %v5917, 2102212464
        %v5930 = vsel %vm5926, %v5914, %v5929
        %v5931 = vsel %vm5925, %v5928, %v5930
        %v5932 = vsel %vm5924, %v5911, %v5914
        %v5933 = vsel %vm5927, %v5920, 920167782
        %v5934 = vsel %vm5926, %v5917, %v5933
        %v5935 = vsel %vm5925, %v5932, %v5934
        %v5936 = vsel %vm5924, %v5914, %v5917
        %v5937 = vsel %vm5927, %v5923, 1326507024
        %v5938 = vsel %vm5926, %v5920, %v5937
        %v5939 = vsel %vm5925, %v5936, %v5938
        %v5940 = vshll.u32 %v5900, 8
        %v5941 = vmul.u32.u64.compose %v5940, %v5939
        %v5942 = vextract.low.u32 %v5941
        %v5943 = vextract.high.u32 %v5941
        %v5944 = vmul.u32.u64.compose %v5940, %v5935
        %v5945 = vextract.low.u32 %v5944
        %v5946 = vextract.high.u32 %v5944
        %v5947 = vmul.u32 %v5940, %v5931
        %v5948 = vadd.s32 %v5943, %v5945
        %vm5949 = vc.u32 %v5943, %v5945
        %v5950 = vadd.s32 %v5946, 1
        %v5951 = vsel %vm5949, %v5950, %v5946
        %v5952 = vadd.s32 %v5947, %v5951
        %v5953 = vadd.s32 %v5952, 536870912
        %v5954 = vshrl.u32 %v5953, 30
        %v5955 = vshll.u32 %v5954, 30
        %v5956 = vsub.s32 %v5952, %v5955
        %vm5957 = vcmp.lt.s32.totalorder %v5956, 0
        %v5958 = vsub.s32 0, %v5956
        %v5959 = vsel %vm5957, %v5958, %v5956
        %v5960 = vclz %v5959
        %v5961 = vsub.s32 %v5960, 2
        %vm5962 = vcmp.gt.s32.totalorder 0, %v5961
        %v5963 = vsel %vm5962, 0, %v5961
        %v5964 = vsub.s32 32, %v5963
        %v5965 = vshll.u32 %v5956, %v5963
        %v5966 = vshrl.u32 %v5948, %v5964
        %v5967 = vor.u32 %v5965, %v5966
        %v5968 = vsub.s32 4294967266, %v5963
        %v5969 = vadd.s32 %v5968, 127
        %v5970 = vshll.u32 %v5969, 23
        %v5971 = vor.u32 4788187, %v5970
        %v5972 = vand.u32 2147483647, %v5971
        %v5974 = vcvt.s32.f32 %v5967
        %v5975 = vmul.f32 %v5974, %v5972
        %v5976 = vxor.u32 %v5975, 2147483648
        %v5977 = vsel %vm5894, %v5976, %v5975
        %v5978 = vsub.s32 4, %v5954
        %v5979 = vsel %vm5894, %v5978, %v5954
        %v5980 = vsel %vm5893, %v3380, %v5977
        %v5981 = vsel %vm5893, 0, %v5979
        %v5982 = vcosq.f32.pop %v5980
        %v5983 = vsinq.f32.pop %v5980
        %vm5984 = vweird.f32 %v3380
        %v5985 = vand.u32 %v5981, 3
        %vm5986 = vcmp.lt.s32.totalorder %v5985, 2
        %vm5987 = vcmp.eq.s32.totalorder %v5985, 0
        %v5988 = vxor.u32 %v5983, 2147483648
        %v5989 = vsel %vm5987, %v5982, %v5988
        %vm5990 = vcmp.eq.s32.totalorder %v5985, 2
        %v5991 = vxor.u32 %v5982, 2147483648
        %v5992 = vsel %vm5990, %v5991, %v5983
        %v5993 = vsel %vm5986, %v5989, %v5992
        %v5994 = vsel %vm5984, nan, %v5993
        %v5995 = vand.u32 2147483647, %v3381
        %vm5996 = vcmp.le.f32.partialorder %v5995, 0.7853982
        %vm5997 = vcmp.lt.s32.totalorder %v3381, 0
        %v5998 = vand.u32 %v3381, 2139095040
        %v5999 = vshrl.u32 %v5998, 23
        %v6000 = vsub.s32 %v5999, 127
        %v6001 = vand.u32 2147483647, %v3381
        %v6002 = vand.u32 %v6001, 8388607
        %v6003 = vor.u32 %v6002, 8388608
        %v6004 = vsub.s32 0, %v6003
        %v6005 = vadd.s32 %v6000, 1
        %vm6006 = vcmp.gt.s32.totalorder %v6005, 0
        %v6007 = vsel %vm6006, %v6005, 0
        %v6008 = vshrl.u32 %v6007, 5
        %v6009 = vand.u32 %v6007, 31
        %v6010 = vsub.s32 32, %v6009
        %v6011 = vshrl.u32 683565275, %v6010
        %v6012 = vshll.u32 683565275, %v6009
        %v6013 = vshrl.u32 2475754826, %v6010
        %v6014 = vor.u32 %v6012, %v6013
        %v6015 = vshll.u32 2475754826, %v6009
        %v6016 = vshrl.u32 2131351028, %v6010
        %v6017 = vor.u32 %v6015, %v6016
        %v6018 = vshll.u32 2131351028, %v6009
        %v6019 = vshrl.u32 2102212464, %v6010
        %v6020 = vor.u32 %v6018, %v6019
        %v6021 = vshll.u32 2102212464, %v6009
        %v6022 = vshrl.u32 920167782, %v6010
        %v6023 = vor.u32 %v6021, %v6022
        %v6024 = vshll.u32 920167782, %v6009
        %v6025 = vshrl.u32 1326507024, %v6010
        %v6026 = vor.u32 %v6024, %v6025
        %vm6027 = vcmp.lt.s32.totalorder %v6008, 1
        %vm6028 = vcmp.lt.s32.totalorder %v6008, 2
        %vm6029 = vcmp.lt.s32.totalorder %v6008, 3
        %vm6030 = vcmp.lt.s32.totalorder %v6008, 4
        %v6031 = vsel %vm6027, %v6011, %v6014
        %v6032 = vsel %vm6030, %v6020, 2102212464
        %v6033 = vsel %vm6029, %v6017, %v6032
        %v6034 = vsel %vm6028, %v6031, %v6033
        %v6035 = vsel %vm6027, %v6014, %v6017
        %v6036 = vsel %vm6030, %v6023, 920167782
        %v6037 = vsel %vm6029, %v6020, %v6036
        %v6038 = vsel %vm6028, %v6035, %v6037
        %v6039 = vsel %vm6027, %v6017, %v6020
        %v6040 = vsel %vm6030, %v6026, 1326507024
        %v6041 = vsel %vm6029, %v6023, %v6040
        %v6042 = vsel %vm6028, %v6039, %v6041
        %v6043 = vshll.u32 %v6003, 8
        %v6044 = vmul.u32.u64.compose %v6043, %v6042
        %v6045 = vextract.low.u32 %v6044
        %v6046 = vextract.high.u32 %v6044
        %v6047 = vmul.u32.u64.compose %v6043, %v6038
        %v6048 = vextract.low.u32 %v6047
        %v6049 = vextract.high.u32 %v6047
        %v6050 = vmul.u32 %v6043, %v6034
        %v6051 = vadd.s32 %v6046, %v6048
        %vm6052 = vc.u32 %v6046, %v6048
        %v6053 = vadd.s32 %v6049, 1
        %v6054 = vsel %vm6052, %v6053, %v6049
        %v6055 = vadd.s32 %v6050, %v6054
        %v6056 = vadd.s32 %v6055, 536870912
        %v6057 = vshrl.u32 %v6056, 30
        %v6058 = vshll.u32 %v6057, 30
        %v6059 = vsub.s32 %v6055, %v6058
        %vm6060 = vcmp.lt.s32.totalorder %v6059, 0
        %v6061 = vsub.s32 0, %v6059
        %v6062 = vsel %vm6060, %v6061, %v6059
        %v6063 = vclz %v6062
        %v6064 = vsub.s32 %v6063, 2
        %vm6065 = vcmp.gt.s32.totalorder 0, %v6064
        %v6066 = vsel %vm6065, 0, %v6064
        %v6067 = vsub.s32 32, %v6066
        %v6068 = vshll.u32 %v6059, %v6066
        %v6069 = vshrl.u32 %v6051, %v6067
        %v6070 = vor.u32 %v6068, %v6069
        %v6071 = vsub.s32 4294967266, %v6066
        %v6072 = vadd.s32 %v6071, 127
        %v6073 = vshll.u32 %v6072, 23
        %v6074 = vor.u32 4788187, %v6073
        %v6075 = vand.u32 2147483647, %v6074
        %v6077 = vcvt.s32.f32 %v6070
        %v6078 = vmul.f32 %v6077, %v6075
        %v6079 = vxor.u32 %v6078, 2147483648
        %v6080 = vsel %vm5997, %v6079, %v6078
        %v6081 = vsub.s32 4, %v6057
        %v6082 = vsel %vm5997, %v6081, %v6057
        %v6083 = vsel %vm5996, %v3381, %v6080
        %v6084 = vsel %vm5996, 0, %v6082
        %v6085 = vcosq.f32.pop %v6083
        %v6086 = vsinq.f32.pop %v6083
        %vm6087 = vweird.f32 %v3381
        %v6088 = vand.u32 %v6084, 3
        %vm6089 = vcmp.lt.s32.totalorder %v6088, 2
        %vm6090 = vcmp.eq.s32.totalorder %v6088, 0
        %v6091 = vxor.u32 %v6086, 2147483648
        %v6092 = vsel %vm6090, %v6085, %v6091
        %vm6093 = vcmp.eq.s32.totalorder %v6088, 2
        %v6094 = vxor.u32 %v6085, 2147483648
        %v6095 = vsel %vm6093, %v6094, %v6086
        %v6096 = vsel %vm6089, %v6092, %v6095
        %v6097 = vsel %vm6087, nan, %v6096
        %v6098 = vand.u32 2147483647, %v3382
        %vm6099 = vcmp.le.f32.partialorder %v6098, 0.7853982
        %vm6100 = vcmp.lt.s32.totalorder %v3382, 0
        %v6101 = vand.u32 %v3382, 2139095040
        %v6102 = vshrl.u32 %v6101, 23
        %v6103 = vsub.s32 %v6102, 127
        %v6104 = vand.u32 2147483647, %v3382
        %v6105 = vand.u32 %v6104, 8388607
        %v6106 = vor.u32 %v6105, 8388608
        %v6107 = vsub.s32 0, %v6106
        %v6108 = vadd.s32 %v6103, 1
        %vm6109 = vcmp.gt.s32.totalorder %v6108, 0
        %v6110 = vsel %vm6109, %v6108, 0
        %v6111 = vshrl.u32 %v6110, 5
        %v6112 = vand.u32 %v6110, 31
        %v6113 = vsub.s32 32, %v6112
        %v6114 = vshrl.u32 683565275, %v6113
        %v6115 = vshll.u32 683565275, %v6112
        %v6116 = vshrl.u32 2475754826, %v6113
        %v6117 = vor.u32 %v6115, %v6116
        %v6118 = vshll.u32 2475754826, %v6112
        %v6119 = vshrl.u32 2131351028, %v6113
        %v6120 = vor.u32 %v6118, %v6119
        %v6121 = vshll.u32 2131351028, %v6112
        %v6122 = vshrl.u32 2102212464, %v6113
        %v6123 = vor.u32 %v6121, %v6122
        %v6124 = vshll.u32 2102212464, %v6112
        %v6125 = vshrl.u32 920167782, %v6113
        %v6126 = vor.u32 %v6124, %v6125
        %v6127 = vshll.u32 920167782, %v6112
        %v6128 = vshrl.u32 1326507024, %v6113
        %v6129 = vor.u32 %v6127, %v6128
        %vm6130 = vcmp.lt.s32.totalorder %v6111, 1
        %vm6131 = vcmp.lt.s32.totalorder %v6111, 2
        %vm6132 = vcmp.lt.s32.totalorder %v6111, 3
        %vm6133 = vcmp.lt.s32.totalorder %v6111, 4
        %v6134 = vsel %vm6130, %v6114, %v6117
        %v6135 = vsel %vm6133, %v6123, 2102212464
        %v6136 = vsel %vm6132, %v6120, %v6135
        %v6137 = vsel %vm6131, %v6134, %v6136
        %v6138 = vsel %vm6130, %v6117, %v6120
        %v6139 = vsel %vm6133, %v6126, 920167782
        %v6140 = vsel %vm6132, %v6123, %v6139
        %v6141 = vsel %vm6131, %v6138, %v6140
        %v6142 = vsel %vm6130, %v6120, %v6123
        %v6143 = vsel %vm6133, %v6129, 1326507024
        %v6144 = vsel %vm6132, %v6126, %v6143
        %v6145 = vsel %vm6131, %v6142, %v6144
        %v6146 = vshll.u32 %v6106, 8
        %v6147 = vmul.u32.u64.compose %v6146, %v6145
        %v6148 = vextract.low.u32 %v6147
        %v6149 = vextract.high.u32 %v6147
        %v6150 = vmul.u32.u64.compose %v6146, %v6141
        %v6151 = vextract.low.u32 %v6150
        %v6152 = vextract.high.u32 %v6150
        %v6153 = vmul.u32 %v6146, %v6137
        %v6154 = vadd.s32 %v6149, %v6151
        %vm6155 = vc.u32 %v6149, %v6151
        %v6156 = vadd.s32 %v6152, 1
        %v6157 = vsel %vm6155, %v6156, %v6152
        %v6158 = vadd.s32 %v6153, %v6157
        %v6159 = vadd.s32 %v6158, 536870912
        %v6160 = vshrl.u32 %v6159, 30
        %v6161 = vshll.u32 %v6160, 30
        %v6162 = vsub.s32 %v6158, %v6161
        %vm6163 = vcmp.lt.s32.totalorder %v6162, 0
        %v6164 = vsub.s32 0, %v6162
        %v6165 = vsel %vm6163, %v6164, %v6162
        %v6166 = vclz %v6165
        %v6167 = vsub.s32 %v6166, 2
        %vm6168 = vcmp.gt.s32.totalorder 0, %v6167
        %v6169 = vsel %vm6168, 0, %v6167
        %v6170 = vsub.s32 32, %v6169
        %v6171 = vshll.u32 %v6162, %v6169
        %v6172 = vshrl.u32 %v6154, %v6170
        %v6173 = vor.u32 %v6171, %v6172
        %v6174 = vsub.s32 4294967266, %v6169
        %v6175 = vadd.s32 %v6174, 127
        %v6176 = vshll.u32 %v6175, 23
        %v6177 = vor.u32 4788187, %v6176
        %v6178 = vand.u32 2147483647, %v6177
        %v6180 = vcvt.s32.f32 %v6173
        %v6181 = vmul.f32 %v6180, %v6178
        %v6182 = vxor.u32 %v6181, 2147483648
        %v6183 = vsel %vm6100, %v6182, %v6181
        %v6184 = vsub.s32 4, %v6160
        %v6185 = vsel %vm6100, %v6184, %v6160
        %v6186 = vsel %vm6099, %v3382, %v6183
        %v6187 = vsel %vm6099, 0, %v6185
        %v6188 = vcosq.f32.pop %v6186
        %v6189 = vsinq.f32.pop %v6186
        %vm6190 = vweird.f32 %v3382
        %v6191 = vand.u32 %v6187, 3
        %vm6192 = vcmp.lt.s32.totalorder %v6191, 2
        %vm6193 = vcmp.eq.s32.totalorder %v6191, 0
        %v6194 = vxor.u32 %v6189, 2147483648
        %v6195 = vsel %vm6193, %v6188, %v6194
        %vm6196 = vcmp.eq.s32.totalorder %v6191, 2
        %v6197 = vxor.u32 %v6188, 2147483648
        %v6198 = vsel %vm6196, %v6197, %v6189
        %v6199 = vsel %vm6192, %v6195, %v6198
        %v6200 = vsel %vm6190, nan, %v6199
        %v6201 = vand.u32 2147483647, %v3383
        %vm6202 = vcmp.le.f32.partialorder %v6201, 0.7853982
        %vm6203 = vcmp.lt.s32.totalorder %v3383, 0
        %v6204 = vand.u32 %v3383, 2139095040
        %v6205 = vshrl.u32 %v6204, 23
        %v6206 = vsub.s32 %v6205, 127
        %v6207 = vand.u32 2147483647, %v3383
        %v6208 = vand.u32 %v6207, 8388607
        %v6209 = vor.u32 %v6208, 8388608
        %v6210 = vsub.s32 0, %v6209
        %v6211 = vadd.s32 %v6206, 1
        %vm6212 = vcmp.gt.s32.totalorder %v6211, 0
        %v6213 = vsel %vm6212, %v6211, 0
        %v6214 = vshrl.u32 %v6213, 5
        %v6215 = vand.u32 %v6213, 31
        %v6216 = vsub.s32 32, %v6215
        %v6217 = vshrl.u32 683565275, %v6216
        %v6218 = vshll.u32 683565275, %v6215
        %v6219 = vshrl.u32 2475754826, %v6216
        %v6220 = vor.u32 %v6218, %v6219
        %v6221 = vshll.u32 2475754826, %v6215
        %v6222 = vshrl.u32 2131351028, %v6216
        %v6223 = vor.u32 %v6221, %v6222
        %v6224 = vshll.u32 2131351028, %v6215
        %v6225 = vshrl.u32 2102212464, %v6216
        %v6226 = vor.u32 %v6224, %v6225
        %v6227 = vshll.u32 2102212464, %v6215
        %v6228 = vshrl.u32 920167782, %v6216
        %v6229 = vor.u32 %v6227, %v6228
        %v6230 = vshll.u32 920167782, %v6215
        %v6231 = vshrl.u32 1326507024, %v6216
        %v6232 = vor.u32 %v6230, %v6231
        %vm6233 = vcmp.lt.s32.totalorder %v6214, 1
        %vm6234 = vcmp.lt.s32.totalorder %v6214, 2
        %vm6235 = vcmp.lt.s32.totalorder %v6214, 3
        %vm6236 = vcmp.lt.s32.totalorder %v6214, 4
        %v6237 = vsel %vm6233, %v6217, %v6220
        %v6238 = vsel %vm6236, %v6226, 2102212464
        %v6239 = vsel %vm6235, %v6223, %v6238
        %v6240 = vsel %vm6234, %v6237, %v6239
        %v6241 = vsel %vm6233, %v6220, %v6223
        %v6242 = vsel %vm6236, %v6229, 920167782
        %v6243 = vsel %vm6235, %v6226, %v6242
        %v6244 = vsel %vm6234, %v6241, %v6243
        %v6245 = vsel %vm6233, %v6223, %v6226
        %v6246 = vsel %vm6236, %v6232, 1326507024
        %v6247 = vsel %vm6235, %v6229, %v6246
        %v6248 = vsel %vm6234, %v6245, %v6247
        %v6249 = vshll.u32 %v6209, 8
        %v6250 = vmul.u32.u64.compose %v6249, %v6248
        %v6251 = vextract.low.u32 %v6250
        %v6252 = vextract.high.u32 %v6250
        %v6253 = vmul.u32.u64.compose %v6249, %v6244
        %v6254 = vextract.low.u32 %v6253
        %v6255 = vextract.high.u32 %v6253
        %v6256 = vmul.u32 %v6249, %v6240
        %v6257 = vadd.s32 %v6252, %v6254
        %vm6258 = vc.u32 %v6252, %v6254
        %v6259 = vadd.s32 %v6255, 1
        %v6260 = vsel %vm6258, %v6259, %v6255
        %v6261 = vadd.s32 %v6256, %v6260
        %v6262 = vadd.s32 %v6261, 536870912
        %v6263 = vshrl.u32 %v6262, 30
        %v6264 = vshll.u32 %v6263, 30
        %v6265 = vsub.s32 %v6261, %v6264
        %vm6266 = vcmp.lt.s32.totalorder %v6265, 0
        %v6267 = vsub.s32 0, %v6265
        %v6268 = vsel %vm6266, %v6267, %v6265
        %v6269 = vclz %v6268
        %v6270 = vsub.s32 %v6269, 2
        %vm6271 = vcmp.gt.s32.totalorder 0, %v6270
        %v6272 = vsel %vm6271, 0, %v6270
        %v6273 = vsub.s32 32, %v6272
        %v6274 = vshll.u32 %v6265, %v6272
        %v6275 = vshrl.u32 %v6257, %v6273
        %v6276 = vor.u32 %v6274, %v6275
        %v6277 = vsub.s32 4294967266, %v6272
        %v6278 = vadd.s32 %v6277, 127
        %v6279 = vshll.u32 %v6278, 23
        %v6280 = vor.u32 4788187, %v6279
        %v6281 = vand.u32 2147483647, %v6280
        %v6283 = vcvt.s32.f32 %v6276
        %v6284 = vmul.f32 %v6283, %v6281
        %v6285 = vxor.u32 %v6284, 2147483648
        %v6286 = vsel %vm6203, %v6285, %v6284
        %v6287 = vsub.s32 4, %v6263
        %v6288 = vsel %vm6203, %v6287, %v6263
        %v6289 = vsel %vm6202, %v3383, %v6286
        %v6290 = vsel %vm6202, 0, %v6288
        %v6291 = vcosq.f32.pop %v6289
        %v6292 = vsinq.f32.pop %v6289
        %vm6293 = vweird.f32 %v3383
        %v6294 = vand.u32 %v6290, 3
        %vm6295 = vcmp.lt.s32.totalorder %v6294, 2
        %vm6296 = vcmp.eq.s32.totalorder %v6294, 0
        %v6297 = vxor.u32 %v6292, 2147483648
        %v6298 = vsel %vm6296, %v6291, %v6297
        %vm6299 = vcmp.eq.s32.totalorder %v6294, 2
        %v6300 = vxor.u32 %v6291, 2147483648
        %v6301 = vsel %vm6299, %v6300, %v6292
        %v6302 = vsel %vm6295, %v6298, %v6301
        %v6303 = vsel %vm6293, nan, %v6302
        %v6304 = vand.u32 2147483647, %v3384
        %vm6305 = vcmp.le.f32.partialorder %v6304, 0.7853982
        %vm6306 = vcmp.lt.s32.totalorder %v3384, 0
        %v6307 = vand.u32 %v3384, 2139095040
        %v6308 = vshrl.u32 %v6307, 23
        %v6309 = vsub.s32 %v6308, 127
        %v6310 = vand.u32 2147483647, %v3384
        %v6311 = vand.u32 %v6310, 8388607
        %v6312 = vor.u32 %v6311, 8388608
        %v6313 = vsub.s32 0, %v6312
        %v6314 = vadd.s32 %v6309, 1
        %vm6315 = vcmp.gt.s32.totalorder %v6314, 0
        %v6316 = vsel %vm6315, %v6314, 0
        %v6317 = vshrl.u32 %v6316, 5
        %v6318 = vand.u32 %v6316, 31
        %v6319 = vsub.s32 32, %v6318
        %v6320 = vshrl.u32 683565275, %v6319
        %v6321 = vshll.u32 683565275, %v6318
        %v6322 = vshrl.u32 2475754826, %v6319
        %v6323 = vor.u32 %v6321, %v6322
        %v6324 = vshll.u32 2475754826, %v6318
        %v6325 = vshrl.u32 2131351028, %v6319
        %v6326 = vor.u32 %v6324, %v6325
        %v6327 = vshll.u32 2131351028, %v6318
        %v6328 = vshrl.u32 2102212464, %v6319
        %v6329 = vor.u32 %v6327, %v6328
        %v6330 = vshll.u32 2102212464, %v6318
        %v6331 = vshrl.u32 920167782, %v6319
        %v6332 = vor.u32 %v6330, %v6331
        %v6333 = vshll.u32 920167782, %v6318
        %v6334 = vshrl.u32 1326507024, %v6319
        %v6335 = vor.u32 %v6333, %v6334
        %vm6336 = vcmp.lt.s32.totalorder %v6317, 1
        %vm6337 = vcmp.lt.s32.totalorder %v6317, 2
        %vm6338 = vcmp.lt.s32.totalorder %v6317, 3
        %vm6339 = vcmp.lt.s32.totalorder %v6317, 4
        %v6340 = vsel %vm6336, %v6320, %v6323
        %v6341 = vsel %vm6339, %v6329, 2102212464
        %v6342 = vsel %vm6338, %v6326, %v6341
        %v6343 = vsel %vm6337, %v6340, %v6342
        %v6344 = vsel %vm6336, %v6323, %v6326
        %v6345 = vsel %vm6339, %v6332, 920167782
        %v6346 = vsel %vm6338, %v6329, %v6345
        %v6347 = vsel %vm6337, %v6344, %v6346
        %v6348 = vsel %vm6336, %v6326, %v6329
        %v6349 = vsel %vm6339, %v6335, 1326507024
        %v6350 = vsel %vm6338, %v6332, %v6349
        %v6351 = vsel %vm6337, %v6348, %v6350
        %v6352 = vshll.u32 %v6312, 8
        %v6353 = vmul.u32.u64.compose %v6352, %v6351
        %v6354 = vextract.low.u32 %v6353
        %v6355 = vextract.high.u32 %v6353
        %v6356 = vmul.u32.u64.compose %v6352, %v6347
        %v6357 = vextract.low.u32 %v6356
        %v6358 = vextract.high.u32 %v6356
        %v6359 = vmul.u32 %v6352, %v6343
        %v6360 = vadd.s32 %v6355, %v6357
        %vm6361 = vc.u32 %v6355, %v6357
        %v6362 = vadd.s32 %v6358, 1
        %v6363 = vsel %vm6361, %v6362, %v6358
        %v6364 = vadd.s32 %v6359, %v6363
        %v6365 = vadd.s32 %v6364, 536870912
        %v6366 = vshrl.u32 %v6365, 30
        %v6367 = vshll.u32 %v6366, 30
        %v6368 = vsub.s32 %v6364, %v6367
        %vm6369 = vcmp.lt.s32.totalorder %v6368, 0
        %v6370 = vsub.s32 0, %v6368
        %v6371 = vsel %vm6369, %v6370, %v6368
        %v6372 = vclz %v6371
        %v6373 = vsub.s32 %v6372, 2
        %vm6374 = vcmp.gt.s32.totalorder 0, %v6373
        %v6375 = vsel %vm6374, 0, %v6373
        %v6376 = vsub.s32 32, %v6375
        %v6377 = vshll.u32 %v6368, %v6375
        %v6378 = vshrl.u32 %v6360, %v6376
        %v6379 = vor.u32 %v6377, %v6378
        %v6380 = vsub.s32 4294967266, %v6375
        %v6381 = vadd.s32 %v6380, 127
        %v6382 = vshll.u32 %v6381, 23
        %v6383 = vor.u32 4788187, %v6382
        %v6384 = vand.u32 2147483647, %v6383
        %v6386 = vcvt.s32.f32 %v6379
        %v6387 = vmul.f32 %v6386, %v6384
        %v6388 = vxor.u32 %v6387, 2147483648
        %v6389 = vsel %vm6306, %v6388, %v6387
        %v6390 = vsub.s32 4, %v6366
        %v6391 = vsel %vm6306, %v6390, %v6366
        %v6392 = vsel %vm6305, %v3384, %v6389
        %v6393 = vsel %vm6305, 0, %v6391
        %v6394 = vcosq.f32.pop %v6392
        %v6395 = vsinq.f32.pop %v6392
        %vm6396 = vweird.f32 %v3384
        %v6397 = vand.u32 %v6393, 3
        %vm6398 = vcmp.lt.s32.totalorder %v6397, 2
        %vm6399 = vcmp.eq.s32.totalorder %v6397, 0
        %v6400 = vxor.u32 %v6395, 2147483648
        %v6401 = vsel %vm6399, %v6394, %v6400
        %vm6402 = vcmp.eq.s32.totalorder %v6397, 2
        %v6403 = vxor.u32 %v6394, 2147483648
        %v6404 = vsel %vm6402, %v6403, %v6395
        %v6405 = vsel %vm6398, %v6401, %v6404
        %v6406 = vsel %vm6396, nan, %v6405
        %v6407 = vand.u32 2147483647, %v3385
        %vm6408 = vcmp.le.f32.partialorder %v6407, 0.7853982
        %vm6409 = vcmp.lt.s32.totalorder %v3385, 0
        %v6410 = vand.u32 %v3385, 2139095040
        %v6411 = vshrl.u32 %v6410, 23
        %v6412 = vsub.s32 %v6411, 127
        %v6413 = vand.u32 2147483647, %v3385
        %v6414 = vand.u32 %v6413, 8388607
        %v6415 = vor.u32 %v6414, 8388608
        %v6416 = vsub.s32 0, %v6415
        %v6417 = vadd.s32 %v6412, 1
        %vm6418 = vcmp.gt.s32.totalorder %v6417, 0
        %v6419 = vsel %vm6418, %v6417, 0
        %v6420 = vshrl.u32 %v6419, 5
        %v6421 = vand.u32 %v6419, 31
        %v6422 = vsub.s32 32, %v6421
        %v6423 = vshrl.u32 683565275, %v6422
        %v6424 = vshll.u32 683565275, %v6421
        %v6425 = vshrl.u32 2475754826, %v6422
        %v6426 = vor.u32 %v6424, %v6425
        %v6427 = vshll.u32 2475754826, %v6421
        %v6428 = vshrl.u32 2131351028, %v6422
        %v6429 = vor.u32 %v6427, %v6428
        %v6430 = vshll.u32 2131351028, %v6421
        %v6431 = vshrl.u32 2102212464, %v6422
        %v6432 = vor.u32 %v6430, %v6431
        %v6433 = vshll.u32 2102212464, %v6421
        %v6434 = vshrl.u32 920167782, %v6422
        %v6435 = vor.u32 %v6433, %v6434
        %v6436 = vshll.u32 920167782, %v6421
        %v6437 = vshrl.u32 1326507024, %v6422
        %v6438 = vor.u32 %v6436, %v6437
        %vm6439 = vcmp.lt.s32.totalorder %v6420, 1
        %vm6440 = vcmp.lt.s32.totalorder %v6420, 2
        %vm6441 = vcmp.lt.s32.totalorder %v6420, 3
        %vm6442 = vcmp.lt.s32.totalorder %v6420, 4
        %v6443 = vsel %vm6439, %v6423, %v6426
        %v6444 = vsel %vm6442, %v6432, 2102212464
        %v6445 = vsel %vm6441, %v6429, %v6444
        %v6446 = vsel %vm6440, %v6443, %v6445
        %v6447 = vsel %vm6439, %v6426, %v6429
        %v6448 = vsel %vm6442, %v6435, 920167782
        %v6449 = vsel %vm6441, %v6432, %v6448
        %v6450 = vsel %vm6440, %v6447, %v6449
        %v6451 = vsel %vm6439, %v6429, %v6432
        %v6452 = vsel %vm6442, %v6438, 1326507024
        %v6453 = vsel %vm6441, %v6435, %v6452
        %v6454 = vsel %vm6440, %v6451, %v6453
        %v6455 = vshll.u32 %v6415, 8
        %v6456 = vmul.u32.u64.compose %v6455, %v6454
        %v6457 = vextract.low.u32 %v6456
        %v6458 = vextract.high.u32 %v6456
        %v6459 = vmul.u32.u64.compose %v6455, %v6450
        %v6460 = vextract.low.u32 %v6459
        %v6461 = vextract.high.u32 %v6459
        %v6462 = vmul.u32 %v6455, %v6446
        %v6463 = vadd.s32 %v6458, %v6460
        %vm6464 = vc.u32 %v6458, %v6460
        %v6465 = vadd.s32 %v6461, 1
        %v6466 = vsel %vm6464, %v6465, %v6461
        %v6467 = vadd.s32 %v6462, %v6466
        %v6468 = vadd.s32 %v6467, 536870912
        %v6469 = vshrl.u32 %v6468, 30
        %v6470 = vshll.u32 %v6469, 30
        %v6471 = vsub.s32 %v6467, %v6470
        %vm6472 = vcmp.lt.s32.totalorder %v6471, 0
        %v6473 = vsub.s32 0, %v6471
        %v6474 = vsel %vm6472, %v6473, %v6471
        %v6475 = vclz %v6474
        %v6476 = vsub.s32 %v6475, 2
        %vm6477 = vcmp.gt.s32.totalorder 0, %v6476
        %v6478 = vsel %vm6477, 0, %v6476
        %v6479 = vsub.s32 32, %v6478
        %v6480 = vshll.u32 %v6471, %v6478
        %v6481 = vshrl.u32 %v6463, %v6479
        %v6482 = vor.u32 %v6480, %v6481
        %v6483 = vsub.s32 4294967266, %v6478
        %v6484 = vadd.s32 %v6483, 127
        %v6485 = vshll.u32 %v6484, 23
        %v6486 = vor.u32 4788187, %v6485
        %v6487 = vand.u32 2147483647, %v6486
        %v6489 = vcvt.s32.f32 %v6482
        %v6490 = vmul.f32 %v6489, %v6487
        %v6491 = vxor.u32 %v6490, 2147483648
        %v6492 = vsel %vm6409, %v6491, %v6490
        %v6493 = vsub.s32 4, %v6469
        %v6494 = vsel %vm6409, %v6493, %v6469
        %v6495 = vsel %vm6408, %v3385, %v6492
        %v6496 = vsel %vm6408, 0, %v6494
        %v6497 = vcosq.f32.pop %v6495
        %v6498 = vsinq.f32.pop %v6495
        %vm6499 = vweird.f32 %v3385
        %v6500 = vand.u32 %v6496, 3
        %vm6501 = vcmp.lt.s32.totalorder %v6500, 2
        %vm6502 = vcmp.eq.s32.totalorder %v6500, 0
        %v6503 = vxor.u32 %v6498, 2147483648
        %v6504 = vsel %vm6502, %v6497, %v6503
        %vm6505 = vcmp.eq.s32.totalorder %v6500, 2
        %v6506 = vxor.u32 %v6497, 2147483648
        %v6507 = vsel %vm6505, %v6506, %v6498
        %v6508 = vsel %vm6501, %v6504, %v6507
        %v6509 = vsel %vm6499, nan, %v6508
        %v6510 = vand.u32 2147483647, %v3386
        %vm6511 = vcmp.le.f32.partialorder %v6510, 0.7853982
        %vm6512 = vcmp.lt.s32.totalorder %v3386, 0
        %v6513 = vand.u32 %v3386, 2139095040
        %v6514 = vshrl.u32 %v6513, 23
        %v6515 = vsub.s32 %v6514, 127
        %v6516 = vand.u32 2147483647, %v3386
        %v6517 = vand.u32 %v6516, 8388607
        %v6518 = vor.u32 %v6517, 8388608
        %v6519 = vsub.s32 0, %v6518
        %v6520 = vadd.s32 %v6515, 1
        %vm6521 = vcmp.gt.s32.totalorder %v6520, 0
        %v6522 = vsel %vm6521, %v6520, 0
        %v6523 = vshrl.u32 %v6522, 5
        %v6524 = vand.u32 %v6522, 31
        %v6525 = vsub.s32 32, %v6524
        %v6526 = vshrl.u32 683565275, %v6525
        %v6527 = vshll.u32 683565275, %v6524
        %v6528 = vshrl.u32 2475754826, %v6525
        %v6529 = vor.u32 %v6527, %v6528
        %v6530 = vshll.u32 2475754826, %v6524
        %v6531 = vshrl.u32 2131351028, %v6525
        %v6532 = vor.u32 %v6530, %v6531
        %v6533 = vshll.u32 2131351028, %v6524
        %v6534 = vshrl.u32 2102212464, %v6525
        %v6535 = vor.u32 %v6533, %v6534
        %v6536 = vshll.u32 2102212464, %v6524
        %v6537 = vshrl.u32 920167782, %v6525
        %v6538 = vor.u32 %v6536, %v6537
        %v6539 = vshll.u32 920167782, %v6524
        %v6540 = vshrl.u32 1326507024, %v6525
        %v6541 = vor.u32 %v6539, %v6540
        %vm6542 = vcmp.lt.s32.totalorder %v6523, 1
        %vm6543 = vcmp.lt.s32.totalorder %v6523, 2
        %vm6544 = vcmp.lt.s32.totalorder %v6523, 3
        %vm6545 = vcmp.lt.s32.totalorder %v6523, 4
        %v6546 = vsel %vm6542, %v6526, %v6529
        %v6547 = vsel %vm6545, %v6535, 2102212464
        %v6548 = vsel %vm6544, %v6532, %v6547
        %v6549 = vsel %vm6543, %v6546, %v6548
        %v6550 = vsel %vm6542, %v6529, %v6532
        %v6551 = vsel %vm6545, %v6538, 920167782
        %v6552 = vsel %vm6544, %v6535, %v6551
        %v6553 = vsel %vm6543, %v6550, %v6552
        %v6554 = vsel %vm6542, %v6532, %v6535
        %v6555 = vsel %vm6545, %v6541, 1326507024
        %v6556 = vsel %vm6544, %v6538, %v6555
        %v6557 = vsel %vm6543, %v6554, %v6556
        %v6558 = vshll.u32 %v6518, 8
        %v6559 = vmul.u32.u64.compose %v6558, %v6557
        %v6560 = vextract.low.u32 %v6559
        %v6561 = vextract.high.u32 %v6559
        %v6562 = vmul.u32.u64.compose %v6558, %v6553
        %v6563 = vextract.low.u32 %v6562
        %v6564 = vextract.high.u32 %v6562
        %v6565 = vmul.u32 %v6558, %v6549
        %v6566 = vadd.s32 %v6561, %v6563
        %vm6567 = vc.u32 %v6561, %v6563
        %v6568 = vadd.s32 %v6564, 1
        %v6569 = vsel %vm6567, %v6568, %v6564
        %v6570 = vadd.s32 %v6565, %v6569
        %v6571 = vadd.s32 %v6570, 536870912
        %v6572 = vshrl.u32 %v6571, 30
        %v6573 = vshll.u32 %v6572, 30
        %v6574 = vsub.s32 %v6570, %v6573
        %vm6575 = vcmp.lt.s32.totalorder %v6574, 0
        %v6576 = vsub.s32 0, %v6574
        %v6577 = vsel %vm6575, %v6576, %v6574
        %v6578 = vclz %v6577
        %v6579 = vsub.s32 %v6578, 2
        %vm6580 = vcmp.gt.s32.totalorder 0, %v6579
        %v6581 = vsel %vm6580, 0, %v6579
        %v6582 = vsub.s32 32, %v6581
        %v6583 = vshll.u32 %v6574, %v6581
        %v6584 = vshrl.u32 %v6566, %v6582
        %v6585 = vor.u32 %v6583, %v6584
        %v6586 = vsub.s32 4294967266, %v6581
        %v6587 = vadd.s32 %v6586, 127
        %v6588 = vshll.u32 %v6587, 23
        %v6589 = vor.u32 4788187, %v6588
        %v6590 = vand.u32 2147483647, %v6589
        %v6592 = vcvt.s32.f32 %v6585
        %v6593 = vmul.f32 %v6592, %v6590
        %v6594 = vxor.u32 %v6593, 2147483648
        %v6595 = vsel %vm6512, %v6594, %v6593
        %v6596 = vsub.s32 4, %v6572
        %v6597 = vsel %vm6512, %v6596, %v6572
        %v6598 = vsel %vm6511, %v3386, %v6595
        %v6599 = vsel %vm6511, 0, %v6597
        %v6600 = vcosq.f32.pop %v6598
        %v6601 = vsinq.f32.pop %v6598
        %vm6602 = vweird.f32 %v3386
        %v6603 = vand.u32 %v6599, 3
        %vm6604 = vcmp.lt.s32.totalorder %v6603, 2
        %vm6605 = vcmp.eq.s32.totalorder %v6603, 0
        %v6606 = vxor.u32 %v6601, 2147483648
        %v6607 = vsel %vm6605, %v6600, %v6606
        %vm6608 = vcmp.eq.s32.totalorder %v6603, 2
        %v6609 = vxor.u32 %v6600, 2147483648
        %v6610 = vsel %vm6608, %v6609, %v6601
        %v6611 = vsel %vm6604, %v6607, %v6610
        %v6612 = vsel %vm6602, nan, %v6611
        %v6613 = vand.u32 2147483647, %v3387
        %vm6614 = vcmp.le.f32.partialorder %v6613, 0.7853982
        %vm6615 = vcmp.lt.s32.totalorder %v3387, 0
        %v6616 = vand.u32 %v3387, 2139095040
        %v6617 = vshrl.u32 %v6616, 23
        %v6618 = vsub.s32 %v6617, 127
        %v6619 = vand.u32 2147483647, %v3387
        %v6620 = vand.u32 %v6619, 8388607
        %v6621 = vor.u32 %v6620, 8388608
        %v6622 = vsub.s32 0, %v6621
        %v6623 = vadd.s32 %v6618, 1
        %vm6624 = vcmp.gt.s32.totalorder %v6623, 0
        %v6625 = vsel %vm6624, %v6623, 0
        %v6626 = vshrl.u32 %v6625, 5
        %v6627 = vand.u32 %v6625, 31
        %v6628 = vsub.s32 32, %v6627
        %v6629 = vshrl.u32 683565275, %v6628
        %v6630 = vshll.u32 683565275, %v6627
        %v6631 = vshrl.u32 2475754826, %v6628
        %v6632 = vor.u32 %v6630, %v6631
        %v6633 = vshll.u32 2475754826, %v6627
        %v6634 = vshrl.u32 2131351028, %v6628
        %v6635 = vor.u32 %v6633, %v6634
        %v6636 = vshll.u32 2131351028, %v6627
        %v6637 = vshrl.u32 2102212464, %v6628
        %v6638 = vor.u32 %v6636, %v6637
        %v6639 = vshll.u32 2102212464, %v6627
        %v6640 = vshrl.u32 920167782, %v6628
        %v6641 = vor.u32 %v6639, %v6640
        %v6642 = vshll.u32 920167782, %v6627
        %v6643 = vshrl.u32 1326507024, %v6628
        %v6644 = vor.u32 %v6642, %v6643
        %vm6645 = vcmp.lt.s32.totalorder %v6626, 1
        %vm6646 = vcmp.lt.s32.totalorder %v6626, 2
        %vm6647 = vcmp.lt.s32.totalorder %v6626, 3
        %vm6648 = vcmp.lt.s32.totalorder %v6626, 4
        %v6649 = vsel %vm6645, %v6629, %v6632
        %v6650 = vsel %vm6648, %v6638, 2102212464
        %v6651 = vsel %vm6647, %v6635, %v6650
        %v6652 = vsel %vm6646, %v6649, %v6651
        %v6653 = vsel %vm6645, %v6632, %v6635
        %v6654 = vsel %vm6648, %v6641, 920167782
        %v6655 = vsel %vm6647, %v6638, %v6654
        %v6656 = vsel %vm6646, %v6653, %v6655
        %v6657 = vsel %vm6645, %v6635, %v6638
        %v6658 = vsel %vm6648, %v6644, 1326507024
        %v6659 = vsel %vm6647, %v6641, %v6658
        %v6660 = vsel %vm6646, %v6657, %v6659
        %v6661 = vshll.u32 %v6621, 8
        %v6662 = vmul.u32.u64.compose %v6661, %v6660
        %v6663 = vextract.low.u32 %v6662
        %v6664 = vextract.high.u32 %v6662
        %v6665 = vmul.u32.u64.compose %v6661, %v6656
        %v6666 = vextract.low.u32 %v6665
        %v6667 = vextract.high.u32 %v6665
        %v6668 = vmul.u32 %v6661, %v6652
        %v6669 = vadd.s32 %v6664, %v6666
        %vm6670 = vc.u32 %v6664, %v6666
        %v6671 = vadd.s32 %v6667, 1
        %v6672 = vsel %vm6670, %v6671, %v6667
        %v6673 = vadd.s32 %v6668, %v6672
        %v6674 = vadd.s32 %v6673, 536870912
        %v6675 = vshrl.u32 %v6674, 30
        %v6676 = vshll.u32 %v6675, 30
        %v6677 = vsub.s32 %v6673, %v6676
        %vm6678 = vcmp.lt.s32.totalorder %v6677, 0
        %v6679 = vsub.s32 0, %v6677
        %v6680 = vsel %vm6678, %v6679, %v6677
        %v6681 = vclz %v6680
        %v6682 = vsub.s32 %v6681, 2
        %vm6683 = vcmp.gt.s32.totalorder 0, %v6682
        %v6684 = vsel %vm6683, 0, %v6682
        %v6685 = vsub.s32 32, %v6684
        %v6686 = vshll.u32 %v6677, %v6684
        %v6687 = vshrl.u32 %v6669, %v6685
        %v6688 = vor.u32 %v6686, %v6687
        %v6689 = vsub.s32 4294967266, %v6684
        %v6690 = vadd.s32 %v6689, 127
        %v6691 = vshll.u32 %v6690, 23
        %v6692 = vor.u32 4788187, %v6691
        %v6693 = vand.u32 2147483647, %v6692
        %v6695 = vcvt.s32.f32 %v6688
        %v6696 = vmul.f32 %v6695, %v6693
        %v6697 = vxor.u32 %v6696, 2147483648
        %v6698 = vsel %vm6615, %v6697, %v6696
        %v6699 = vsub.s32 4, %v6675
        %v6700 = vsel %vm6615, %v6699, %v6675
        %v6701 = vsel %vm6614, %v3387, %v6698
        %v6702 = vsel %vm6614, 0, %v6700
        %v6703 = vcosq.f32.pop %v6701
        %v6704 = vsinq.f32.pop %v6701
        %vm6705 = vweird.f32 %v3387
        %v6706 = vand.u32 %v6702, 3
        %vm6707 = vcmp.lt.s32.totalorder %v6706, 2
        %vm6708 = vcmp.eq.s32.totalorder %v6706, 0
        %v6709 = vxor.u32 %v6704, 2147483648
        %v6710 = vsel %vm6708, %v6703, %v6709
        %vm6711 = vcmp.eq.s32.totalorder %v6706, 2
        %v6712 = vxor.u32 %v6703, 2147483648
        %v6713 = vsel %vm6711, %v6712, %v6704
        %v6714 = vsel %vm6707, %v6710, %v6713
        %v6715 = vsel %vm6705, nan, %v6714
        %v6716 = vand.u32 2147483647, %v3388
        %vm6717 = vcmp.le.f32.partialorder %v6716, 0.7853982
        %vm6718 = vcmp.lt.s32.totalorder %v3388, 0
        %v6719 = vand.u32 %v3388, 2139095040
        %v6720 = vshrl.u32 %v6719, 23
        %v6721 = vsub.s32 %v6720, 127
        %v6722 = vand.u32 2147483647, %v3388
        %v6723 = vand.u32 %v6722, 8388607
        %v6724 = vor.u32 %v6723, 8388608
        %v6725 = vsub.s32 0, %v6724
        %v6726 = vadd.s32 %v6721, 1
        %vm6727 = vcmp.gt.s32.totalorder %v6726, 0
        %v6728 = vsel %vm6727, %v6726, 0
        %v6729 = vshrl.u32 %v6728, 5
        %v6730 = vand.u32 %v6728, 31
        %v6731 = vsub.s32 32, %v6730
        %v6732 = vshrl.u32 683565275, %v6731
        %v6733 = vshll.u32 683565275, %v6730
        %v6734 = vshrl.u32 2475754826, %v6731
        %v6735 = vor.u32 %v6733, %v6734
        %v6736 = vshll.u32 2475754826, %v6730
        %v6737 = vshrl.u32 2131351028, %v6731
        %v6738 = vor.u32 %v6736, %v6737
        %v6739 = vshll.u32 2131351028, %v6730
        %v6740 = vshrl.u32 2102212464, %v6731
        %v6741 = vor.u32 %v6739, %v6740
        %v6742 = vshll.u32 2102212464, %v6730
        %v6743 = vshrl.u32 920167782, %v6731
        %v6744 = vor.u32 %v6742, %v6743
        %v6745 = vshll.u32 920167782, %v6730
        %v6746 = vshrl.u32 1326507024, %v6731
        %v6747 = vor.u32 %v6745, %v6746
        %vm6748 = vcmp.lt.s32.totalorder %v6729, 1
        %vm6749 = vcmp.lt.s32.totalorder %v6729, 2
        %vm6750 = vcmp.lt.s32.totalorder %v6729, 3
        %vm6751 = vcmp.lt.s32.totalorder %v6729, 4
        %v6752 = vsel %vm6748, %v6732, %v6735
        %v6753 = vsel %vm6751, %v6741, 2102212464
        %v6754 = vsel %vm6750, %v6738, %v6753
        %v6755 = vsel %vm6749, %v6752, %v6754
        %v6756 = vsel %vm6748, %v6735, %v6738
        %v6757 = vsel %vm6751, %v6744, 920167782
        %v6758 = vsel %vm6750, %v6741, %v6757
        %v6759 = vsel %vm6749, %v6756, %v6758
        %v6760 = vsel %vm6748, %v6738, %v6741
        %v6761 = vsel %vm6751, %v6747, 1326507024
        %v6762 = vsel %vm6750, %v6744, %v6761
        %v6763 = vsel %vm6749, %v6760, %v6762
        %v6764 = vshll.u32 %v6724, 8
        %v6765 = vmul.u32.u64.compose %v6764, %v6763
        %v6766 = vextract.low.u32 %v6765
        %v6767 = vextract.high.u32 %v6765
        %v6768 = vmul.u32.u64.compose %v6764, %v6759
        %v6769 = vextract.low.u32 %v6768
        %v6770 = vextract.high.u32 %v6768
        %v6771 = vmul.u32 %v6764, %v6755
        %v6772 = vadd.s32 %v6767, %v6769
        %vm6773 = vc.u32 %v6767, %v6769
        %v6774 = vadd.s32 %v6770, 1
        %v6775 = vsel %vm6773, %v6774, %v6770
        %v6776 = vadd.s32 %v6771, %v6775
        %v6777 = vadd.s32 %v6776, 536870912
        %v6778 = vshrl.u32 %v6777, 30
        %v6779 = vshll.u32 %v6778, 30
        %v6780 = vsub.s32 %v6776, %v6779
        %vm6781 = vcmp.lt.s32.totalorder %v6780, 0
        %v6782 = vsub.s32 0, %v6780
        %v6783 = vsel %vm6781, %v6782, %v6780
        %v6784 = vclz %v6783
        %v6785 = vsub.s32 %v6784, 2
        %vm6786 = vcmp.gt.s32.totalorder 0, %v6785
        %v6787 = vsel %vm6786, 0, %v6785
        %v6788 = vsub.s32 32, %v6787
        %v6789 = vshll.u32 %v6780, %v6787
        %v6790 = vshrl.u32 %v6772, %v6788
        %v6791 = vor.u32 %v6789, %v6790
        %v6792 = vsub.s32 4294967266, %v6787
        %v6793 = vadd.s32 %v6792, 127
        %v6794 = vshll.u32 %v6793, 23
        %v6795 = vor.u32 4788187, %v6794
        %v6796 = vand.u32 2147483647, %v6795
        %v6798 = vcvt.s32.f32 %v6791
        %v6799 = vmul.f32 %v6798, %v6796
        %v6800 = vxor.u32 %v6799, 2147483648
        %v6801 = vsel %vm6718, %v6800, %v6799
        %v6802 = vsub.s32 4, %v6778
        %v6803 = vsel %vm6718, %v6802, %v6778
        %v6804 = vsel %vm6717, %v3388, %v6801
        %v6805 = vsel %vm6717, 0, %v6803
        %v6806 = vcosq.f32.pop %v6804
        %v6807 = vsinq.f32.pop %v6804
        %vm6808 = vweird.f32 %v3388
        %v6809 = vand.u32 %v6805, 3
        %vm6810 = vcmp.lt.s32.totalorder %v6809, 2
        %vm6811 = vcmp.eq.s32.totalorder %v6809, 0
        %v6812 = vxor.u32 %v6807, 2147483648
        %v6813 = vsel %vm6811, %v6806, %v6812
        %vm6814 = vcmp.eq.s32.totalorder %v6809, 2
        %v6815 = vxor.u32 %v6806, 2147483648
        %v6816 = vsel %vm6814, %v6815, %v6807
        %v6817 = vsel %vm6810, %v6813, %v6816
        %v6818 = vsel %vm6808, nan, %v6817
        %v6819 = vand.u32 2147483647, %v3389
        %vm6820 = vcmp.le.f32.partialorder %v6819, 0.7853982
        %vm6821 = vcmp.lt.s32.totalorder %v3389, 0
        %v6822 = vand.u32 %v3389, 2139095040
        %v6823 = vshrl.u32 %v6822, 23
        %v6824 = vsub.s32 %v6823, 127
        %v6825 = vand.u32 2147483647, %v3389
        %v6826 = vand.u32 %v6825, 8388607
        %v6827 = vor.u32 %v6826, 8388608
        %v6828 = vsub.s32 0, %v6827
        %v6829 = vadd.s32 %v6824, 1
        %vm6830 = vcmp.gt.s32.totalorder %v6829, 0
        %v6831 = vsel %vm6830, %v6829, 0
        %v6832 = vshrl.u32 %v6831, 5
        %v6833 = vand.u32 %v6831, 31
        %v6834 = vsub.s32 32, %v6833
        %v6835 = vshrl.u32 683565275, %v6834
        %v6836 = vshll.u32 683565275, %v6833
        %v6837 = vshrl.u32 2475754826, %v6834
        %v6838 = vor.u32 %v6836, %v6837
        %v6839 = vshll.u32 2475754826, %v6833
        %v6840 = vshrl.u32 2131351028, %v6834
        %v6841 = vor.u32 %v6839, %v6840
        %v6842 = vshll.u32 2131351028, %v6833
        %v6843 = vshrl.u32 2102212464, %v6834
        %v6844 = vor.u32 %v6842, %v6843
        %v6845 = vshll.u32 2102212464, %v6833
        %v6846 = vshrl.u32 920167782, %v6834
        %v6847 = vor.u32 %v6845, %v6846
        %v6848 = vshll.u32 920167782, %v6833
        %v6849 = vshrl.u32 1326507024, %v6834
        %v6850 = vor.u32 %v6848, %v6849
        %vm6851 = vcmp.lt.s32.totalorder %v6832, 1
        %vm6852 = vcmp.lt.s32.totalorder %v6832, 2
        %vm6853 = vcmp.lt.s32.totalorder %v6832, 3
        %vm6854 = vcmp.lt.s32.totalorder %v6832, 4
        %v6855 = vsel %vm6851, %v6835, %v6838
        %v6856 = vsel %vm6854, %v6844, 2102212464
        %v6857 = vsel %vm6853, %v6841, %v6856
        %v6858 = vsel %vm6852, %v6855, %v6857
        %v6859 = vsel %vm6851, %v6838, %v6841
        %v6860 = vsel %vm6854, %v6847, 920167782
        %v6861 = vsel %vm6853, %v6844, %v6860
        %v6862 = vsel %vm6852, %v6859, %v6861
        %v6863 = vsel %vm6851, %v6841, %v6844
        %v6864 = vsel %vm6854, %v6850, 1326507024
        %v6865 = vsel %vm6853, %v6847, %v6864
        %v6866 = vsel %vm6852, %v6863, %v6865
        %v6867 = vshll.u32 %v6827, 8
        %v6868 = vmul.u32.u64.compose %v6867, %v6866
        %v6869 = vextract.low.u32 %v6868
        %v6870 = vextract.high.u32 %v6868
        %v6871 = vmul.u32.u64.compose %v6867, %v6862
        %v6872 = vextract.low.u32 %v6871
        %v6873 = vextract.high.u32 %v6871
        %v6874 = vmul.u32 %v6867, %v6858
        %v6875 = vadd.s32 %v6870, %v6872
        %vm6876 = vc.u32 %v6870, %v6872
        %v6877 = vadd.s32 %v6873, 1
        %v6878 = vsel %vm6876, %v6877, %v6873
        %v6879 = vadd.s32 %v6874, %v6878
        %v6880 = vadd.s32 %v6879, 536870912
        %v6881 = vshrl.u32 %v6880, 30
        %v6882 = vshll.u32 %v6881, 30
        %v6883 = vsub.s32 %v6879, %v6882
        %vm6884 = vcmp.lt.s32.totalorder %v6883, 0
        %v6885 = vsub.s32 0, %v6883
        %v6886 = vsel %vm6884, %v6885, %v6883
        %v6887 = vclz %v6886
        %v6888 = vsub.s32 %v6887, 2
        %vm6889 = vcmp.gt.s32.totalorder 0, %v6888
        %v6890 = vsel %vm6889, 0, %v6888
        %v6891 = vsub.s32 32, %v6890
        %v6892 = vshll.u32 %v6883, %v6890
        %v6893 = vshrl.u32 %v6875, %v6891
        %v6894 = vor.u32 %v6892, %v6893
        %v6895 = vsub.s32 4294967266, %v6890
        %v6896 = vadd.s32 %v6895, 127
        %v6897 = vshll.u32 %v6896, 23
        %v6898 = vor.u32 4788187, %v6897
        %v6899 = vand.u32 2147483647, %v6898
        %v6901 = vcvt.s32.f32 %v6894
        %v6902 = vmul.f32 %v6901, %v6899
        %v6903 = vxor.u32 %v6902, 2147483648
        %v6904 = vsel %vm6821, %v6903, %v6902
        %v6905 = vsub.s32 4, %v6881
        %v6906 = vsel %vm6821, %v6905, %v6881
        %v6907 = vsel %vm6820, %v3389, %v6904
        %v6908 = vsel %vm6820, 0, %v6906
        %v6909 = vcosq.f32.pop %v6907
        %v6910 = vsinq.f32.pop %v6907
        %vm6911 = vweird.f32 %v3389
        %v6912 = vand.u32 %v6908, 3
        %vm6913 = vcmp.lt.s32.totalorder %v6912, 2
        %vm6914 = vcmp.eq.s32.totalorder %v6912, 0
        %v6915 = vxor.u32 %v6910, 2147483648
        %v6916 = vsel %vm6914, %v6909, %v6915
        %vm6917 = vcmp.eq.s32.totalorder %v6912, 2
        %v6918 = vxor.u32 %v6909, 2147483648
        %v6919 = vsel %vm6917, %v6918, %v6910
        %v6920 = vsel %vm6913, %v6916, %v6919
        %v6921 = vsel %vm6911, nan, %v6920
        %v6922 = vand.u32 2147483647, %v3390
        %vm6923 = vcmp.le.f32.partialorder %v6922, 0.7853982
        %vm6924 = vcmp.lt.s32.totalorder %v3390, 0
        %v6925 = vand.u32 %v3390, 2139095040
        %v6926 = vshrl.u32 %v6925, 23
        %v6927 = vsub.s32 %v6926, 127
        %v6928 = vand.u32 2147483647, %v3390
        %v6929 = vand.u32 %v6928, 8388607
        %v6930 = vor.u32 %v6929, 8388608
        %v6931 = vsub.s32 0, %v6930
        %v6932 = vadd.s32 %v6927, 1
        %vm6933 = vcmp.gt.s32.totalorder %v6932, 0
        %v6934 = vsel %vm6933, %v6932, 0
        %v6935 = vshrl.u32 %v6934, 5
        %v6936 = vand.u32 %v6934, 31
        %v6937 = vsub.s32 32, %v6936
        %v6938 = vshrl.u32 683565275, %v6937
        %v6939 = vshll.u32 683565275, %v6936
        %v6940 = vshrl.u32 2475754826, %v6937
        %v6941 = vor.u32 %v6939, %v6940
        %v6942 = vshll.u32 2475754826, %v6936
        %v6943 = vshrl.u32 2131351028, %v6937
        %v6944 = vor.u32 %v6942, %v6943
        %v6945 = vshll.u32 2131351028, %v6936
        %v6946 = vshrl.u32 2102212464, %v6937
        %v6947 = vor.u32 %v6945, %v6946
        %v6948 = vshll.u32 2102212464, %v6936
        %v6949 = vshrl.u32 920167782, %v6937
        %v6950 = vor.u32 %v6948, %v6949
        %v6951 = vshll.u32 920167782, %v6936
        %v6952 = vshrl.u32 1326507024, %v6937
        %v6953 = vor.u32 %v6951, %v6952
        %vm6954 = vcmp.lt.s32.totalorder %v6935, 1
        %vm6955 = vcmp.lt.s32.totalorder %v6935, 2
        %vm6956 = vcmp.lt.s32.totalorder %v6935, 3
        %vm6957 = vcmp.lt.s32.totalorder %v6935, 4
        %v6958 = vsel %vm6954, %v6938, %v6941
        %v6959 = vsel %vm6957, %v6947, 2102212464
        %v6960 = vsel %vm6956, %v6944, %v6959
        %v6961 = vsel %vm6955, %v6958, %v6960
        %v6962 = vsel %vm6954, %v6941, %v6944
        %v6963 = vsel %vm6957, %v6950, 920167782
        %v6964 = vsel %vm6956, %v6947, %v6963
        %v6965 = vsel %vm6955, %v6962, %v6964
        %v6966 = vsel %vm6954, %v6944, %v6947
        %v6967 = vsel %vm6957, %v6953, 1326507024
        %v6968 = vsel %vm6956, %v6950, %v6967
        %v6969 = vsel %vm6955, %v6966, %v6968
        %v6970 = vshll.u32 %v6930, 8
        %v6971 = vmul.u32.u64.compose %v6970, %v6969
        %v6972 = vextract.low.u32 %v6971
        %v6973 = vextract.high.u32 %v6971
        %v6974 = vmul.u32.u64.compose %v6970, %v6965
        %v6975 = vextract.low.u32 %v6974
        %v6976 = vextract.high.u32 %v6974
        %v6977 = vmul.u32 %v6970, %v6961
        %v6978 = vadd.s32 %v6973, %v6975
        %vm6979 = vc.u32 %v6973, %v6975
        %v6980 = vadd.s32 %v6976, 1
        %v6981 = vsel %vm6979, %v6980, %v6976
        %v6982 = vadd.s32 %v6977, %v6981
        %v6983 = vadd.s32 %v6982, 536870912
        %v6984 = vshrl.u32 %v6983, 30
        %v6985 = vshll.u32 %v6984, 30
        %v6986 = vsub.s32 %v6982, %v6985
        %vm6987 = vcmp.lt.s32.totalorder %v6986, 0
        %v6988 = vsub.s32 0, %v6986
        %v6989 = vsel %vm6987, %v6988, %v6986
        %v6990 = vclz %v6989
        %v6991 = vsub.s32 %v6990, 2
        %vm6992 = vcmp.gt.s32.totalorder 0, %v6991
        %v6993 = vsel %vm6992, 0, %v6991
        %v6994 = vsub.s32 32, %v6993
        %v6995 = vshll.u32 %v6986, %v6993
        %v6996 = vshrl.u32 %v6978, %v6994
        %v6997 = vor.u32 %v6995, %v6996
        %v6998 = vsub.s32 4294967266, %v6993
        %v6999 = vadd.s32 %v6998, 127
        %v7000 = vshll.u32 %v6999, 23
        %v7001 = vor.u32 4788187, %v7000
        %v7002 = vand.u32 2147483647, %v7001
        %v7004 = vcvt.s32.f32 %v6997
        %v7005 = vmul.f32 %v7004, %v7002
        %v7006 = vxor.u32 %v7005, 2147483648
        %v7007 = vsel %vm6924, %v7006, %v7005
        %v7008 = vsub.s32 4, %v6984
        %v7009 = vsel %vm6924, %v7008, %v6984
        %v7010 = vsel %vm6923, %v3390, %v7007
        %v7011 = vsel %vm6923, 0, %v7009
        %v7012 = vcosq.f32.pop %v7010
        %v7013 = vsinq.f32.pop %v7010
        %vm7014 = vweird.f32 %v3390
        %v7015 = vand.u32 %v7011, 3
        %vm7016 = vcmp.lt.s32.totalorder %v7015, 2
        %vm7017 = vcmp.eq.s32.totalorder %v7015, 0
        %v7018 = vxor.u32 %v7013, 2147483648
        %v7019 = vsel %vm7017, %v7012, %v7018
        %vm7020 = vcmp.eq.s32.totalorder %v7015, 2
        %v7021 = vxor.u32 %v7012, 2147483648
        %v7022 = vsel %vm7020, %v7021, %v7013
        %v7023 = vsel %vm7016, %v7019, %v7022
        %v7024 = vsel %vm7014, nan, %v7023
        %v7025 = vand.u32 2147483647, %v3391
        %vm7026 = vcmp.le.f32.partialorder %v7025, 0.7853982
        %vm7027 = vcmp.lt.s32.totalorder %v3391, 0
        %v7028 = vand.u32 %v3391, 2139095040
        %v7029 = vshrl.u32 %v7028, 23
        %v7030 = vsub.s32 %v7029, 127
        %v7031 = vand.u32 2147483647, %v3391
        %v7032 = vand.u32 %v7031, 8388607
        %v7033 = vor.u32 %v7032, 8388608
        %v7034 = vsub.s32 0, %v7033
        %v7035 = vadd.s32 %v7030, 1
        %vm7036 = vcmp.gt.s32.totalorder %v7035, 0
        %v7037 = vsel %vm7036, %v7035, 0
        %v7038 = vshrl.u32 %v7037, 5
        %v7039 = vand.u32 %v7037, 31
        %v7040 = vsub.s32 32, %v7039
        %v7041 = vshrl.u32 683565275, %v7040
        %v7042 = vshll.u32 683565275, %v7039
        %v7043 = vshrl.u32 2475754826, %v7040
        %v7044 = vor.u32 %v7042, %v7043
        %v7045 = vshll.u32 2475754826, %v7039
        %v7046 = vshrl.u32 2131351028, %v7040
        %v7047 = vor.u32 %v7045, %v7046
        %v7048 = vshll.u32 2131351028, %v7039
        %v7049 = vshrl.u32 2102212464, %v7040
        %v7050 = vor.u32 %v7048, %v7049
        %v7051 = vshll.u32 2102212464, %v7039
        %v7052 = vshrl.u32 920167782, %v7040
        %v7053 = vor.u32 %v7051, %v7052
        %v7054 = vshll.u32 920167782, %v7039
        %v7055 = vshrl.u32 1326507024, %v7040
        %v7056 = vor.u32 %v7054, %v7055
        %vm7057 = vcmp.lt.s32.totalorder %v7038, 1
        %vm7058 = vcmp.lt.s32.totalorder %v7038, 2
        %vm7059 = vcmp.lt.s32.totalorder %v7038, 3
        %vm7060 = vcmp.lt.s32.totalorder %v7038, 4
        %v7061 = vsel %vm7057, %v7041, %v7044
        %v7062 = vsel %vm7060, %v7050, 2102212464
        %v7063 = vsel %vm7059, %v7047, %v7062
        %v7064 = vsel %vm7058, %v7061, %v7063
        %v7065 = vsel %vm7057, %v7044, %v7047
        %v7066 = vsel %vm7060, %v7053, 920167782
        %v7067 = vsel %vm7059, %v7050, %v7066
        %v7068 = vsel %vm7058, %v7065, %v7067
        %v7069 = vsel %vm7057, %v7047, %v7050
        %v7070 = vsel %vm7060, %v7056, 1326507024
        %v7071 = vsel %vm7059, %v7053, %v7070
        %v7072 = vsel %vm7058, %v7069, %v7071
        %v7073 = vshll.u32 %v7033, 8
        %v7074 = vmul.u32.u64.compose %v7073, %v7072
        %v7075 = vextract.low.u32 %v7074
        %v7076 = vextract.high.u32 %v7074
        %v7077 = vmul.u32.u64.compose %v7073, %v7068
        %v7078 = vextract.low.u32 %v7077
        %v7079 = vextract.high.u32 %v7077
        %v7080 = vmul.u32 %v7073, %v7064
        %v7081 = vadd.s32 %v7076, %v7078
        %vm7082 = vc.u32 %v7076, %v7078
        %v7083 = vadd.s32 %v7079, 1
        %v7084 = vsel %vm7082, %v7083, %v7079
        %v7085 = vadd.s32 %v7080, %v7084
        %v7086 = vadd.s32 %v7085, 536870912
        %v7087 = vshrl.u32 %v7086, 30
        %v7088 = vshll.u32 %v7087, 30
        %v7089 = vsub.s32 %v7085, %v7088
        %vm7090 = vcmp.lt.s32.totalorder %v7089, 0
        %v7091 = vsub.s32 0, %v7089
        %v7092 = vsel %vm7090, %v7091, %v7089
        %v7093 = vclz %v7092
        %v7094 = vsub.s32 %v7093, 2
        %vm7095 = vcmp.gt.s32.totalorder 0, %v7094
        %v7096 = vsel %vm7095, 0, %v7094
        %v7097 = vsub.s32 32, %v7096
        %v7098 = vshll.u32 %v7089, %v7096
        %v7099 = vshrl.u32 %v7081, %v7097
        %v7100 = vor.u32 %v7098, %v7099
        %v7101 = vsub.s32 4294967266, %v7096
        %v7102 = vadd.s32 %v7101, 127
        %v7103 = vshll.u32 %v7102, 23
        %v7104 = vor.u32 4788187, %v7103
        %v7105 = vand.u32 2147483647, %v7104
        %v7107 = vcvt.s32.f32 %v7100
        %v7108 = vmul.f32 %v7107, %v7105
        %v7109 = vxor.u32 %v7108, 2147483648
        %v7110 = vsel %vm7027, %v7109, %v7108
        %v7111 = vsub.s32 4, %v7087
        %v7112 = vsel %vm7027, %v7111, %v7087
        %v7113 = vsel %vm7026, %v3391, %v7110
        %v7114 = vsel %vm7026, 0, %v7112
        %v7115 = vcosq.f32.pop %v7113
        %v7116 = vsinq.f32.pop %v7113
        %vm7117 = vweird.f32 %v3391
        %v7118 = vand.u32 %v7114, 3
        %vm7119 = vcmp.lt.s32.totalorder %v7118, 2
        %vm7120 = vcmp.eq.s32.totalorder %v7118, 0
        %v7121 = vxor.u32 %v7116, 2147483648
        %v7122 = vsel %vm7120, %v7115, %v7121
        %vm7123 = vcmp.eq.s32.totalorder %v7118, 2
        %v7124 = vxor.u32 %v7115, 2147483648
        %v7125 = vsel %vm7123, %v7124, %v7116
        %v7126 = vsel %vm7119, %v7122, %v7125
        %v7127 = vsel %vm7117, nan, %v7126
        %v7128 = vand.u32 2147483647, %v3392
        %vm7129 = vcmp.le.f32.partialorder %v7128, 0.7853982
        %vm7130 = vcmp.lt.s32.totalorder %v3392, 0
        %v7131 = vand.u32 %v3392, 2139095040
        %v7132 = vshrl.u32 %v7131, 23
        %v7133 = vsub.s32 %v7132, 127
        %v7134 = vand.u32 2147483647, %v3392
        %v7135 = vand.u32 %v7134, 8388607
        %v7136 = vor.u32 %v7135, 8388608
        %v7137 = vsub.s32 0, %v7136
        %v7138 = vadd.s32 %v7133, 1
        %vm7139 = vcmp.gt.s32.totalorder %v7138, 0
        %v7140 = vsel %vm7139, %v7138, 0
        %v7141 = vshrl.u32 %v7140, 5
        %v7142 = vand.u32 %v7140, 31
        %v7143 = vsub.s32 32, %v7142
        %v7144 = vshrl.u32 683565275, %v7143
        %v7145 = vshll.u32 683565275, %v7142
        %v7146 = vshrl.u32 2475754826, %v7143
        %v7147 = vor.u32 %v7145, %v7146
        %v7148 = vshll.u32 2475754826, %v7142
        %v7149 = vshrl.u32 2131351028, %v7143
        %v7150 = vor.u32 %v7148, %v7149
        %v7151 = vshll.u32 2131351028, %v7142
        %v7152 = vshrl.u32 2102212464, %v7143
        %v7153 = vor.u32 %v7151, %v7152
        %v7154 = vshll.u32 2102212464, %v7142
        %v7155 = vshrl.u32 920167782, %v7143
        %v7156 = vor.u32 %v7154, %v7155
        %v7157 = vshll.u32 920167782, %v7142
        %v7158 = vshrl.u32 1326507024, %v7143
        %v7159 = vor.u32 %v7157, %v7158
        %vm7160 = vcmp.lt.s32.totalorder %v7141, 1
        %vm7161 = vcmp.lt.s32.totalorder %v7141, 2
        %vm7162 = vcmp.lt.s32.totalorder %v7141, 3
        %vm7163 = vcmp.lt.s32.totalorder %v7141, 4
        %v7164 = vsel %vm7160, %v7144, %v7147
        %v7165 = vsel %vm7163, %v7153, 2102212464
        %v7166 = vsel %vm7162, %v7150, %v7165
        %v7167 = vsel %vm7161, %v7164, %v7166
        %v7168 = vsel %vm7160, %v7147, %v7150
        %v7169 = vsel %vm7163, %v7156, 920167782
        %v7170 = vsel %vm7162, %v7153, %v7169
        %v7171 = vsel %vm7161, %v7168, %v7170
        %v7172 = vsel %vm7160, %v7150, %v7153
        %v7173 = vsel %vm7163, %v7159, 1326507024
        %v7174 = vsel %vm7162, %v7156, %v7173
        %v7175 = vsel %vm7161, %v7172, %v7174
        %v7176 = vshll.u32 %v7136, 8
        %v7177 = vmul.u32.u64.compose %v7176, %v7175
        %v7178 = vextract.low.u32 %v7177
        %v7179 = vextract.high.u32 %v7177
        %v7180 = vmul.u32.u64.compose %v7176, %v7171
        %v7181 = vextract.low.u32 %v7180
        %v7182 = vextract.high.u32 %v7180
        %v7183 = vmul.u32 %v7176, %v7167
        %v7184 = vadd.s32 %v7179, %v7181
        %vm7185 = vc.u32 %v7179, %v7181
        %v7186 = vadd.s32 %v7182, 1
        %v7187 = vsel %vm7185, %v7186, %v7182
        %v7188 = vadd.s32 %v7183, %v7187
        %v7189 = vadd.s32 %v7188, 536870912
        %v7190 = vshrl.u32 %v7189, 30
        %v7191 = vshll.u32 %v7190, 30
        %v7192 = vsub.s32 %v7188, %v7191
        %vm7193 = vcmp.lt.s32.totalorder %v7192, 0
        %v7194 = vsub.s32 0, %v7192
        %v7195 = vsel %vm7193, %v7194, %v7192
        %v7196 = vclz %v7195
        %v7197 = vsub.s32 %v7196, 2
        %vm7198 = vcmp.gt.s32.totalorder 0, %v7197
        %v7199 = vsel %vm7198, 0, %v7197
        %v7200 = vsub.s32 32, %v7199
        %v7201 = vshll.u32 %v7192, %v7199
        %v7202 = vshrl.u32 %v7184, %v7200
        %v7203 = vor.u32 %v7201, %v7202
        %v7204 = vsub.s32 4294967266, %v7199
        %v7205 = vadd.s32 %v7204, 127
        %v7206 = vshll.u32 %v7205, 23
        %v7207 = vor.u32 4788187, %v7206
        %v7208 = vand.u32 2147483647, %v7207
        %v7210 = vcvt.s32.f32 %v7203
        %v7211 = vmul.f32 %v7210, %v7208
        %v7212 = vxor.u32 %v7211, 2147483648
        %v7213 = vsel %vm7130, %v7212, %v7211
        %v7214 = vsub.s32 4, %v7190
        %v7215 = vsel %vm7130, %v7214, %v7190
        %v7216 = vsel %vm7129, %v3392, %v7213
        %v7217 = vsel %vm7129, 0, %v7215
        %v7218 = vcosq.f32.pop %v7216
        %v7219 = vsinq.f32.pop %v7216
        %vm7220 = vweird.f32 %v3392
        %v7221 = vand.u32 %v7217, 3
        %vm7222 = vcmp.lt.s32.totalorder %v7221, 2
        %vm7223 = vcmp.eq.s32.totalorder %v7221, 0
        %v7224 = vxor.u32 %v7219, 2147483648
        %v7225 = vsel %vm7223, %v7218, %v7224
        %vm7226 = vcmp.eq.s32.totalorder %v7221, 2
        %v7227 = vxor.u32 %v7218, 2147483648
        %v7228 = vsel %vm7226, %v7227, %v7219
        %v7229 = vsel %vm7222, %v7225, %v7228
        %v7230 = vsel %vm7220, nan, %v7229
        %v7231 = vand.u32 2147483647, %v3393
        %vm7232 = vcmp.le.f32.partialorder %v7231, 0.7853982
        %vm7233 = vcmp.lt.s32.totalorder %v3393, 0
        %v7234 = vand.u32 %v3393, 2139095040
        %v7235 = vshrl.u32 %v7234, 23
        %v7236 = vsub.s32 %v7235, 127
        %v7237 = vand.u32 2147483647, %v3393
        %v7238 = vand.u32 %v7237, 8388607
        %v7239 = vor.u32 %v7238, 8388608
        %v7240 = vsub.s32 0, %v7239
        %v7241 = vadd.s32 %v7236, 1
        %vm7242 = vcmp.gt.s32.totalorder %v7241, 0
        %v7243 = vsel %vm7242, %v7241, 0
        %v7244 = vshrl.u32 %v7243, 5
        %v7245 = vand.u32 %v7243, 31
        %v7246 = vsub.s32 32, %v7245
        %v7247 = vshrl.u32 683565275, %v7246
        %v7248 = vshll.u32 683565275, %v7245
        %v7249 = vshrl.u32 2475754826, %v7246
        %v7250 = vor.u32 %v7248, %v7249
        %v7251 = vshll.u32 2475754826, %v7245
        %v7252 = vshrl.u32 2131351028, %v7246
        %v7253 = vor.u32 %v7251, %v7252
        %v7254 = vshll.u32 2131351028, %v7245
        %v7255 = vshrl.u32 2102212464, %v7246
        %v7256 = vor.u32 %v7254, %v7255
        %v7257 = vshll.u32 2102212464, %v7245
        %v7258 = vshrl.u32 920167782, %v7246
        %v7259 = vor.u32 %v7257, %v7258
        %v7260 = vshll.u32 920167782, %v7245
        %v7261 = vshrl.u32 1326507024, %v7246
        %v7262 = vor.u32 %v7260, %v7261
        %vm7263 = vcmp.lt.s32.totalorder %v7244, 1
        %vm7264 = vcmp.lt.s32.totalorder %v7244, 2
        %vm7265 = vcmp.lt.s32.totalorder %v7244, 3
        %vm7266 = vcmp.lt.s32.totalorder %v7244, 4
        %v7267 = vsel %vm7263, %v7247, %v7250
        %v7268 = vsel %vm7266, %v7256, 2102212464
        %v7269 = vsel %vm7265, %v7253, %v7268
        %v7270 = vsel %vm7264, %v7267, %v7269
        %v7271 = vsel %vm7263, %v7250, %v7253
        %v7272 = vsel %vm7266, %v7259, 920167782
        %v7273 = vsel %vm7265, %v7256, %v7272
        %v7274 = vsel %vm7264, %v7271, %v7273
        %v7275 = vsel %vm7263, %v7253, %v7256
        %v7276 = vsel %vm7266, %v7262, 1326507024
        %v7277 = vsel %vm7265, %v7259, %v7276
        %v7278 = vsel %vm7264, %v7275, %v7277
        %v7279 = vshll.u32 %v7239, 8
        %v7280 = vmul.u32.u64.compose %v7279, %v7278
        %v7281 = vextract.low.u32 %v7280
        %v7282 = vextract.high.u32 %v7280
        %v7283 = vmul.u32.u64.compose %v7279, %v7274
        %v7284 = vextract.low.u32 %v7283
        %v7285 = vextract.high.u32 %v7283
        %v7286 = vmul.u32 %v7279, %v7270
        %v7287 = vadd.s32 %v7282, %v7284
        %vm7288 = vc.u32 %v7282, %v7284
        %v7289 = vadd.s32 %v7285, 1
        %v7290 = vsel %vm7288, %v7289, %v7285
        %v7291 = vadd.s32 %v7286, %v7290
        %v7292 = vadd.s32 %v7291, 536870912
        %v7293 = vshrl.u32 %v7292, 30
        %v7294 = vshll.u32 %v7293, 30
        %v7295 = vsub.s32 %v7291, %v7294
        %vm7296 = vcmp.lt.s32.totalorder %v7295, 0
        %v7297 = vsub.s32 0, %v7295
        %v7298 = vsel %vm7296, %v7297, %v7295
        %v7299 = vclz %v7298
        %v7300 = vsub.s32 %v7299, 2
        %vm7301 = vcmp.gt.s32.totalorder 0, %v7300
        %v7302 = vsel %vm7301, 0, %v7300
        %v7303 = vsub.s32 32, %v7302
        %v7304 = vshll.u32 %v7295, %v7302
        %v7305 = vshrl.u32 %v7287, %v7303
        %v7306 = vor.u32 %v7304, %v7305
        %v7307 = vsub.s32 4294967266, %v7302
        %v7308 = vadd.s32 %v7307, 127
        %v7309 = vshll.u32 %v7308, 23
        %v7310 = vor.u32 4788187, %v7309
        %v7311 = vand.u32 2147483647, %v7310
        %v7313 = vcvt.s32.f32 %v7306
        %v7314 = vmul.f32 %v7313, %v7311
        %v7315 = vxor.u32 %v7314, 2147483648
        %v7316 = vsel %vm7233, %v7315, %v7314
        %v7317 = vsub.s32 4, %v7293
        %v7318 = vsel %vm7233, %v7317, %v7293
        %v7319 = vsel %vm7232, %v3393, %v7316
        %v7320 = vsel %vm7232, 0, %v7318
        %v7321 = vcosq.f32.pop %v7319
        %v7322 = vsinq.f32.pop %v7319
        %vm7323 = vweird.f32 %v3393
        %v7324 = vand.u32 %v7320, 3
        %vm7325 = vcmp.lt.s32.totalorder %v7324, 2
        %vm7326 = vcmp.eq.s32.totalorder %v7324, 0
        %v7327 = vxor.u32 %v7322, 2147483648
        %v7328 = vsel %vm7326, %v7321, %v7327
        %vm7329 = vcmp.eq.s32.totalorder %v7324, 2
        %v7330 = vxor.u32 %v7321, 2147483648
        %v7331 = vsel %vm7329, %v7330, %v7322
        %v7332 = vsel %vm7325, %v7328, %v7331
        %v7333 = vsel %vm7323, nan, %v7332
        %v7334 = vand.u32 2147483647, %v3394
        %vm7335 = vcmp.le.f32.partialorder %v7334, 0.7853982
        %vm7336 = vcmp.lt.s32.totalorder %v3394, 0
        %v7337 = vand.u32 %v3394, 2139095040
        %v7338 = vshrl.u32 %v7337, 23
        %v7339 = vsub.s32 %v7338, 127
        %v7340 = vand.u32 2147483647, %v3394
        %v7341 = vand.u32 %v7340, 8388607
        %v7342 = vor.u32 %v7341, 8388608
        %v7343 = vsub.s32 0, %v7342
        %v7344 = vadd.s32 %v7339, 1
        %vm7345 = vcmp.gt.s32.totalorder %v7344, 0
        %v7346 = vsel %vm7345, %v7344, 0
        %v7347 = vshrl.u32 %v7346, 5
        %v7348 = vand.u32 %v7346, 31
        %v7349 = vsub.s32 32, %v7348
        %v7350 = vshrl.u32 683565275, %v7349
        %v7351 = vshll.u32 683565275, %v7348
        %v7352 = vshrl.u32 2475754826, %v7349
        %v7353 = vor.u32 %v7351, %v7352
        %v7354 = vshll.u32 2475754826, %v7348
        %v7355 = vshrl.u32 2131351028, %v7349
        %v7356 = vor.u32 %v7354, %v7355
        %v7357 = vshll.u32 2131351028, %v7348
        %v7358 = vshrl.u32 2102212464, %v7349
        %v7359 = vor.u32 %v7357, %v7358
        %v7360 = vshll.u32 2102212464, %v7348
        %v7361 = vshrl.u32 920167782, %v7349
        %v7362 = vor.u32 %v7360, %v7361
        %v7363 = vshll.u32 920167782, %v7348
        %v7364 = vshrl.u32 1326507024, %v7349
        %v7365 = vor.u32 %v7363, %v7364
        %vm7366 = vcmp.lt.s32.totalorder %v7347, 1
        %vm7367 = vcmp.lt.s32.totalorder %v7347, 2
        %vm7368 = vcmp.lt.s32.totalorder %v7347, 3
        %vm7369 = vcmp.lt.s32.totalorder %v7347, 4
        %v7370 = vsel %vm7366, %v7350, %v7353
        %v7371 = vsel %vm7369, %v7359, 2102212464
        %v7372 = vsel %vm7368, %v7356, %v7371
        %v7373 = vsel %vm7367, %v7370, %v7372
        %v7374 = vsel %vm7366, %v7353, %v7356
        %v7375 = vsel %vm7369, %v7362, 920167782
        %v7376 = vsel %vm7368, %v7359, %v7375
        %v7377 = vsel %vm7367, %v7374, %v7376
        %v7378 = vsel %vm7366, %v7356, %v7359
        %v7379 = vsel %vm7369, %v7365, 1326507024
        %v7380 = vsel %vm7368, %v7362, %v7379
        %v7381 = vsel %vm7367, %v7378, %v7380
        %v7382 = vshll.u32 %v7342, 8
        %v7383 = vmul.u32.u64.compose %v7382, %v7381
        %v7384 = vextract.low.u32 %v7383
        %v7385 = vextract.high.u32 %v7383
        %v7386 = vmul.u32.u64.compose %v7382, %v7377
        %v7387 = vextract.low.u32 %v7386
        %v7388 = vextract.high.u32 %v7386
        %v7389 = vmul.u32 %v7382, %v7373
        %v7390 = vadd.s32 %v7385, %v7387
        %vm7391 = vc.u32 %v7385, %v7387
        %v7392 = vadd.s32 %v7388, 1
        %v7393 = vsel %vm7391, %v7392, %v7388
        %v7394 = vadd.s32 %v7389, %v7393
        %v7395 = vadd.s32 %v7394, 536870912
        %v7396 = vshrl.u32 %v7395, 30
        %v7397 = vshll.u32 %v7396, 30
        %v7398 = vsub.s32 %v7394, %v7397
        %vm7399 = vcmp.lt.s32.totalorder %v7398, 0
        %v7400 = vsub.s32 0, %v7398
        %v7401 = vsel %vm7399, %v7400, %v7398
        %v7402 = vclz %v7401
        %v7403 = vsub.s32 %v7402, 2
        %vm7404 = vcmp.gt.s32.totalorder 0, %v7403
        %v7405 = vsel %vm7404, 0, %v7403
        %v7406 = vsub.s32 32, %v7405
        %v7407 = vshll.u32 %v7398, %v7405
        %v7408 = vshrl.u32 %v7390, %v7406
        %v7409 = vor.u32 %v7407, %v7408
        %v7410 = vsub.s32 4294967266, %v7405
        %v7411 = vadd.s32 %v7410, 127
        %v7412 = vshll.u32 %v7411, 23
        %v7413 = vor.u32 4788187, %v7412
        %v7414 = vand.u32 2147483647, %v7413
        %v7416 = vcvt.s32.f32 %v7409
        %v7417 = vmul.f32 %v7416, %v7414
        %v7418 = vxor.u32 %v7417, 2147483648
        %v7419 = vsel %vm7336, %v7418, %v7417
        %v7420 = vsub.s32 4, %v7396
        %v7421 = vsel %vm7336, %v7420, %v7396
        %v7422 = vsel %vm7335, %v3394, %v7419
        %v7423 = vsel %vm7335, 0, %v7421
        %v7424 = vcosq.f32.pop %v7422
        %v7425 = vsinq.f32.pop %v7422
        %vm7426 = vweird.f32 %v3394
        %v7427 = vand.u32 %v7423, 3
        %vm7428 = vcmp.lt.s32.totalorder %v7427, 2
        %vm7429 = vcmp.eq.s32.totalorder %v7427, 0
        %v7430 = vxor.u32 %v7425, 2147483648
        %v7431 = vsel %vm7429, %v7424, %v7430
        %vm7432 = vcmp.eq.s32.totalorder %v7427, 2
        %v7433 = vxor.u32 %v7424, 2147483648
        %v7434 = vsel %vm7432, %v7433, %v7425
        %v7435 = vsel %vm7428, %v7431, %v7434
        %v7436 = vsel %vm7426, nan, %v7435
        %v7437 = vand.u32 2147483647, %v3395
        %vm7438 = vcmp.le.f32.partialorder %v7437, 0.7853982
        %vm7439 = vcmp.lt.s32.totalorder %v3395, 0
        %v7440 = vand.u32 %v3395, 2139095040
        %v7441 = vshrl.u32 %v7440, 23
        %v7442 = vsub.s32 %v7441, 127
        %v7443 = vand.u32 2147483647, %v3395
        %v7444 = vand.u32 %v7443, 8388607
        %v7445 = vor.u32 %v7444, 8388608
        %v7446 = vsub.s32 0, %v7445
        %v7447 = vadd.s32 %v7442, 1
        %vm7448 = vcmp.gt.s32.totalorder %v7447, 0
        %v7449 = vsel %vm7448, %v7447, 0
        %v7450 = vshrl.u32 %v7449, 5
        %v7451 = vand.u32 %v7449, 31
        %v7452 = vsub.s32 32, %v7451
        %v7453 = vshrl.u32 683565275, %v7452
        %v7454 = vshll.u32 683565275, %v7451
        %v7455 = vshrl.u32 2475754826, %v7452
        %v7456 = vor.u32 %v7454, %v7455
        %v7457 = vshll.u32 2475754826, %v7451
        %v7458 = vshrl.u32 2131351028, %v7452
        %v7459 = vor.u32 %v7457, %v7458
        %v7460 = vshll.u32 2131351028, %v7451
        %v7461 = vshrl.u32 2102212464, %v7452
        %v7462 = vor.u32 %v7460, %v7461
        %v7463 = vshll.u32 2102212464, %v7451
        %v7464 = vshrl.u32 920167782, %v7452
        %v7465 = vor.u32 %v7463, %v7464
        %v7466 = vshll.u32 920167782, %v7451
        %v7467 = vshrl.u32 1326507024, %v7452
        %v7468 = vor.u32 %v7466, %v7467
        %vm7469 = vcmp.lt.s32.totalorder %v7450, 1
        %vm7470 = vcmp.lt.s32.totalorder %v7450, 2
        %vm7471 = vcmp.lt.s32.totalorder %v7450, 3
        %vm7472 = vcmp.lt.s32.totalorder %v7450, 4
        %v7473 = vsel %vm7469, %v7453, %v7456
        %v7474 = vsel %vm7472, %v7462, 2102212464
        %v7475 = vsel %vm7471, %v7459, %v7474
        %v7476 = vsel %vm7470, %v7473, %v7475
        %v7477 = vsel %vm7469, %v7456, %v7459
        %v7478 = vsel %vm7472, %v7465, 920167782
        %v7479 = vsel %vm7471, %v7462, %v7478
        %v7480 = vsel %vm7470, %v7477, %v7479
        %v7481 = vsel %vm7469, %v7459, %v7462
        %v7482 = vsel %vm7472, %v7468, 1326507024
        %v7483 = vsel %vm7471, %v7465, %v7482
        %v7484 = vsel %vm7470, %v7481, %v7483
        %v7485 = vshll.u32 %v7445, 8
        %v7486 = vmul.u32.u64.compose %v7485, %v7484
        %v7487 = vextract.low.u32 %v7486
        %v7488 = vextract.high.u32 %v7486
        %v7489 = vmul.u32.u64.compose %v7485, %v7480
        %v7490 = vextract.low.u32 %v7489
        %v7491 = vextract.high.u32 %v7489
        %v7492 = vmul.u32 %v7485, %v7476
        %v7493 = vadd.s32 %v7488, %v7490
        %vm7494 = vc.u32 %v7488, %v7490
        %v7495 = vadd.s32 %v7491, 1
        %v7496 = vsel %vm7494, %v7495, %v7491
        %v7497 = vadd.s32 %v7492, %v7496
        %v7498 = vadd.s32 %v7497, 536870912
        %v7499 = vshrl.u32 %v7498, 30
        %v7500 = vshll.u32 %v7499, 30
        %v7501 = vsub.s32 %v7497, %v7500
        %vm7502 = vcmp.lt.s32.totalorder %v7501, 0
        %v7503 = vsub.s32 0, %v7501
        %v7504 = vsel %vm7502, %v7503, %v7501
        %v7505 = vclz %v7504
        %v7506 = vsub.s32 %v7505, 2
        %vm7507 = vcmp.gt.s32.totalorder 0, %v7506
        %v7508 = vsel %vm7507, 0, %v7506
        %v7509 = vsub.s32 32, %v7508
        %v7510 = vshll.u32 %v7501, %v7508
        %v7511 = vshrl.u32 %v7493, %v7509
        %v7512 = vor.u32 %v7510, %v7511
        %v7513 = vsub.s32 4294967266, %v7508
        %v7514 = vadd.s32 %v7513, 127
        %v7515 = vshll.u32 %v7514, 23
        %v7516 = vor.u32 4788187, %v7515
        %v7517 = vand.u32 2147483647, %v7516
        %v7519 = vcvt.s32.f32 %v7512
        %v7520 = vmul.f32 %v7519, %v7517
        %v7521 = vxor.u32 %v7520, 2147483648
        %v7522 = vsel %vm7439, %v7521, %v7520
        %v7523 = vsub.s32 4, %v7499
        %v7524 = vsel %vm7439, %v7523, %v7499
        %v7525 = vsel %vm7438, %v3395, %v7522
        %v7526 = vsel %vm7438, 0, %v7524
        %v7527 = vcosq.f32.pop %v7525
        %v7528 = vsinq.f32.pop %v7525
        %vm7529 = vweird.f32 %v3395
        %v7530 = vand.u32 %v7526, 3
        %vm7531 = vcmp.lt.s32.totalorder %v7530, 2
        %vm7532 = vcmp.eq.s32.totalorder %v7530, 0
        %v7533 = vxor.u32 %v7528, 2147483648
        %v7534 = vsel %vm7532, %v7527, %v7533
        %vm7535 = vcmp.eq.s32.totalorder %v7530, 2
        %v7536 = vxor.u32 %v7527, 2147483648
        %v7537 = vsel %vm7535, %v7536, %v7528
        %v7538 = vsel %vm7531, %v7534, %v7537
        %v7539 = vsel %vm7529, nan, %v7538
        %v7540 = vand.u32 2147483647, %v3396
        %vm7541 = vcmp.le.f32.partialorder %v7540, 0.7853982
        %vm7542 = vcmp.lt.s32.totalorder %v3396, 0
        %v7543 = vand.u32 %v3396, 2139095040
        %v7544 = vshrl.u32 %v7543, 23
        %v7545 = vsub.s32 %v7544, 127
        %v7546 = vand.u32 2147483647, %v3396
        %v7547 = vand.u32 %v7546, 8388607
        %v7548 = vor.u32 %v7547, 8388608
        %v7549 = vsub.s32 0, %v7548
        %v7550 = vadd.s32 %v7545, 1
        %vm7551 = vcmp.gt.s32.totalorder %v7550, 0
        %v7552 = vsel %vm7551, %v7550, 0
        %v7553 = vshrl.u32 %v7552, 5
        %v7554 = vand.u32 %v7552, 31
        %v7555 = vsub.s32 32, %v7554
        %v7556 = vshrl.u32 683565275, %v7555
        %v7557 = vshll.u32 683565275, %v7554
        %v7558 = vshrl.u32 2475754826, %v7555
        %v7559 = vor.u32 %v7557, %v7558
        %v7560 = vshll.u32 2475754826, %v7554
        %v7561 = vshrl.u32 2131351028, %v7555
        %v7562 = vor.u32 %v7560, %v7561
        %v7563 = vshll.u32 2131351028, %v7554
        %v7564 = vshrl.u32 2102212464, %v7555
        %v7565 = vor.u32 %v7563, %v7564
        %v7566 = vshll.u32 2102212464, %v7554
        %v7567 = vshrl.u32 920167782, %v7555
        %v7568 = vor.u32 %v7566, %v7567
        %v7569 = vshll.u32 920167782, %v7554
        %v7570 = vshrl.u32 1326507024, %v7555
        %v7571 = vor.u32 %v7569, %v7570
        %vm7572 = vcmp.lt.s32.totalorder %v7553, 1
        %vm7573 = vcmp.lt.s32.totalorder %v7553, 2
        %vm7574 = vcmp.lt.s32.totalorder %v7553, 3
        %vm7575 = vcmp.lt.s32.totalorder %v7553, 4
        %v7576 = vsel %vm7572, %v7556, %v7559
        %v7577 = vsel %vm7575, %v7565, 2102212464
        %v7578 = vsel %vm7574, %v7562, %v7577
        %v7579 = vsel %vm7573, %v7576, %v7578
        %v7580 = vsel %vm7572, %v7559, %v7562
        %v7581 = vsel %vm7575, %v7568, 920167782
        %v7582 = vsel %vm7574, %v7565, %v7581
        %v7583 = vsel %vm7573, %v7580, %v7582
        %v7584 = vsel %vm7572, %v7562, %v7565
        %v7585 = vsel %vm7575, %v7571, 1326507024
        %v7586 = vsel %vm7574, %v7568, %v7585
        %v7587 = vsel %vm7573, %v7584, %v7586
        %v7588 = vshll.u32 %v7548, 8
        %v7589 = vmul.u32.u64.compose %v7588, %v7587
        %v7590 = vextract.low.u32 %v7589
        %v7591 = vextract.high.u32 %v7589
        %v7592 = vmul.u32.u64.compose %v7588, %v7583
        %v7593 = vextract.low.u32 %v7592
        %v7594 = vextract.high.u32 %v7592
        %v7595 = vmul.u32 %v7588, %v7579
        %v7596 = vadd.s32 %v7591, %v7593
        %vm7597 = vc.u32 %v7591, %v7593
        %v7598 = vadd.s32 %v7594, 1
        %v7599 = vsel %vm7597, %v7598, %v7594
        %v7600 = vadd.s32 %v7595, %v7599
        %v7601 = vadd.s32 %v7600, 536870912
        %v7602 = vshrl.u32 %v7601, 30
        %v7603 = vshll.u32 %v7602, 30
        %v7604 = vsub.s32 %v7600, %v7603
        %vm7605 = vcmp.lt.s32.totalorder %v7604, 0
        %v7606 = vsub.s32 0, %v7604
        %v7607 = vsel %vm7605, %v7606, %v7604
        %v7608 = vclz %v7607
        %v7609 = vsub.s32 %v7608, 2
        %vm7610 = vcmp.gt.s32.totalorder 0, %v7609
        %v7611 = vsel %vm7610, 0, %v7609
        %v7612 = vsub.s32 32, %v7611
        %v7613 = vshll.u32 %v7604, %v7611
        %v7614 = vshrl.u32 %v7596, %v7612
        %v7615 = vor.u32 %v7613, %v7614
        %v7616 = vsub.s32 4294967266, %v7611
        %v7617 = vadd.s32 %v7616, 127
        %v7618 = vshll.u32 %v7617, 23
        %v7619 = vor.u32 4788187, %v7618
        %v7620 = vand.u32 2147483647, %v7619
        %v7622 = vcvt.s32.f32 %v7615
        %v7623 = vmul.f32 %v7622, %v7620
        %v7624 = vxor.u32 %v7623, 2147483648
        %v7625 = vsel %vm7542, %v7624, %v7623
        %v7626 = vsub.s32 4, %v7602
        %v7627 = vsel %vm7542, %v7626, %v7602
        %v7628 = vsel %vm7541, %v3396, %v7625
        %v7629 = vsel %vm7541, 0, %v7627
        %v7630 = vcosq.f32.pop %v7628
        %v7631 = vsinq.f32.pop %v7628
        %vm7632 = vweird.f32 %v3396
        %v7633 = vand.u32 %v7629, 3
        %vm7634 = vcmp.lt.s32.totalorder %v7633, 2
        %vm7635 = vcmp.eq.s32.totalorder %v7633, 0
        %v7636 = vxor.u32 %v7631, 2147483648
        %v7637 = vsel %vm7635, %v7630, %v7636
        %vm7638 = vcmp.eq.s32.totalorder %v7633, 2
        %v7639 = vxor.u32 %v7630, 2147483648
        %v7640 = vsel %vm7638, %v7639, %v7631
        %v7641 = vsel %vm7634, %v7637, %v7640
        %v7642 = vsel %vm7632, nan, %v7641
        %v7643 = vand.u32 2147483647, %v3397
        %vm7644 = vcmp.le.f32.partialorder %v7643, 0.7853982
        %vm7645 = vcmp.lt.s32.totalorder %v3397, 0
        %v7646 = vand.u32 %v3397, 2139095040
        %v7647 = vshrl.u32 %v7646, 23
        %v7648 = vsub.s32 %v7647, 127
        %v7649 = vand.u32 2147483647, %v3397
        %v7650 = vand.u32 %v7649, 8388607
        %v7651 = vor.u32 %v7650, 8388608
        %v7652 = vsub.s32 0, %v7651
        %v7653 = vadd.s32 %v7648, 1
        %vm7654 = vcmp.gt.s32.totalorder %v7653, 0
        %v7655 = vsel %vm7654, %v7653, 0
        %v7656 = vshrl.u32 %v7655, 5
        %v7657 = vand.u32 %v7655, 31
        %v7658 = vsub.s32 32, %v7657
        %v7659 = vshrl.u32 683565275, %v7658
        %v7660 = vshll.u32 683565275, %v7657
        %v7661 = vshrl.u32 2475754826, %v7658
        %v7662 = vor.u32 %v7660, %v7661
        %v7663 = vshll.u32 2475754826, %v7657
        %v7664 = vshrl.u32 2131351028, %v7658
        %v7665 = vor.u32 %v7663, %v7664
        %v7666 = vshll.u32 2131351028, %v7657
        %v7667 = vshrl.u32 2102212464, %v7658
        %v7668 = vor.u32 %v7666, %v7667
        %v7669 = vshll.u32 2102212464, %v7657
        %v7670 = vshrl.u32 920167782, %v7658
        %v7671 = vor.u32 %v7669, %v7670
        %v7672 = vshll.u32 920167782, %v7657
        %v7673 = vshrl.u32 1326507024, %v7658
        %v7674 = vor.u32 %v7672, %v7673
        %vm7675 = vcmp.lt.s32.totalorder %v7656, 1
        %vm7676 = vcmp.lt.s32.totalorder %v7656, 2
        %vm7677 = vcmp.lt.s32.totalorder %v7656, 3
        %vm7678 = vcmp.lt.s32.totalorder %v7656, 4
        %v7679 = vsel %vm7675, %v7659, %v7662
        %v7680 = vsel %vm7678, %v7668, 2102212464
        %v7681 = vsel %vm7677, %v7665, %v7680
        %v7682 = vsel %vm7676, %v7679, %v7681
        %v7683 = vsel %vm7675, %v7662, %v7665
        %v7684 = vsel %vm7678, %v7671, 920167782
        %v7685 = vsel %vm7677, %v7668, %v7684
        %v7686 = vsel %vm7676, %v7683, %v7685
        %v7687 = vsel %vm7675, %v7665, %v7668
        %v7688 = vsel %vm7678, %v7674, 1326507024
        %v7689 = vsel %vm7677, %v7671, %v7688
        %v7690 = vsel %vm7676, %v7687, %v7689
        %v7691 = vshll.u32 %v7651, 8
        %v7692 = vmul.u32.u64.compose %v7691, %v7690
        %v7693 = vextract.low.u32 %v7692
        %v7694 = vextract.high.u32 %v7692
        %v7695 = vmul.u32.u64.compose %v7691, %v7686
        %v7696 = vextract.low.u32 %v7695
        %v7697 = vextract.high.u32 %v7695
        %v7698 = vmul.u32 %v7691, %v7682
        %v7699 = vadd.s32 %v7694, %v7696
        %vm7700 = vc.u32 %v7694, %v7696
        %v7701 = vadd.s32 %v7697, 1
        %v7702 = vsel %vm7700, %v7701, %v7697
        %v7703 = vadd.s32 %v7698, %v7702
        %v7704 = vadd.s32 %v7703, 536870912
        %v7705 = vshrl.u32 %v7704, 30
        %v7706 = vshll.u32 %v7705, 30
        %v7707 = vsub.s32 %v7703, %v7706
        %vm7708 = vcmp.lt.s32.totalorder %v7707, 0
        %v7709 = vsub.s32 0, %v7707
        %v7710 = vsel %vm7708, %v7709, %v7707
        %v7711 = vclz %v7710
        %v7712 = vsub.s32 %v7711, 2
        %vm7713 = vcmp.gt.s32.totalorder 0, %v7712
        %v7714 = vsel %vm7713, 0, %v7712
        %v7715 = vsub.s32 32, %v7714
        %v7716 = vshll.u32 %v7707, %v7714
        %v7717 = vshrl.u32 %v7699, %v7715
        %v7718 = vor.u32 %v7716, %v7717
        %v7719 = vsub.s32 4294967266, %v7714
        %v7720 = vadd.s32 %v7719, 127
        %v7721 = vshll.u32 %v7720, 23
        %v7722 = vor.u32 4788187, %v7721
        %v7723 = vand.u32 2147483647, %v7722
        %v7725 = vcvt.s32.f32 %v7718
        %v7726 = vmul.f32 %v7725, %v7723
        %v7727 = vxor.u32 %v7726, 2147483648
        %v7728 = vsel %vm7645, %v7727, %v7726
        %v7729 = vsub.s32 4, %v7705
        %v7730 = vsel %vm7645, %v7729, %v7705
        %v7731 = vsel %vm7644, %v3397, %v7728
        %v7732 = vsel %vm7644, 0, %v7730
        %v7733 = vcosq.f32.pop %v7731
        %v7734 = vsinq.f32.pop %v7731
        %vm7735 = vweird.f32 %v3397
        %v7736 = vand.u32 %v7732, 3
        %vm7737 = vcmp.lt.s32.totalorder %v7736, 2
        %vm7738 = vcmp.eq.s32.totalorder %v7736, 0
        %v7739 = vxor.u32 %v7734, 2147483648
        %v7740 = vsel %vm7738, %v7733, %v7739
        %vm7741 = vcmp.eq.s32.totalorder %v7736, 2
        %v7742 = vxor.u32 %v7733, 2147483648
        %v7743 = vsel %vm7741, %v7742, %v7734
        %v7744 = vsel %vm7737, %v7740, %v7743
        %v7745 = vsel %vm7735, nan, %v7744
        %v7746 = vand.u32 2147483647, %v3398
        %vm7747 = vcmp.le.f32.partialorder %v7746, 0.7853982
        %vm7748 = vcmp.lt.s32.totalorder %v3398, 0
        %v7749 = vand.u32 %v3398, 2139095040
        %v7750 = vshrl.u32 %v7749, 23
        %v7751 = vsub.s32 %v7750, 127
        %v7752 = vand.u32 2147483647, %v3398
        %v7753 = vand.u32 %v7752, 8388607
        %v7754 = vor.u32 %v7753, 8388608
        %v7755 = vsub.s32 0, %v7754
        %v7756 = vadd.s32 %v7751, 1
        %vm7757 = vcmp.gt.s32.totalorder %v7756, 0
        %v7758 = vsel %vm7757, %v7756, 0
        %v7759 = vshrl.u32 %v7758, 5
        %v7760 = vand.u32 %v7758, 31
        %v7761 = vsub.s32 32, %v7760
        %v7762 = vshrl.u32 683565275, %v7761
        %v7763 = vshll.u32 683565275, %v7760
        %v7764 = vshrl.u32 2475754826, %v7761
        %v7765 = vor.u32 %v7763, %v7764
        %v7766 = vshll.u32 2475754826, %v7760
        %v7767 = vshrl.u32 2131351028, %v7761
        %v7768 = vor.u32 %v7766, %v7767
        %v7769 = vshll.u32 2131351028, %v7760
        %v7770 = vshrl.u32 2102212464, %v7761
        %v7771 = vor.u32 %v7769, %v7770
        %v7772 = vshll.u32 2102212464, %v7760
        %v7773 = vshrl.u32 920167782, %v7761
        %v7774 = vor.u32 %v7772, %v7773
        %v7775 = vshll.u32 920167782, %v7760
        %v7776 = vshrl.u32 1326507024, %v7761
        %v7777 = vor.u32 %v7775, %v7776
        %vm7778 = vcmp.lt.s32.totalorder %v7759, 1
        %vm7779 = vcmp.lt.s32.totalorder %v7759, 2
        %vm7780 = vcmp.lt.s32.totalorder %v7759, 3
        %vm7781 = vcmp.lt.s32.totalorder %v7759, 4
        %v7782 = vsel %vm7778, %v7762, %v7765
        %v7783 = vsel %vm7781, %v7771, 2102212464
        %v7784 = vsel %vm7780, %v7768, %v7783
        %v7785 = vsel %vm7779, %v7782, %v7784
        %v7786 = vsel %vm7778, %v7765, %v7768
        %v7787 = vsel %vm7781, %v7774, 920167782
        %v7788 = vsel %vm7780, %v7771, %v7787
        %v7789 = vsel %vm7779, %v7786, %v7788
        %v7790 = vsel %vm7778, %v7768, %v7771
        %v7791 = vsel %vm7781, %v7777, 1326507024
        %v7792 = vsel %vm7780, %v7774, %v7791
        %v7793 = vsel %vm7779, %v7790, %v7792
        %v7794 = vshll.u32 %v7754, 8
        %v7795 = vmul.u32.u64.compose %v7794, %v7793
        %v7796 = vextract.low.u32 %v7795
        %v7797 = vextract.high.u32 %v7795
        %v7798 = vmul.u32.u64.compose %v7794, %v7789
        %v7799 = vextract.low.u32 %v7798
        %v7800 = vextract.high.u32 %v7798
        %v7801 = vmul.u32 %v7794, %v7785
        %v7802 = vadd.s32 %v7797, %v7799
        %vm7803 = vc.u32 %v7797, %v7799
        %v7804 = vadd.s32 %v7800, 1
        %v7805 = vsel %vm7803, %v7804, %v7800
        %v7806 = vadd.s32 %v7801, %v7805
        %v7807 = vadd.s32 %v7806, 536870912
        %v7808 = vshrl.u32 %v7807, 30
        %v7809 = vshll.u32 %v7808, 30
        %v7810 = vsub.s32 %v7806, %v7809
        %vm7811 = vcmp.lt.s32.totalorder %v7810, 0
        %v7812 = vsub.s32 0, %v7810
        %v7813 = vsel %vm7811, %v7812, %v7810
        %v7814 = vclz %v7813
        %v7815 = vsub.s32 %v7814, 2
        %vm7816 = vcmp.gt.s32.totalorder 0, %v7815
        %v7817 = vsel %vm7816, 0, %v7815
        %v7818 = vsub.s32 32, %v7817
        %v7819 = vshll.u32 %v7810, %v7817
        %v7820 = vshrl.u32 %v7802, %v7818
        %v7821 = vor.u32 %v7819, %v7820
        %v7822 = vsub.s32 4294967266, %v7817
        %v7823 = vadd.s32 %v7822, 127
        %v7824 = vshll.u32 %v7823, 23
        %v7825 = vor.u32 4788187, %v7824
        %v7826 = vand.u32 2147483647, %v7825
        %v7828 = vcvt.s32.f32 %v7821
        %v7829 = vmul.f32 %v7828, %v7826
        %v7830 = vxor.u32 %v7829, 2147483648
        %v7831 = vsel %vm7748, %v7830, %v7829
        %v7832 = vsub.s32 4, %v7808
        %v7833 = vsel %vm7748, %v7832, %v7808
        %v7834 = vsel %vm7747, %v3398, %v7831
        %v7835 = vsel %vm7747, 0, %v7833
        %v7836 = vcosq.f32.pop %v7834
        %v7837 = vsinq.f32.pop %v7834
        %vm7838 = vweird.f32 %v3398
        %v7839 = vand.u32 %v7835, 3
        %vm7840 = vcmp.lt.s32.totalorder %v7839, 2
        %vm7841 = vcmp.eq.s32.totalorder %v7839, 0
        %v7842 = vxor.u32 %v7837, 2147483648
        %v7843 = vsel %vm7841, %v7836, %v7842
        %vm7844 = vcmp.eq.s32.totalorder %v7839, 2
        %v7845 = vxor.u32 %v7836, 2147483648
        %v7846 = vsel %vm7844, %v7845, %v7837
        %v7847 = vsel %vm7840, %v7843, %v7846
        %v7848 = vsel %vm7838, nan, %v7847
        %v7849 = vand.u32 2147483647, %v3399
        %vm7850 = vcmp.le.f32.partialorder %v7849, 0.7853982
        %vm7851 = vcmp.lt.s32.totalorder %v3399, 0
        %v7852 = vand.u32 %v3399, 2139095040
        %v7853 = vshrl.u32 %v7852, 23
        %v7854 = vsub.s32 %v7853, 127
        %v7855 = vand.u32 2147483647, %v3399
        %v7856 = vand.u32 %v7855, 8388607
        %v7857 = vor.u32 %v7856, 8388608
        %v7858 = vsub.s32 0, %v7857
        %v7859 = vadd.s32 %v7854, 1
        %vm7860 = vcmp.gt.s32.totalorder %v7859, 0
        %v7861 = vsel %vm7860, %v7859, 0
        %v7862 = vshrl.u32 %v7861, 5
        %v7863 = vand.u32 %v7861, 31
        %v7864 = vsub.s32 32, %v7863
        %v7865 = vshrl.u32 683565275, %v7864
        %v7866 = vshll.u32 683565275, %v7863
        %v7867 = vshrl.u32 2475754826, %v7864
        %v7868 = vor.u32 %v7866, %v7867
        %v7869 = vshll.u32 2475754826, %v7863
        %v7870 = vshrl.u32 2131351028, %v7864
        %v7871 = vor.u32 %v7869, %v7870
        %v7872 = vshll.u32 2131351028, %v7863
        %v7873 = vshrl.u32 2102212464, %v7864
        %v7874 = vor.u32 %v7872, %v7873
        %v7875 = vshll.u32 2102212464, %v7863
        %v7876 = vshrl.u32 920167782, %v7864
        %v7877 = vor.u32 %v7875, %v7876
        %v7878 = vshll.u32 920167782, %v7863
        %v7879 = vshrl.u32 1326507024, %v7864
        %v7880 = vor.u32 %v7878, %v7879
        %vm7881 = vcmp.lt.s32.totalorder %v7862, 1
        %vm7882 = vcmp.lt.s32.totalorder %v7862, 2
        %vm7883 = vcmp.lt.s32.totalorder %v7862, 3
        %vm7884 = vcmp.lt.s32.totalorder %v7862, 4
        %v7885 = vsel %vm7881, %v7865, %v7868
        %v7886 = vsel %vm7884, %v7874, 2102212464
        %v7887 = vsel %vm7883, %v7871, %v7886
        %v7888 = vsel %vm7882, %v7885, %v7887
        %v7889 = vsel %vm7881, %v7868, %v7871
        %v7890 = vsel %vm7884, %v7877, 920167782
        %v7891 = vsel %vm7883, %v7874, %v7890
        %v7892 = vsel %vm7882, %v7889, %v7891
        %v7893 = vsel %vm7881, %v7871, %v7874
        %v7894 = vsel %vm7884, %v7880, 1326507024
        %v7895 = vsel %vm7883, %v7877, %v7894
        %v7896 = vsel %vm7882, %v7893, %v7895
        %v7897 = vshll.u32 %v7857, 8
        %v7898 = vmul.u32.u64.compose %v7897, %v7896
        %v7899 = vextract.low.u32 %v7898
        %v7900 = vextract.high.u32 %v7898
        %v7901 = vmul.u32.u64.compose %v7897, %v7892
        %v7902 = vextract.low.u32 %v7901
        %v7903 = vextract.high.u32 %v7901
        %v7904 = vmul.u32 %v7897, %v7888
        %v7905 = vadd.s32 %v7900, %v7902
        %vm7906 = vc.u32 %v7900, %v7902
        %v7907 = vadd.s32 %v7903, 1
        %v7908 = vsel %vm7906, %v7907, %v7903
        %v7909 = vadd.s32 %v7904, %v7908
        %v7910 = vadd.s32 %v7909, 536870912
        %v7911 = vshrl.u32 %v7910, 30
        %v7912 = vshll.u32 %v7911, 30
        %v7913 = vsub.s32 %v7909, %v7912
        %vm7914 = vcmp.lt.s32.totalorder %v7913, 0
        %v7915 = vsub.s32 0, %v7913
        %v7916 = vsel %vm7914, %v7915, %v7913
        %v7917 = vclz %v7916
        %v7918 = vsub.s32 %v7917, 2
        %vm7919 = vcmp.gt.s32.totalorder 0, %v7918
        %v7920 = vsel %vm7919, 0, %v7918
        %v7921 = vsub.s32 32, %v7920
        %v7922 = vshll.u32 %v7913, %v7920
        %v7923 = vshrl.u32 %v7905, %v7921
        %v7924 = vor.u32 %v7922, %v7923
        %v7925 = vsub.s32 4294967266, %v7920
        %v7926 = vadd.s32 %v7925, 127
        %v7927 = vshll.u32 %v7926, 23
        %v7928 = vor.u32 4788187, %v7927
        %v7929 = vand.u32 2147483647, %v7928
        %v7931 = vcvt.s32.f32 %v7924
        %v7932 = vmul.f32 %v7931, %v7929
        %v7933 = vxor.u32 %v7932, 2147483648
        %v7934 = vsel %vm7851, %v7933, %v7932
        %v7935 = vsub.s32 4, %v7911
        %v7936 = vsel %vm7851, %v7935, %v7911
        %v7937 = vsel %vm7850, %v3399, %v7934
        %v7938 = vsel %vm7850, 0, %v7936
        %v7939 = vcosq.f32.pop %v7937
        %v7940 = vsinq.f32.pop %v7937
        %vm7941 = vweird.f32 %v3399
        %v7942 = vand.u32 %v7938, 3
        %vm7943 = vcmp.lt.s32.totalorder %v7942, 2
        %vm7944 = vcmp.eq.s32.totalorder %v7942, 0
        %v7945 = vxor.u32 %v7940, 2147483648
        %v7946 = vsel %vm7944, %v7939, %v7945
        %vm7947 = vcmp.eq.s32.totalorder %v7942, 2
        %v7948 = vxor.u32 %v7939, 2147483648
        %v7949 = vsel %vm7947, %v7948, %v7940
        %v7950 = vsel %vm7943, %v7946, %v7949
        %v7951 = vsel %vm7941, nan, %v7950
        %v7952 = vand.u32 2147483647, %v3400
        %vm7953 = vcmp.le.f32.partialorder %v7952, 0.7853982
        %vm7954 = vcmp.lt.s32.totalorder %v3400, 0
        %v7955 = vand.u32 %v3400, 2139095040
        %v7956 = vshrl.u32 %v7955, 23
        %v7957 = vsub.s32 %v7956, 127
        %v7958 = vand.u32 2147483647, %v3400
        %v7959 = vand.u32 %v7958, 8388607
        %v7960 = vor.u32 %v7959, 8388608
        %v7961 = vsub.s32 0, %v7960
        %v7962 = vadd.s32 %v7957, 1
        %vm7963 = vcmp.gt.s32.totalorder %v7962, 0
        %v7964 = vsel %vm7963, %v7962, 0
        %v7965 = vshrl.u32 %v7964, 5
        %v7966 = vand.u32 %v7964, 31
        %v7967 = vsub.s32 32, %v7966
        %v7968 = vshrl.u32 683565275, %v7967
        %v7969 = vshll.u32 683565275, %v7966
        %v7970 = vshrl.u32 2475754826, %v7967
        %v7971 = vor.u32 %v7969, %v7970
        %v7972 = vshll.u32 2475754826, %v7966
        %v7973 = vshrl.u32 2131351028, %v7967
        %v7974 = vor.u32 %v7972, %v7973
        %v7975 = vshll.u32 2131351028, %v7966
        %v7976 = vshrl.u32 2102212464, %v7967
        %v7977 = vor.u32 %v7975, %v7976
        %v7978 = vshll.u32 2102212464, %v7966
        %v7979 = vshrl.u32 920167782, %v7967
        %v7980 = vor.u32 %v7978, %v7979
        %v7981 = vshll.u32 920167782, %v7966
        %v7982 = vshrl.u32 1326507024, %v7967
        %v7983 = vor.u32 %v7981, %v7982
        %vm7984 = vcmp.lt.s32.totalorder %v7965, 1
        %vm7985 = vcmp.lt.s32.totalorder %v7965, 2
        %vm7986 = vcmp.lt.s32.totalorder %v7965, 3
        %vm7987 = vcmp.lt.s32.totalorder %v7965, 4
        %v7988 = vsel %vm7984, %v7968, %v7971
        %v7989 = vsel %vm7987, %v7977, 2102212464
        %v7990 = vsel %vm7986, %v7974, %v7989
        %v7991 = vsel %vm7985, %v7988, %v7990
        %v7992 = vsel %vm7984, %v7971, %v7974
        %v7993 = vsel %vm7987, %v7980, 920167782
        %v7994 = vsel %vm7986, %v7977, %v7993
        %v7995 = vsel %vm7985, %v7992, %v7994
        %v7996 = vsel %vm7984, %v7974, %v7977
        %v7997 = vsel %vm7987, %v7983, 1326507024
        %v7998 = vsel %vm7986, %v7980, %v7997
        %v7999 = vsel %vm7985, %v7996, %v7998
        %v8000 = vshll.u32 %v7960, 8
        %v8001 = vmul.u32.u64.compose %v8000, %v7999
        %v8002 = vextract.low.u32 %v8001
        %v8003 = vextract.high.u32 %v8001
        %v8004 = vmul.u32.u64.compose %v8000, %v7995
        %v8005 = vextract.low.u32 %v8004
        %v8006 = vextract.high.u32 %v8004
        %v8007 = vmul.u32 %v8000, %v7991
        %v8008 = vadd.s32 %v8003, %v8005
        %vm8009 = vc.u32 %v8003, %v8005
        %v8010 = vadd.s32 %v8006, 1
        %v8011 = vsel %vm8009, %v8010, %v8006
        %v8012 = vadd.s32 %v8007, %v8011
        %v8013 = vadd.s32 %v8012, 536870912
        %v8014 = vshrl.u32 %v8013, 30
        %v8015 = vshll.u32 %v8014, 30
        %v8016 = vsub.s32 %v8012, %v8015
        %vm8017 = vcmp.lt.s32.totalorder %v8016, 0
        %v8018 = vsub.s32 0, %v8016
        %v8019 = vsel %vm8017, %v8018, %v8016
        %v8020 = vclz %v8019
        %v8021 = vsub.s32 %v8020, 2
        %vm8022 = vcmp.gt.s32.totalorder 0, %v8021
        %v8023 = vsel %vm8022, 0, %v8021
        %v8024 = vsub.s32 32, %v8023
        %v8025 = vshll.u32 %v8016, %v8023
        %v8026 = vshrl.u32 %v8008, %v8024
        %v8027 = vor.u32 %v8025, %v8026
        %v8028 = vsub.s32 4294967266, %v8023
        %v8029 = vadd.s32 %v8028, 127
        %v8030 = vshll.u32 %v8029, 23
        %v8031 = vor.u32 4788187, %v8030
        %v8032 = vand.u32 2147483647, %v8031
        %v8034 = vcvt.s32.f32 %v8027
        %v8035 = vmul.f32 %v8034, %v8032
        %v8036 = vxor.u32 %v8035, 2147483648
        %v8037 = vsel %vm7954, %v8036, %v8035
        %v8038 = vsub.s32 4, %v8014
        %v8039 = vsel %vm7954, %v8038, %v8014
        %v8040 = vsel %vm7953, %v3400, %v8037
        %v8041 = vsel %vm7953, 0, %v8039
        %v8042 = vcosq.f32.pop %v8040
        %v8043 = vsinq.f32.pop %v8040
        %vm8044 = vweird.f32 %v3400
        %v8045 = vand.u32 %v8041, 3
        %vm8046 = vcmp.lt.s32.totalorder %v8045, 2
        %vm8047 = vcmp.eq.s32.totalorder %v8045, 0
        %v8048 = vxor.u32 %v8043, 2147483648
        %v8049 = vsel %vm8047, %v8042, %v8048
        %vm8050 = vcmp.eq.s32.totalorder %v8045, 2
        %v8051 = vxor.u32 %v8042, 2147483648
        %v8052 = vsel %vm8050, %v8051, %v8043
        %v8053 = vsel %vm8046, %v8049, %v8052
        %v8054 = vsel %vm8044, nan, %v8053
        %v8055 = vand.u32 2147483647, %v3401
        %vm8056 = vcmp.le.f32.partialorder %v8055, 0.7853982
        %vm8057 = vcmp.lt.s32.totalorder %v3401, 0
        %v8058 = vand.u32 %v3401, 2139095040
        %v8059 = vshrl.u32 %v8058, 23
        %v8060 = vsub.s32 %v8059, 127
        %v8061 = vand.u32 2147483647, %v3401
        %v8062 = vand.u32 %v8061, 8388607
        %v8063 = vor.u32 %v8062, 8388608
        %v8064 = vsub.s32 0, %v8063
        %v8065 = vadd.s32 %v8060, 1
        %vm8066 = vcmp.gt.s32.totalorder %v8065, 0
        %v8067 = vsel %vm8066, %v8065, 0
        %v8068 = vshrl.u32 %v8067, 5
        %v8069 = vand.u32 %v8067, 31
        %v8070 = vsub.s32 32, %v8069
        %v8071 = vshrl.u32 683565275, %v8070
        %v8072 = vshll.u32 683565275, %v8069
        %v8073 = vshrl.u32 2475754826, %v8070
        %v8074 = vor.u32 %v8072, %v8073
        %v8075 = vshll.u32 2475754826, %v8069
        %v8076 = vshrl.u32 2131351028, %v8070
        %v8077 = vor.u32 %v8075, %v8076
        %v8078 = vshll.u32 2131351028, %v8069
        %v8079 = vshrl.u32 2102212464, %v8070
        %v8080 = vor.u32 %v8078, %v8079
        %v8081 = vshll.u32 2102212464, %v8069
        %v8082 = vshrl.u32 920167782, %v8070
        %v8083 = vor.u32 %v8081, %v8082
        %v8084 = vshll.u32 920167782, %v8069
        %v8085 = vshrl.u32 1326507024, %v8070
        %v8086 = vor.u32 %v8084, %v8085
        %vm8087 = vcmp.lt.s32.totalorder %v8068, 1
        %vm8088 = vcmp.lt.s32.totalorder %v8068, 2
        %vm8089 = vcmp.lt.s32.totalorder %v8068, 3
        %vm8090 = vcmp.lt.s32.totalorder %v8068, 4
        %v8091 = vsel %vm8087, %v8071, %v8074
        %v8092 = vsel %vm8090, %v8080, 2102212464
        %v8093 = vsel %vm8089, %v8077, %v8092
        %v8094 = vsel %vm8088, %v8091, %v8093
        %v8095 = vsel %vm8087, %v8074, %v8077
        %v8096 = vsel %vm8090, %v8083, 920167782
        %v8097 = vsel %vm8089, %v8080, %v8096
        %v8098 = vsel %vm8088, %v8095, %v8097
        %v8099 = vsel %vm8087, %v8077, %v8080
        %v8100 = vsel %vm8090, %v8086, 1326507024
        %v8101 = vsel %vm8089, %v8083, %v8100
        %v8102 = vsel %vm8088, %v8099, %v8101
        %v8103 = vshll.u32 %v8063, 8
        %v8104 = vmul.u32.u64.compose %v8103, %v8102
        %v8105 = vextract.low.u32 %v8104
        %v8106 = vextract.high.u32 %v8104
        %v8107 = vmul.u32.u64.compose %v8103, %v8098
        %v8108 = vextract.low.u32 %v8107
        %v8109 = vextract.high.u32 %v8107
        %v8110 = vmul.u32 %v8103, %v8094
        %v8111 = vadd.s32 %v8106, %v8108
        %vm8112 = vc.u32 %v8106, %v8108
        %v8113 = vadd.s32 %v8109, 1
        %v8114 = vsel %vm8112, %v8113, %v8109
        %v8115 = vadd.s32 %v8110, %v8114
        %v8116 = vadd.s32 %v8115, 536870912
        %v8117 = vshrl.u32 %v8116, 30
        %v8118 = vshll.u32 %v8117, 30
        %v8119 = vsub.s32 %v8115, %v8118
        %vm8120 = vcmp.lt.s32.totalorder %v8119, 0
        %v8121 = vsub.s32 0, %v8119
        %v8122 = vsel %vm8120, %v8121, %v8119
        %v8123 = vclz %v8122
        %v8124 = vsub.s32 %v8123, 2
        %vm8125 = vcmp.gt.s32.totalorder 0, %v8124
        %v8126 = vsel %vm8125, 0, %v8124
        %v8127 = vsub.s32 32, %v8126
        %v8128 = vshll.u32 %v8119, %v8126
        %v8129 = vshrl.u32 %v8111, %v8127
        %v8130 = vor.u32 %v8128, %v8129
        %v8131 = vsub.s32 4294967266, %v8126
        %v8132 = vadd.s32 %v8131, 127
        %v8133 = vshll.u32 %v8132, 23
        %v8134 = vor.u32 4788187, %v8133
        %v8135 = vand.u32 2147483647, %v8134
        %v8137 = vcvt.s32.f32 %v8130
        %v8138 = vmul.f32 %v8137, %v8135
        %v8139 = vxor.u32 %v8138, 2147483648
        %v8140 = vsel %vm8057, %v8139, %v8138
        %v8141 = vsub.s32 4, %v8117
        %v8142 = vsel %vm8057, %v8141, %v8117
        %v8143 = vsel %vm8056, %v3401, %v8140
        %v8144 = vsel %vm8056, 0, %v8142
        %v8145 = vcosq.f32.pop %v8143
        %v8146 = vsinq.f32.pop %v8143
        %vm8147 = vweird.f32 %v3401
        %v8148 = vand.u32 %v8144, 3
        %vm8149 = vcmp.lt.s32.totalorder %v8148, 2
        %vm8150 = vcmp.eq.s32.totalorder %v8148, 0
        %v8151 = vxor.u32 %v8146, 2147483648
        %v8152 = vsel %vm8150, %v8145, %v8151
        %vm8153 = vcmp.eq.s32.totalorder %v8148, 2
        %v8154 = vxor.u32 %v8145, 2147483648
        %v8155 = vsel %vm8153, %v8154, %v8146
        %v8156 = vsel %vm8149, %v8152, %v8155
        %v8157 = vsel %vm8147, nan, %v8156
        %v8158 = vand.u32 2147483647, %v3402
        %vm8159 = vcmp.le.f32.partialorder %v8158, 0.7853982
        %vm8160 = vcmp.lt.s32.totalorder %v3402, 0
        %v8161 = vand.u32 %v3402, 2139095040
        %v8162 = vshrl.u32 %v8161, 23
        %v8163 = vsub.s32 %v8162, 127
        %v8164 = vand.u32 2147483647, %v3402
        %v8165 = vand.u32 %v8164, 8388607
        %v8166 = vor.u32 %v8165, 8388608
        %v8167 = vsub.s32 0, %v8166
        %v8168 = vadd.s32 %v8163, 1
        %vm8169 = vcmp.gt.s32.totalorder %v8168, 0
        %v8170 = vsel %vm8169, %v8168, 0
        %v8171 = vshrl.u32 %v8170, 5
        %v8172 = vand.u32 %v8170, 31
        %v8173 = vsub.s32 32, %v8172
        %v8174 = vshrl.u32 683565275, %v8173
        %v8175 = vshll.u32 683565275, %v8172
        %v8176 = vshrl.u32 2475754826, %v8173
        %v8177 = vor.u32 %v8175, %v8176
        %v8178 = vshll.u32 2475754826, %v8172
        %v8179 = vshrl.u32 2131351028, %v8173
        %v8180 = vor.u32 %v8178, %v8179
        %v8181 = vshll.u32 2131351028, %v8172
        %v8182 = vshrl.u32 2102212464, %v8173
        %v8183 = vor.u32 %v8181, %v8182
        %v8184 = vshll.u32 2102212464, %v8172
        %v8185 = vshrl.u32 920167782, %v8173
        %v8186 = vor.u32 %v8184, %v8185
        %v8187 = vshll.u32 920167782, %v8172
        %v8188 = vshrl.u32 1326507024, %v8173
        %v8189 = vor.u32 %v8187, %v8188
        %vm8190 = vcmp.lt.s32.totalorder %v8171, 1
        %vm8191 = vcmp.lt.s32.totalorder %v8171, 2
        %vm8192 = vcmp.lt.s32.totalorder %v8171, 3
        %vm8193 = vcmp.lt.s32.totalorder %v8171, 4
        %v8194 = vsel %vm8190, %v8174, %v8177
        %v8195 = vsel %vm8193, %v8183, 2102212464
        %v8196 = vsel %vm8192, %v8180, %v8195
        %v8197 = vsel %vm8191, %v8194, %v8196
        %v8198 = vsel %vm8190, %v8177, %v8180
        %v8199 = vsel %vm8193, %v8186, 920167782
        %v8200 = vsel %vm8192, %v8183, %v8199
        %v8201 = vsel %vm8191, %v8198, %v8200
        %v8202 = vsel %vm8190, %v8180, %v8183
        %v8203 = vsel %vm8193, %v8189, 1326507024
        %v8204 = vsel %vm8192, %v8186, %v8203
        %v8205 = vsel %vm8191, %v8202, %v8204
        %v8206 = vshll.u32 %v8166, 8
        %v8207 = vmul.u32.u64.compose %v8206, %v8205
        %v8208 = vextract.low.u32 %v8207
        %v8209 = vextract.high.u32 %v8207
        %v8210 = vmul.u32.u64.compose %v8206, %v8201
        %v8211 = vextract.low.u32 %v8210
        %v8212 = vextract.high.u32 %v8210
        %v8213 = vmul.u32 %v8206, %v8197
        %v8214 = vadd.s32 %v8209, %v8211
        %vm8215 = vc.u32 %v8209, %v8211
        %v8216 = vadd.s32 %v8212, 1
        %v8217 = vsel %vm8215, %v8216, %v8212
        %v8218 = vadd.s32 %v8213, %v8217
        %v8219 = vadd.s32 %v8218, 536870912
        %v8220 = vshrl.u32 %v8219, 30
        %v8221 = vshll.u32 %v8220, 30
        %v8222 = vsub.s32 %v8218, %v8221
        %vm8223 = vcmp.lt.s32.totalorder %v8222, 0
        %v8224 = vsub.s32 0, %v8222
        %v8225 = vsel %vm8223, %v8224, %v8222
        %v8226 = vclz %v8225
        %v8227 = vsub.s32 %v8226, 2
        %vm8228 = vcmp.gt.s32.totalorder 0, %v8227
        %v8229 = vsel %vm8228, 0, %v8227
        %v8230 = vsub.s32 32, %v8229
        %v8231 = vshll.u32 %v8222, %v8229
        %v8232 = vshrl.u32 %v8214, %v8230
        %v8233 = vor.u32 %v8231, %v8232
        %v8234 = vsub.s32 4294967266, %v8229
        %v8235 = vadd.s32 %v8234, 127
        %v8236 = vshll.u32 %v8235, 23
        %v8237 = vor.u32 4788187, %v8236
        %v8238 = vand.u32 2147483647, %v8237
        %v8240 = vcvt.s32.f32 %v8233
        %v8241 = vmul.f32 %v8240, %v8238
        %v8242 = vxor.u32 %v8241, 2147483648
        %v8243 = vsel %vm8160, %v8242, %v8241
        %v8244 = vsub.s32 4, %v8220
        %v8245 = vsel %vm8160, %v8244, %v8220
        %v8246 = vsel %vm8159, %v3402, %v8243
        %v8247 = vsel %vm8159, 0, %v8245
        %v8248 = vcosq.f32.pop %v8246
        %v8249 = vsinq.f32.pop %v8246
        %vm8250 = vweird.f32 %v3402
        %v8251 = vand.u32 %v8247, 3
        %vm8252 = vcmp.lt.s32.totalorder %v8251, 2
        %vm8253 = vcmp.eq.s32.totalorder %v8251, 0
        %v8254 = vxor.u32 %v8249, 2147483648
        %v8255 = vsel %vm8253, %v8248, %v8254
        %vm8256 = vcmp.eq.s32.totalorder %v8251, 2
        %v8257 = vxor.u32 %v8248, 2147483648
        %v8258 = vsel %vm8256, %v8257, %v8249
        %v8259 = vsel %vm8252, %v8255, %v8258
        %v8260 = vsel %vm8250, nan, %v8259
        %v8261 = vand.u32 2147483647, %v3403
        %vm8262 = vcmp.le.f32.partialorder %v8261, 0.7853982
        %vm8263 = vcmp.lt.s32.totalorder %v3403, 0
        %v8264 = vand.u32 %v3403, 2139095040
        %v8265 = vshrl.u32 %v8264, 23
        %v8266 = vsub.s32 %v8265, 127
        %v8267 = vand.u32 2147483647, %v3403
        %v8268 = vand.u32 %v8267, 8388607
        %v8269 = vor.u32 %v8268, 8388608
        %v8270 = vsub.s32 0, %v8269
        %v8271 = vadd.s32 %v8266, 1
        %vm8272 = vcmp.gt.s32.totalorder %v8271, 0
        %v8273 = vsel %vm8272, %v8271, 0
        %v8274 = vshrl.u32 %v8273, 5
        %v8275 = vand.u32 %v8273, 31
        %v8276 = vsub.s32 32, %v8275
        %v8277 = vshrl.u32 683565275, %v8276
        %v8278 = vshll.u32 683565275, %v8275
        %v8279 = vshrl.u32 2475754826, %v8276
        %v8280 = vor.u32 %v8278, %v8279
        %v8281 = vshll.u32 2475754826, %v8275
        %v8282 = vshrl.u32 2131351028, %v8276
        %v8283 = vor.u32 %v8281, %v8282
        %v8284 = vshll.u32 2131351028, %v8275
        %v8285 = vshrl.u32 2102212464, %v8276
        %v8286 = vor.u32 %v8284, %v8285
        %v8287 = vshll.u32 2102212464, %v8275
        %v8288 = vshrl.u32 920167782, %v8276
        %v8289 = vor.u32 %v8287, %v8288
        %v8290 = vshll.u32 920167782, %v8275
        %v8291 = vshrl.u32 1326507024, %v8276
        %v8292 = vor.u32 %v8290, %v8291
        %vm8293 = vcmp.lt.s32.totalorder %v8274, 1
        %vm8294 = vcmp.lt.s32.totalorder %v8274, 2
        %vm8295 = vcmp.lt.s32.totalorder %v8274, 3
        %vm8296 = vcmp.lt.s32.totalorder %v8274, 4
        %v8297 = vsel %vm8293, %v8277, %v8280
        %v8298 = vsel %vm8296, %v8286, 2102212464
        %v8299 = vsel %vm8295, %v8283, %v8298
        %v8300 = vsel %vm8294, %v8297, %v8299
        %v8301 = vsel %vm8293, %v8280, %v8283
        %v8302 = vsel %vm8296, %v8289, 920167782
        %v8303 = vsel %vm8295, %v8286, %v8302
        %v8304 = vsel %vm8294, %v8301, %v8303
        %v8305 = vsel %vm8293, %v8283, %v8286
        %v8306 = vsel %vm8296, %v8292, 1326507024
        %v8307 = vsel %vm8295, %v8289, %v8306
        %v8308 = vsel %vm8294, %v8305, %v8307
        %v8309 = vshll.u32 %v8269, 8
        %v8310 = vmul.u32.u64.compose %v8309, %v8308
        %v8311 = vextract.low.u32 %v8310
        %v8312 = vextract.high.u32 %v8310
        %v8313 = vmul.u32.u64.compose %v8309, %v8304
        %v8314 = vextract.low.u32 %v8313
        %v8315 = vextract.high.u32 %v8313
        %v8316 = vmul.u32 %v8309, %v8300
        %v8317 = vadd.s32 %v8312, %v8314
        %vm8318 = vc.u32 %v8312, %v8314
        %v8319 = vadd.s32 %v8315, 1
        %v8320 = vsel %vm8318, %v8319, %v8315
        %v8321 = vadd.s32 %v8316, %v8320
        %v8322 = vadd.s32 %v8321, 536870912
        %v8323 = vshrl.u32 %v8322, 30
        %v8324 = vshll.u32 %v8323, 30
        %v8325 = vsub.s32 %v8321, %v8324
        %vm8326 = vcmp.lt.s32.totalorder %v8325, 0
        %v8327 = vsub.s32 0, %v8325
        %v8328 = vsel %vm8326, %v8327, %v8325
        %v8329 = vclz %v8328
        %v8330 = vsub.s32 %v8329, 2
        %vm8331 = vcmp.gt.s32.totalorder 0, %v8330
        %v8332 = vsel %vm8331, 0, %v8330
        %v8333 = vsub.s32 32, %v8332
        %v8334 = vshll.u32 %v8325, %v8332
        %v8335 = vshrl.u32 %v8317, %v8333
        %v8336 = vor.u32 %v8334, %v8335
        %v8337 = vsub.s32 4294967266, %v8332
        %v8338 = vadd.s32 %v8337, 127
        %v8339 = vshll.u32 %v8338, 23
        %v8340 = vor.u32 4788187, %v8339
        %v8341 = vand.u32 2147483647, %v8340
        %v8343 = vcvt.s32.f32 %v8336
        %v8344 = vmul.f32 %v8343, %v8341
        %v8345 = vxor.u32 %v8344, 2147483648
        %v8346 = vsel %vm8263, %v8345, %v8344
        %v8347 = vsub.s32 4, %v8323
        %v8348 = vsel %vm8263, %v8347, %v8323
        %v8349 = vsel %vm8262, %v3403, %v8346
        %v8350 = vsel %vm8262, 0, %v8348
        %v8351 = vcosq.f32.pop %v8349
        %v8352 = vsinq.f32.pop %v8349
        %vm8353 = vweird.f32 %v3403
        %v8354 = vand.u32 %v8350, 3
        %vm8355 = vcmp.lt.s32.totalorder %v8354, 2
        %vm8356 = vcmp.eq.s32.totalorder %v8354, 0
        %v8357 = vxor.u32 %v8352, 2147483648
        %v8358 = vsel %vm8356, %v8351, %v8357
        %vm8359 = vcmp.eq.s32.totalorder %v8354, 2
        %v8360 = vxor.u32 %v8351, 2147483648
        %v8361 = vsel %vm8359, %v8360, %v8352
        %v8362 = vsel %vm8355, %v8358, %v8361
        %v8363 = vsel %vm8353, nan, %v8362
        %v8364 = vand.u32 2147483647, %v3404
        %vm8365 = vcmp.le.f32.partialorder %v8364, 0.7853982
        %vm8366 = vcmp.lt.s32.totalorder %v3404, 0
        %v8367 = vand.u32 %v3404, 2139095040
        %v8368 = vshrl.u32 %v8367, 23
        %v8369 = vsub.s32 %v8368, 127
        %v8370 = vand.u32 2147483647, %v3404
        %v8371 = vand.u32 %v8370, 8388607
        %v8372 = vor.u32 %v8371, 8388608
        %v8373 = vsub.s32 0, %v8372
        %v8374 = vadd.s32 %v8369, 1
        %vm8375 = vcmp.gt.s32.totalorder %v8374, 0
        %v8376 = vsel %vm8375, %v8374, 0
        %v8377 = vshrl.u32 %v8376, 5
        %v8378 = vand.u32 %v8376, 31
        %v8379 = vsub.s32 32, %v8378
        %v8380 = vshrl.u32 683565275, %v8379
        %v8381 = vshll.u32 683565275, %v8378
        %v8382 = vshrl.u32 2475754826, %v8379
        %v8383 = vor.u32 %v8381, %v8382
        %v8384 = vshll.u32 2475754826, %v8378
        %v8385 = vshrl.u32 2131351028, %v8379
        %v8386 = vor.u32 %v8384, %v8385
        %v8387 = vshll.u32 2131351028, %v8378
        %v8388 = vshrl.u32 2102212464, %v8379
        %v8389 = vor.u32 %v8387, %v8388
        %v8390 = vshll.u32 2102212464, %v8378
        %v8391 = vshrl.u32 920167782, %v8379
        %v8392 = vor.u32 %v8390, %v8391
        %v8393 = vshll.u32 920167782, %v8378
        %v8394 = vshrl.u32 1326507024, %v8379
        %v8395 = vor.u32 %v8393, %v8394
        %vm8396 = vcmp.lt.s32.totalorder %v8377, 1
        %vm8397 = vcmp.lt.s32.totalorder %v8377, 2
        %vm8398 = vcmp.lt.s32.totalorder %v8377, 3
        %vm8399 = vcmp.lt.s32.totalorder %v8377, 4
        %v8400 = vsel %vm8396, %v8380, %v8383
        %v8401 = vsel %vm8399, %v8389, 2102212464
        %v8402 = vsel %vm8398, %v8386, %v8401
        %v8403 = vsel %vm8397, %v8400, %v8402
        %v8404 = vsel %vm8396, %v8383, %v8386
        %v8405 = vsel %vm8399, %v8392, 920167782
        %v8406 = vsel %vm8398, %v8389, %v8405
        %v8407 = vsel %vm8397, %v8404, %v8406
        %v8408 = vsel %vm8396, %v8386, %v8389
        %v8409 = vsel %vm8399, %v8395, 1326507024
        %v8410 = vsel %vm8398, %v8392, %v8409
        %v8411 = vsel %vm8397, %v8408, %v8410
        %v8412 = vshll.u32 %v8372, 8
        %v8413 = vmul.u32.u64.compose %v8412, %v8411
        %v8414 = vextract.low.u32 %v8413
        %v8415 = vextract.high.u32 %v8413
        %v8416 = vmul.u32.u64.compose %v8412, %v8407
        %v8417 = vextract.low.u32 %v8416
        %v8418 = vextract.high.u32 %v8416
        %v8419 = vmul.u32 %v8412, %v8403
        %v8420 = vadd.s32 %v8415, %v8417
        %vm8421 = vc.u32 %v8415, %v8417
        %v8422 = vadd.s32 %v8418, 1
        %v8423 = vsel %vm8421, %v8422, %v8418
        %v8424 = vadd.s32 %v8419, %v8423
        %v8425 = vadd.s32 %v8424, 536870912
        %v8426 = vshrl.u32 %v8425, 30
        %v8427 = vshll.u32 %v8426, 30
        %v8428 = vsub.s32 %v8424, %v8427
        %vm8429 = vcmp.lt.s32.totalorder %v8428, 0
        %v8430 = vsub.s32 0, %v8428
        %v8431 = vsel %vm8429, %v8430, %v8428
        %v8432 = vclz %v8431
        %v8433 = vsub.s32 %v8432, 2
        %vm8434 = vcmp.gt.s32.totalorder 0, %v8433
        %v8435 = vsel %vm8434, 0, %v8433
        %v8436 = vsub.s32 32, %v8435
        %v8437 = vshll.u32 %v8428, %v8435
        %v8438 = vshrl.u32 %v8420, %v8436
        %v8439 = vor.u32 %v8437, %v8438
        %v8440 = vsub.s32 4294967266, %v8435
        %v8441 = vadd.s32 %v8440, 127
        %v8442 = vshll.u32 %v8441, 23
        %v8443 = vor.u32 4788187, %v8442
        %v8444 = vand.u32 2147483647, %v8443
        %v8446 = vcvt.s32.f32 %v8439
        %v8447 = vmul.f32 %v8446, %v8444
        %v8448 = vxor.u32 %v8447, 2147483648
        %v8449 = vsel %vm8366, %v8448, %v8447
        %v8450 = vsub.s32 4, %v8426
        %v8451 = vsel %vm8366, %v8450, %v8426
        %v8452 = vsel %vm8365, %v3404, %v8449
        %v8453 = vsel %vm8365, 0, %v8451
        %v8454 = vcosq.f32.pop %v8452
        %v8455 = vsinq.f32.pop %v8452
        %vm8456 = vweird.f32 %v3404
        %v8457 = vand.u32 %v8453, 3
        %vm8458 = vcmp.lt.s32.totalorder %v8457, 2
        %vm8459 = vcmp.eq.s32.totalorder %v8457, 0
        %v8460 = vxor.u32 %v8455, 2147483648
        %v8461 = vsel %vm8459, %v8454, %v8460
        %vm8462 = vcmp.eq.s32.totalorder %v8457, 2
        %v8463 = vxor.u32 %v8454, 2147483648
        %v8464 = vsel %vm8462, %v8463, %v8455
        %v8465 = vsel %vm8458, %v8461, %v8464
        %v8466 = vsel %vm8456, nan, %v8465
        %v8467 = vand.u32 2147483647, %v3405
        %vm8468 = vcmp.le.f32.partialorder %v8467, 0.7853982
        %vm8469 = vcmp.lt.s32.totalorder %v3405, 0
        %v8470 = vand.u32 %v3405, 2139095040
        %v8471 = vshrl.u32 %v8470, 23
        %v8472 = vsub.s32 %v8471, 127
        %v8473 = vand.u32 2147483647, %v3405
        %v8474 = vand.u32 %v8473, 8388607
        %v8475 = vor.u32 %v8474, 8388608
        %v8476 = vsub.s32 0, %v8475
        %v8477 = vadd.s32 %v8472, 1
        %vm8478 = vcmp.gt.s32.totalorder %v8477, 0
        %v8479 = vsel %vm8478, %v8477, 0
        %v8480 = vshrl.u32 %v8479, 5
        %v8481 = vand.u32 %v8479, 31
        %v8482 = vsub.s32 32, %v8481
        %v8483 = vshrl.u32 683565275, %v8482
        %v8484 = vshll.u32 683565275, %v8481
        %v8485 = vshrl.u32 2475754826, %v8482
        %v8486 = vor.u32 %v8484, %v8485
        %v8487 = vshll.u32 2475754826, %v8481
        %v8488 = vshrl.u32 2131351028, %v8482
        %v8489 = vor.u32 %v8487, %v8488
        %v8490 = vshll.u32 2131351028, %v8481
        %v8491 = vshrl.u32 2102212464, %v8482
        %v8492 = vor.u32 %v8490, %v8491
        %v8493 = vshll.u32 2102212464, %v8481
        %v8494 = vshrl.u32 920167782, %v8482
        %v8495 = vor.u32 %v8493, %v8494
        %v8496 = vshll.u32 920167782, %v8481
        %v8497 = vshrl.u32 1326507024, %v8482
        %v8498 = vor.u32 %v8496, %v8497
        %vm8499 = vcmp.lt.s32.totalorder %v8480, 1
        %vm8500 = vcmp.lt.s32.totalorder %v8480, 2
        %vm8501 = vcmp.lt.s32.totalorder %v8480, 3
        %vm8502 = vcmp.lt.s32.totalorder %v8480, 4
        %v8503 = vsel %vm8499, %v8483, %v8486
        %v8504 = vsel %vm8502, %v8492, 2102212464
        %v8505 = vsel %vm8501, %v8489, %v8504
        %v8506 = vsel %vm8500, %v8503, %v8505
        %v8507 = vsel %vm8499, %v8486, %v8489
        %v8508 = vsel %vm8502, %v8495, 920167782
        %v8509 = vsel %vm8501, %v8492, %v8508
        %v8510 = vsel %vm8500, %v8507, %v8509
        %v8511 = vsel %vm8499, %v8489, %v8492
        %v8512 = vsel %vm8502, %v8498, 1326507024
        %v8513 = vsel %vm8501, %v8495, %v8512
        %v8514 = vsel %vm8500, %v8511, %v8513
        %v8515 = vshll.u32 %v8475, 8
        %v8516 = vmul.u32.u64.compose %v8515, %v8514
        %v8517 = vextract.low.u32 %v8516
        %v8518 = vextract.high.u32 %v8516
        %v8519 = vmul.u32.u64.compose %v8515, %v8510
        %v8520 = vextract.low.u32 %v8519
        %v8521 = vextract.high.u32 %v8519
        %v8522 = vmul.u32 %v8515, %v8506
        %v8523 = vadd.s32 %v8518, %v8520
        %vm8524 = vc.u32 %v8518, %v8520
        %v8525 = vadd.s32 %v8521, 1
        %v8526 = vsel %vm8524, %v8525, %v8521
        %v8527 = vadd.s32 %v8522, %v8526
        %v8528 = vadd.s32 %v8527, 536870912
        %v8529 = vshrl.u32 %v8528, 30
        %v8530 = vshll.u32 %v8529, 30
        %v8531 = vsub.s32 %v8527, %v8530
        %vm8532 = vcmp.lt.s32.totalorder %v8531, 0
        %v8533 = vsub.s32 0, %v8531
        %v8534 = vsel %vm8532, %v8533, %v8531
        %v8535 = vclz %v8534
        %v8536 = vsub.s32 %v8535, 2
        %vm8537 = vcmp.gt.s32.totalorder 0, %v8536
        %v8538 = vsel %vm8537, 0, %v8536
        %v8539 = vsub.s32 32, %v8538
        %v8540 = vshll.u32 %v8531, %v8538
        %v8541 = vshrl.u32 %v8523, %v8539
        %v8542 = vor.u32 %v8540, %v8541
        %v8543 = vsub.s32 4294967266, %v8538
        %v8544 = vadd.s32 %v8543, 127
        %v8545 = vshll.u32 %v8544, 23
        %v8546 = vor.u32 4788187, %v8545
        %v8547 = vand.u32 2147483647, %v8546
        %v8549 = vcvt.s32.f32 %v8542
        %v8550 = vmul.f32 %v8549, %v8547
        %v8551 = vxor.u32 %v8550, 2147483648
        %v8552 = vsel %vm8469, %v8551, %v8550
        %v8553 = vsub.s32 4, %v8529
        %v8554 = vsel %vm8469, %v8553, %v8529
        %v8555 = vsel %vm8468, %v3405, %v8552
        %v8556 = vsel %vm8468, 0, %v8554
        %v8557 = vcosq.f32.pop %v8555
        %v8558 = vsinq.f32.pop %v8555
        %vm8559 = vweird.f32 %v3405
        %v8560 = vand.u32 %v8556, 3
        %vm8561 = vcmp.lt.s32.totalorder %v8560, 2
        %vm8562 = vcmp.eq.s32.totalorder %v8560, 0
        %v8563 = vxor.u32 %v8558, 2147483648
        %v8564 = vsel %vm8562, %v8557, %v8563
        %vm8565 = vcmp.eq.s32.totalorder %v8560, 2
        %v8566 = vxor.u32 %v8557, 2147483648
        %v8567 = vsel %vm8565, %v8566, %v8558
        %v8568 = vsel %vm8561, %v8564, %v8567
        %v8569 = vsel %vm8559, nan, %v8568
        %v8570 = vand.u32 2147483647, %v3406
        %vm8571 = vcmp.le.f32.partialorder %v8570, 0.7853982
        %vm8572 = vcmp.lt.s32.totalorder %v3406, 0
        %v8573 = vand.u32 %v3406, 2139095040
        %v8574 = vshrl.u32 %v8573, 23
        %v8575 = vsub.s32 %v8574, 127
        %v8576 = vand.u32 2147483647, %v3406
        %v8577 = vand.u32 %v8576, 8388607
        %v8578 = vor.u32 %v8577, 8388608
        %v8579 = vsub.s32 0, %v8578
        %v8580 = vadd.s32 %v8575, 1
        %vm8581 = vcmp.gt.s32.totalorder %v8580, 0
        %v8582 = vsel %vm8581, %v8580, 0
        %v8583 = vshrl.u32 %v8582, 5
        %v8584 = vand.u32 %v8582, 31
        %v8585 = vsub.s32 32, %v8584
        %v8586 = vshrl.u32 683565275, %v8585
        %v8587 = vshll.u32 683565275, %v8584
        %v8588 = vshrl.u32 2475754826, %v8585
        %v8589 = vor.u32 %v8587, %v8588
        %v8590 = vshll.u32 2475754826, %v8584
        %v8591 = vshrl.u32 2131351028, %v8585
        %v8592 = vor.u32 %v8590, %v8591
        %v8593 = vshll.u32 2131351028, %v8584
        %v8594 = vshrl.u32 2102212464, %v8585
        %v8595 = vor.u32 %v8593, %v8594
        %v8596 = vshll.u32 2102212464, %v8584
        %v8597 = vshrl.u32 920167782, %v8585
        %v8598 = vor.u32 %v8596, %v8597
        %v8599 = vshll.u32 920167782, %v8584
        %v8600 = vshrl.u32 1326507024, %v8585
        %v8601 = vor.u32 %v8599, %v8600
        %vm8602 = vcmp.lt.s32.totalorder %v8583, 1
        %vm8603 = vcmp.lt.s32.totalorder %v8583, 2
        %vm8604 = vcmp.lt.s32.totalorder %v8583, 3
        %vm8605 = vcmp.lt.s32.totalorder %v8583, 4
        %v8606 = vsel %vm8602, %v8586, %v8589
        %v8607 = vsel %vm8605, %v8595, 2102212464
        %v8608 = vsel %vm8604, %v8592, %v8607
        %v8609 = vsel %vm8603, %v8606, %v8608
        %v8610 = vsel %vm8602, %v8589, %v8592
        %v8611 = vsel %vm8605, %v8598, 920167782
        %v8612 = vsel %vm8604, %v8595, %v8611
        %v8613 = vsel %vm8603, %v8610, %v8612
        %v8614 = vsel %vm8602, %v8592, %v8595
        %v8615 = vsel %vm8605, %v8601, 1326507024
        %v8616 = vsel %vm8604, %v8598, %v8615
        %v8617 = vsel %vm8603, %v8614, %v8616
        %v8618 = vshll.u32 %v8578, 8
        %v8619 = vmul.u32.u64.compose %v8618, %v8617
        %v8620 = vextract.low.u32 %v8619
        %v8621 = vextract.high.u32 %v8619
        %v8622 = vmul.u32.u64.compose %v8618, %v8613
        %v8623 = vextract.low.u32 %v8622
        %v8624 = vextract.high.u32 %v8622
        %v8625 = vmul.u32 %v8618, %v8609
        %v8626 = vadd.s32 %v8621, %v8623
        %vm8627 = vc.u32 %v8621, %v8623
        %v8628 = vadd.s32 %v8624, 1
        %v8629 = vsel %vm8627, %v8628, %v8624
        %v8630 = vadd.s32 %v8625, %v8629
        %v8631 = vadd.s32 %v8630, 536870912
        %v8632 = vshrl.u32 %v8631, 30
        %v8633 = vshll.u32 %v8632, 30
        %v8634 = vsub.s32 %v8630, %v8633
        %vm8635 = vcmp.lt.s32.totalorder %v8634, 0
        %v8636 = vsub.s32 0, %v8634
        %v8637 = vsel %vm8635, %v8636, %v8634
        %v8638 = vclz %v8637
        %v8639 = vsub.s32 %v8638, 2
        %vm8640 = vcmp.gt.s32.totalorder 0, %v8639
        %v8641 = vsel %vm8640, 0, %v8639
        %v8642 = vsub.s32 32, %v8641
        %v8643 = vshll.u32 %v8634, %v8641
        %v8644 = vshrl.u32 %v8626, %v8642
        %v8645 = vor.u32 %v8643, %v8644
        %v8646 = vsub.s32 4294967266, %v8641
        %v8647 = vadd.s32 %v8646, 127
        %v8648 = vshll.u32 %v8647, 23
        %v8649 = vor.u32 4788187, %v8648
        %v8650 = vand.u32 2147483647, %v8649
        %v8652 = vcvt.s32.f32 %v8645
        %v8653 = vmul.f32 %v8652, %v8650
        %v8654 = vxor.u32 %v8653, 2147483648
        %v8655 = vsel %vm8572, %v8654, %v8653
        %v8656 = vsub.s32 4, %v8632
        %v8657 = vsel %vm8572, %v8656, %v8632
        %v8658 = vsel %vm8571, %v3406, %v8655
        %v8659 = vsel %vm8571, 0, %v8657
        %v8660 = vcosq.f32.pop %v8658
        %v8661 = vsinq.f32.pop %v8658
        %vm8662 = vweird.f32 %v3406
        %v8663 = vand.u32 %v8659, 3
        %vm8664 = vcmp.lt.s32.totalorder %v8663, 2
        %vm8665 = vcmp.eq.s32.totalorder %v8663, 0
        %v8666 = vxor.u32 %v8661, 2147483648
        %v8667 = vsel %vm8665, %v8660, %v8666
        %vm8668 = vcmp.eq.s32.totalorder %v8663, 2
        %v8669 = vxor.u32 %v8660, 2147483648
        %v8670 = vsel %vm8668, %v8669, %v8661
        %v8671 = vsel %vm8664, %v8667, %v8670
        %v8672 = vsel %vm8662, nan, %v8671
        %v8673 = vand.u32 2147483647, %v3407
        %vm8674 = vcmp.le.f32.partialorder %v8673, 0.7853982
        %vm8675 = vcmp.lt.s32.totalorder %v3407, 0
        %v8676 = vand.u32 %v3407, 2139095040
        %v8677 = vshrl.u32 %v8676, 23
        %v8678 = vsub.s32 %v8677, 127
        %v8679 = vand.u32 2147483647, %v3407
        %v8680 = vand.u32 %v8679, 8388607
        %v8681 = vor.u32 %v8680, 8388608
        %v8682 = vsub.s32 0, %v8681
        %v8683 = vadd.s32 %v8678, 1
        %vm8684 = vcmp.gt.s32.totalorder %v8683, 0
        %v8685 = vsel %vm8684, %v8683, 0
        %v8686 = vshrl.u32 %v8685, 5
        %v8687 = vand.u32 %v8685, 31
        %v8688 = vsub.s32 32, %v8687
        %v8689 = vshrl.u32 683565275, %v8688
        %v8690 = vshll.u32 683565275, %v8687
        %v8691 = vshrl.u32 2475754826, %v8688
        %v8692 = vor.u32 %v8690, %v8691
        %v8693 = vshll.u32 2475754826, %v8687
        %v8694 = vshrl.u32 2131351028, %v8688
        %v8695 = vor.u32 %v8693, %v8694
        %v8696 = vshll.u32 2131351028, %v8687
        %v8697 = vshrl.u32 2102212464, %v8688
        %v8698 = vor.u32 %v8696, %v8697
        %v8699 = vshll.u32 2102212464, %v8687
        %v8700 = vshrl.u32 920167782, %v8688
        %v8701 = vor.u32 %v8699, %v8700
        %v8702 = vshll.u32 920167782, %v8687
        %v8703 = vshrl.u32 1326507024, %v8688
        %v8704 = vor.u32 %v8702, %v8703
        %vm8705 = vcmp.lt.s32.totalorder %v8686, 1
        %vm8706 = vcmp.lt.s32.totalorder %v8686, 2
        %vm8707 = vcmp.lt.s32.totalorder %v8686, 3
        %vm8708 = vcmp.lt.s32.totalorder %v8686, 4
        %v8709 = vsel %vm8705, %v8689, %v8692
        %v8710 = vsel %vm8708, %v8698, 2102212464
        %v8711 = vsel %vm8707, %v8695, %v8710
        %v8712 = vsel %vm8706, %v8709, %v8711
        %v8713 = vsel %vm8705, %v8692, %v8695
        %v8714 = vsel %vm8708, %v8701, 920167782
        %v8715 = vsel %vm8707, %v8698, %v8714
        %v8716 = vsel %vm8706, %v8713, %v8715
        %v8717 = vsel %vm8705, %v8695, %v8698
        %v8718 = vsel %vm8708, %v8704, 1326507024
        %v8719 = vsel %vm8707, %v8701, %v8718
        %v8720 = vsel %vm8706, %v8717, %v8719
        %v8721 = vshll.u32 %v8681, 8
        %v8722 = vmul.u32.u64.compose %v8721, %v8720
        %v8723 = vextract.low.u32 %v8722
        %v8724 = vextract.high.u32 %v8722
        %v8725 = vmul.u32.u64.compose %v8721, %v8716
        %v8726 = vextract.low.u32 %v8725
        %v8727 = vextract.high.u32 %v8725
        %v8728 = vmul.u32 %v8721, %v8712
        %v8729 = vadd.s32 %v8724, %v8726
        %vm8730 = vc.u32 %v8724, %v8726
        %v8731 = vadd.s32 %v8727, 1
        %v8732 = vsel %vm8730, %v8731, %v8727
        %v8733 = vadd.s32 %v8728, %v8732
        %v8734 = vadd.s32 %v8733, 536870912
        %v8735 = vshrl.u32 %v8734, 30
        %v8736 = vshll.u32 %v8735, 30
        %v8737 = vsub.s32 %v8733, %v8736
        %vm8738 = vcmp.lt.s32.totalorder %v8737, 0
        %v8739 = vsub.s32 0, %v8737
        %v8740 = vsel %vm8738, %v8739, %v8737
        %v8741 = vclz %v8740
        %v8742 = vsub.s32 %v8741, 2
        %vm8743 = vcmp.gt.s32.totalorder 0, %v8742
        %v8744 = vsel %vm8743, 0, %v8742
        %v8745 = vsub.s32 32, %v8744
        %v8746 = vshll.u32 %v8737, %v8744
        %v8747 = vshrl.u32 %v8729, %v8745
        %v8748 = vor.u32 %v8746, %v8747
        %v8749 = vsub.s32 4294967266, %v8744
        %v8750 = vadd.s32 %v8749, 127
        %v8751 = vshll.u32 %v8750, 23
        %v8752 = vor.u32 4788187, %v8751
        %v8753 = vand.u32 2147483647, %v8752
        %v8755 = vcvt.s32.f32 %v8748
        %v8756 = vmul.f32 %v8755, %v8753
        %v8757 = vxor.u32 %v8756, 2147483648
        %v8758 = vsel %vm8675, %v8757, %v8756
        %v8759 = vsub.s32 4, %v8735
        %v8760 = vsel %vm8675, %v8759, %v8735
        %v8761 = vsel %vm8674, %v3407, %v8758
        %v8762 = vsel %vm8674, 0, %v8760
        %v8763 = vcosq.f32.pop %v8761
        %v8764 = vsinq.f32.pop %v8761
        %vm8765 = vweird.f32 %v3407
        %v8766 = vand.u32 %v8762, 3
        %vm8767 = vcmp.lt.s32.totalorder %v8766, 2
        %vm8768 = vcmp.eq.s32.totalorder %v8766, 0
        %v8769 = vxor.u32 %v8764, 2147483648
        %v8770 = vsel %vm8768, %v8763, %v8769
        %vm8771 = vcmp.eq.s32.totalorder %v8766, 2
        %v8772 = vxor.u32 %v8763, 2147483648
        %v8773 = vsel %vm8771, %v8772, %v8764
        %v8774 = vsel %vm8767, %v8770, %v8773
        %v8775 = vsel %vm8765, nan, %v8774
        %v8776 = vand.u32 2147483647, %v3408
        %vm8777 = vcmp.le.f32.partialorder %v8776, 0.7853982
        %vm8778 = vcmp.lt.s32.totalorder %v3408, 0
        %v8779 = vand.u32 %v3408, 2139095040
        %v8780 = vshrl.u32 %v8779, 23
        %v8781 = vsub.s32 %v8780, 127
        %v8782 = vand.u32 2147483647, %v3408
        %v8783 = vand.u32 %v8782, 8388607
        %v8784 = vor.u32 %v8783, 8388608
        %v8785 = vsub.s32 0, %v8784
        %v8786 = vadd.s32 %v8781, 1
        %vm8787 = vcmp.gt.s32.totalorder %v8786, 0
        %v8788 = vsel %vm8787, %v8786, 0
        %v8789 = vshrl.u32 %v8788, 5
        %v8790 = vand.u32 %v8788, 31
        %v8791 = vsub.s32 32, %v8790
        %v8792 = vshrl.u32 683565275, %v8791
        %v8793 = vshll.u32 683565275, %v8790
        %v8794 = vshrl.u32 2475754826, %v8791
        %v8795 = vor.u32 %v8793, %v8794
        %v8796 = vshll.u32 2475754826, %v8790
        %v8797 = vshrl.u32 2131351028, %v8791
        %v8798 = vor.u32 %v8796, %v8797
        %v8799 = vshll.u32 2131351028, %v8790
        %v8800 = vshrl.u32 2102212464, %v8791
        %v8801 = vor.u32 %v8799, %v8800
        %v8802 = vshll.u32 2102212464, %v8790
        %v8803 = vshrl.u32 920167782, %v8791
        %v8804 = vor.u32 %v8802, %v8803
        %v8805 = vshll.u32 920167782, %v8790
        %v8806 = vshrl.u32 1326507024, %v8791
        %v8807 = vor.u32 %v8805, %v8806
        %vm8808 = vcmp.lt.s32.totalorder %v8789, 1
        %vm8809 = vcmp.lt.s32.totalorder %v8789, 2
        %vm8810 = vcmp.lt.s32.totalorder %v8789, 3
        %vm8811 = vcmp.lt.s32.totalorder %v8789, 4
        %v8812 = vsel %vm8808, %v8792, %v8795
        %v8813 = vsel %vm8811, %v8801, 2102212464
        %v8814 = vsel %vm8810, %v8798, %v8813
        %v8815 = vsel %vm8809, %v8812, %v8814
        %v8816 = vsel %vm8808, %v8795, %v8798
        %v8817 = vsel %vm8811, %v8804, 920167782
        %v8818 = vsel %vm8810, %v8801, %v8817
        %v8819 = vsel %vm8809, %v8816, %v8818
        %v8820 = vsel %vm8808, %v8798, %v8801
        %v8821 = vsel %vm8811, %v8807, 1326507024
        %v8822 = vsel %vm8810, %v8804, %v8821
        %v8823 = vsel %vm8809, %v8820, %v8822
        %v8824 = vshll.u32 %v8784, 8
        %v8825 = vmul.u32.u64.compose %v8824, %v8823
        %v8826 = vextract.low.u32 %v8825
        %v8827 = vextract.high.u32 %v8825
        %v8828 = vmul.u32.u64.compose %v8824, %v8819
        %v8829 = vextract.low.u32 %v8828
        %v8830 = vextract.high.u32 %v8828
        %v8831 = vmul.u32 %v8824, %v8815
        %v8832 = vadd.s32 %v8827, %v8829
        %vm8833 = vc.u32 %v8827, %v8829
        %v8834 = vadd.s32 %v8830, 1
        %v8835 = vsel %vm8833, %v8834, %v8830
        %v8836 = vadd.s32 %v8831, %v8835
        %v8837 = vadd.s32 %v8836, 536870912
        %v8838 = vshrl.u32 %v8837, 30
        %v8839 = vshll.u32 %v8838, 30
        %v8840 = vsub.s32 %v8836, %v8839
        %vm8841 = vcmp.lt.s32.totalorder %v8840, 0
        %v8842 = vsub.s32 0, %v8840
        %v8843 = vsel %vm8841, %v8842, %v8840
        %v8844 = vclz %v8843
        %v8845 = vsub.s32 %v8844, 2
        %vm8846 = vcmp.gt.s32.totalorder 0, %v8845
        %v8847 = vsel %vm8846, 0, %v8845
        %v8848 = vsub.s32 32, %v8847
        %v8849 = vshll.u32 %v8840, %v8847
        %v8850 = vshrl.u32 %v8832, %v8848
        %v8851 = vor.u32 %v8849, %v8850
        %v8852 = vsub.s32 4294967266, %v8847
        %v8853 = vadd.s32 %v8852, 127
        %v8854 = vshll.u32 %v8853, 23
        %v8855 = vor.u32 4788187, %v8854
        %v8856 = vand.u32 2147483647, %v8855
        %v8858 = vcvt.s32.f32 %v8851
        %v8859 = vmul.f32 %v8858, %v8856
        %v8860 = vxor.u32 %v8859, 2147483648
        %v8861 = vsel %vm8778, %v8860, %v8859
        %v8862 = vsub.s32 4, %v8838
        %v8863 = vsel %vm8778, %v8862, %v8838
        %v8864 = vsel %vm8777, %v3408, %v8861
        %v8865 = vsel %vm8777, 0, %v8863
        %v8866 = vcosq.f32.pop %v8864
        %v8867 = vsinq.f32.pop %v8864
        %vm8868 = vweird.f32 %v3408
        %v8869 = vand.u32 %v8865, 3
        %vm8870 = vcmp.lt.s32.totalorder %v8869, 2
        %vm8871 = vcmp.eq.s32.totalorder %v8869, 0
        %v8872 = vxor.u32 %v8867, 2147483648
        %v8873 = vsel %vm8871, %v8866, %v8872
        %vm8874 = vcmp.eq.s32.totalorder %v8869, 2
        %v8875 = vxor.u32 %v8866, 2147483648
        %v8876 = vsel %vm8874, %v8875, %v8867
        %v8877 = vsel %vm8870, %v8873, %v8876
        %v8878 = vsel %vm8868, nan, %v8877
        %v8879 = vand.u32 2147483647, %v3409
        %vm8880 = vcmp.le.f32.partialorder %v8879, 0.7853982
        %vm8881 = vcmp.lt.s32.totalorder %v3409, 0
        %v8882 = vand.u32 %v3409, 2139095040
        %v8883 = vshrl.u32 %v8882, 23
        %v8884 = vsub.s32 %v8883, 127
        %v8885 = vand.u32 2147483647, %v3409
        %v8886 = vand.u32 %v8885, 8388607
        %v8887 = vor.u32 %v8886, 8388608
        %v8888 = vsub.s32 0, %v8887
        %v8889 = vadd.s32 %v8884, 1
        %vm8890 = vcmp.gt.s32.totalorder %v8889, 0
        %v8891 = vsel %vm8890, %v8889, 0
        %v8892 = vshrl.u32 %v8891, 5
        %v8893 = vand.u32 %v8891, 31
        %v8894 = vsub.s32 32, %v8893
        %v8895 = vshrl.u32 683565275, %v8894
        %v8896 = vshll.u32 683565275, %v8893
        %v8897 = vshrl.u32 2475754826, %v8894
        %v8898 = vor.u32 %v8896, %v8897
        %v8899 = vshll.u32 2475754826, %v8893
        %v8900 = vshrl.u32 2131351028, %v8894
        %v8901 = vor.u32 %v8899, %v8900
        %v8902 = vshll.u32 2131351028, %v8893
        %v8903 = vshrl.u32 2102212464, %v8894
        %v8904 = vor.u32 %v8902, %v8903
        %v8905 = vshll.u32 2102212464, %v8893
        %v8906 = vshrl.u32 920167782, %v8894
        %v8907 = vor.u32 %v8905, %v8906
        %v8908 = vshll.u32 920167782, %v8893
        %v8909 = vshrl.u32 1326507024, %v8894
        %v8910 = vor.u32 %v8908, %v8909
        %vm8911 = vcmp.lt.s32.totalorder %v8892, 1
        %vm8912 = vcmp.lt.s32.totalorder %v8892, 2
        %vm8913 = vcmp.lt.s32.totalorder %v8892, 3
        %vm8914 = vcmp.lt.s32.totalorder %v8892, 4
        %v8915 = vsel %vm8911, %v8895, %v8898
        %v8916 = vsel %vm8914, %v8904, 2102212464
        %v8917 = vsel %vm8913, %v8901, %v8916
        %v8918 = vsel %vm8912, %v8915, %v8917
        %v8919 = vsel %vm8911, %v8898, %v8901
        %v8920 = vsel %vm8914, %v8907, 920167782
        %v8921 = vsel %vm8913, %v8904, %v8920
        %v8922 = vsel %vm8912, %v8919, %v8921
        %v8923 = vsel %vm8911, %v8901, %v8904
        %v8924 = vsel %vm8914, %v8910, 1326507024
        %v8925 = vsel %vm8913, %v8907, %v8924
        %v8926 = vsel %vm8912, %v8923, %v8925
        %v8927 = vshll.u32 %v8887, 8
        %v8928 = vmul.u32.u64.compose %v8927, %v8926
        %v8929 = vextract.low.u32 %v8928
        %v8930 = vextract.high.u32 %v8928
        %v8931 = vmul.u32.u64.compose %v8927, %v8922
        %v8932 = vextract.low.u32 %v8931
        %v8933 = vextract.high.u32 %v8931
        %v8934 = vmul.u32 %v8927, %v8918
        %v8935 = vadd.s32 %v8930, %v8932
        %vm8936 = vc.u32 %v8930, %v8932
        %v8937 = vadd.s32 %v8933, 1
        %v8938 = vsel %vm8936, %v8937, %v8933
        %v8939 = vadd.s32 %v8934, %v8938
        %v8940 = vadd.s32 %v8939, 536870912
        %v8941 = vshrl.u32 %v8940, 30
        %v8942 = vshll.u32 %v8941, 30
        %v8943 = vsub.s32 %v8939, %v8942
        %vm8944 = vcmp.lt.s32.totalorder %v8943, 0
        %v8945 = vsub.s32 0, %v8943
        %v8946 = vsel %vm8944, %v8945, %v8943
        %v8947 = vclz %v8946
        %v8948 = vsub.s32 %v8947, 2
        %vm8949 = vcmp.gt.s32.totalorder 0, %v8948
        %v8950 = vsel %vm8949, 0, %v8948
        %v8951 = vsub.s32 32, %v8950
        %v8952 = vshll.u32 %v8943, %v8950
        %v8953 = vshrl.u32 %v8935, %v8951
        %v8954 = vor.u32 %v8952, %v8953
        %v8955 = vsub.s32 4294967266, %v8950
        %v8956 = vadd.s32 %v8955, 127
        %v8957 = vshll.u32 %v8956, 23
        %v8958 = vor.u32 4788187, %v8957
        %v8959 = vand.u32 2147483647, %v8958
        %v8961 = vcvt.s32.f32 %v8954
        %v8962 = vmul.f32 %v8961, %v8959
        %v8963 = vxor.u32 %v8962, 2147483648
        %v8964 = vsel %vm8881, %v8963, %v8962
        %v8965 = vsub.s32 4, %v8941
        %v8966 = vsel %vm8881, %v8965, %v8941
        %v8967 = vsel %vm8880, %v3409, %v8964
        %v8968 = vsel %vm8880, 0, %v8966
        %v8969 = vcosq.f32.pop %v8967
        %v8970 = vsinq.f32.pop %v8967
        %vm8971 = vweird.f32 %v3409
        %v8972 = vand.u32 %v8968, 3
        %vm8973 = vcmp.lt.s32.totalorder %v8972, 2
        %vm8974 = vcmp.eq.s32.totalorder %v8972, 0
        %v8975 = vxor.u32 %v8970, 2147483648
        %v8976 = vsel %vm8974, %v8969, %v8975
        %vm8977 = vcmp.eq.s32.totalorder %v8972, 2
        %v8978 = vxor.u32 %v8969, 2147483648
        %v8979 = vsel %vm8977, %v8978, %v8970
        %v8980 = vsel %vm8973, %v8976, %v8979
        %v8981 = vsel %vm8971, nan, %v8980
        %v8982 = vand.u32 2147483647, %v3410
        %vm8983 = vcmp.le.f32.partialorder %v8982, 0.7853982
        %vm8984 = vcmp.lt.s32.totalorder %v3410, 0
        %v8985 = vand.u32 %v3410, 2139095040
        %v8986 = vshrl.u32 %v8985, 23
        %v8987 = vsub.s32 %v8986, 127
        %v8988 = vand.u32 2147483647, %v3410
        %v8989 = vand.u32 %v8988, 8388607
        %v8990 = vor.u32 %v8989, 8388608
        %v8991 = vsub.s32 0, %v8990
        %v8992 = vadd.s32 %v8987, 1
        %vm8993 = vcmp.gt.s32.totalorder %v8992, 0
        %v8994 = vsel %vm8993, %v8992, 0
        %v8995 = vshrl.u32 %v8994, 5
        %v8996 = vand.u32 %v8994, 31
        %v8997 = vsub.s32 32, %v8996
        %v8998 = vshrl.u32 683565275, %v8997
        %v8999 = vshll.u32 683565275, %v8996
        %v9000 = vshrl.u32 2475754826, %v8997
        %v9001 = vor.u32 %v8999, %v9000
        %v9002 = vshll.u32 2475754826, %v8996
        %v9003 = vshrl.u32 2131351028, %v8997
        %v9004 = vor.u32 %v9002, %v9003
        %v9005 = vshll.u32 2131351028, %v8996
        %v9006 = vshrl.u32 2102212464, %v8997
        %v9007 = vor.u32 %v9005, %v9006
        %v9008 = vshll.u32 2102212464, %v8996
        %v9009 = vshrl.u32 920167782, %v8997
        %v9010 = vor.u32 %v9008, %v9009
        %v9011 = vshll.u32 920167782, %v8996
        %v9012 = vshrl.u32 1326507024, %v8997
        %v9013 = vor.u32 %v9011, %v9012
        %vm9014 = vcmp.lt.s32.totalorder %v8995, 1
        %vm9015 = vcmp.lt.s32.totalorder %v8995, 2
        %vm9016 = vcmp.lt.s32.totalorder %v8995, 3
        %vm9017 = vcmp.lt.s32.totalorder %v8995, 4
        %v9018 = vsel %vm9014, %v8998, %v9001
        %v9019 = vsel %vm9017, %v9007, 2102212464
        %v9020 = vsel %vm9016, %v9004, %v9019
        %v9021 = vsel %vm9015, %v9018, %v9020
        %v9022 = vsel %vm9014, %v9001, %v9004
        %v9023 = vsel %vm9017, %v9010, 920167782
        %v9024 = vsel %vm9016, %v9007, %v9023
        %v9025 = vsel %vm9015, %v9022, %v9024
        %v9026 = vsel %vm9014, %v9004, %v9007
        %v9027 = vsel %vm9017, %v9013, 1326507024
        %v9028 = vsel %vm9016, %v9010, %v9027
        %v9029 = vsel %vm9015, %v9026, %v9028
        %v9030 = vshll.u32 %v8990, 8
        %v9031 = vmul.u32.u64.compose %v9030, %v9029
        %v9032 = vextract.low.u32 %v9031
        %v9033 = vextract.high.u32 %v9031
        %v9034 = vmul.u32.u64.compose %v9030, %v9025
        %v9035 = vextract.low.u32 %v9034
        %v9036 = vextract.high.u32 %v9034
        %v9037 = vmul.u32 %v9030, %v9021
        %v9038 = vadd.s32 %v9033, %v9035
        %vm9039 = vc.u32 %v9033, %v9035
        %v9040 = vadd.s32 %v9036, 1
        %v9041 = vsel %vm9039, %v9040, %v9036
        %v9042 = vadd.s32 %v9037, %v9041
        %v9043 = vadd.s32 %v9042, 536870912
        %v9044 = vshrl.u32 %v9043, 30
        %v9045 = vshll.u32 %v9044, 30
        %v9046 = vsub.s32 %v9042, %v9045
        %vm9047 = vcmp.lt.s32.totalorder %v9046, 0
        %v9048 = vsub.s32 0, %v9046
        %v9049 = vsel %vm9047, %v9048, %v9046
        %v9050 = vclz %v9049
        %v9051 = vsub.s32 %v9050, 2
        %vm9052 = vcmp.gt.s32.totalorder 0, %v9051
        %v9053 = vsel %vm9052, 0, %v9051
        %v9054 = vsub.s32 32, %v9053
        %v9055 = vshll.u32 %v9046, %v9053
        %v9056 = vshrl.u32 %v9038, %v9054
        %v9057 = vor.u32 %v9055, %v9056
        %v9058 = vsub.s32 4294967266, %v9053
        %v9059 = vadd.s32 %v9058, 127
        %v9060 = vshll.u32 %v9059, 23
        %v9061 = vor.u32 4788187, %v9060
        %v9062 = vand.u32 2147483647, %v9061
        %v9064 = vcvt.s32.f32 %v9057
        %v9065 = vmul.f32 %v9064, %v9062
        %v9066 = vxor.u32 %v9065, 2147483648
        %v9067 = vsel %vm8984, %v9066, %v9065
        %v9068 = vsub.s32 4, %v9044
        %v9069 = vsel %vm8984, %v9068, %v9044
        %v9070 = vsel %vm8983, %v3410, %v9067
        %v9071 = vsel %vm8983, 0, %v9069
        %v9072 = vcosq.f32.pop %v9070
        %v9073 = vsinq.f32.pop %v9070
        %vm9074 = vweird.f32 %v3410
        %v9075 = vand.u32 %v9071, 3
        %vm9076 = vcmp.lt.s32.totalorder %v9075, 2
        %vm9077 = vcmp.eq.s32.totalorder %v9075, 0
        %v9078 = vxor.u32 %v9073, 2147483648
        %v9079 = vsel %vm9077, %v9072, %v9078
        %vm9080 = vcmp.eq.s32.totalorder %v9075, 2
        %v9081 = vxor.u32 %v9072, 2147483648
        %v9082 = vsel %vm9080, %v9081, %v9073
        %v9083 = vsel %vm9076, %v9079, %v9082
        %v9084 = vsel %vm9074, nan, %v9083
        %v9085 = vand.u32 2147483647, %v3411
        %vm9086 = vcmp.le.f32.partialorder %v9085, 0.7853982
        %vm9087 = vcmp.lt.s32.totalorder %v3411, 0
        %v9088 = vand.u32 %v3411, 2139095040
        %v9089 = vshrl.u32 %v9088, 23
        %v9090 = vsub.s32 %v9089, 127
        %v9091 = vand.u32 2147483647, %v3411
        %v9092 = vand.u32 %v9091, 8388607
        %v9093 = vor.u32 %v9092, 8388608
        %v9094 = vsub.s32 0, %v9093
        %v9095 = vadd.s32 %v9090, 1
        %vm9096 = vcmp.gt.s32.totalorder %v9095, 0
        %v9097 = vsel %vm9096, %v9095, 0
        %v9098 = vshrl.u32 %v9097, 5
        %v9099 = vand.u32 %v9097, 31
        %v9100 = vsub.s32 32, %v9099
        %v9101 = vshrl.u32 683565275, %v9100
        %v9102 = vshll.u32 683565275, %v9099
        %v9103 = vshrl.u32 2475754826, %v9100
        %v9104 = vor.u32 %v9102, %v9103
        %v9105 = vshll.u32 2475754826, %v9099
        %v9106 = vshrl.u32 2131351028, %v9100
        %v9107 = vor.u32 %v9105, %v9106
        %v9108 = vshll.u32 2131351028, %v9099
        %v9109 = vshrl.u32 2102212464, %v9100
        %v9110 = vor.u32 %v9108, %v9109
        %v9111 = vshll.u32 2102212464, %v9099
        %v9112 = vshrl.u32 920167782, %v9100
        %v9113 = vor.u32 %v9111, %v9112
        %v9114 = vshll.u32 920167782, %v9099
        %v9115 = vshrl.u32 1326507024, %v9100
        %v9116 = vor.u32 %v9114, %v9115
        %vm9117 = vcmp.lt.s32.totalorder %v9098, 1
        %vm9118 = vcmp.lt.s32.totalorder %v9098, 2
        %vm9119 = vcmp.lt.s32.totalorder %v9098, 3
        %vm9120 = vcmp.lt.s32.totalorder %v9098, 4
        %v9121 = vsel %vm9117, %v9101, %v9104
        %v9122 = vsel %vm9120, %v9110, 2102212464
        %v9123 = vsel %vm9119, %v9107, %v9122
        %v9124 = vsel %vm9118, %v9121, %v9123
        %v9125 = vsel %vm9117, %v9104, %v9107
        %v9126 = vsel %vm9120, %v9113, 920167782
        %v9127 = vsel %vm9119, %v9110, %v9126
        %v9128 = vsel %vm9118, %v9125, %v9127
        %v9129 = vsel %vm9117, %v9107, %v9110
        %v9130 = vsel %vm9120, %v9116, 1326507024
        %v9131 = vsel %vm9119, %v9113, %v9130
        %v9132 = vsel %vm9118, %v9129, %v9131
        %v9133 = vshll.u32 %v9093, 8
        %v9134 = vmul.u32.u64.compose %v9133, %v9132
        %v9135 = vextract.low.u32 %v9134
        %v9136 = vextract.high.u32 %v9134
        %v9137 = vmul.u32.u64.compose %v9133, %v9128
        %v9138 = vextract.low.u32 %v9137
        %v9139 = vextract.high.u32 %v9137
        %v9140 = vmul.u32 %v9133, %v9124
        %v9141 = vadd.s32 %v9136, %v9138
        %vm9142 = vc.u32 %v9136, %v9138
        %v9143 = vadd.s32 %v9139, 1
        %v9144 = vsel %vm9142, %v9143, %v9139
        %v9145 = vadd.s32 %v9140, %v9144
        %v9146 = vadd.s32 %v9145, 536870912
        %v9147 = vshrl.u32 %v9146, 30
        %v9148 = vshll.u32 %v9147, 30
        %v9149 = vsub.s32 %v9145, %v9148
        %vm9150 = vcmp.lt.s32.totalorder %v9149, 0
        %v9151 = vsub.s32 0, %v9149
        %v9152 = vsel %vm9150, %v9151, %v9149
        %v9153 = vclz %v9152
        %v9154 = vsub.s32 %v9153, 2
        %vm9155 = vcmp.gt.s32.totalorder 0, %v9154
        %v9156 = vsel %vm9155, 0, %v9154
        %v9157 = vsub.s32 32, %v9156
        %v9158 = vshll.u32 %v9149, %v9156
        %v9159 = vshrl.u32 %v9141, %v9157
        %v9160 = vor.u32 %v9158, %v9159
        %v9161 = vsub.s32 4294967266, %v9156
        %v9162 = vadd.s32 %v9161, 127
        %v9163 = vshll.u32 %v9162, 23
        %v9164 = vor.u32 4788187, %v9163
        %v9165 = vand.u32 2147483647, %v9164
        %v9167 = vcvt.s32.f32 %v9160
        %v9168 = vmul.f32 %v9167, %v9165
        %v9169 = vxor.u32 %v9168, 2147483648
        %v9170 = vsel %vm9087, %v9169, %v9168
        %v9171 = vsub.s32 4, %v9147
        %v9172 = vsel %vm9087, %v9171, %v9147
        %v9173 = vsel %vm9086, %v3411, %v9170
        %v9174 = vsel %vm9086, 0, %v9172
        %v9175 = vcosq.f32.pop %v9173
        %v9176 = vsinq.f32.pop %v9173
        %vm9177 = vweird.f32 %v3411
        %v9178 = vand.u32 %v9174, 3
        %vm9179 = vcmp.lt.s32.totalorder %v9178, 2
        %vm9180 = vcmp.eq.s32.totalorder %v9178, 0
        %v9181 = vxor.u32 %v9176, 2147483648
        %v9182 = vsel %vm9180, %v9175, %v9181
        %vm9183 = vcmp.eq.s32.totalorder %v9178, 2
        %v9184 = vxor.u32 %v9175, 2147483648
        %v9185 = vsel %vm9183, %v9184, %v9176
        %v9186 = vsel %vm9179, %v9182, %v9185
        %v9187 = vsel %vm9177, nan, %v9186
        %v9188 = vand.u32 2147483647, %v3412
        %vm9189 = vcmp.le.f32.partialorder %v9188, 0.7853982
        %vm9190 = vcmp.lt.s32.totalorder %v3412, 0
        %v9191 = vand.u32 %v3412, 2139095040
        %v9192 = vshrl.u32 %v9191, 23
        %v9193 = vsub.s32 %v9192, 127
        %v9194 = vand.u32 2147483647, %v3412
        %v9195 = vand.u32 %v9194, 8388607
        %v9196 = vor.u32 %v9195, 8388608
        %v9197 = vsub.s32 0, %v9196
        %v9198 = vadd.s32 %v9193, 1
        %vm9199 = vcmp.gt.s32.totalorder %v9198, 0
        %v9200 = vsel %vm9199, %v9198, 0
        %v9201 = vshrl.u32 %v9200, 5
        %v9202 = vand.u32 %v9200, 31
        %v9203 = vsub.s32 32, %v9202
        %v9204 = vshrl.u32 683565275, %v9203
        %v9205 = vshll.u32 683565275, %v9202
        %v9206 = vshrl.u32 2475754826, %v9203
        %v9207 = vor.u32 %v9205, %v9206
        %v9208 = vshll.u32 2475754826, %v9202
        %v9209 = vshrl.u32 2131351028, %v9203
        %v9210 = vor.u32 %v9208, %v9209
        %v9211 = vshll.u32 2131351028, %v9202
        %v9212 = vshrl.u32 2102212464, %v9203
        %v9213 = vor.u32 %v9211, %v9212
        %v9214 = vshll.u32 2102212464, %v9202
        %v9215 = vshrl.u32 920167782, %v9203
        %v9216 = vor.u32 %v9214, %v9215
        %v9217 = vshll.u32 920167782, %v9202
        %v9218 = vshrl.u32 1326507024, %v9203
        %v9219 = vor.u32 %v9217, %v9218
        %vm9220 = vcmp.lt.s32.totalorder %v9201, 1
        %vm9221 = vcmp.lt.s32.totalorder %v9201, 2
        %vm9222 = vcmp.lt.s32.totalorder %v9201, 3
        %vm9223 = vcmp.lt.s32.totalorder %v9201, 4
        %v9224 = vsel %vm9220, %v9204, %v9207
        %v9225 = vsel %vm9223, %v9213, 2102212464
        %v9226 = vsel %vm9222, %v9210, %v9225
        %v9227 = vsel %vm9221, %v9224, %v9226
        %v9228 = vsel %vm9220, %v9207, %v9210
        %v9229 = vsel %vm9223, %v9216, 920167782
        %v9230 = vsel %vm9222, %v9213, %v9229
        %v9231 = vsel %vm9221, %v9228, %v9230
        %v9232 = vsel %vm9220, %v9210, %v9213
        %v9233 = vsel %vm9223, %v9219, 1326507024
        %v9234 = vsel %vm9222, %v9216, %v9233
        %v9235 = vsel %vm9221, %v9232, %v9234
        %v9236 = vshll.u32 %v9196, 8
        %v9237 = vmul.u32.u64.compose %v9236, %v9235
        %v9238 = vextract.low.u32 %v9237
        %v9239 = vextract.high.u32 %v9237
        %v9240 = vmul.u32.u64.compose %v9236, %v9231
        %v9241 = vextract.low.u32 %v9240
        %v9242 = vextract.high.u32 %v9240
        %v9243 = vmul.u32 %v9236, %v9227
        %v9244 = vadd.s32 %v9239, %v9241
        %vm9245 = vc.u32 %v9239, %v9241
        %v9246 = vadd.s32 %v9242, 1
        %v9247 = vsel %vm9245, %v9246, %v9242
        %v9248 = vadd.s32 %v9243, %v9247
        %v9249 = vadd.s32 %v9248, 536870912
        %v9250 = vshrl.u32 %v9249, 30
        %v9251 = vshll.u32 %v9250, 30
        %v9252 = vsub.s32 %v9248, %v9251
        %vm9253 = vcmp.lt.s32.totalorder %v9252, 0
        %v9254 = vsub.s32 0, %v9252
        %v9255 = vsel %vm9253, %v9254, %v9252
        %v9256 = vclz %v9255
        %v9257 = vsub.s32 %v9256, 2
        %vm9258 = vcmp.gt.s32.totalorder 0, %v9257
        %v9259 = vsel %vm9258, 0, %v9257
        %v9260 = vsub.s32 32, %v9259
        %v9261 = vshll.u32 %v9252, %v9259
        %v9262 = vshrl.u32 %v9244, %v9260
        %v9263 = vor.u32 %v9261, %v9262
        %v9264 = vsub.s32 4294967266, %v9259
        %v9265 = vadd.s32 %v9264, 127
        %v9266 = vshll.u32 %v9265, 23
        %v9267 = vor.u32 4788187, %v9266
        %v9268 = vand.u32 2147483647, %v9267
        %v9270 = vcvt.s32.f32 %v9263
        %v9271 = vmul.f32 %v9270, %v9268
        %v9272 = vxor.u32 %v9271, 2147483648
        %v9273 = vsel %vm9190, %v9272, %v9271
        %v9274 = vsub.s32 4, %v9250
        %v9275 = vsel %vm9190, %v9274, %v9250
        %v9276 = vsel %vm9189, %v3412, %v9273
        %v9277 = vsel %vm9189, 0, %v9275
        %v9278 = vcosq.f32.pop %v9276
        %v9279 = vsinq.f32.pop %v9276
        %vm9280 = vweird.f32 %v3412
        %v9281 = vand.u32 %v9277, 3
        %vm9282 = vcmp.lt.s32.totalorder %v9281, 2
        %vm9283 = vcmp.eq.s32.totalorder %v9281, 0
        %v9284 = vxor.u32 %v9279, 2147483648
        %v9285 = vsel %vm9283, %v9278, %v9284
        %vm9286 = vcmp.eq.s32.totalorder %v9281, 2
        %v9287 = vxor.u32 %v9278, 2147483648
        %v9288 = vsel %vm9286, %v9287, %v9279
        %v9289 = vsel %vm9282, %v9285, %v9288
        %v9290 = vsel %vm9280, nan, %v9289
        %v9291 = vand.u32 2147483647, %v3413
        %vm9292 = vcmp.le.f32.partialorder %v9291, 0.7853982
        %vm9293 = vcmp.lt.s32.totalorder %v3413, 0
        %v9294 = vand.u32 %v3413, 2139095040
        %v9295 = vshrl.u32 %v9294, 23
        %v9296 = vsub.s32 %v9295, 127
        %v9297 = vand.u32 2147483647, %v3413
        %v9298 = vand.u32 %v9297, 8388607
        %v9299 = vor.u32 %v9298, 8388608
        %v9300 = vsub.s32 0, %v9299
        %v9301 = vadd.s32 %v9296, 1
        %vm9302 = vcmp.gt.s32.totalorder %v9301, 0
        %v9303 = vsel %vm9302, %v9301, 0
        %v9304 = vshrl.u32 %v9303, 5
        %v9305 = vand.u32 %v9303, 31
        %v9306 = vsub.s32 32, %v9305
        %v9307 = vshrl.u32 683565275, %v9306
        %v9308 = vshll.u32 683565275, %v9305
        %v9309 = vshrl.u32 2475754826, %v9306
        %v9310 = vor.u32 %v9308, %v9309
        %v9311 = vshll.u32 2475754826, %v9305
        %v9312 = vshrl.u32 2131351028, %v9306
        %v9313 = vor.u32 %v9311, %v9312
        %v9314 = vshll.u32 2131351028, %v9305
        %v9315 = vshrl.u32 2102212464, %v9306
        %v9316 = vor.u32 %v9314, %v9315
        %v9317 = vshll.u32 2102212464, %v9305
        %v9318 = vshrl.u32 920167782, %v9306
        %v9319 = vor.u32 %v9317, %v9318
        %v9320 = vshll.u32 920167782, %v9305
        %v9321 = vshrl.u32 1326507024, %v9306
        %v9322 = vor.u32 %v9320, %v9321
        %vm9323 = vcmp.lt.s32.totalorder %v9304, 1
        %vm9324 = vcmp.lt.s32.totalorder %v9304, 2
        %vm9325 = vcmp.lt.s32.totalorder %v9304, 3
        %vm9326 = vcmp.lt.s32.totalorder %v9304, 4
        %v9327 = vsel %vm9323, %v9307, %v9310
        %v9328 = vsel %vm9326, %v9316, 2102212464
        %v9329 = vsel %vm9325, %v9313, %v9328
        %v9330 = vsel %vm9324, %v9327, %v9329
        %v9331 = vsel %vm9323, %v9310, %v9313
        %v9332 = vsel %vm9326, %v9319, 920167782
        %v9333 = vsel %vm9325, %v9316, %v9332
        %v9334 = vsel %vm9324, %v9331, %v9333
        %v9335 = vsel %vm9323, %v9313, %v9316
        %v9336 = vsel %vm9326, %v9322, 1326507024
        %v9337 = vsel %vm9325, %v9319, %v9336
        %v9338 = vsel %vm9324, %v9335, %v9337
        %v9339 = vshll.u32 %v9299, 8
        %v9340 = vmul.u32.u64.compose %v9339, %v9338
        %v9341 = vextract.low.u32 %v9340
        %v9342 = vextract.high.u32 %v9340
        %v9343 = vmul.u32.u64.compose %v9339, %v9334
        %v9344 = vextract.low.u32 %v9343
        %v9345 = vextract.high.u32 %v9343
        %v9346 = vmul.u32 %v9339, %v9330
        %v9347 = vadd.s32 %v9342, %v9344
        %vm9348 = vc.u32 %v9342, %v9344
        %v9349 = vadd.s32 %v9345, 1
        %v9350 = vsel %vm9348, %v9349, %v9345
        %v9351 = vadd.s32 %v9346, %v9350
        %v9352 = vadd.s32 %v9351, 536870912
        %v9353 = vshrl.u32 %v9352, 30
        %v9354 = vshll.u32 %v9353, 30
        %v9355 = vsub.s32 %v9351, %v9354
        %vm9356 = vcmp.lt.s32.totalorder %v9355, 0
        %v9357 = vsub.s32 0, %v9355
        %v9358 = vsel %vm9356, %v9357, %v9355
        %v9359 = vclz %v9358
        %v9360 = vsub.s32 %v9359, 2
        %vm9361 = vcmp.gt.s32.totalorder 0, %v9360
        %v9362 = vsel %vm9361, 0, %v9360
        %v9363 = vsub.s32 32, %v9362
        %v9364 = vshll.u32 %v9355, %v9362
        %v9365 = vshrl.u32 %v9347, %v9363
        %v9366 = vor.u32 %v9364, %v9365
        %v9367 = vsub.s32 4294967266, %v9362
        %v9368 = vadd.s32 %v9367, 127
        %v9369 = vshll.u32 %v9368, 23
        %v9370 = vor.u32 4788187, %v9369
        %v9371 = vand.u32 2147483647, %v9370
        %v9373 = vcvt.s32.f32 %v9366
        %v9374 = vmul.f32 %v9373, %v9371
        %v9375 = vxor.u32 %v9374, 2147483648
        %v9376 = vsel %vm9293, %v9375, %v9374
        %v9377 = vsub.s32 4, %v9353
        %v9378 = vsel %vm9293, %v9377, %v9353
        %v9379 = vsel %vm9292, %v3413, %v9376
        %v9380 = vsel %vm9292, 0, %v9378
        %v9381 = vcosq.f32.pop %v9379
        %v9382 = vsinq.f32.pop %v9379
        %vm9383 = vweird.f32 %v3413
        %v9384 = vand.u32 %v9380, 3
        %vm9385 = vcmp.lt.s32.totalorder %v9384, 2
        %vm9386 = vcmp.eq.s32.totalorder %v9384, 0
        %v9387 = vxor.u32 %v9382, 2147483648
        %v9388 = vsel %vm9386, %v9381, %v9387
        %vm9389 = vcmp.eq.s32.totalorder %v9384, 2
        %v9390 = vxor.u32 %v9381, 2147483648
        %v9391 = vsel %vm9389, %v9390, %v9382
        %v9392 = vsel %vm9385, %v9388, %v9391
        %v9393 = vsel %vm9383, nan, %v9392
        %v9394 = vand.u32 2147483647, %v3414
        %vm9395 = vcmp.le.f32.partialorder %v9394, 0.7853982
        %vm9396 = vcmp.lt.s32.totalorder %v3414, 0
        %v9397 = vand.u32 %v3414, 2139095040
        %v9398 = vshrl.u32 %v9397, 23
        %v9399 = vsub.s32 %v9398, 127
        %v9400 = vand.u32 2147483647, %v3414
        %v9401 = vand.u32 %v9400, 8388607
        %v9402 = vor.u32 %v9401, 8388608
        %v9403 = vsub.s32 0, %v9402
        %v9404 = vadd.s32 %v9399, 1
        %vm9405 = vcmp.gt.s32.totalorder %v9404, 0
        %v9406 = vsel %vm9405, %v9404, 0
        %v9407 = vshrl.u32 %v9406, 5
        %v9408 = vand.u32 %v9406, 31
        %v9409 = vsub.s32 32, %v9408
        %v9410 = vshrl.u32 683565275, %v9409
        %v9411 = vshll.u32 683565275, %v9408
        %v9412 = vshrl.u32 2475754826, %v9409
        %v9413 = vor.u32 %v9411, %v9412
        %v9414 = vshll.u32 2475754826, %v9408
        %v9415 = vshrl.u32 2131351028, %v9409
        %v9416 = vor.u32 %v9414, %v9415
        %v9417 = vshll.u32 2131351028, %v9408
        %v9418 = vshrl.u32 2102212464, %v9409
        %v9419 = vor.u32 %v9417, %v9418
        %v9420 = vshll.u32 2102212464, %v9408
        %v9421 = vshrl.u32 920167782, %v9409
        %v9422 = vor.u32 %v9420, %v9421
        %v9423 = vshll.u32 920167782, %v9408
        %v9424 = vshrl.u32 1326507024, %v9409
        %v9425 = vor.u32 %v9423, %v9424
        %vm9426 = vcmp.lt.s32.totalorder %v9407, 1
        %vm9427 = vcmp.lt.s32.totalorder %v9407, 2
        %vm9428 = vcmp.lt.s32.totalorder %v9407, 3
        %vm9429 = vcmp.lt.s32.totalorder %v9407, 4
        %v9430 = vsel %vm9426, %v9410, %v9413
        %v9431 = vsel %vm9429, %v9419, 2102212464
        %v9432 = vsel %vm9428, %v9416, %v9431
        %v9433 = vsel %vm9427, %v9430, %v9432
        %v9434 = vsel %vm9426, %v9413, %v9416
        %v9435 = vsel %vm9429, %v9422, 920167782
        %v9436 = vsel %vm9428, %v9419, %v9435
        %v9437 = vsel %vm9427, %v9434, %v9436
        %v9438 = vsel %vm9426, %v9416, %v9419
        %v9439 = vsel %vm9429, %v9425, 1326507024
        %v9440 = vsel %vm9428, %v9422, %v9439
        %v9441 = vsel %vm9427, %v9438, %v9440
        %v9442 = vshll.u32 %v9402, 8
        %v9443 = vmul.u32.u64.compose %v9442, %v9441
        %v9444 = vextract.low.u32 %v9443
        %v9445 = vextract.high.u32 %v9443
        %v9446 = vmul.u32.u64.compose %v9442, %v9437
        %v9447 = vextract.low.u32 %v9446
        %v9448 = vextract.high.u32 %v9446
        %v9449 = vmul.u32 %v9442, %v9433
        %v9450 = vadd.s32 %v9445, %v9447
        %vm9451 = vc.u32 %v9445, %v9447
        %v9452 = vadd.s32 %v9448, 1
        %v9453 = vsel %vm9451, %v9452, %v9448
        %v9454 = vadd.s32 %v9449, %v9453
        %v9455 = vadd.s32 %v9454, 536870912
        %v9456 = vshrl.u32 %v9455, 30
        %v9457 = vshll.u32 %v9456, 30
        %v9458 = vsub.s32 %v9454, %v9457
        %vm9459 = vcmp.lt.s32.totalorder %v9458, 0
        %v9460 = vsub.s32 0, %v9458
        %v9461 = vsel %vm9459, %v9460, %v9458
        %v9462 = vclz %v9461
        %v9463 = vsub.s32 %v9462, 2
        %vm9464 = vcmp.gt.s32.totalorder 0, %v9463
        %v9465 = vsel %vm9464, 0, %v9463
        %v9466 = vsub.s32 32, %v9465
        %v9467 = vshll.u32 %v9458, %v9465
        %v9468 = vshrl.u32 %v9450, %v9466
        %v9469 = vor.u32 %v9467, %v9468
        %v9470 = vsub.s32 4294967266, %v9465
        %v9471 = vadd.s32 %v9470, 127
        %v9472 = vshll.u32 %v9471, 23
        %v9473 = vor.u32 4788187, %v9472
        %v9474 = vand.u32 2147483647, %v9473
        %v9476 = vcvt.s32.f32 %v9469
        %v9477 = vmul.f32 %v9476, %v9474
        %v9478 = vxor.u32 %v9477, 2147483648
        %v9479 = vsel %vm9396, %v9478, %v9477
        %v9480 = vsub.s32 4, %v9456
        %v9481 = vsel %vm9396, %v9480, %v9456
        %v9482 = vsel %vm9395, %v3414, %v9479
        %v9483 = vsel %vm9395, 0, %v9481
        %v9484 = vcosq.f32.pop %v9482
        %v9485 = vsinq.f32.pop %v9482
        %vm9486 = vweird.f32 %v3414
        %v9487 = vand.u32 %v9483, 3
        %vm9488 = vcmp.lt.s32.totalorder %v9487, 2
        %vm9489 = vcmp.eq.s32.totalorder %v9487, 0
        %v9490 = vxor.u32 %v9485, 2147483648
        %v9491 = vsel %vm9489, %v9484, %v9490
        %vm9492 = vcmp.eq.s32.totalorder %v9487, 2
        %v9493 = vxor.u32 %v9484, 2147483648
        %v9494 = vsel %vm9492, %v9493, %v9485
        %v9495 = vsel %vm9488, %v9491, %v9494
        %v9496 = vsel %vm9486, nan, %v9495
        %v9497 = vand.u32 2147483647, %v3415
        %vm9498 = vcmp.le.f32.partialorder %v9497, 0.7853982
        %vm9499 = vcmp.lt.s32.totalorder %v3415, 0
        %v9500 = vand.u32 %v3415, 2139095040
        %v9501 = vshrl.u32 %v9500, 23
        %v9502 = vsub.s32 %v9501, 127
        %v9503 = vand.u32 2147483647, %v3415
        %v9504 = vand.u32 %v9503, 8388607
        %v9505 = vor.u32 %v9504, 8388608
        %v9506 = vsub.s32 0, %v9505
        %v9507 = vadd.s32 %v9502, 1
        %vm9508 = vcmp.gt.s32.totalorder %v9507, 0
        %v9509 = vsel %vm9508, %v9507, 0
        %v9510 = vshrl.u32 %v9509, 5
        %v9511 = vand.u32 %v9509, 31
        %v9512 = vsub.s32 32, %v9511
        %v9513 = vshrl.u32 683565275, %v9512
        %v9514 = vshll.u32 683565275, %v9511
        %v9515 = vshrl.u32 2475754826, %v9512
        %v9516 = vor.u32 %v9514, %v9515
        %v9517 = vshll.u32 2475754826, %v9511
        %v9518 = vshrl.u32 2131351028, %v9512
        %v9519 = vor.u32 %v9517, %v9518
        %v9520 = vshll.u32 2131351028, %v9511
        %v9521 = vshrl.u32 2102212464, %v9512
        %v9522 = vor.u32 %v9520, %v9521
        %v9523 = vshll.u32 2102212464, %v9511
        %v9524 = vshrl.u32 920167782, %v9512
        %v9525 = vor.u32 %v9523, %v9524
        %v9526 = vshll.u32 920167782, %v9511
        %v9527 = vshrl.u32 1326507024, %v9512
        %v9528 = vor.u32 %v9526, %v9527
        %vm9529 = vcmp.lt.s32.totalorder %v9510, 1
        %vm9530 = vcmp.lt.s32.totalorder %v9510, 2
        %vm9531 = vcmp.lt.s32.totalorder %v9510, 3
        %vm9532 = vcmp.lt.s32.totalorder %v9510, 4
        %v9533 = vsel %vm9529, %v9513, %v9516
        %v9534 = vsel %vm9532, %v9522, 2102212464
        %v9535 = vsel %vm9531, %v9519, %v9534
        %v9536 = vsel %vm9530, %v9533, %v9535
        %v9537 = vsel %vm9529, %v9516, %v9519
        %v9538 = vsel %vm9532, %v9525, 920167782
        %v9539 = vsel %vm9531, %v9522, %v9538
        %v9540 = vsel %vm9530, %v9537, %v9539
        %v9541 = vsel %vm9529, %v9519, %v9522
        %v9542 = vsel %vm9532, %v9528, 1326507024
        %v9543 = vsel %vm9531, %v9525, %v9542
        %v9544 = vsel %vm9530, %v9541, %v9543
        %v9545 = vshll.u32 %v9505, 8
        %v9546 = vmul.u32.u64.compose %v9545, %v9544
        %v9547 = vextract.low.u32 %v9546
        %v9548 = vextract.high.u32 %v9546
        %v9549 = vmul.u32.u64.compose %v9545, %v9540
        %v9550 = vextract.low.u32 %v9549
        %v9551 = vextract.high.u32 %v9549
        %v9552 = vmul.u32 %v9545, %v9536
        %v9553 = vadd.s32 %v9548, %v9550
        %vm9554 = vc.u32 %v9548, %v9550
        %v9555 = vadd.s32 %v9551, 1
        %v9556 = vsel %vm9554, %v9555, %v9551
        %v9557 = vadd.s32 %v9552, %v9556
        %v9558 = vadd.s32 %v9557, 536870912
        %v9559 = vshrl.u32 %v9558, 30
        %v9560 = vshll.u32 %v9559, 30
        %v9561 = vsub.s32 %v9557, %v9560
        %vm9562 = vcmp.lt.s32.totalorder %v9561, 0
        %v9563 = vsub.s32 0, %v9561
        %v9564 = vsel %vm9562, %v9563, %v9561
        %v9565 = vclz %v9564
        %v9566 = vsub.s32 %v9565, 2
        %vm9567 = vcmp.gt.s32.totalorder 0, %v9566
        %v9568 = vsel %vm9567, 0, %v9566
        %v9569 = vsub.s32 32, %v9568
        %v9570 = vshll.u32 %v9561, %v9568
        %v9571 = vshrl.u32 %v9553, %v9569
        %v9572 = vor.u32 %v9570, %v9571
        %v9573 = vsub.s32 4294967266, %v9568
        %v9574 = vadd.s32 %v9573, 127
        %v9575 = vshll.u32 %v9574, 23
        %v9576 = vor.u32 4788187, %v9575
        %v9577 = vand.u32 2147483647, %v9576
        %v9579 = vcvt.s32.f32 %v9572
        %v9580 = vmul.f32 %v9579, %v9577
        %v9581 = vxor.u32 %v9580, 2147483648
        %v9582 = vsel %vm9499, %v9581, %v9580
        %v9583 = vsub.s32 4, %v9559
        %v9584 = vsel %vm9499, %v9583, %v9559
        %v9585 = vsel %vm9498, %v3415, %v9582
        %v9586 = vsel %vm9498, 0, %v9584
        %v9587 = vcosq.f32.pop %v9585
        %v9588 = vsinq.f32.pop %v9585
        %vm9589 = vweird.f32 %v3415
        %v9590 = vand.u32 %v9586, 3
        %vm9591 = vcmp.lt.s32.totalorder %v9590, 2
        %vm9592 = vcmp.eq.s32.totalorder %v9590, 0
        %v9593 = vxor.u32 %v9588, 2147483648
        %v9594 = vsel %vm9592, %v9587, %v9593
        %vm9595 = vcmp.eq.s32.totalorder %v9590, 2
        %v9596 = vxor.u32 %v9587, 2147483648
        %v9597 = vsel %vm9595, %v9596, %v9588
        %v9598 = vsel %vm9591, %v9594, %v9597
        %v9599 = vsel %vm9589, nan, %v9598
        %v9600 = vand.u32 2147483647, %v3416
        %vm9601 = vcmp.le.f32.partialorder %v9600, 0.7853982
        %vm9602 = vcmp.lt.s32.totalorder %v3416, 0
        %v9603 = vand.u32 %v3416, 2139095040
        %v9604 = vshrl.u32 %v9603, 23
        %v9605 = vsub.s32 %v9604, 127
        %v9606 = vand.u32 2147483647, %v3416
        %v9607 = vand.u32 %v9606, 8388607
        %v9608 = vor.u32 %v9607, 8388608
        %v9609 = vsub.s32 0, %v9608
        %v9610 = vadd.s32 %v9605, 1
        %vm9611 = vcmp.gt.s32.totalorder %v9610, 0
        %v9612 = vsel %vm9611, %v9610, 0
        %v9613 = vshrl.u32 %v9612, 5
        %v9614 = vand.u32 %v9612, 31
        %v9615 = vsub.s32 32, %v9614
        %v9616 = vshrl.u32 683565275, %v9615
        %v9617 = vshll.u32 683565275, %v9614
        %v9618 = vshrl.u32 2475754826, %v9615
        %v9619 = vor.u32 %v9617, %v9618
        %v9620 = vshll.u32 2475754826, %v9614
        %v9621 = vshrl.u32 2131351028, %v9615
        %v9622 = vor.u32 %v9620, %v9621
        %v9623 = vshll.u32 2131351028, %v9614
        %v9624 = vshrl.u32 2102212464, %v9615
        %v9625 = vor.u32 %v9623, %v9624
        %v9626 = vshll.u32 2102212464, %v9614
        %v9627 = vshrl.u32 920167782, %v9615
        %v9628 = vor.u32 %v9626, %v9627
        %v9629 = vshll.u32 920167782, %v9614
        %v9630 = vshrl.u32 1326507024, %v9615
        %v9631 = vor.u32 %v9629, %v9630
        %vm9632 = vcmp.lt.s32.totalorder %v9613, 1
        %vm9633 = vcmp.lt.s32.totalorder %v9613, 2
        %vm9634 = vcmp.lt.s32.totalorder %v9613, 3
        %vm9635 = vcmp.lt.s32.totalorder %v9613, 4
        %v9636 = vsel %vm9632, %v9616, %v9619
        %v9637 = vsel %vm9635, %v9625, 2102212464
        %v9638 = vsel %vm9634, %v9622, %v9637
        %v9639 = vsel %vm9633, %v9636, %v9638
        %v9640 = vsel %vm9632, %v9619, %v9622
        %v9641 = vsel %vm9635, %v9628, 920167782
        %v9642 = vsel %vm9634, %v9625, %v9641
        %v9643 = vsel %vm9633, %v9640, %v9642
        %v9644 = vsel %vm9632, %v9622, %v9625
        %v9645 = vsel %vm9635, %v9631, 1326507024
        %v9646 = vsel %vm9634, %v9628, %v9645
        %v9647 = vsel %vm9633, %v9644, %v9646
        %v9648 = vshll.u32 %v9608, 8
        %v9649 = vmul.u32.u64.compose %v9648, %v9647
        %v9650 = vextract.low.u32 %v9649
        %v9651 = vextract.high.u32 %v9649
        %v9652 = vmul.u32.u64.compose %v9648, %v9643
        %v9653 = vextract.low.u32 %v9652
        %v9654 = vextract.high.u32 %v9652
        %v9655 = vmul.u32 %v9648, %v9639
        %v9656 = vadd.s32 %v9651, %v9653
        %vm9657 = vc.u32 %v9651, %v9653
        %v9658 = vadd.s32 %v9654, 1
        %v9659 = vsel %vm9657, %v9658, %v9654
        %v9660 = vadd.s32 %v9655, %v9659
        %v9661 = vadd.s32 %v9660, 536870912
        %v9662 = vshrl.u32 %v9661, 30
        %v9663 = vshll.u32 %v9662, 30
        %v9664 = vsub.s32 %v9660, %v9663
        %vm9665 = vcmp.lt.s32.totalorder %v9664, 0
        %v9666 = vsub.s32 0, %v9664
        %v9667 = vsel %vm9665, %v9666, %v9664
        %v9668 = vclz %v9667
        %v9669 = vsub.s32 %v9668, 2
        %vm9670 = vcmp.gt.s32.totalorder 0, %v9669
        %v9671 = vsel %vm9670, 0, %v9669
        %v9672 = vsub.s32 32, %v9671
        %v9673 = vshll.u32 %v9664, %v9671
        %v9674 = vshrl.u32 %v9656, %v9672
        %v9675 = vor.u32 %v9673, %v9674
        %v9676 = vsub.s32 4294967266, %v9671
        %v9677 = vadd.s32 %v9676, 127
        %v9678 = vshll.u32 %v9677, 23
        %v9679 = vor.u32 4788187, %v9678
        %v9680 = vand.u32 2147483647, %v9679
        %v9682 = vcvt.s32.f32 %v9675
        %v9683 = vmul.f32 %v9682, %v9680
        %v9684 = vxor.u32 %v9683, 2147483648
        %v9685 = vsel %vm9602, %v9684, %v9683
        %v9686 = vsub.s32 4, %v9662
        %v9687 = vsel %vm9602, %v9686, %v9662
        %v9688 = vsel %vm9601, %v3416, %v9685
        %v9689 = vsel %vm9601, 0, %v9687
        %v9690 = vcosq.f32.pop %v9688
        %v9691 = vsinq.f32.pop %v9688
        %vm9692 = vweird.f32 %v3416
        %v9693 = vand.u32 %v9689, 3
        %vm9694 = vcmp.lt.s32.totalorder %v9693, 2
        %vm9695 = vcmp.eq.s32.totalorder %v9693, 0
        %v9696 = vxor.u32 %v9691, 2147483648
        %v9697 = vsel %vm9695, %v9690, %v9696
        %vm9698 = vcmp.eq.s32.totalorder %v9693, 2
        %v9699 = vxor.u32 %v9690, 2147483648
        %v9700 = vsel %vm9698, %v9699, %v9691
        %v9701 = vsel %vm9694, %v9697, %v9700
        %v9702 = vsel %vm9692, nan, %v9701
        %v9703 = vand.u32 2147483647, %v3417
        %vm9704 = vcmp.le.f32.partialorder %v9703, 0.7853982
        %vm9705 = vcmp.lt.s32.totalorder %v3417, 0
        %v9706 = vand.u32 %v3417, 2139095040
        %v9707 = vshrl.u32 %v9706, 23
        %v9708 = vsub.s32 %v9707, 127
        %v9709 = vand.u32 2147483647, %v3417
        %v9710 = vand.u32 %v9709, 8388607
        %v9711 = vor.u32 %v9710, 8388608
        %v9712 = vsub.s32 0, %v9711
        %v9713 = vadd.s32 %v9708, 1
        %vm9714 = vcmp.gt.s32.totalorder %v9713, 0
        %v9715 = vsel %vm9714, %v9713, 0
        %v9716 = vshrl.u32 %v9715, 5
        %v9717 = vand.u32 %v9715, 31
        %v9718 = vsub.s32 32, %v9717
        %v9719 = vshrl.u32 683565275, %v9718
        %v9720 = vshll.u32 683565275, %v9717
        %v9721 = vshrl.u32 2475754826, %v9718
        %v9722 = vor.u32 %v9720, %v9721
        %v9723 = vshll.u32 2475754826, %v9717
        %v9724 = vshrl.u32 2131351028, %v9718
        %v9725 = vor.u32 %v9723, %v9724
        %v9726 = vshll.u32 2131351028, %v9717
        %v9727 = vshrl.u32 2102212464, %v9718
        %v9728 = vor.u32 %v9726, %v9727
        %v9729 = vshll.u32 2102212464, %v9717
        %v9730 = vshrl.u32 920167782, %v9718
        %v9731 = vor.u32 %v9729, %v9730
        %v9732 = vshll.u32 920167782, %v9717
        %v9733 = vshrl.u32 1326507024, %v9718
        %v9734 = vor.u32 %v9732, %v9733
        %vm9735 = vcmp.lt.s32.totalorder %v9716, 1
        %vm9736 = vcmp.lt.s32.totalorder %v9716, 2
        %vm9737 = vcmp.lt.s32.totalorder %v9716, 3
        %vm9738 = vcmp.lt.s32.totalorder %v9716, 4
        %v9739 = vsel %vm9735, %v9719, %v9722
        %v9740 = vsel %vm9738, %v9728, 2102212464
        %v9741 = vsel %vm9737, %v9725, %v9740
        %v9742 = vsel %vm9736, %v9739, %v9741
        %v9743 = vsel %vm9735, %v9722, %v9725
        %v9744 = vsel %vm9738, %v9731, 920167782
        %v9745 = vsel %vm9737, %v9728, %v9744
        %v9746 = vsel %vm9736, %v9743, %v9745
        %v9747 = vsel %vm9735, %v9725, %v9728
        %v9748 = vsel %vm9738, %v9734, 1326507024
        %v9749 = vsel %vm9737, %v9731, %v9748
        %v9750 = vsel %vm9736, %v9747, %v9749
        %v9751 = vshll.u32 %v9711, 8
        %v9752 = vmul.u32.u64.compose %v9751, %v9750
        %v9753 = vextract.low.u32 %v9752
        %v9754 = vextract.high.u32 %v9752
        %v9755 = vmul.u32.u64.compose %v9751, %v9746
        %v9756 = vextract.low.u32 %v9755
        %v9757 = vextract.high.u32 %v9755
        %v9758 = vmul.u32 %v9751, %v9742
        %v9759 = vadd.s32 %v9754, %v9756
        %vm9760 = vc.u32 %v9754, %v9756
        %v9761 = vadd.s32 %v9757, 1
        %v9762 = vsel %vm9760, %v9761, %v9757
        %v9763 = vadd.s32 %v9758, %v9762
        %v9764 = vadd.s32 %v9763, 536870912
        %v9765 = vshrl.u32 %v9764, 30
        %v9766 = vshll.u32 %v9765, 30
        %v9767 = vsub.s32 %v9763, %v9766
        %vm9768 = vcmp.lt.s32.totalorder %v9767, 0
        %v9769 = vsub.s32 0, %v9767
        %v9770 = vsel %vm9768, %v9769, %v9767
        %v9771 = vclz %v9770
        %v9772 = vsub.s32 %v9771, 2
        %vm9773 = vcmp.gt.s32.totalorder 0, %v9772
        %v9774 = vsel %vm9773, 0, %v9772
        %v9775 = vsub.s32 32, %v9774
        %v9776 = vshll.u32 %v9767, %v9774
        %v9777 = vshrl.u32 %v9759, %v9775
        %v9778 = vor.u32 %v9776, %v9777
        %v9779 = vsub.s32 4294967266, %v9774
        %v9780 = vadd.s32 %v9779, 127
        %v9781 = vshll.u32 %v9780, 23
        %v9782 = vor.u32 4788187, %v9781
        %v9783 = vand.u32 2147483647, %v9782
        %v9785 = vcvt.s32.f32 %v9778
        %v9786 = vmul.f32 %v9785, %v9783
        %v9787 = vxor.u32 %v9786, 2147483648
        %v9788 = vsel %vm9705, %v9787, %v9786
        %v9789 = vsub.s32 4, %v9765
        %v9790 = vsel %vm9705, %v9789, %v9765
        %v9791 = vsel %vm9704, %v3417, %v9788
        %v9792 = vsel %vm9704, 0, %v9790
        %v9793 = vcosq.f32.pop %v9791
        %v9794 = vsinq.f32.pop %v9791
        %vm9795 = vweird.f32 %v3417
        %v9796 = vand.u32 %v9792, 3
        %vm9797 = vcmp.lt.s32.totalorder %v9796, 2
        %vm9798 = vcmp.eq.s32.totalorder %v9796, 0
        %v9799 = vxor.u32 %v9794, 2147483648
        %v9800 = vsel %vm9798, %v9793, %v9799
        %vm9801 = vcmp.eq.s32.totalorder %v9796, 2
        %v9802 = vxor.u32 %v9793, 2147483648
        %v9803 = vsel %vm9801, %v9802, %v9794
        %v9804 = vsel %vm9797, %v9800, %v9803
        %v9805 = vsel %vm9795, nan, %v9804
        %v9806 = vand.u32 2147483647, %v3418
        %vm9807 = vcmp.le.f32.partialorder %v9806, 0.7853982
        %vm9808 = vcmp.lt.s32.totalorder %v3418, 0
        %v9809 = vand.u32 %v3418, 2139095040
        %v9810 = vshrl.u32 %v9809, 23
        %v9811 = vsub.s32 %v9810, 127
        %v9812 = vand.u32 2147483647, %v3418
        %v9813 = vand.u32 %v9812, 8388607
        %v9814 = vor.u32 %v9813, 8388608
        %v9815 = vsub.s32 0, %v9814
        %v9816 = vadd.s32 %v9811, 1
        %vm9817 = vcmp.gt.s32.totalorder %v9816, 0
        %v9818 = vsel %vm9817, %v9816, 0
        %v9819 = vshrl.u32 %v9818, 5
        %v9820 = vand.u32 %v9818, 31
        %v9821 = vsub.s32 32, %v9820
        %v9822 = vshrl.u32 683565275, %v9821
        %v9823 = vshll.u32 683565275, %v9820
        %v9824 = vshrl.u32 2475754826, %v9821
        %v9825 = vor.u32 %v9823, %v9824
        %v9826 = vshll.u32 2475754826, %v9820
        %v9827 = vshrl.u32 2131351028, %v9821
        %v9828 = vor.u32 %v9826, %v9827
        %v9829 = vshll.u32 2131351028, %v9820
        %v9830 = vshrl.u32 2102212464, %v9821
        %v9831 = vor.u32 %v9829, %v9830
        %v9832 = vshll.u32 2102212464, %v9820
        %v9833 = vshrl.u32 920167782, %v9821
        %v9834 = vor.u32 %v9832, %v9833
        %v9835 = vshll.u32 920167782, %v9820
        %v9836 = vshrl.u32 1326507024, %v9821
        %v9837 = vor.u32 %v9835, %v9836
        %vm9838 = vcmp.lt.s32.totalorder %v9819, 1
        %vm9839 = vcmp.lt.s32.totalorder %v9819, 2
        %vm9840 = vcmp.lt.s32.totalorder %v9819, 3
        %vm9841 = vcmp.lt.s32.totalorder %v9819, 4
        %v9842 = vsel %vm9838, %v9822, %v9825
        %v9843 = vsel %vm9841, %v9831, 2102212464
        %v9844 = vsel %vm9840, %v9828, %v9843
        %v9845 = vsel %vm9839, %v9842, %v9844
        %v9846 = vsel %vm9838, %v9825, %v9828
        %v9847 = vsel %vm9841, %v9834, 920167782
        %v9848 = vsel %vm9840, %v9831, %v9847
        %v9849 = vsel %vm9839, %v9846, %v9848
        %v9850 = vsel %vm9838, %v9828, %v9831
        %v9851 = vsel %vm9841, %v9837, 1326507024
        %v9852 = vsel %vm9840, %v9834, %v9851
        %v9853 = vsel %vm9839, %v9850, %v9852
        %v9854 = vshll.u32 %v9814, 8
        %v9855 = vmul.u32.u64.compose %v9854, %v9853
        %v9856 = vextract.low.u32 %v9855
        %v9857 = vextract.high.u32 %v9855
        %v9858 = vmul.u32.u64.compose %v9854, %v9849
        %v9859 = vextract.low.u32 %v9858
        %v9860 = vextract.high.u32 %v9858
        %v9861 = vmul.u32 %v9854, %v9845
        %v9862 = vadd.s32 %v9857, %v9859
        %vm9863 = vc.u32 %v9857, %v9859
        %v9864 = vadd.s32 %v9860, 1
        %v9865 = vsel %vm9863, %v9864, %v9860
        %v9866 = vadd.s32 %v9861, %v9865
        %v9867 = vadd.s32 %v9866, 536870912
        %v9868 = vshrl.u32 %v9867, 30
        %v9869 = vshll.u32 %v9868, 30
        %v9870 = vsub.s32 %v9866, %v9869
        %vm9871 = vcmp.lt.s32.totalorder %v9870, 0
        %v9872 = vsub.s32 0, %v9870
        %v9873 = vsel %vm9871, %v9872, %v9870
        %v9874 = vclz %v9873
        %v9875 = vsub.s32 %v9874, 2
        %vm9876 = vcmp.gt.s32.totalorder 0, %v9875
        %v9877 = vsel %vm9876, 0, %v9875
        %v9878 = vsub.s32 32, %v9877
        %v9879 = vshll.u32 %v9870, %v9877
        %v9880 = vshrl.u32 %v9862, %v9878
        %v9881 = vor.u32 %v9879, %v9880
        %v9882 = vsub.s32 4294967266, %v9877
        %v9883 = vadd.s32 %v9882, 127
        %v9884 = vshll.u32 %v9883, 23
        %v9885 = vor.u32 4788187, %v9884
        %v9886 = vand.u32 2147483647, %v9885
        %v9888 = vcvt.s32.f32 %v9881
        %v9889 = vmul.f32 %v9888, %v9886
        %v9890 = vxor.u32 %v9889, 2147483648
        %v9891 = vsel %vm9808, %v9890, %v9889
        %v9892 = vsub.s32 4, %v9868
        %v9893 = vsel %vm9808, %v9892, %v9868
        %v9894 = vsel %vm9807, %v3418, %v9891
        %v9895 = vsel %vm9807, 0, %v9893
        %v9896 = vcosq.f32.pop %v9894
        %v9897 = vsinq.f32.pop %v9894
        %vm9898 = vweird.f32 %v3418
        %v9899 = vand.u32 %v9895, 3
        %vm9900 = vcmp.lt.s32.totalorder %v9899, 2
        %vm9901 = vcmp.eq.s32.totalorder %v9899, 0
        %v9902 = vxor.u32 %v9897, 2147483648
        %v9903 = vsel %vm9901, %v9896, %v9902
        %vm9904 = vcmp.eq.s32.totalorder %v9899, 2
        %v9905 = vxor.u32 %v9896, 2147483648
        %v9906 = vsel %vm9904, %v9905, %v9897
        %v9907 = vsel %vm9900, %v9903, %v9906
        %v9908 = vsel %vm9898, nan, %v9907
        %v9909 = vand.u32 2147483647, %v3419
        %vm9910 = vcmp.le.f32.partialorder %v9909, 0.7853982
        %vm9911 = vcmp.lt.s32.totalorder %v3419, 0
        %v9912 = vand.u32 %v3419, 2139095040
        %v9913 = vshrl.u32 %v9912, 23
        %v9914 = vsub.s32 %v9913, 127
        %v9915 = vand.u32 2147483647, %v3419
        %v9916 = vand.u32 %v9915, 8388607
        %v9917 = vor.u32 %v9916, 8388608
        %v9918 = vsub.s32 0, %v9917
        %v9919 = vadd.s32 %v9914, 1
        %vm9920 = vcmp.gt.s32.totalorder %v9919, 0
        %v9921 = vsel %vm9920, %v9919, 0
        %v9922 = vshrl.u32 %v9921, 5
        %v9923 = vand.u32 %v9921, 31
        %v9924 = vsub.s32 32, %v9923
        %v9925 = vshrl.u32 683565275, %v9924
        %v9926 = vshll.u32 683565275, %v9923
        %v9927 = vshrl.u32 2475754826, %v9924
        %v9928 = vor.u32 %v9926, %v9927
        %v9929 = vshll.u32 2475754826, %v9923
        %v9930 = vshrl.u32 2131351028, %v9924
        %v9931 = vor.u32 %v9929, %v9930
        %v9932 = vshll.u32 2131351028, %v9923
        %v9933 = vshrl.u32 2102212464, %v9924
        %v9934 = vor.u32 %v9932, %v9933
        %v9935 = vshll.u32 2102212464, %v9923
        %v9936 = vshrl.u32 920167782, %v9924
        %v9937 = vor.u32 %v9935, %v9936
        %v9938 = vshll.u32 920167782, %v9923
        %v9939 = vshrl.u32 1326507024, %v9924
        %v9940 = vor.u32 %v9938, %v9939
        %vm9941 = vcmp.lt.s32.totalorder %v9922, 1
        %vm9942 = vcmp.lt.s32.totalorder %v9922, 2
        %vm9943 = vcmp.lt.s32.totalorder %v9922, 3
        %vm9944 = vcmp.lt.s32.totalorder %v9922, 4
        %v9945 = vsel %vm9941, %v9925, %v9928
        %v9946 = vsel %vm9944, %v9934, 2102212464
        %v9947 = vsel %vm9943, %v9931, %v9946
        %v9948 = vsel %vm9942, %v9945, %v9947
        %v9949 = vsel %vm9941, %v9928, %v9931
        %v9950 = vsel %vm9944, %v9937, 920167782
        %v9951 = vsel %vm9943, %v9934, %v9950
        %v9952 = vsel %vm9942, %v9949, %v9951
        %v9953 = vsel %vm9941, %v9931, %v9934
        %v9954 = vsel %vm9944, %v9940, 1326507024
        %v9955 = vsel %vm9943, %v9937, %v9954
        %v9956 = vsel %vm9942, %v9953, %v9955
        %v9957 = vshll.u32 %v9917, 8
        %v9958 = vmul.u32.u64.compose %v9957, %v9956
        %v9959 = vextract.low.u32 %v9958
        %v9960 = vextract.high.u32 %v9958
        %v9961 = vmul.u32.u64.compose %v9957, %v9952
        %v9962 = vextract.low.u32 %v9961
        %v9963 = vextract.high.u32 %v9961
        %v9964 = vmul.u32 %v9957, %v9948
        %v9965 = vadd.s32 %v9960, %v9962
        %vm9966 = vc.u32 %v9960, %v9962
        %v9967 = vadd.s32 %v9963, 1
        %v9968 = vsel %vm9966, %v9967, %v9963
        %v9969 = vadd.s32 %v9964, %v9968
        %v9970 = vadd.s32 %v9969, 536870912
        %v9971 = vshrl.u32 %v9970, 30
        %v9972 = vshll.u32 %v9971, 30
        %v9973 = vsub.s32 %v9969, %v9972
        %vm9974 = vcmp.lt.s32.totalorder %v9973, 0
        %v9975 = vsub.s32 0, %v9973
        %v9976 = vsel %vm9974, %v9975, %v9973
        %v9977 = vclz %v9976
        %v9978 = vsub.s32 %v9977, 2
        %vm9979 = vcmp.gt.s32.totalorder 0, %v9978
        %v9980 = vsel %vm9979, 0, %v9978
        %v9981 = vsub.s32 32, %v9980
        %v9982 = vshll.u32 %v9973, %v9980
        %v9983 = vshrl.u32 %v9965, %v9981
        %v9984 = vor.u32 %v9982, %v9983
        %v9985 = vsub.s32 4294967266, %v9980
        %v9986 = vadd.s32 %v9985, 127
        %v9987 = vshll.u32 %v9986, 23
        %v9988 = vor.u32 4788187, %v9987
        %v9989 = vand.u32 2147483647, %v9988
        %v9991 = vcvt.s32.f32 %v9984
        %v9992 = vmul.f32 %v9991, %v9989
        %v9993 = vxor.u32 %v9992, 2147483648
        %v9994 = vsel %vm9911, %v9993, %v9992
        %v9995 = vsub.s32 4, %v9971
        %v9996 = vsel %vm9911, %v9995, %v9971
        %v9997 = vsel %vm9910, %v3419, %v9994
        %v9998 = vsel %vm9910, 0, %v9996
        %v9999 = vcosq.f32.pop %v9997
        %v10000 = vsinq.f32.pop %v9997
        %vm10001 = vweird.f32 %v3419
        %v10002 = vand.u32 %v9998, 3
        %vm10003 = vcmp.lt.s32.totalorder %v10002, 2
        %vm10004 = vcmp.eq.s32.totalorder %v10002, 0
        %v10005 = vxor.u32 %v10000, 2147483648
        %v10006 = vsel %vm10004, %v9999, %v10005
        %vm10007 = vcmp.eq.s32.totalorder %v10002, 2
        %v10008 = vxor.u32 %v9999, 2147483648
        %v10009 = vsel %vm10007, %v10008, %v10000
        %v10010 = vsel %vm10003, %v10006, %v10009
        %v10011 = vsel %vm10001, nan, %v10010
        %v10012 = vmul.f32 %v2914, %v3522
        %v10013 = vmul.f32 %v2921, %v3625
        %v10014 = vmul.f32 %v2928, %v3728
        %v10015 = vmul.f32 %v2935, %v3831
        %v10016 = vmul.f32 %v2942, %v3934
        %v10017 = vmul.f32 %v2949, %v4037
        %v10018 = vmul.f32 %v2956, %v4140
        %v10019 = vmul.f32 %v2963, %v4243
        %v10020 = vmul.f32 %v2970, %v4346
        %v10021 = vmul.f32 %v2977, %v4449
        %v10022 = vmul.f32 %v2984, %v4552
        %v10023 = vmul.f32 %v2991, %v4655
        %v10024 = vmul.f32 %v2998, %v4758
        %v10025 = vmul.f32 %v3005, %v4861
        %v10026 = vmul.f32 %v3012, %v4964
        %v10027 = vmul.f32 %v3019, %v5067
        %v10028 = vmul.f32 %v3026, %v5170
        %v10029 = vmul.f32 %v3033, %v5273
        %v10030 = vmul.f32 %v3040, %v5376
        %v10031 = vmul.f32 %v3047, %v5479
        %v10032 = vmul.f32 %v3054, %v5582
        %v10033 = vmul.f32 %v3061, %v5685
        %v10034 = vmul.f32 %v3068, %v5788
        %v10035 = vmul.f32 %v3075, %v5891
        %v10036 = vmul.f32 %v3082, %v5994
        %v10037 = vmul.f32 %v3089, %v6097
        %v10038 = vmul.f32 %v3096, %v6200
        %v10039 = vmul.f32 %v3103, %v6303
        %v10040 = vmul.f32 %v3110, %v6406
        %v10041 = vmul.f32 %v3117, %v6509
        %v10042 = vmul.f32 %v3124, %v6612
        %v10043 = vmul.f32 %v3131, %v6715
        %v10044 = vmul.f32 %v3138, %v6818
        %v10045 = vmul.f32 %v3145, %v6921
        %v10046 = vmul.f32 %v3152, %v7024
        %v10047 = vmul.f32 %v3159, %v7127
        %v10048 = vmul.f32 %v3166, %v7230
        %v10049 = vmul.f32 %v3173, %v7333
        %v10050 = vmul.f32 %v3180, %v7436
        %v10051 = vmul.f32 %v3187, %v7539
        %v10052 = vmul.f32 %v3194, %v7642
        %v10053 = vmul.f32 %v3201, %v7745
        %v10054 = vmul.f32 %v3208, %v7848
        %v10055 = vmul.f32 %v3215, %v7951
        %v10056 = vmul.f32 %v3222, %v8054
        %v10057 = vmul.f32 %v3229, %v8157
        %v10058 = vmul.f32 %v3236, %v8260
        %v10059 = vmul.f32 %v3243, %v8363
        %v10060 = vmul.f32 %v3250, %v8466
        %v10061 = vmul.f32 %v3257, %v8569
        %v10062 = vmul.f32 %v3264, %v8672
        %v10063 = vmul.f32 %v3271, %v8775
        %v10064 = vmul.f32 %v3278, %v8878
        %v10065 = vmul.f32 %v3285, %v8981
        %v10066 = vmul.f32 %v3292, %v9084
        %v10067 = vmul.f32 %v3299, %v9187
        %v10068 = vmul.f32 %v3306, %v9290
        %v10069 = vmul.f32 %v3313, %v9393
        %v10070 = vmul.f32 %v3320, %v9496
        %v10071 = vmul.f32 %v3327, %v9599
        %v10072 = vmul.f32 %v3334, %v9702
        %v10073 = vmul.f32 %v3341, %v9805
        %v10074 = vmul.f32 %v3348, %v9908
        %v10075 = vmul.f32 %v3355, %v10011
        %v10076 = vmul.f32 %v10012, 0.20024985
        %v10077 = vmul.f32 %v10013, 0.20024985
        %v10078 = vmul.f32 %v10014, 0.20024985
        %v10079 = vmul.f32 %v10015, 0.20024985
        %v10080 = vmul.f32 %v10016, 0.20024985
        %v10081 = vmul.f32 %v10017, 0.20024985
        %v10082 = vmul.f32 %v10018, 0.20024985
        %v10083 = vmul.f32 %v10019, 0.20024985
        %v10084 = vmul.f32 %v10020, 0.20024985
        %v10085 = vmul.f32 %v10021, 0.20024985
        %v10086 = vmul.f32 %v10022, 0.20024985
        %v10087 = vmul.f32 %v10023, 0.20024985
        %v10088 = vmul.f32 %v10024, 0.20024985
        %v10089 = vmul.f32 %v10025, 0.20024985
        %v10090 = vmul.f32 %v10026, 0.20024985
        %v10091 = vmul.f32 %v10027, 0.20024985
        %v10092 = vmul.f32 %v10028, 0.20024985
        %v10093 = vmul.f32 %v10029, 0.20024985
        %v10094 = vmul.f32 %v10030, 0.20024985
        %v10095 = vmul.f32 %v10031, 0.20024985
        %v10096 = vmul.f32 %v10032, 0.20024985
        %v10097 = vmul.f32 %v10033, 0.20024985
        %v10098 = vmul.f32 %v10034, 0.20024985
        %v10099 = vmul.f32 %v10035, 0.20024985
        %v10100 = vmul.f32 %v10036, 0.20024985
        %v10101 = vmul.f32 %v10037, 0.20024985
        %v10102 = vmul.f32 %v10038, 0.20024985
        %v10103 = vmul.f32 %v10039, 0.20024985
        %v10104 = vmul.f32 %v10040, 0.20024985
        %v10105 = vmul.f32 %v10041, 0.20024985
        %v10106 = vmul.f32 %v10042, 0.20024985
        %v10107 = vmul.f32 %v10043, 0.20024985
        %v10108 = vmul.f32 %v10044, 0.20024985
        %v10109 = vmul.f32 %v10045, 0.20024985
        %v10110 = vmul.f32 %v10046, 0.20024985
        %v10111 = vmul.f32 %v10047, 0.20024985
        %v10112 = vmul.f32 %v10048, 0.20024985
        %v10113 = vmul.f32 %v10049, 0.20024985
        %v10114 = vmul.f32 %v10050, 0.20024985
        %v10115 = vmul.f32 %v10051, 0.20024985
        %v10116 = vmul.f32 %v10052, 0.20024985
        %v10117 = vmul.f32 %v10053, 0.20024985
        %v10118 = vmul.f32 %v10054, 0.20024985
        %v10119 = vmul.f32 %v10055, 0.20024985
        %v10120 = vmul.f32 %v10056, 0.20024985
        %v10121 = vmul.f32 %v10057, 0.20024985
        %v10122 = vmul.f32 %v10058, 0.20024985
        %v10123 = vmul.f32 %v10059, 0.20024985
        %v10124 = vmul.f32 %v10060, 0.20024985
        %v10125 = vmul.f32 %v10061, 0.20024985
        %v10126 = vmul.f32 %v10062, 0.20024985
        %v10127 = vmul.f32 %v10063, 0.20024985
        %v10128 = vmul.f32 %v10064, 0.20024985
        %v10129 = vmul.f32 %v10065, 0.20024985
        %v10130 = vmul.f32 %v10066, 0.20024985
        %v10131 = vmul.f32 %v10067, 0.20024985
        %v10132 = vmul.f32 %v10068, 0.20024985
        %v10133 = vmul.f32 %v10069, 0.20024985
        %v10134 = vmul.f32 %v10070, 0.20024985
        %v10135 = vmul.f32 %v10071, 0.20024985
        %v10136 = vmul.f32 %v10072, 0.20024985
        %v10137 = vmul.f32 %v10073, 0.20024985
        %v10138 = vmul.f32 %v10074, 0.20024985
        %v10139 = vmul.f32 %v10075, 0.20024985
        %vm10140 = vcmask 80896
        %v10142 = vsel %vm10140, %v581, 0
        %v10145 = vsel %vm10140, %v582, 0
        %v10148 = vsel %vm10140, %v583, 0
        %v10151 = vsel %vm10140, %v584, 0
        %v10154 = vsel %vm10140, %v585, 0
        %v10157 = vsel %vm10140, %v586, 0
        %v10160 = vsel %vm10140, %v587, 0
        %v10163 = vsel %vm10140, %v588, 0
        %v10166 = vsel %vm10140, %v589, 0
        %v10169 = vsel %vm10140, %v590, 0
        %v10172 = vsel %vm10140, %v591, 0
        %v10175 = vsel %vm10140, %v592, 0
        %v10178 = vsel %vm10140, %v593, 0
        %v10181 = vsel %vm10140, %v594, 0
        %v10184 = vsel %vm10140, %v595, 0
        %v10187 = vsel %vm10140, %v596, 0
        %v10190 = vsel %vm10140, %v597, 0
        %v10193 = vsel %vm10140, %v598, 0
        %v10196 = vsel %vm10140, %v599, 0
        %v10199 = vsel %vm10140, %v600, 0
        %v10202 = vsel %vm10140, %v601, 0
        %v10205 = vsel %vm10140, %v602, 0
        %v10208 = vsel %vm10140, %v603, 0
        %v10211 = vsel %vm10140, %v604, 0
        %v10214 = vsel %vm10140, %v605, 0
        %v10217 = vsel %vm10140, %v606, 0
        %v10220 = vsel %vm10140, %v607, 0
        %v10223 = vsel %vm10140, %v608, 0
        %v10226 = vsel %vm10140, %v609, 0
        %v10229 = vsel %vm10140, %v610, 0
        %v10232 = vsel %vm10140, %v611, 0
        %v10235 = vsel %vm10140, %v612, 0
        %v10238 = vsel %vm10140, %v613, 0
        %v10241 = vsel %vm10140, %v614, 0
        %v10244 = vsel %vm10140, %v615, 0
        %v10247 = vsel %vm10140, %v616, 0
        %v10250 = vsel %vm10140, %v617, 0
        %v10253 = vsel %vm10140, %v618, 0
        %v10256 = vsel %vm10140, %v619, 0
        %v10259 = vsel %vm10140, %v620, 0
        %v10262 = vsel %vm10140, %v621, 0
        %v10265 = vsel %vm10140, %v622, 0
        %v10268 = vsel %vm10140, %v623, 0
        %v10271 = vsel %vm10140, %v624, 0
        %v10274 = vsel %vm10140, %v625, 0
        %v10277 = vsel %vm10140, %v626, 0
        %v10280 = vsel %vm10140, %v627, 0
        %v10283 = vsel %vm10140, %v628, 0
        %v10286 = vsel %vm10140, %v629, 0
        %v10289 = vsel %vm10140, %v630, 0
        %v10292 = vsel %vm10140, %v631, 0
        %v10295 = vsel %vm10140, %v632, 0
        %v10298 = vsel %vm10140, %v633, 0
        %v10301 = vsel %vm10140, %v634, 0
        %v10304 = vsel %vm10140, %v635, 0
        %v10307 = vsel %vm10140, %v636, 0
        %v10310 = vsel %vm10140, %v637, 0
        %v10313 = vsel %vm10140, %v638, 0
        %v10316 = vsel %vm10140, %v639, 0
        %v10319 = vsel %vm10140, %v640, 0
        %v10322 = vsel %vm10140, %v641, 0
        %v10325 = vsel %vm10140, %v642, 0
        %v10328 = vsel %vm10140, %v643, 0
        %v10331 = vsel %vm10140, %v644, 0
        %vm10333 = vcmask 1041408
        %v10335 = vsel %vm10333, %v257, 0
        %10337 = vmatprep.subr.mxu0 0.0
        %10338 = vmatpush1.msra.mxu0 0.0
        %10339 = vmatprep.subr.mxu0 0.0
        %10340 = vmatpush1.msra.mxu0 0.0
        %10341 = vmatprep.subr.mxu0 0.0
        %10342 = vmatpush1.msra.mxu0 0.0
        %10343 = vmatprep.subr.mxu0 0.0
        %10344 = vmatpush1.msra.mxu0 0.0
        %10345 = vmatprep.subr.mxu0 0.0
        %10346 = vmatpush1.msra.mxu0 0.0
        %10347 = vmatprep.subr.mxu0 0.0
        %10348 = vmatpush1.msra.mxu0 0.0
        %10349 = vmatprep.subr.mxu0 0.0
        %10350 = vmatpush1.msra.mxu0 0.0
        %10351 = vmatprep.subr.mxu0 0.0
        %10352 = vmatpush1.msra.mxu0 0.0
        %10353 = vmatprep.subr.mxu0 0.0
        %10354 = vmatpush1.msra.mxu0 0.0
        %10355 = vmatprep.subr.mxu0 0.0
        %10356 = vmatpush1.msra.mxu0 0.0
        %10357 = vmatprep.subr.mxu0 0.0
        %10358 = vmatpush1.msra.mxu0 0.0
        %10359 = vmatprep.subr.mxu0 0.0
        %10360 = vmatpush1.msra.mxu0 0.0
        %10361 = vmatprep.subr.mxu0 0.0
        %10362 = vmatpush1.msra.mxu0 0.0
        %10363 = vmatprep.subr.mxu0 0.0
        %10364 = vmatpush1.msra.mxu0 0.0
        %10365 = vmatprep.subr.mxu0 0.0
        %10366 = vmatpush1.msra.mxu0 %v10335
        %10367 = vmatprep.subr.mxu0 0.0
        %10368 = vmatpush1.msra.mxu0 %v256
        %10369 = vmatprep.subr.mxu0 0.0
        %10370 = vmatpush2.msra.mxu0 0.0
        %10371 = vmatprep.subr.mxu0 0.0
        %10372 = vmatpush2.msra.mxu0 0.0
        %10373 = vmatprep.subr.mxu0 0.0
        %10374 = vmatpush2.msra.mxu0 0.0
        %10375 = vmatprep.subr.mxu0 0.0
        %10376 = vmatpush2.msra.mxu0 0.0
        %10377 = vmatprep.subr.mxu0 0.0
        %10378 = vmatpush2.msra.mxu0 0.0
        %10379 = vmatprep.subr.mxu0 0.0
        %10380 = vmatpush2.msra.mxu0 0.0
        %10381 = vmatprep.subr.mxu0 0.0
        %10382 = vmatpush2.msra.mxu0 0.0
        %10383 = vmatprep.subr.mxu0 0.0
        %10384 = vmatpush2.msra.mxu0 0.0
        %10385 = vmatprep.subr.mxu0 0.0
        %10386 = vmatpush2.msra.mxu0 0.0
        %10387 = vmatprep.subr.mxu0 0.0
        %10388 = vmatpush2.msra.mxu0 0.0
        %10389 = vmatprep.subr.mxu0 0.0
        %10390 = vmatpush2.msra.mxu0 0.0
        %10391 = vmatprep.subr.mxu0 0.0
        %10392 = vmatpush2.msra.mxu0 0.0
        %10393 = vmatprep.subr.mxu0 0.0
        %10394 = vmatpush2.msra.mxu0 0.0
        %10395 = vmatprep.subr.mxu0 0.0
        %10396 = vmatpush2.msra.mxu0 0.0
        %10397 = vmatprep.subr.mxu0 0.0
        %10398 = vmatpush2.msra.mxu0 0.0
        %10399 = vmatprep.subr.mxu0 0.0
        %10400 = vmatpush2.msra.mxu0 0.0
        %10401 = vmatprep.mubr.f32.mxu0 0.0
        %10402 = vmatmul.mubr.f32.gmra.mxu0 %v10142
        %v10403 = vpop.f32.mrf.mxu0
        %v10404 = vadd.f32 %v10076, %v10403
        %v10405 = vpop.f32.mrf.mxu0
        %10406 = vmatprep.mubr.f32.mxu0 0.0
        %10407 = vmatmul.mubr.f32.gmra.mxu0 %v10145
        %v10408 = vpop.f32.mrf.mxu0
        %v10409 = vadd.f32 %v10077, %v10408
        %v10410 = vpop.f32.mrf.mxu0
        %10411 = vmatprep.mubr.f32.mxu0 0.0
        %10412 = vmatmul.mubr.f32.gmra.mxu0 %v10148
        %v10413 = vpop.f32.mrf.mxu0
        %v10414 = vadd.f32 %v10078, %v10413
        %v10415 = vpop.f32.mrf.mxu0
        %10416 = vmatprep.mubr.f32.mxu0 0.0
        %10417 = vmatmul.mubr.f32.gmra.mxu0 %v10151
        %v10418 = vpop.f32.mrf.mxu0
        %v10419 = vadd.f32 %v10079, %v10418
        %v10420 = vpop.f32.mrf.mxu0
        %10421 = vmatprep.mubr.f32.mxu0 0.0
        %10422 = vmatmul.mubr.f32.gmra.mxu0 %v10154
        %v10423 = vpop.f32.mrf.mxu0
        %v10424 = vadd.f32 %v10080, %v10423
        %v10425 = vpop.f32.mrf.mxu0
        %10426 = vmatprep.mubr.f32.mxu0 0.0
        %10427 = vmatmul.mubr.f32.gmra.mxu0 %v10157
        %v10428 = vpop.f32.mrf.mxu0
        %v10429 = vadd.f32 %v10081, %v10428
        %v10430 = vpop.f32.mrf.mxu0
        %10431 = vmatprep.mubr.f32.mxu0 0.0
        %10432 = vmatmul.mubr.f32.gmra.mxu0 %v10160
        %v10433 = vpop.f32.mrf.mxu0
        %v10434 = vadd.f32 %v10082, %v10433
        %v10435 = vpop.f32.mrf.mxu0
        %10436 = vmatprep.mubr.f32.mxu0 0.0
        %10437 = vmatmul.mubr.f32.gmra.mxu0 %v10163
        %v10438 = vpop.f32.mrf.mxu0
        %v10439 = vadd.f32 %v10083, %v10438
        %v10440 = vpop.f32.mrf.mxu0
        %10441 = vmatprep.mubr.f32.mxu0 0.0
        %10442 = vmatmul.mubr.f32.gmra.mxu0 %v10166
        %v10443 = vpop.f32.mrf.mxu0
        %v10444 = vadd.f32 %v10084, %v10443
        %v10445 = vpop.f32.mrf.mxu0
        %10446 = vmatprep.mubr.f32.mxu0 0.0
        %10447 = vmatmul.mubr.f32.gmra.mxu0 %v10169
        %v10448 = vpop.f32.mrf.mxu0
        %v10449 = vadd.f32 %v10085, %v10448
        %v10450 = vpop.f32.mrf.mxu0
        %10451 = vmatprep.mubr.f32.mxu0 0.0
        %10452 = vmatmul.mubr.f32.gmra.mxu0 %v10172
        %v10453 = vpop.f32.mrf.mxu0
        %v10454 = vadd.f32 %v10086, %v10453
        %v10455 = vpop.f32.mrf.mxu0
        %10456 = vmatprep.mubr.f32.mxu0 0.0
        %10457 = vmatmul.mubr.f32.gmra.mxu0 %v10175
        %v10458 = vpop.f32.mrf.mxu0
        %v10459 = vadd.f32 %v10087, %v10458
        %v10460 = vpop.f32.mrf.mxu0
        %10461 = vmatprep.mubr.f32.mxu0 0.0
        %10462 = vmatmul.mubr.f32.gmra.mxu0 %v10178
        %v10463 = vpop.f32.mrf.mxu0
        %v10464 = vadd.f32 %v10088, %v10463
        %v10465 = vpop.f32.mrf.mxu0
        %10466 = vmatprep.mubr.f32.mxu0 0.0
        %10467 = vmatmul.mubr.f32.gmra.mxu0 %v10181
        %v10468 = vpop.f32.mrf.mxu0
        %v10469 = vadd.f32 %v10089, %v10468
        %v10470 = vpop.f32.mrf.mxu0
        %10471 = vmatprep.mubr.f32.mxu0 0.0
        %10472 = vmatmul.mubr.f32.gmra.mxu0 %v10184
        %v10473 = vpop.f32.mrf.mxu0
        %v10474 = vadd.f32 %v10090, %v10473
        %v10475 = vpop.f32.mrf.mxu0
        %10476 = vmatprep.mubr.f32.mxu0 0.0
        %10477 = vmatmul.mubr.f32.gmra.mxu0 %v10187
        %v10478 = vpop.f32.mrf.mxu0
        %v10479 = vadd.f32 %v10091, %v10478
        %v10480 = vpop.f32.mrf.mxu0
        %10481 = vmatprep.mubr.f32.mxu0 0.0
        %10482 = vmatmul.mubr.f32.gmra.mxu0 %v10190
        %v10483 = vpop.f32.mrf.mxu0
        %v10484 = vadd.f32 %v10092, %v10483
        %v10485 = vpop.f32.mrf.mxu0
        %10486 = vmatprep.mubr.f32.mxu0 0.0
        %10487 = vmatmul.mubr.f32.gmra.mxu0 %v10193
        %v10488 = vpop.f32.mrf.mxu0
        %v10489 = vadd.f32 %v10093, %v10488
        %v10490 = vpop.f32.mrf.mxu0
        %10491 = vmatprep.mubr.f32.mxu0 0.0
        %10492 = vmatmul.mubr.f32.gmra.mxu0 %v10196
        %v10493 = vpop.f32.mrf.mxu0
        %v10494 = vadd.f32 %v10094, %v10493
        %v10495 = vpop.f32.mrf.mxu0
        %10496 = vmatprep.mubr.f32.mxu0 0.0
        %10497 = vmatmul.mubr.f32.gmra.mxu0 %v10199
        %v10498 = vpop.f32.mrf.mxu0
        %v10499 = vadd.f32 %v10095, %v10498
        %v10500 = vpop.f32.mrf.mxu0
        %10501 = vmatprep.mubr.f32.mxu0 0.0
        %10502 = vmatmul.mubr.f32.gmra.mxu0 %v10202
        %v10503 = vpop.f32.mrf.mxu0
        %v10504 = vadd.f32 %v10096, %v10503
        %v10505 = vpop.f32.mrf.mxu0
        %10506 = vmatprep.mubr.f32.mxu0 0.0
        %10507 = vmatmul.mubr.f32.gmra.mxu0 %v10205
        %v10508 = vpop.f32.mrf.mxu0
        %v10509 = vadd.f32 %v10097, %v10508
        %v10510 = vpop.f32.mrf.mxu0
        %10511 = vmatprep.mubr.f32.mxu0 0.0
        %10512 = vmatmul.mubr.f32.gmra.mxu0 %v10208
        %v10513 = vpop.f32.mrf.mxu0
        %v10514 = vadd.f32 %v10098, %v10513
        %v10515 = vpop.f32.mrf.mxu0
        %10516 = vmatprep.mubr.f32.mxu0 0.0
        %10517 = vmatmul.mubr.f32.gmra.mxu0 %v10211
        %v10518 = vpop.f32.mrf.mxu0
        %v10519 = vadd.f32 %v10099, %v10518
        %v10520 = vpop.f32.mrf.mxu0
        %10521 = vmatprep.mubr.f32.mxu0 0.0
        %10522 = vmatmul.mubr.f32.gmra.mxu0 %v10214
        %v10523 = vpop.f32.mrf.mxu0
        %v10524 = vadd.f32 %v10100, %v10523
        %v10525 = vpop.f32.mrf.mxu0
        %10526 = vmatprep.mubr.f32.mxu0 0.0
        %10527 = vmatmul.mubr.f32.gmra.mxu0 %v10217
        %v10528 = vpop.f32.mrf.mxu0
        %v10529 = vadd.f32 %v10101, %v10528
        %v10530 = vpop.f32.mrf.mxu0
        %10531 = vmatprep.mubr.f32.mxu0 0.0
        %10532 = vmatmul.mubr.f32.gmra.mxu0 %v10220
        %v10533 = vpop.f32.mrf.mxu0
        %v10534 = vadd.f32 %v10102, %v10533
        %v10535 = vpop.f32.mrf.mxu0
        %10536 = vmatprep.mubr.f32.mxu0 0.0
        %10537 = vmatmul.mubr.f32.gmra.mxu0 %v10223
        %v10538 = vpop.f32.mrf.mxu0
        %v10539 = vadd.f32 %v10103, %v10538
        %v10540 = vpop.f32.mrf.mxu0
        %10541 = vmatprep.mubr.f32.mxu0 0.0
        %10542 = vmatmul.mubr.f32.gmra.mxu0 %v10226
        %v10543 = vpop.f32.mrf.mxu0
        %v10544 = vadd.f32 %v10104, %v10543
        %v10545 = vpop.f32.mrf.mxu0
        %10546 = vmatprep.mubr.f32.mxu0 0.0
        %10547 = vmatmul.mubr.f32.gmra.mxu0 %v10229
        %v10548 = vpop.f32.mrf.mxu0
        %v10549 = vadd.f32 %v10105, %v10548
        %v10550 = vpop.f32.mrf.mxu0
        %10551 = vmatprep.mubr.f32.mxu0 0.0
        %10552 = vmatmul.mubr.f32.gmra.mxu0 %v10232
        %v10553 = vpop.f32.mrf.mxu0
        %v10554 = vadd.f32 %v10106, %v10553
        %v10555 = vpop.f32.mrf.mxu0
        %10556 = vmatprep.mubr.f32.mxu0 0.0
        %10557 = vmatmul.mubr.f32.gmra.mxu0 %v10235
        %v10558 = vpop.f32.mrf.mxu0
        %v10559 = vadd.f32 %v10107, %v10558
        %v10560 = vpop.f32.mrf.mxu0
        %10561 = vmatprep.mubr.f32.mxu0 0.0
        %10562 = vmatmul.mubr.f32.gmra.mxu0 %v10238
        %v10563 = vpop.f32.mrf.mxu0
        %v10564 = vadd.f32 %v10108, %v10563
        %v10565 = vpop.f32.mrf.mxu0
        %10566 = vmatprep.mubr.f32.mxu0 0.0
        %10567 = vmatmul.mubr.f32.gmra.mxu0 %v10241
        %v10568 = vpop.f32.mrf.mxu0
        %v10569 = vadd.f32 %v10109, %v10568
        %v10570 = vpop.f32.mrf.mxu0
        %10571 = vmatprep.mubr.f32.mxu0 0.0
        %10572 = vmatmul.mubr.f32.gmra.mxu0 %v10244
        %v10573 = vpop.f32.mrf.mxu0
        %v10574 = vadd.f32 %v10110, %v10573
        %v10575 = vpop.f32.mrf.mxu0
        %10576 = vmatprep.mubr.f32.mxu0 0.0
        %10577 = vmatmul.mubr.f32.gmra.mxu0 %v10247
        %v10578 = vpop.f32.mrf.mxu0
        %v10579 = vadd.f32 %v10111, %v10578
        %v10580 = vpop.f32.mrf.mxu0
        %10581 = vmatprep.mubr.f32.mxu0 0.0
        %10582 = vmatmul.mubr.f32.gmra.mxu0 %v10250
        %v10583 = vpop.f32.mrf.mxu0
        %v10584 = vadd.f32 %v10112, %v10583
        %v10585 = vpop.f32.mrf.mxu0
        %10586 = vmatprep.mubr.f32.mxu0 0.0
        %10587 = vmatmul.mubr.f32.gmra.mxu0 %v10253
        %v10588 = vpop.f32.mrf.mxu0
        %v10589 = vadd.f32 %v10113, %v10588
        %v10590 = vpop.f32.mrf.mxu0
        %10591 = vmatprep.mubr.f32.mxu0 0.0
        %10592 = vmatmul.mubr.f32.gmra.mxu0 %v10256
        %v10593 = vpop.f32.mrf.mxu0
        %v10594 = vadd.f32 %v10114, %v10593
        %v10595 = vpop.f32.mrf.mxu0
        %10596 = vmatprep.mubr.f32.mxu0 0.0
        %10597 = vmatmul.mubr.f32.gmra.mxu0 %v10259
        %v10598 = vpop.f32.mrf.mxu0
        %v10599 = vadd.f32 %v10115, %v10598
        %v10600 = vpop.f32.mrf.mxu0
        %10601 = vmatprep.mubr.f32.mxu0 0.0
        %10602 = vmatmul.mubr.f32.gmra.mxu0 %v10262
        %v10603 = vpop.f32.mrf.mxu0
        %v10604 = vadd.f32 %v10116, %v10603
        %v10605 = vpop.f32.mrf.mxu0
        %10606 = vmatprep.mubr.f32.mxu0 0.0
        %10607 = vmatmul.mubr.f32.gmra.mxu0 %v10265
        %v10608 = vpop.f32.mrf.mxu0
        %v10609 = vadd.f32 %v10117, %v10608
        %v10610 = vpop.f32.mrf.mxu0
        %10611 = vmatprep.mubr.f32.mxu0 0.0
        %10612 = vmatmul.mubr.f32.gmra.mxu0 %v10268
        %v10613 = vpop.f32.mrf.mxu0
        %v10614 = vadd.f32 %v10118, %v10613
        %v10615 = vpop.f32.mrf.mxu0
        %10616 = vmatprep.mubr.f32.mxu0 0.0
        %10617 = vmatmul.mubr.f32.gmra.mxu0 %v10271
        %v10618 = vpop.f32.mrf.mxu0
        %v10619 = vadd.f32 %v10119, %v10618
        %v10620 = vpop.f32.mrf.mxu0
        %10621 = vmatprep.mubr.f32.mxu0 0.0
        %10622 = vmatmul.mubr.f32.gmra.mxu0 %v10274
        %v10623 = vpop.f32.mrf.mxu0
        %v10624 = vadd.f32 %v10120, %v10623
        %v10625 = vpop.f32.mrf.mxu0
        %10626 = vmatprep.mubr.f32.mxu0 0.0
        %10627 = vmatmul.mubr.f32.gmra.mxu0 %v10277
        %v10628 = vpop.f32.mrf.mxu0
        %v10629 = vadd.f32 %v10121, %v10628
        %v10630 = vpop.f32.mrf.mxu0
        %10631 = vmatprep.mubr.f32.mxu0 0.0
        %10632 = vmatmul.mubr.f32.gmra.mxu0 %v10280
        %v10633 = vpop.f32.mrf.mxu0
        %v10634 = vadd.f32 %v10122, %v10633
        %v10635 = vpop.f32.mrf.mxu0
        %10636 = vmatprep.mubr.f32.mxu0 0.0
        %10637 = vmatmul.mubr.f32.gmra.mxu0 %v10283
        %v10638 = vpop.f32.mrf.mxu0
        %v10639 = vadd.f32 %v10123, %v10638
        %v10640 = vpop.f32.mrf.mxu0
        %10641 = vmatprep.mubr.f32.mxu0 0.0
        %10642 = vmatmul.mubr.f32.gmra.mxu0 %v10286
        %v10643 = vpop.f32.mrf.mxu0
        %v10644 = vadd.f32 %v10124, %v10643
        %v10645 = vpop.f32.mrf.mxu0
        %10646 = vmatprep.mubr.f32.mxu0 0.0
        %10647 = vmatmul.mubr.f32.gmra.mxu0 %v10289
        %v10648 = vpop.f32.mrf.mxu0
        %v10649 = vadd.f32 %v10125, %v10648
        %v10650 = vpop.f32.mrf.mxu0
        %10651 = vmatprep.mubr.f32.mxu0 0.0
        %10652 = vmatmul.mubr.f32.gmra.mxu0 %v10292
        %v10653 = vpop.f32.mrf.mxu0
        %v10654 = vadd.f32 %v10126, %v10653
        %v10655 = vpop.f32.mrf.mxu0
        %10656 = vmatprep.mubr.f32.mxu0 0.0
        %10657 = vmatmul.mubr.f32.gmra.mxu0 %v10295
        %v10658 = vpop.f32.mrf.mxu0
        %v10659 = vadd.f32 %v10127, %v10658
        %v10660 = vpop.f32.mrf.mxu0
        %10661 = vmatprep.mubr.f32.mxu0 0.0
        %10662 = vmatmul.mubr.f32.gmra.mxu0 %v10298
        %v10663 = vpop.f32.mrf.mxu0
        %v10664 = vadd.f32 %v10128, %v10663
        %v10665 = vpop.f32.mrf.mxu0
        %10666 = vmatprep.mubr.f32.mxu0 0.0
        %10667 = vmatmul.mubr.f32.gmra.mxu0 %v10301
        %v10668 = vpop.f32.mrf.mxu0
        %v10669 = vadd.f32 %v10129, %v10668
        %v10670 = vpop.f32.mrf.mxu0
        %10671 = vmatprep.mubr.f32.mxu0 0.0
        %10672 = vmatmul.mubr.f32.gmra.mxu0 %v10304
        %v10673 = vpop.f32.mrf.mxu0
        %v10674 = vadd.f32 %v10130, %v10673
        %v10675 = vpop.f32.mrf.mxu0
        %10676 = vmatprep.mubr.f32.mxu0 0.0
        %10677 = vmatmul.mubr.f32.gmra.mxu0 %v10307
        %v10678 = vpop.f32.mrf.mxu0
        %v10679 = vadd.f32 %v10131, %v10678
        %v10680 = vpop.f32.mrf.mxu0
        %10681 = vmatprep.mubr.f32.mxu0 0.0
        %10682 = vmatmul.mubr.f32.gmra.mxu0 %v10310
        %v10683 = vpop.f32.mrf.mxu0
        %v10684 = vadd.f32 %v10132, %v10683
        %v10685 = vpop.f32.mrf.mxu0
        %10686 = vmatprep.mubr.f32.mxu0 0.0
        %10687 = vmatmul.mubr.f32.gmra.mxu0 %v10313
        %v10688 = vpop.f32.mrf.mxu0
        %v10689 = vadd.f32 %v10133, %v10688
        %v10690 = vpop.f32.mrf.mxu0
        %10691 = vmatprep.mubr.f32.mxu0 0.0
        %10692 = vmatmul.mubr.f32.gmra.mxu0 %v10316
        %v10693 = vpop.f32.mrf.mxu0
        %v10694 = vadd.f32 %v10134, %v10693
        %v10695 = vpop.f32.mrf.mxu0
        %10696 = vmatprep.mubr.f32.mxu0 0.0
        %10697 = vmatmul.mubr.f32.gmra.mxu0 %v10319
        %v10698 = vpop.f32.mrf.mxu0
        %v10699 = vadd.f32 %v10135, %v10698
        %v10700 = vpop.f32.mrf.mxu0
        %10701 = vmatprep.mubr.f32.mxu0 0.0
        %10702 = vmatmul.mubr.f32.gmra.mxu0 %v10322
        %v10703 = vpop.f32.mrf.mxu0
        %v10704 = vadd.f32 %v10136, %v10703
        %v10705 = vpop.f32.mrf.mxu0
        %10706 = vmatprep.mubr.f32.mxu0 0.0
        %10707 = vmatmul.mubr.f32.gmra.mxu0 %v10325
        %v10708 = vpop.f32.mrf.mxu0
        %v10709 = vadd.f32 %v10137, %v10708
        %v10710 = vpop.f32.mrf.mxu0
        %10711 = vmatprep.mubr.f32.mxu0 0.0
        %10712 = vmatmul.mubr.f32.gmra.mxu0 %v10328
        %v10713 = vpop.f32.mrf.mxu0
        %v10714 = vadd.f32 %v10138, %v10713
        %v10715 = vpop.f32.mrf.mxu0
        %10716 = vmatprep.mubr.f32.mxu0 0.0
        %10717 = vmatmul.mubr.f32.gmra.mxu0 %v10331
        %v10718 = vpop.f32.mrf.mxu0
        %v10719 = vadd.f32 %v10139, %v10718
        %v10720 = vpop.f32.mrf.mxu0
        %10721 = vdwg.mxu0
        %v10722 = vld [vmem:[#allocation3] sm:$0x1]
        %v10723 = vadd.f32 %v10404, %v10409
        %v10724 = vadd.f32 %v10723, %v10414
        %v10725 = vadd.f32 %v10724, %v10419
        %v10726 = vadd.f32 %v10725, %v10424
        %v10727 = vadd.f32 %v10726, %v10429
        %v10728 = vadd.f32 %v10727, %v10434
        %v10729 = vadd.f32 %v10728, %v10439
        %v10730 = vadd.f32 %v10729, %v10444
        %v10731 = vadd.f32 %v10730, %v10449
        %v10732 = vadd.f32 %v10731, %v10454
        %v10733 = vadd.f32 %v10732, %v10459
        %v10734 = vadd.f32 %v10733, %v10464
        %v10735 = vadd.f32 %v10734, %v10469
        %v10736 = vadd.f32 %v10735, %v10474
        %v10737 = vadd.f32 %v10736, %v10479
        %v10738 = vadd.f32 %v10737, %v10484
        %v10739 = vadd.f32 %v10738, %v10489
        %v10740 = vadd.f32 %v10739, %v10494
        %v10741 = vadd.f32 %v10740, %v10499
        %v10742 = vadd.f32 %v10741, %v10504
        %v10743 = vadd.f32 %v10742, %v10509
        %v10744 = vadd.f32 %v10743, %v10514
        %v10745 = vadd.f32 %v10744, %v10519
        %v10746 = vadd.f32 %v10745, %v10524
        %v10747 = vadd.f32 %v10746, %v10529
        %v10748 = vadd.f32 %v10747, %v10534
        %v10749 = vadd.f32 %v10748, %v10539
        %v10750 = vadd.f32 %v10749, %v10544
        %v10751 = vadd.f32 %v10750, %v10549
        %v10752 = vadd.f32 %v10751, %v10554
        %v10753 = vadd.f32 %v10752, %v10559
        %v10754 = vadd.f32 %v10753, %v10564
        %v10755 = vadd.f32 %v10754, %v10569
        %v10756 = vadd.f32 %v10755, %v10574
        %v10757 = vadd.f32 %v10756, %v10579
        %v10758 = vadd.f32 %v10757, %v10584
        %v10759 = vadd.f32 %v10758, %v10589
        %v10760 = vadd.f32 %v10759, %v10594
        %v10761 = vadd.f32 %v10760, %v10599
        %v10762 = vadd.f32 %v10761, %v10604
        %v10763 = vadd.f32 %v10762, %v10609
        %v10764 = vadd.f32 %v10763, %v10614
        %v10765 = vadd.f32 %v10764, %v10619
        %v10766 = vadd.f32 %v10765, %v10624
        %v10767 = vadd.f32 %v10766, %v10629
        %v10768 = vadd.f32 %v10767, %v10634
        %v10769 = vadd.f32 %v10768, %v10639
        %v10770 = vadd.f32 %v10769, %v10644
        %v10771 = vadd.f32 %v10770, %v10649
        %v10772 = vadd.f32 %v10771, %v10654
        %v10773 = vadd.f32 %v10772, %v10659
        %v10774 = vadd.f32 %v10773, %v10664
        %v10775 = vadd.f32 %v10774, %v10669
        %v10776 = vadd.f32 %v10775, %v10674
        %v10777 = vadd.f32 %v10776, %v10679
        %v10778 = vadd.f32 %v10777, %v10684
        %v10779 = vadd.f32 %v10778, %v10689
        %v10780 = vadd.f32 %v10779, %v10694
        %v10781 = vadd.f32 %v10780, %v10699
        %v10782 = vadd.f32 %v10781, %v10704
        %v10783 = vadd.f32 %v10782, %v10709
        %v10784 = vadd.f32 %v10783, %v10714
        %v10785 = vadd.f32 %v10784, %v10719
        %v10786 = vrot.slane %v10785, 4
        %v10787 = vadd.f32 %v10785, %v10786
        %v10788 = vrot.slane %v10787, 2
        %v10789 = vadd.f32 %v10787, %v10788
        %v10790 = vrot.slane %v10789, 1
        %v10791 = vadd.f32 %v10789, %v10790
        %v10792 = vadd.f32 %v10722, %v10791
        %10793 = vst [vmem:[#allocation3] sm:$0x1] %v10792
        %v10794 = vld [vmem:[#allocation5] sm:$0x1]
        %v10795 = vmul.f32 %v10404, %v10404
        %v10796 = vmul.f32 %v10409, %v10409
        %v10797 = vmul.f32 %v10414, %v10414
        %v10798 = vmul.f32 %v10419, %v10419
        %v10799 = vmul.f32 %v10424, %v10424
        %v10800 = vmul.f32 %v10429, %v10429
        %v10801 = vmul.f32 %v10434, %v10434
        %v10802 = vmul.f32 %v10439, %v10439
        %v10803 = vmul.f32 %v10444, %v10444
        %v10804 = vmul.f32 %v10449, %v10449
        %v10805 = vmul.f32 %v10454, %v10454
        %v10806 = vmul.f32 %v10459, %v10459
        %v10807 = vmul.f32 %v10464, %v10464
        %v10808 = vmul.f32 %v10469, %v10469
        %v10809 = vmul.f32 %v10474, %v10474
        %v10810 = vmul.f32 %v10479, %v10479
        %v10811 = vmul.f32 %v10484, %v10484
        %v10812 = vmul.f32 %v10489, %v10489
        %v10813 = vmul.f32 %v10494, %v10494
        %v10814 = vmul.f32 %v10499, %v10499
        %v10815 = vmul.f32 %v10504, %v10504
        %v10816 = vmul.f32 %v10509, %v10509
        %v10817 = vmul.f32 %v10514, %v10514
        %v10818 = vmul.f32 %v10519, %v10519
        %v10819 = vmul.f32 %v10524, %v10524
        %v10820 = vmul.f32 %v10529, %v10529
        %v10821 = vmul.f32 %v10534, %v10534
        %v10822 = vmul.f32 %v10539, %v10539
        %v10823 = vmul.f32 %v10544, %v10544
        %v10824 = vmul.f32 %v10549, %v10549
        %v10825 = vmul.f32 %v10554, %v10554
        %v10826 = vmul.f32 %v10559, %v10559
        %v10827 = vmul.f32 %v10564, %v10564
        %v10828 = vmul.f32 %v10569, %v10569
        %v10829 = vmul.f32 %v10574, %v10574
        %v10830 = vmul.f32 %v10579, %v10579
        %v10831 = vmul.f32 %v10584, %v10584
        %v10832 = vmul.f32 %v10589, %v10589
        %v10833 = vmul.f32 %v10594, %v10594
        %v10834 = vmul.f32 %v10599, %v10599
        %v10835 = vmul.f32 %v10604, %v10604
        %v10836 = vmul.f32 %v10609, %v10609
        %v10837 = vmul.f32 %v10614, %v10614
        %v10838 = vmul.f32 %v10619, %v10619
        %v10839 = vmul.f32 %v10624, %v10624
        %v10840 = vmul.f32 %v10629, %v10629
        %v10841 = vmul.f32 %v10634, %v10634
        %v10842 = vmul.f32 %v10639, %v10639
        %v10843 = vmul.f32 %v10644, %v10644
        %v10844 = vmul.f32 %v10649, %v10649
        %v10845 = vmul.f32 %v10654, %v10654
        %v10846 = vmul.f32 %v10659, %v10659
        %v10847 = vmul.f32 %v10664, %v10664
        %v10848 = vmul.f32 %v10669, %v10669
        %v10849 = vmul.f32 %v10674, %v10674
        %v10850 = vmul.f32 %v10679, %v10679
        %v10851 = vmul.f32 %v10684, %v10684
        %v10852 = vmul.f32 %v10689, %v10689
        %v10853 = vmul.f32 %v10694, %v10694
        %v10854 = vmul.f32 %v10699, %v10699
        %v10855 = vmul.f32 %v10704, %v10704
        %v10856 = vmul.f32 %v10709, %v10709
        %v10857 = vmul.f32 %v10714, %v10714
        %v10858 = vmul.f32 %v10719, %v10719
        %v10859 = vadd.f32 %v10795, %v10796
        %v10860 = vadd.f32 %v10859, %v10797
        %v10861 = vadd.f32 %v10860, %v10798
        %v10862 = vadd.f32 %v10861, %v10799
        %v10863 = vadd.f32 %v10862, %v10800
        %v10864 = vadd.f32 %v10863, %v10801
        %v10865 = vadd.f32 %v10864, %v10802
        %v10866 = vadd.f32 %v10865, %v10803
        %v10867 = vadd.f32 %v10866, %v10804
        %v10868 = vadd.f32 %v10867, %v10805
        %v10869 = vadd.f32 %v10868, %v10806
        %v10870 = vadd.f32 %v10869, %v10807
        %v10871 = vadd.f32 %v10870, %v10808
        %v10872 = vadd.f32 %v10871, %v10809
        %v10873 = vadd.f32 %v10872, %v10810
        %v10874 = vadd.f32 %v10873, %v10811
        %v10875 = vadd.f32 %v10874, %v10812
        %v10876 = vadd.f32 %v10875, %v10813
        %v10877 = vadd.f32 %v10876, %v10814
        %v10878 = vadd.f32 %v10877, %v10815
        %v10879 = vadd.f32 %v10878, %v10816
        %v10880 = vadd.f32 %v10879, %v10817
        %v10881 = vadd.f32 %v10880, %v10818
        %v10882 = vadd.f32 %v10881, %v10819
        %v10883 = vadd.f32 %v10882, %v10820
        %v10884 = vadd.f32 %v10883, %v10821
        %v10885 = vadd.f32 %v10884, %v10822
        %v10886 = vadd.f32 %v10885, %v10823
        %v10887 = vadd.f32 %v10886, %v10824
        %v10888 = vadd.f32 %v10887, %v10825
        %v10889 = vadd.f32 %v10888, %v10826
        %v10890 = vadd.f32 %v10889, %v10827
        %v10891 = vadd.f32 %v10890, %v10828
        %v10892 = vadd.f32 %v10891, %v10829
        %v10893 = vadd.f32 %v10892, %v10830
        %v10894 = vadd.f32 %v10893, %v10831
        %v10895 = vadd.f32 %v10894, %v10832
        %v10896 = vadd.f32 %v10895, %v10833
        %v10897 = vadd.f32 %v10896, %v10834
        %v10898 = vadd.f32 %v10897, %v10835
        %v10899 = vadd.f32 %v10898, %v10836
        %v10900 = vadd.f32 %v10899, %v10837
        %v10901 = vadd.f32 %v10900, %v10838
        %v10902 = vadd.f32 %v10901, %v10839
        %v10903 = vadd.f32 %v10902, %v10840
        %v10904 = vadd.f32 %v10903, %v10841
        %v10905 = vadd.f32 %v10904, %v10842
        %v10906 = vadd.f32 %v10905, %v10843
        %v10907 = vadd.f32 %v10906, %v10844
        %v10908 = vadd.f32 %v10907, %v10845
        %v10909 = vadd.f32 %v10908, %v10846
        %v10910 = vadd.f32 %v10909, %v10847
        %v10911 = vadd.f32 %v10910, %v10848
        %v10912 = vadd.f32 %v10911, %v10849
        %v10913 = vadd.f32 %v10912, %v10850
        %v10914 = vadd.f32 %v10913, %v10851
        %v10915 = vadd.f32 %v10914, %v10852
        %v10916 = vadd.f32 %v10915, %v10853
        %v10917 = vadd.f32 %v10916, %v10854
        %v10918 = vadd.f32 %v10917, %v10855
        %v10919 = vadd.f32 %v10918, %v10856
        %v10920 = vadd.f32 %v10919, %v10857
        %v10921 = vadd.f32 %v10920, %v10858
        %v10922 = vrot.slane %v10921, 4
        %v10923 = vadd.f32 %v10921, %v10922
        %v10924 = vrot.slane %v10923, 2
        %v10925 = vadd.f32 %v10923, %v10924
        %v10926 = vrot.slane %v10925, 1
        %v10927 = vadd.f32 %v10925, %v10926
        %v10928 = vadd.f32 %v10794, %v10927
        %10929 = vst [vmem:[#allocation5] sm:$0x1] %v10928
        %p10930 = scmp.eq.s32.totalorder %s19, 1
        // Predicated region
        $region37: #{tpu_custom_call.1} parent=31 // pred_check
          %p10931 = pneg %p10930
        $region38: #{tpu_custom_call.1} parent=31 // pred_check_branch
          %10933 = sbr.rel (%p10931) target = $region40
        $region39: #{tpu_custom_call.1} parent=31 // pred_region
          %v10934 = vld [vmem:[#allocation3] sm:$0x1]
          %v10935 = vmul.f32 %v10934, 0.0009765625
          %v10936 = vld [vmem:[#allocation5] sm:$0x1]
          %v10937 = vmul.f32 %v10936, 0.0009765625
          %v10938 = vmul.f32 %v10935, %v10935
          %v10939 = vsub.f32 %v10937, %v10938
          %v10940 = vmax.f32 %v10939, 0.0
          %10941 = vst [vmem:[#allocation3] sm:$0x1] %v10935
          %vm10942 = vcmp.gt.f32.partialorder %v10940, 0.0
          %v10943 = vrsqrt.pop %v10940
          %v10944 = vsel %vm10942, %v10943, 1.0
          %10945 = vst [vmem:[#allocation5] sm:$0x1] %v10944
        $region40: #{tpu_custom_call.1} parent=31 // pred_fallthru
          _
        // Predicated region
        $region41: #{tpu_custom_call.1} parent=31 // pred_check
          %p10946 = pneg %p100
        $region42: #{tpu_custom_call.1} parent=31 // pred_check_branch
          %10948 = sbr.rel (%p10946) target = $region44
        $region43: #{tpu_custom_call.1} parent=31 // pred_region
          %s10950 = ssub.s32 16, 16
          %10951 = vsyncadd [#allocation4], %s10950
          %s10953 = sshll.u32 [#allocation3], 4
          %s10954 = int_to_ptr.vmem [resolvable:$true] %s10953
          %10956 = dma.vmem_to_hbm [thread:$0]  %s10954, 16, %s3, [#allocation4]
        $region44: #{tpu_custom_call.1} parent=31 // pred_fallthru
          _
        // Predicated region
        $region45: #{tpu_custom_call.1} parent=31 // pred_check
          %p10957 = pneg %p121
        $region46: #{tpu_custom_call.1} parent=31 // pred_check_branch
          %10959 = sbr.rel (%p10957) target = $region48
        $region47: #{tpu_custom_call.1} parent=31 // pred_region
          %s10961 = ssub.s32 16, 16
          %10962 = vsyncadd [#allocation6], %s10961
          %s10964 = sshll.u32 [#allocation5], 4
          %s10965 = int_to_ptr.vmem [resolvable:$true] %s10964
          %10967 = dma.vmem_to_hbm [thread:$0]  %s10965, 16, %s4, [#allocation6]
        $region48: #{tpu_custom_call.1} parent=31 // pred_fallthru
          _
        // Predicated region
        $region49: #{tpu_custom_call.1} parent=31 // pred_check
          %p10968 = pneg %p100
        $region50: #{tpu_custom_call.1} parent=31 // pred_check_branch
          %10970 = sbr.rel (%p10968) target = $region52
        $region51: #{tpu_custom_call.1} parent=31 // pred_region
          %10971 = dma.done [#allocation4], 16
        $region52: #{tpu_custom_call.1} parent=31 // pred_fallthru
          _
        // Predicated region
        $region53: #{tpu_custom_call.1} parent=31 // pred_check
          %p10972 = pneg %p121
        $region54: #{tpu_custom_call.1} parent=31 // pred_check_branch
          %10974 = sbr.rel (%p10972) target = $region56
        $region55: #{tpu_custom_call.1} parent=31 // pred_region
          %10975 = dma.done [#allocation6], 16
        $region56: #{tpu_custom_call.1} parent=31 // pred_fallthru
          _
      $region32: #{tpu_custom_call.1} parent=5 // pred_fallthru
        _
      %p10976 = scmp.le.s32.totalorder 2, %s14
      // Predicated region
      $region57: #{tpu_custom_call.1} parent=5 // pred_check
        %p10977 = pneg %p10976
      $region58: #{tpu_custom_call.1} parent=5 // pred_check_branch
        %10979 = sbr.rel (%p10977) target = $region60
      $region59: #{tpu_custom_call.1} parent=5 // pred_region
        %s10980 = ssub.s32 %s14, 2
      $region60: #{tpu_custom_call.1} parent=5 // pred_fallthru
        _
    $region6: #{tpu_custom_call.1} parent=1 // loop_footer
      %s18 = sadd.s32 1, %s14
    $region7: #{tpu_custom_call.1} parent=1 // loop_footer_branch
      %13 = sbr.rel target = $region3
    $region8: #{tpu_custom_call.1} parent=1 // loop_exit
      _
    %10981 = vsyncpa [#allocation4], 1
    %s10982 = scalar_lea.sflag [#allocation4], 1
    %10983 = vsyncpa %s10982, 1
    %10984 = vsyncpa [#allocation6], 1

</llo_original>
